<compile_context>
chip_gen: v5e
topology: v5e:2x2
jax: 0.10.0
libtpu: 0.0.40
codegen_flags: <defaults>
</compile_context>

<pallas_src>
import functools

import jax
import jax.numpy as jnp
from jax import lax
from jax.experimental import pallas as pl
from jax.experimental.pallas import tpu as pltpu

H_TRUE = 30     # PyTorch hidden size
HP = 32         # sublane-aligned padded hidden size
F_IN = 4        # input feature size
K_TOT = 4 * HP  # 128 contraction dim: [h1 | h2 | hg | x(4), 1, pad]
M_TOT = 14 * HP # 448 fused gate rows: [LSTM1(4) | LSTM2(4) | GRU-gh(3) | GRU-gi(3)]


# ----------------------------------------------------------------------------- kernel
def lstm_gru_kernel(x_ref,      # (T+1, HP, BT) f32; rows 0:4 = features, row 4 = 1.0 (bias), rest 0
                    wbig_ref,   # (14*HP, 4*HP) bf16 fused block-diagonal weights (+ bias column)
                    wl2_ref,    # (HP, 1) f32  linear column for LSTM-2 features
                    wlg_ref,    # (HP, 1) f32  linear column for GRU features
                    blin_ref,   # (1, 1)  f32
                    out_ref,    # (1, BT) f32
                    *, task_updown):
    Tp1, _, Bt = x_ref.shape
    T = Tp1 - 1
    H = HP

    def lstm_update(g, c):
        # g: (4H, Bt) pre-activations, gate rows packed (i, f, o, g)
        s = jax.nn.sigmoid(g[0:3 * H, :])       # one EUP push for i|f|o
        gg = jnp.tanh(g[3 * H:4 * H, :])        # one EUP push for g
        i, f, o = s[0:H, :], s[H:2 * H, :], s[2 * H:3 * H, :]
        c_new = f * c + i * gg
        h_new = o * jnp.tanh(c_new)
        return h_new, c_new

    zeros = jnp.zeros((H, Bt), jnp.float32)
    h1, c1, h2, c2, hg = zeros, zeros, zeros, zeros, zeros

    # T is small & static -> full trace-time unroll.  Layer-2 is skewed one step:
    # iteration s consumes the carried h1 (= h1_{s-1}) for layer-2 step s-1 via the
    # fused matmul, then overwrites h1 with layer-1 step s -> ONE MXU push per step.
    # The extra step s == T carries only the bias row and drives the layer-2 epilogue.
    # TODO(synk): for long sequences switch to lax.fori_loop over T chunks with a
    #             VMEM scratch (v7x has only 64 MiB physical VMEM).
    for s in range(T + 1):
        S = jnp.concatenate([h1, h2, hg, x_ref[s]], axis=0).astype(jnp.bfloat16)  # (128, Bt)
        G = jnp.dot(wbig_ref[...], S, preferred_element_type=jnp.float32)          # (448, Bt)

        if s >= 1:                                    # ---- LSTM layer 2, step s-1 ----
            h2, c2 = lstm_update(G[4 * H:8 * H, :], c2)

        if s < T:                                     # ---- LSTM layer 1 + GRU, step s ----
            h1, c1 = lstm_update(G[0:4 * H, :], c1)
            # drop_1 on the layer-1 sequence is identity in eval mode.

            gh = G[8 * H:11 * H, :]                   # GRU recurrent part (incl. b_hh)
            gi = G[11 * H:14 * H, :]                  # GRU input part (incl. b_ih)
            rz = jax.nn.sigmoid(gi[0:2 * H, :] + gh[0:2 * H, :])   # one push for r|z
            r, z = rz[0:H, :], rz[H:2 * H, :]
            n = jnp.tanh(gi[2 * H:3 * H, :] + r * gh[2 * H:3 * H, :])
            hg = (1.0 - z) * n + z * hg

    # ---- Linear(60 -> 1): N=1 head as VPU mul + sublane (XLU) reduce, not MXU ----
    feat = h2 * wl2_ref[...] + hg * wlg_ref[...]                   # (H, Bt)
    out = jnp.sum(feat, axis=0, keepdims=True) + blin_ref[...]     # (1, Bt) lane-dense

    if task_updown:
        out = jax.nn.sigmoid(out)
    else:
        # ELU(alpha=1). Clamp before exp so large positives never hit the EUP.
        out = jnp.where(out > 0.0, out, jnp.exp(jnp.minimum(out, 0.0)) - 1.0)

    out_ref[...] = out.astype(out_ref.dtype)


# ----------------------------------------------------------------------------- params
def init_params(key, input_dim=F_IN, hidden=H_TRUE, output_dim=1):
    """PyTorch-native shapes/init: U(-1/sqrt(H), 1/sqrt(H)); LSTM gate order i,f,g,o; GRU r,z,n."""
    k = 1.0 / (hidden ** 0.5)
    keys = jax.random.split(key, 14)

    def u(kk, shape, scale=k):
        return jax.random.uniform(kk, shape, jnp.float32, minval=-scale, maxval=scale)

    p = {}
    p["wih1"] = u(keys[0], (4 * hidden, input_dim))
    p["whh1"] = u(keys[1], (4 * hidden, hidden))
    p["bih1"] = u(keys[2], (4 * hidden,))
    p["bhh1"] = u(keys[3], (4 * hidden,))
    p["wih2"] = u(keys[4], (4 * hidden, hidden))
    p["whh2"] = u(keys[5], (4 * hidden, hidden))
    p["bih2"] = u(keys[6], (4 * hidden,))
    p["bhh2"] = u(keys[7], (4 * hidden,))
    # GRU forward direction only (h_n[1] / gru_out are unused by the PyTorch forward).
    p["wihg"] = u(keys[8], (3 * hidden, input_dim))
    p["whhg"] = u(keys[9], (3 * hidden, hidden))
    p["bihg"] = u(keys[10], (3 * hidden,))
    p["bhhg"] = u(keys[11], (3 * hidden,))
    kl = 1.0 / ((2 * hidden) ** 0.5)
    p["wlin"] = u(keys[12], (output_dim, 2 * hidden), kl)
    p["blin"] = u(keys[13], (output_dim,), kl)
    return p


def prepare_params(p):
    """Pad gates 30->32, reorder LSTM gates to (i,f,o,g), fuse everything into one
    block-diagonal bf16 weight for the single per-step MXU push."""
    H, Hp, F = H_TRUE, HP, F_IN
    LSTM_ORDER = (0, 1, 3, 2)   # PyTorch i,f,g,o -> kernel i,f,o,g

    def pack_rows(w, n_gates, order):
        # (n_gates*H, K) -> (n_gates*Hp, K); pad each gate block's rows 30->32.
        K = w.shape[-1]
        w = w.reshape(n_gates, H, K)
        if order is not None:
            w = w[jnp.array(order)]
        w = jnp.pad(w, ((0, 0), (0, Hp - H), (0, 0)))
        return w.reshape(n_gates * Hp, K)

    def pack_bias(b, n_gates, order):
        return pack_rows(b.reshape(-1, 1), n_gates, order)        # (n_gates*Hp, 1)

    def pad_hidden_cols(w):
        return jnp.pad(w, ((0, 0), (0, Hp - w.shape[1])))

    wih1 = pack_rows(p["wih1"], 4, LSTM_ORDER)                    # (4Hp, 4)
    whh1 = pad_hidden_cols(pack_rows(p["whh1"], 4, LSTM_ORDER))   # (4Hp, Hp)
    b1 = pack_bias(p["bih1"] + p["bhh1"], 4, LSTM_ORDER)
    wih2 = pad_hidden_cols(pack_rows(p["wih2"], 4, LSTM_ORDER))
    whh2 = pad_hidden_cols(pack_rows(p["whh2"], 4, LSTM_ORDER))
    b2 = pack_bias(p["bih2"] + p["bhh2"], 4, LSTM_ORDER)
    wihg = pack_rows(p["wihg"], 3, None)                          # (3Hp, 4)
    whhg = pad_hidden_cols(pack_rows(p["whhg"], 3, None))         # (3Hp, Hp)
    bihg = pack_bias(p["bihg"], 3, None)
    bhhg = pack_bias(p["bhhg"], 3, None)

    C_H1, C_H2, C_HG, C_X, C_ONE = 0, Hp, 2 * Hp, 3 * Hp, 3 * Hp + F
    w_big = jnp.zeros((M_TOT, K_TOT), jnp.float32)
    # LSTM1 gate rows: whh1 @ h1 + wih1 @ x + (b_ih + b_hh)
    w_big = w_big.at[0:4 * Hp, C_H1:C_H1 + Hp].set(whh1)
    w_big = w_big.at[0:4 * Hp, C_X:C_X + F].set(wih1)
    w_big = w_big.at[0:4 * Hp, C_ONE:C_ONE + 1].set(b1)
    # LSTM2 gate rows: wih2 @ h1 + whh2 @ h2 + (b_ih + b_hh)
    w_big = w_big.at[4 * Hp:8 * Hp, C_H1:C_H1 + Hp].set(wih2)
    w_big = w_big.at[4 * Hp:8 * Hp, C_H2:C_H2 + Hp].set(whh2)
    w_big = w_big.at[4 * Hp:8 * Hp, C_ONE:C_ONE + 1].set(b2)
    # GRU recurrent (gh) rows: whhg @ hg + b_hh
    w_big = w_big.at[8 * Hp:11 * Hp, C_HG:C_HG + Hp].set(whhg)
    w_big = w_big.at[8 * Hp:11 * Hp, C_ONE:C_ONE + 1].set(bhhg)
    # GRU input (gi) rows: wihg @ x + b_ih
    w_big = w_big.at[11 * Hp:14 * Hp, C_X:C_X + F].set(wihg)
    w_big = w_big.at[11 * Hp:14 * Hp, C_ONE:C_ONE + 1].set(bihg)

    wl = p["wlin"]                                                # (1, 2H)
    wl_lstm = jnp.pad(wl[:, 0:H].T, ((0, Hp - H), (0, 0)))        # (Hp, 1)
    wl_gru = jnp.pad(wl[:, H:2 * H].T, ((0, Hp - H), (0, 0)))     # (Hp, 1)

    return {
        # NOTE: bf16 weights/biases feed the recurrent MXU matmuls; with T=8 the
        # drift stays well inside the 5e-2 tolerance (checked against f32 reference).
        "w_big": w_big.astype(jnp.bfloat16),
        "wl_lstm": wl_lstm.astype(jnp.float32),
        "wl_gru": wl_gru.astype(jnp.float32),
        "blin": p["blin"].reshape(1, 1).astype(jnp.float32),
    }


# ----------------------------------------------------------------------------- wrapper
def lstm_gru_forward(x, kparams, task="updown"):
    """x: (B, T, 4) batch-first f32. Returns (B, 1)."""
    B, T, F = x.shape
    assert F == F_IN

    # Batch tile on lanes. BT=128 keeps vreg pressure minimal and gives nb>=2 for
    # B>128 so the "parallel" grid axis can occupy both TensorCores on v7x; very
    # large batches use 256 to amortize per-grid-step overhead.
    BT = 128 if B <= 512 else 256
    Bp = ((B + BT - 1) // BT) * BT
    nb = Bp // BT

    # Lane-dense input slab (T+1, HP, Bp): features on sublanes 0:4, constant-1
    # bias row at sublane 4, zeros elsewhere; extra step T is bias-only and drives
    # the skewed layer-2 epilogue iteration.
    xt = jnp.transpose(x, (1, 2, 0)).astype(jnp.float32)                       # (T, F, B)
    xt = jnp.concatenate([xt, jnp.zeros((1, F, B), jnp.float32)], axis=0)      # (T+1, F, B)
    ones = jnp.ones((T + 1, 1, B), jnp.float32)
    rest = jnp.zeros((T + 1, HP - F - 1, B), jnp.float32)
    x_aug = jnp.concatenate([xt, ones, rest], axis=1)                          # (T+1, HP, B)
    if Bp != B:
        x_aug = jnp.pad(x_aug, ((0, 0), (0, 0), (0, Bp - B)))

    kernel = functools.partial(lstm_gru_kernel, task_updown=(task == "updown"))

    def full_block(a):
        return pl.BlockSpec(a.shape, lambda b: (0,) * a.ndim)

    out = pl.pallas_call(
        kernel,
        out_shape=jax.ShapeDtypeStruct((1, Bp), jnp.float32),
        grid=(nb,),
        in_specs=[pl.BlockSpec((T + 1, HP, BT), lambda b: (0, 0, b)),
                  full_block(kparams["w_big"]),
                  full_block(kparams["wl_lstm"]),
                  full_block(kparams["wl_gru"]),
                  full_block(kparams["blin"])],
        out_specs=pl.BlockSpec((1, BT), lambda b: (0, b)),          # lane-dense output
        compiler_params=pltpu.CompilerParams(
            dimension_semantics=("parallel",)),
    )(x_aug, kparams["w_big"], kparams["wl_lstm"], kparams["wl_gru"], kparams["blin"])

    return out[0, :B].reshape(B, 1)


# ----------------------------------------------------------------------------- reference
def _reference_forward(x, p, task):
    """Pure-JAX f32 reference of the PyTorch forward (eval mode), unpadded."""
    B, T, F = x.shape
    H = H_TRUE
    xs = jnp.transpose(x, (1, 0, 2))                     # (T, B, F)

    def lstm_seq(seq, wih, whh, bih, bhh):
        def step(carry, x_t):
            h, c = carry
            g = x_t @ wih.T + h @ whh.T + bih + bhh
            i = jax.nn.sigmoid(g[:, 0:H]); f = jax.nn.sigmoid(g[:, H:2 * H])
            gg = jnp.tanh(g[:, 2 * H:3 * H]); o = jax.nn.sigmoid(g[:, 3 * H:4 * H])
            c = f * c + i * gg
            h = o * jnp.tanh(c)
            return (h, c), h
        (h, _), hs = lax.scan(step, (jnp.zeros((B, H)), jnp.zeros((B, H))), seq)
        return hs, h

    h1_seq, _ = lstm_seq(xs, p["wih1"], p["whh1"], p["bih1"], p["bhh1"])
    _, h2 = lstm_seq(h1_seq, p["wih2"], p["whh2"], p["bih2"], p["bhh2"])

    def gru_step(h, x_t):
        gi = x_t @ p["wihg"].T + p["bihg"]
        gh = h @ p["whhg"].T + p["bhhg"]
        r = jax.nn.sigmoid(gi[:, 0:H] + gh[:, 0:H])
        z = jax.nn.sigmoid(gi[:, H:2 * H] + gh[:, H:2 * H])
        n = jnp.tanh(gi[:, 2 * H:3 * H] + r * gh[:, 2 * H:3 * H])
        return (1.0 - z) * n + z * h, None
    hg, _ = lax.scan(gru_step, jnp.zeros((B, H)), xs)

    out = jnp.concatenate([h2, hg], axis=1) @ p["wlin"].T + p["blin"]
    if task == "updown":
        return jax.nn.sigmoid(out)
    return jnp.where(out > 0.0, out, jnp.exp(jnp.minimum(out, 0.0)) - 1.0)


# ----------------------------------------------------------------------------- main
if __name__ == "__main__":
    key = jax.random.PRNGKey(0)
    k_x, k_p = jax.random.split(key)

    B, T, F = 4, 8, 4
    x = jax.random.normal(k_x, (B, T, F), jnp.float32)
    params = init_params(k_p, input_dim=F, hidden=H_TRUE, output_dim=1)
    kparams = prepare_params(params)

    # 'updown' head (sigmoid)
    out = jax.block_until_ready(lstm_gru_forward(x, kparams, task="updown"))
    assert out.shape == (B, 1)
    assert bool(jnp.all(jnp.isfinite(out)))
    ref = _reference_forward(x, params, "updown")
    assert float(jnp.max(jnp.abs(out - ref))) < 5e-2, float(jnp.max(jnp.abs(out - ref)))

    # ELU head (any other task string)
    out2 = jax.block_until_ready(lstm_gru_forward(x, kparams, task="price"))
    assert out2.shape == (B, 1)
    assert bool(jnp.all(jnp.isfinite(out2)))
    ref2 = _reference_forward(x, params, "price")
    assert float(jnp.max(jnp.abs(out2 - ref2))) < 5e-2, float(jnp.max(jnp.abs(out2 - ref2)))

    print("KERNEL_OK")
</pallas_src>

<mosaic_0001>
module attributes {stable_mosaic.version = 11 : i64} {
  func.func @lstm_gru_kernel(%arg0: i32, %arg1: memref<9x32x128xf32, #tpu.memory_space<vmem>>, %arg2: memref<448x128xbf16, #tpu.memory_space<vmem>>, %arg3: memref<32x1xf32, #tpu.memory_space<vmem>>, %arg4: memref<32x1xf32, #tpu.memory_space<vmem>>, %arg5: memref<1x1xf32, #tpu.memory_space<vmem>>, %arg6: memref<1x128xf32, #tpu.memory_space<vmem>>) attributes {dimension_semantics = [#tpu.dimension_semantics<parallel>], iteration_bounds = array<i64: 1>, scalar_prefetch = 0 : i64, scratch_operands = 0 : i64, tpu.core_type = #tpu.core_type<tc>, window_params = [{transform_indices = @transform_0, window_bounds = array<i64: 9, 32, 128>}, {pipeline_mode = #tpu.pipeline_mode<synchronous>, transform_indices = @transform_1, window_bounds = array<i64: 448, 128>}, {pipeline_mode = #tpu.pipeline_mode<synchronous>, transform_indices = @transform_2, window_bounds = array<i64: 32, 1>}, {pipeline_mode = #tpu.pipeline_mode<synchronous>, transform_indices = @transform_3, window_bounds = array<i64: 32, 1>}, {pipeline_mode = #tpu.pipeline_mode<synchronous>, transform_indices = @transform_4, window_bounds = array<i64: 1, 1>}, {transform_indices = @transform_5, window_bounds = array<i64: 1, 128>}]} {
    %cst = arith.constant 0.000000e+00 : f32
    %0 = vector.broadcast %cst : f32 to vector<32x128xf32>
    %c0 = arith.constant 0 : index
    %c0_0 = arith.constant 0 : index
    %c0_1 = arith.constant 0 : index
    %1 = vector.load %arg1[%c0, %c0_0, %c0_1] : memref<9x32x128xf32, #tpu.memory_space<vmem>>, vector<1x32x128xf32>
    %2 = vector.shape_cast %1 : vector<1x32x128xf32> to vector<32x128xf32>
    %3 = tpu.concatenate %0, %0, %0, %2 in 0 : vector<32x128xf32>, vector<32x128xf32>, vector<32x128xf32>, vector<32x128xf32> -> vector<128x128xf32>
    %4 = arith.truncf %3 : vector<128x128xf32> to vector<128x128xbf16>
    %c0_2 = arith.constant 0 : index
    %c0_3 = arith.constant 0 : index
    %5 = vector.load %arg2[%c0_2, %c0_3] : memref<448x128xbf16, #tpu.memory_space<vmem>>, vector<448x128xbf16>
    %cst_4 = arith.constant dense<0.000000e+00> : vector<448x128xf32>
    %6 = tpu.matmul %5, %4, %cst_4 {dimension_numbers = #tpu.dot_dimension_numbers<[1], [0], [0], [1], [0, 0, 1, 1], [], []>} : vector<448x128xbf16>, vector<128x128xbf16>, vector<448x128xf32> -> vector<448x128xf32>
    %7 = vector.extract_strided_slice %6 {offsets = [0, 0], sizes = [128, 128], strides = [1, 1]} : vector<448x128xf32> to vector<128x128xf32>
    %8 = vector.extract_strided_slice %7 {offsets = [0, 0], sizes = [96, 128], strides = [1, 1]} : vector<128x128xf32> to vector<96x128xf32>
    %9 = arith.negf %8 : vector<96x128xf32>
    %10 = math.exp %9 : vector<96x128xf32>
    %cst_5 = arith.constant 1.000000e+00 : f32
    %11 = vector.broadcast %cst_5 : f32 to vector<96x128xf32>
    %12 = arith.addf %11, %10 : vector<96x128xf32>
    %13 = arith.divf %11, %12 : vector<96x128xf32>
    %14 = vector.extract_strided_slice %7 {offsets = [96, 0], sizes = [32, 128], strides = [1, 1]} : vector<128x128xf32> to vector<32x128xf32>
    %15 = math.tanh %14 : vector<32x128xf32>
    %16 = vector.extract_strided_slice %13 {offsets = [0, 0], sizes = [32, 128], strides = [1, 1]} : vector<96x128xf32> to vector<32x128xf32>
    %17 = vector.extract_strided_slice %13 {offsets = [32, 0], sizes = [32, 128], strides = [1, 1]} : vector<96x128xf32> to vector<32x128xf32>
    %18 = vector.extract_strided_slice %13 {offsets = [64, 0], sizes = [32, 128], strides = [1, 1]} : vector<96x128xf32> to vector<32x128xf32>
    %19 = arith.mulf %17, %0 : vector<32x128xf32>
    %20 = arith.mulf %16, %15 : vector<32x128xf32>
    %21 = arith.addf %19, %20 : vector<32x128xf32>
    %22 = math.tanh %21 : vector<32x128xf32>
    %23 = arith.mulf %18, %22 : vector<32x128xf32>
    %24 = vector.extract_strided_slice %6 {offsets = [256, 0], sizes = [96, 128], strides = [1, 1]} : vector<448x128xf32> to vector<96x128xf32>
    %25 = vector.extract_strided_slice %6 {offsets = [352, 0], sizes = [96, 128], strides = [1, 1]} : vector<448x128xf32> to vector<96x128xf32>
    %26 = vector.extract_strided_slice %25 {offsets = [0, 0], sizes = [64, 128], strides = [1, 1]} : vector<96x128xf32> to vector<64x128xf32>
    %27 = vector.extract_strided_slice %24 {offsets = [0, 0], sizes = [64, 128], strides = [1, 1]} : vector<96x128xf32> to vector<64x128xf32>
    %28 = arith.addf %26, %27 : vector<64x128xf32>
    %29 = arith.negf %28 : vector<64x128xf32>
    %30 = math.exp %29 : vector<64x128xf32>
    %cst_6 = arith.constant 1.000000e+00 : f32
    %31 = vector.broadcast %cst_6 : f32 to vector<64x128xf32>
    %32 = arith.addf %31, %30 : vector<64x128xf32>
    %33 = arith.divf %31, %32 : vector<64x128xf32>
    %34 = vector.extract_strided_slice %33 {offsets = [0, 0], sizes = [32, 128], strides = [1, 1]} : vector<64x128xf32> to vector<32x128xf32>
    %35 = vector.extract_strided_slice %33 {offsets = [32, 0], sizes = [32, 128], strides = [1, 1]} : vector<64x128xf32> to vector<32x128xf32>
    %36 = vector.extract_strided_slice %25 {offsets = [64, 0], sizes = [32, 128], strides = [1, 1]} : vector<96x128xf32> to vector<32x128xf32>
    %37 = vector.extract_strided_slice %24 {offsets = [64, 0], sizes = [32, 128], strides = [1, 1]} : vector<96x128xf32> to vector<32x128xf32>
    %38 = arith.mulf %34, %37 : vector<32x128xf32>
    %39 = arith.addf %36, %38 : vector<32x128xf32>
    %40 = math.tanh %39 : vector<32x128xf32>
    %cst_7 = arith.constant 1.000000e+00 : f32
    %41 = vector.broadcast %cst_7 : f32 to vector<32x128xf32>
    %42 = arith.subf %41, %35 : vector<32x128xf32>
    %43 = arith.mulf %42, %40 : vector<32x128xf32>
    %44 = arith.mulf %35, %0 : vector<32x128xf32>
    %45 = arith.addf %43, %44 : vector<32x128xf32>
    %c1 = arith.constant 1 : index
    %c0_8 = arith.constant 0 : index
    %c0_9 = arith.constant 0 : index
    %46 = vector.load %arg1[%c1, %c0_8, %c0_9] : memref<9x32x128xf32, #tpu.memory_space<vmem>>, vector<1x32x128xf32>
    %47 = vector.shape_cast %46 : vector<1x32x128xf32> to vector<32x128xf32>
    %48 = tpu.concatenate %23, %0, %45, %47 in 0 : vector<32x128xf32>, vector<32x128xf32>, vector<32x128xf32>, vector<32x128xf32> -> vector<128x128xf32>
    %49 = arith.truncf %48 : vector<128x128xf32> to vector<128x128xbf16>
    %c0_10 = arith.constant 0 : index
    %c0_11 = arith.constant 0 : index
    %50 = vector.load %arg2[%c0_10, %c0_11] : memref<448x128xbf16, #tpu.memory_space<vmem>>, vector<448x128xbf16>
    %cst_12 = arith.constant dense<0.000000e+00> : vector<448x128xf32>
    %51 = tpu.matmul %50, %49, %cst_12 {dimension_numbers = #tpu.dot_dimension_numbers<[1], [0], [0], [1], [0, 0, 1, 1], [], []>} : vector<448x128xbf16>, vector<128x128xbf16>, vector<448x128xf32> -> vector<448x128xf32>
    %52 = vector.extract_strided_slice %51 {offsets = [128, 0], sizes = [128, 128], strides = [1, 1]} : vector<448x128xf32> to vector<128x128xf32>
    %53 = vector.extract_strided_slice %52 {offsets = [0, 0], sizes = [96, 128], strides = [1, 1]} : vector<128x128xf32> to vector<96x128xf32>
    %54 = arith.negf %53 : vector<96x128xf32>
    %55 = math.exp %54 : vector<96x128xf32>
    %cst_13 = arith.constant 1.000000e+00 : f32
    %56 = vector.broadcast %cst_13 : f32 to vector<96x128xf32>
    %57 = arith.addf %56, %55 : vector<96x128xf32>
    %58 = arith.divf %56, %57 : vector<96x128xf32>
    %59 = vector.extract_strided_slice %52 {offsets = [96, 0], sizes = [32, 128], strides = [1, 1]} : vector<128x128xf32> to vector<32x128xf32>
    %60 = math.tanh %59 : vector<32x128xf32>
    %61 = vector.extract_strided_slice %58 {offsets = [0, 0], sizes = [32, 128], strides = [1, 1]} : vector<96x128xf32> to vector<32x128xf32>
    %62 = vector.extract_strided_slice %58 {offsets = [32, 0], sizes = [32, 128], strides = [1, 1]} : vector<96x128xf32> to vector<32x128xf32>
    %63 = vector.extract_strided_slice %58 {offsets = [64, 0], sizes = [32, 128], strides = [1, 1]} : vector<96x128xf32> to vector<32x128xf32>
    %64 = arith.mulf %62, %0 : vector<32x128xf32>
    %65 = arith.mulf %61, %60 : vector<32x128xf32>
    %66 = arith.addf %64, %65 : vector<32x128xf32>
    %67 = math.tanh %66 : vector<32x128xf32>
    %68 = arith.mulf %63, %67 : vector<32x128xf32>
    %69 = vector.extract_strided_slice %51 {offsets = [0, 0], sizes = [128, 128], strides = [1, 1]} : vector<448x128xf32> to vector<128x128xf32>
    %70 = vector.extract_strided_slice %69 {offsets = [0, 0], sizes = [96, 128], strides = [1, 1]} : vector<128x128xf32> to vector<96x128xf32>
    %71 = arith.negf %70 : vector<96x128xf32>
    %72 = math.exp %71 : vector<96x128xf32>
    %cst_14 = arith.constant 1.000000e+00 : f32
    %73 = vector.broadcast %cst_14 : f32 to vector<96x128xf32>
    %74 = arith.addf %73, %72 : vector<96x128xf32>
    %75 = arith.divf %73, %74 : vector<96x128xf32>
    %76 = vector.extract_strided_slice %69 {offsets = [96, 0], sizes = [32, 128], strides = [1, 1]} : vector<128x128xf32> to vector<32x128xf32>
    %77 = math.tanh %76 : vector<32x128xf32>
    %78 = vector.extract_strided_slice %75 {offsets = [0, 0], sizes = [32, 128], strides = [1, 1]} : vector<96x128xf32> to vector<32x128xf32>
    %79 = vector.extract_strided_slice %75 {offsets = [32, 0], sizes = [32, 128], strides = [1, 1]} : vector<96x128xf32> to vector<32x128xf32>
    %80 = vector.extract_strided_slice %75 {offsets = [64, 0], sizes = [32, 128], strides = [1, 1]} : vector<96x128xf32> to vector<32x128xf32>
    %81 = arith.mulf %79, %21 : vector<32x128xf32>
    %82 = arith.mulf %78, %77 : vector<32x128xf32>
    %83 = arith.addf %81, %82 : vector<32x128xf32>
    %84 = math.tanh %83 : vector<32x128xf32>
    %85 = arith.mulf %80, %84 : vector<32x128xf32>
    %86 = vector.extract_strided_slice %51 {offsets = [256, 0], sizes = [96, 128], strides = [1, 1]} : vector<448x128xf32> to vector<96x128xf32>
    %87 = vector.extract_strided_slice %51 {offsets = [352, 0], sizes = [96, 128], strides = [1, 1]} : vector<448x128xf32> to vector<96x128xf32>
    %88 = vector.extract_strided_slice %87 {offsets = [0, 0], sizes = [64, 128], strides = [1, 1]} : vector<96x128xf32> to vector<64x128xf32>
    %89 = vector.extract_strided_slice %86 {offsets = [0, 0], sizes = [64, 128], strides = [1, 1]} : vector<96x128xf32> to vector<64x128xf32>
    %90 = arith.addf %88, %89 : vector<64x128xf32>
    %91 = arith.negf %90 : vector<64x128xf32>
    %92 = math.exp %91 : vector<64x128xf32>
    %cst_15 = arith.constant 1.000000e+00 : f32
    %93 = vector.broadcast %cst_15 : f32 to vector<64x128xf32>
    %94 = arith.addf %93, %92 : vector<64x128xf32>
    %95 = arith.divf %93, %94 : vector<64x128xf32>
    %96 = vector.extract_strided_slice %95 {offsets = [0, 0], sizes = [32, 128], strides = [1, 1]} : vector<64x128xf32> to vector<32x128xf32>
    %97 = vector.extract_strided_slice %95 {offsets = [32, 0], sizes = [32, 128], strides = [1, 1]} : vector<64x128xf32> to vector<32x128xf32>
    %98 = vector.extract_strided_slice %87 {offsets = [64, 0], sizes = [32, 128], strides = [1, 1]} : vector<96x128xf32> to vector<32x128xf32>
    %99 = vector.extract_strided_slice %86 {offsets = [64, 0], sizes = [32, 128], strides = [1, 1]} : vector<96x128xf32> to vector<32x128xf32>
    %100 = arith.mulf %96, %99 : vector<32x128xf32>
    %101 = arith.addf %98, %100 : vector<32x128xf32>
    %102 = math.tanh %101 : vector<32x128xf32>
    %cst_16 = arith.constant 1.000000e+00 : f32
    %103 = vector.broadcast %cst_16 : f32 to vector<32x128xf32>
    %104 = arith.subf %103, %97 : vector<32x128xf32>
    %105 = arith.mulf %104, %102 : vector<32x128xf32>
    %106 = arith.mulf %97, %45 : vector<32x128xf32>
    %107 = arith.addf %105, %106 : vector<32x128xf32>
    %c2 = arith.constant 2 : index
    %c0_17 = arith.constant 0 : index
    %c0_18 = arith.constant 0 : index
    %108 = vector.load %arg1[%c2, %c0_17, %c0_18] : memref<9x32x128xf32, #tpu.memory_space<vmem>>, vector<1x32x128xf32>
    %109 = vector.shape_cast %108 : vector<1x32x128xf32> to vector<32x128xf32>
    %110 = tpu.concatenate %85, %68, %107, %109 in 0 : vector<32x128xf32>, vector<32x128xf32>, vector<32x128xf32>, vector<32x128xf32> -> vector<128x128xf32>
    %111 = arith.truncf %110 : vector<128x128xf32> to vector<128x128xbf16>
    %c0_19 = arith.constant 0 : index
    %c0_20 = arith.constant 0 : index
    %112 = vector.load %arg2[%c0_19, %c0_20] : memref<448x128xbf16, #tpu.memory_space<vmem>>, vector<448x128xbf16>
    %cst_21 = arith.constant dense<0.000000e+00> : vector<448x128xf32>
    %113 = tpu.matmul %112, %111, %cst_21 {dimension_numbers = #tpu.dot_dimension_numbers<[1], [0], [0], [1], [0, 0, 1, 1], [], []>} : vector<448x128xbf16>, vector<128x128xbf16>, vector<448x128xf32> -> vector<448x128xf32>
    %114 = vector.extract_strided_slice %113 {offsets = [128, 0], sizes = [128, 128], strides = [1, 1]} : vector<448x128xf32> to vector<128x128xf32>
    %115 = vector.extract_strided_slice %114 {offsets = [0, 0], sizes = [96, 128], strides = [1, 1]} : vector<128x128xf32> to vector<96x128xf32>
    %116 = arith.negf %115 : vector<96x128xf32>
    %117 = math.exp %116 : vector<96x128xf32>
    %cst_22 = arith.constant 1.000000e+00 : f32
    %118 = vector.broadcast %cst_22 : f32 to vector<96x128xf32>
    %119 = arith.addf %118, %117 : vector<96x128xf32>
    %120 = arith.divf %118, %119 : vector<96x128xf32>
    %121 = vector.extract_strided_slice %114 {offsets = [96, 0], sizes = [32, 128], strides = [1, 1]} : vector<128x128xf32> to vector<32x128xf32>
    %122 = math.tanh %121 : vector<32x128xf32>
    %123 = vector.extract_strided_slice %120 {offsets = [0, 0], sizes = [32, 128], strides = [1, 1]} : vector<96x128xf32> to vector<32x128xf32>
    %124 = vector.extract_strided_slice %120 {offsets = [32, 0], sizes = [32, 128], strides = [1, 1]} : vector<96x128xf32> to vector<32x128xf32>
    %125 = vector.extract_strided_slice %120 {offsets = [64, 0], sizes = [32, 128], strides = [1, 1]} : vector<96x128xf32> to vector<32x128xf32>
    %126 = arith.mulf %124, %66 : vector<32x128xf32>
    %127 = arith.mulf %123, %122 : vector<32x128xf32>
    %128 = arith.addf %126, %127 : vector<32x128xf32>
    %129 = math.tanh %128 : vector<32x128xf32>
    %130 = arith.mulf %125, %129 : vector<32x128xf32>
    %131 = vector.extract_strided_slice %113 {offsets = [0, 0], sizes = [128, 128], strides = [1, 1]} : vector<448x128xf32> to vector<128x128xf32>
    %132 = vector.extract_strided_slice %131 {offsets = [0, 0], sizes = [96, 128], strides = [1, 1]} : vector<128x128xf32> to vector<96x128xf32>
    %133 = arith.negf %132 : vector<96x128xf32>
    %134 = math.exp %133 : vector<96x128xf32>
    %cst_23 = arith.constant 1.000000e+00 : f32
    %135 = vector.broadcast %cst_23 : f32 to vector<96x128xf32>
    %136 = arith.addf %135, %134 : vector<96x128xf32>
    %137 = arith.divf %135, %136 : vector<96x128xf32>
    %138 = vector.extract_strided_slice %131 {offsets = [96, 0], sizes = [32, 128], strides = [1, 1]} : vector<128x128xf32> to vector<32x128xf32>
    %139 = math.tanh %138 : vector<32x128xf32>
    %140 = vector.extract_strided_slice %137 {offsets = [0, 0], sizes = [32, 128], strides = [1, 1]} : vector<96x128xf32> to vector<32x128xf32>
    %141 = vector.extract_strided_slice %137 {offsets = [32, 0], sizes = [32, 128], strides = [1, 1]} : vector<96x128xf32> to vector<32x128xf32>
    %142 = vector.extract_strided_slice %137 {offsets = [64, 0], sizes = [32, 128], strides = [1, 1]} : vector<96x128xf32> to vector<32x128xf32>
    %143 = arith.mulf %141, %83 : vector<32x128xf32>
    %144 = arith.mulf %140, %139 : vector<32x128xf32>
    %145 = arith.addf %143, %144 : vector<32x128xf32>
    %146 = math.tanh %145 : vector<32x128xf32>
    %147 = arith.mulf %142, %146 : vector<32x128xf32>
    %148 = vector.extract_strided_slice %113 {offsets = [256, 0], sizes = [96, 128], strides = [1, 1]} : vector<448x128xf32> to vector<96x128xf32>
    %149 = vector.extract_strided_slice %113 {offsets = [352, 0], sizes = [96, 128], strides = [1, 1]} : vector<448x128xf32> to vector<96x128xf32>
    %150 = vector.extract_strided_slice %149 {offsets = [0, 0], sizes = [64, 128], strides = [1, 1]} : vector<96x128xf32> to vector<64x128xf32>
    %151 = vector.extract_strided_slice %148 {offsets = [0, 0], sizes = [64, 128], strides = [1, 1]} : vector<96x128xf32> to vector<64x128xf32>
    %152 = arith.addf %150, %151 : vector<64x128xf32>
    %153 = arith.negf %152 : vector<64x128xf32>
    %154 = math.exp %153 : vector<64x128xf32>
    %cst_24 = arith.constant 1.000000e+00 : f32
    %155 = vector.broadcast %cst_24 : f32 to vector<64x128xf32>
    %156 = arith.addf %155, %154 : vector<64x128xf32>
    %157 = arith.divf %155, %156 : vector<64x128xf32>
    %158 = vector.extract_strided_slice %157 {offsets = [0, 0], sizes = [32, 128], strides = [1, 1]} : vector<64x128xf32> to vector<32x128xf32>
    %159 = vector.extract_strided_slice %157 {offsets = [32, 0], sizes = [32, 128], strides = [1, 1]} : vector<64x128xf32> to vector<32x128xf32>
    %160 = vector.extract_strided_slice %149 {offsets = [64, 0], sizes = [32, 128], strides = [1, 1]} : vector<96x128xf32> to vector<32x128xf32>
    %161 = vector.extract_strided_slice %148 {offsets = [64, 0], sizes = [32, 128], strides = [1, 1]} : vector<96x128xf32> to vector<32x128xf32>
    %162 = arith.mulf %158, %161 : vector<32x128xf32>
    %163 = arith.addf %160, %162 : vector<32x128xf32>
    %164 = math.tanh %163 : vector<32x128xf32>
    %cst_25 = arith.constant 1.000000e+00 : f32
    %165 = vector.broadcast %cst_25 : f32 to vector<32x128xf32>
    %166 = arith.subf %165, %159 : vector<32x128xf32>
    %167 = arith.mulf %166, %164 : vector<32x128xf32>
    %168 = arith.mulf %159, %107 : vector<32x128xf32>
    %169 = arith.addf %167, %168 : vector<32x128xf32>
    %c3 = arith.constant 3 : index
    %c0_26 = arith.constant 0 : index
    %c0_27 = arith.constant 0 : index
    %170 = vector.load %arg1[%c3, %c0_26, %c0_27] : memref<9x32x128xf32, #tpu.memory_space<vmem>>, vector<1x32x128xf32>
    %171 = vector.shape_cast %170 : vector<1x32x128xf32> to vector<32x128xf32>
    %172 = tpu.concatenate %147, %130, %169, %171 in 0 : vector<32x128xf32>, vector<32x128xf32>, vector<32x128xf32>, vector<32x128xf32> -> vector<128x128xf32>
    %173 = arith.truncf %172 : vector<128x128xf32> to vector<128x128xbf16>
    %c0_28 = arith.constant 0 : index
    %c0_29 = arith.constant 0 : index
    %174 = vector.load %arg2[%c0_28, %c0_29] : memref<448x128xbf16, #tpu.memory_space<vmem>>, vector<448x128xbf16>
    %cst_30 = arith.constant dense<0.000000e+00> : vector<448x128xf32>
    %175 = tpu.matmul %174, %173, %cst_30 {dimension_numbers = #tpu.dot_dimension_numbers<[1], [0], [0], [1], [0, 0, 1, 1], [], []>} : vector<448x128xbf16>, vector<128x128xbf16>, vector<448x128xf32> -> vector<448x128xf32>
    %176 = vector.extract_strided_slice %175 {offsets = [128, 0], sizes = [128, 128], strides = [1, 1]} : vector<448x128xf32> to vector<128x128xf32>
    %177 = vector.extract_strided_slice %176 {offsets = [0, 0], sizes = [96, 128], strides = [1, 1]} : vector<128x128xf32> to vector<96x128xf32>
    %178 = arith.negf %177 : vector<96x128xf32>
    %179 = math.exp %178 : vector<96x128xf32>
    %cst_31 = arith.constant 1.000000e+00 : f32
    %180 = vector.broadcast %cst_31 : f32 to vector<96x128xf32>
    %181 = arith.addf %180, %179 : vector<96x128xf32>
    %182 = arith.divf %180, %181 : vector<96x128xf32>
    %183 = vector.extract_strided_slice %176 {offsets = [96, 0], sizes = [32, 128], strides = [1, 1]} : vector<128x128xf32> to vector<32x128xf32>
    %184 = math.tanh %183 : vector<32x128xf32>
    %185 = vector.extract_strided_slice %182 {offsets = [0, 0], sizes = [32, 128], strides = [1, 1]} : vector<96x128xf32> to vector<32x128xf32>
    %186 = vector.extract_strided_slice %182 {offsets = [32, 0], sizes = [32, 128], strides = [1, 1]} : vector<96x128xf32> to vector<32x128xf32>
    %187 = vector.extract_strided_slice %182 {offsets = [64, 0], sizes = [32, 128], strides = [1, 1]} : vector<96x128xf32> to vector<32x128xf32>
    %188 = arith.mulf %186, %128 : vector<32x128xf32>
    %189 = arith.mulf %185, %184 : vector<32x128xf32>
    %190 = arith.addf %188, %189 : vector<32x128xf32>
    %191 = math.tanh %190 : vector<32x128xf32>
    %192 = arith.mulf %187, %191 : vector<32x128xf32>
    %193 = vector.extract_strided_slice %175 {offsets = [0, 0], sizes = [128, 128], strides = [1, 1]} : vector<448x128xf32> to vector<128x128xf32>
    %194 = vector.extract_strided_slice %193 {offsets = [0, 0], sizes = [96, 128], strides = [1, 1]} : vector<128x128xf32> to vector<96x128xf32>
    %195 = arith.negf %194 : vector<96x128xf32>
    %196 = math.exp %195 : vector<96x128xf32>
    %cst_32 = arith.constant 1.000000e+00 : f32
    %197 = vector.broadcast %cst_32 : f32 to vector<96x128xf32>
    %198 = arith.addf %197, %196 : vector<96x128xf32>
    %199 = arith.divf %197, %198 : vector<96x128xf32>
    %200 = vector.extract_strided_slice %193 {offsets = [96, 0], sizes = [32, 128], strides = [1, 1]} : vector<128x128xf32> to vector<32x128xf32>
    %201 = math.tanh %200 : vector<32x128xf32>
    %202 = vector.extract_strided_slice %199 {offsets = [0, 0], sizes = [32, 128], strides = [1, 1]} : vector<96x128xf32> to vector<32x128xf32>
    %203 = vector.extract_strided_slice %199 {offsets = [32, 0], sizes = [32, 128], strides = [1, 1]} : vector<96x128xf32> to vector<32x128xf32>
    %204 = vector.extract_strided_slice %199 {offsets = [64, 0], sizes = [32, 128], strides = [1, 1]} : vector<96x128xf32> to vector<32x128xf32>
    %205 = arith.mulf %203, %145 : vector<32x128xf32>
    %206 = arith.mulf %202, %201 : vector<32x128xf32>
    %207 = arith.addf %205, %206 : vector<32x128xf32>
    %208 = math.tanh %207 : vector<32x128xf32>
    %209 = arith.mulf %204, %208 : vector<32x128xf32>
    %210 = vector.extract_strided_slice %175 {offsets = [256, 0], sizes = [96, 128], strides = [1, 1]} : vector<448x128xf32> to vector<96x128xf32>
    %211 = vector.extract_strided_slice %175 {offsets = [352, 0], sizes = [96, 128], strides = [1, 1]} : vector<448x128xf32> to vector<96x128xf32>
    %212 = vector.extract_strided_slice %211 {offsets = [0, 0], sizes = [64, 128], strides = [1, 1]} : vector<96x128xf32> to vector<64x128xf32>
    %213 = vector.extract_strided_slice %210 {offsets = [0, 0], sizes = [64, 128], strides = [1, 1]} : vector<96x128xf32> to vector<64x128xf32>
    %214 = arith.addf %212, %213 : vector<64x128xf32>
    %215 = arith.negf %214 : vector<64x128xf32>
    %216 = math.exp %215 : vector<64x128xf32>
    %cst_33 = arith.constant 1.000000e+00 : f32
    %217 = vector.broadcast %cst_33 : f32 to vector<64x128xf32>
    %218 = arith.addf %217, %216 : vector<64x128xf32>
    %219 = arith.divf %217, %218 : vector<64x128xf32>
    %220 = vector.extract_strided_slice %219 {offsets = [0, 0], sizes = [32, 128], strides = [1, 1]} : vector<64x128xf32> to vector<32x128xf32>
    %221 = vector.extract_strided_slice %219 {offsets = [32, 0], sizes = [32, 128], strides = [1, 1]} : vector<64x128xf32> to vector<32x128xf32>
    %222 = vector.extract_strided_slice %211 {offsets = [64, 0], sizes = [32, 128], strides = [1, 1]} : vector<96x128xf32> to vector<32x128xf32>
    %223 = vector.extract_strided_slice %210 {offsets = [64, 0], sizes = [32, 128], strides = [1, 1]} : vector<96x128xf32> to vector<32x128xf32>
    %224 = arith.mulf %220, %223 : vector<32x128xf32>
    %225 = arith.addf %222, %224 : vector<32x128xf32>
    %226 = math.tanh %225 : vector<32x128xf32>
    %cst_34 = arith.constant 1.000000e+00 : f32
    %227 = vector.broadcast %cst_34 : f32 to vector<32x128xf32>
    %228 = arith.subf %227, %221 : vector<32x128xf32>
    %229 = arith.mulf %228, %226 : vector<32x128xf32>
    %230 = arith.mulf %221, %169 : vector<32x128xf32>
    %231 = arith.addf %229, %230 : vector<32x128xf32>
    %c4 = arith.constant 4 : index
    %c0_35 = arith.constant 0 : index
    %c0_36 = arith.constant 0 : index
    %232 = vector.load %arg1[%c4, %c0_35, %c0_36] : memref<9x32x128xf32, #tpu.memory_space<vmem>>, vector<1x32x128xf32>
    %233 = vector.shape_cast %232 : vector<1x32x128xf32> to vector<32x128xf32>
    %234 = tpu.concatenate %209, %192, %231, %233 in 0 : vector<32x128xf32>, vector<32x128xf32>, vector<32x128xf32>, vector<32x128xf32> -> vector<128x128xf32>
    %235 = arith.truncf %234 : vector<128x128xf32> to vector<128x128xbf16>
    %c0_37 = arith.constant 0 : index
    %c0_38 = arith.constant 0 : index
    %236 = vector.load %arg2[%c0_37, %c0_38] : memref<448x128xbf16, #tpu.memory_space<vmem>>, vector<448x128xbf16>
    %cst_39 = arith.constant dense<0.000000e+00> : vector<448x128xf32>
    %237 = tpu.matmul %236, %235, %cst_39 {dimension_numbers = #tpu.dot_dimension_numbers<[1], [0], [0], [1], [0, 0, 1, 1], [], []>} : vector<448x128xbf16>, vector<128x128xbf16>, vector<448x128xf32> -> vector<448x128xf32>
    %238 = vector.extract_strided_slice %237 {offsets = [128, 0], sizes = [128, 128], strides = [1, 1]} : vector<448x128xf32> to vector<128x128xf32>
    %239 = vector.extract_strided_slice %238 {offsets = [0, 0], sizes = [96, 128], strides = [1, 1]} : vector<128x128xf32> to vector<96x128xf32>
    %240 = arith.negf %239 : vector<96x128xf32>
    %241 = math.exp %240 : vector<96x128xf32>
    %cst_40 = arith.constant 1.000000e+00 : f32
    %242 = vector.broadcast %cst_40 : f32 to vector<96x128xf32>
    %243 = arith.addf %242, %241 : vector<96x128xf32>
    %244 = arith.divf %242, %243 : vector<96x128xf32>
    %245 = vector.extract_strided_slice %238 {offsets = [96, 0], sizes = [32, 128], strides = [1, 1]} : vector<128x128xf32> to vector<32x128xf32>
    %246 = math.tanh %245 : vector<32x128xf32>
    %247 = vector.extract_strided_slice %244 {offsets = [0, 0], sizes = [32, 128], strides = [1, 1]} : vector<96x128xf32> to vector<32x128xf32>
    %248 = vector.extract_strided_slice %244 {offsets = [32, 0], sizes = [32, 128], strides = [1, 1]} : vector<96x128xf32> to vector<32x128xf32>
    %249 = vector.extract_strided_slice %244 {offsets = [64, 0], sizes = [32, 128], strides = [1, 1]} : vector<96x128xf32> to vector<32x128xf32>
    %250 = arith.mulf %248, %190 : vector<32x128xf32>
    %251 = arith.mulf %247, %246 : vector<32x128xf32>
    %252 = arith.addf %250, %251 : vector<32x128xf32>
    %253 = math.tanh %252 : vector<32x128xf32>
    %254 = arith.mulf %249, %253 : vector<32x128xf32>
    %255 = vector.extract_strided_slice %237 {offsets = [0, 0], sizes = [128, 128], strides = [1, 1]} : vector<448x128xf32> to vector<128x128xf32>
    %256 = vector.extract_strided_slice %255 {offsets = [0, 0], sizes = [96, 128], strides = [1, 1]} : vector<128x128xf32> to vector<96x128xf32>
    %257 = arith.negf %256 : vector<96x128xf32>
    %258 = math.exp %257 : vector<96x128xf32>
    %cst_41 = arith.constant 1.000000e+00 : f32
    %259 = vector.broadcast %cst_41 : f32 to vector<96x128xf32>
    %260 = arith.addf %259, %258 : vector<96x128xf32>
    %261 = arith.divf %259, %260 : vector<96x128xf32>
    %262 = vector.extract_strided_slice %255 {offsets = [96, 0], sizes = [32, 128], strides = [1, 1]} : vector<128x128xf32> to vector<32x128xf32>
    %263 = math.tanh %262 : vector<32x128xf32>
    %264 = vector.extract_strided_slice %261 {offsets = [0, 0], sizes = [32, 128], strides = [1, 1]} : vector<96x128xf32> to vector<32x128xf32>
    %265 = vector.extract_strided_slice %261 {offsets = [32, 0], sizes = [32, 128], strides = [1, 1]} : vector<96x128xf32> to vector<32x128xf32>
    %266 = vector.extract_strided_slice %261 {offsets = [64, 0], sizes = [32, 128], strides = [1, 1]} : vector<96x128xf32> to vector<32x128xf32>
    %267 = arith.mulf %265, %207 : vector<32x128xf32>
    %268 = arith.mulf %264, %263 : vector<32x128xf32>
    %269 = arith.addf %267, %268 : vector<32x128xf32>
    %270 = math.tanh %269 : vector<32x128xf32>
    %271 = arith.mulf %266, %270 : vector<32x128xf32>
    %272 = vector.extract_strided_slice %237 {offsets = [256, 0], sizes = [96, 128], strides = [1, 1]} : vector<448x128xf32> to vector<96x128xf32>
    %273 = vector.extract_strided_slice %237 {offsets = [352, 0], sizes = [96, 128], strides = [1, 1]} : vector<448x128xf32> to vector<96x128xf32>
    %274 = vector.extract_strided_slice %273 {offsets = [0, 0], sizes = [64, 128], strides = [1, 1]} : vector<96x128xf32> to vector<64x128xf32>
    %275 = vector.extract_strided_slice %272 {offsets = [0, 0], sizes = [64, 128], strides = [1, 1]} : vector<96x128xf32> to vector<64x128xf32>
    %276 = arith.addf %274, %275 : vector<64x128xf32>
    %277 = arith.negf %276 : vector<64x128xf32>
    %278 = math.exp %277 : vector<64x128xf32>
    %cst_42 = arith.constant 1.000000e+00 : f32
    %279 = vector.broadcast %cst_42 : f32 to vector<64x128xf32>
    %280 = arith.addf %279, %278 : vector<64x128xf32>
    %281 = arith.divf %279, %280 : vector<64x128xf32>
    %282 = vector.extract_strided_slice %281 {offsets = [0, 0], sizes = [32, 128], strides = [1, 1]} : vector<64x128xf32> to vector<32x128xf32>
    %283 = vector.extract_strided_slice %281 {offsets = [32, 0], sizes = [32, 128], strides = [1, 1]} : vector<64x128xf32> to vector<32x128xf32>
    %284 = vector.extract_strided_slice %273 {offsets = [64, 0], sizes = [32, 128], strides = [1, 1]} : vector<96x128xf32> to vector<32x128xf32>
    %285 = vector.extract_strided_slice %272 {offsets = [64, 0], sizes = [32, 128], strides = [1, 1]} : vector<96x128xf32> to vector<32x128xf32>
    %286 = arith.mulf %282, %285 : vector<32x128xf32>
    %287 = arith.addf %284, %286 : vector<32x128xf32>
    %288 = math.tanh %287 : vector<32x128xf32>
    %cst_43 = arith.constant 1.000000e+00 : f32
    %289 = vector.broadcast %cst_43 : f32 to vector<32x128xf32>
    %290 = arith.subf %289, %283 : vector<32x128xf32>
    %291 = arith.mulf %290, %288 : vector<32x128xf32>
    %292 = arith.mulf %283, %231 : vector<32x128xf32>
    %293 = arith.addf %291, %292 : vector<32x128xf32>
    %c5 = arith.constant 5 : index
    %c0_44 = arith.constant 0 : index
    %c0_45 = arith.constant 0 : index
    %294 = vector.load %arg1[%c5, %c0_44, %c0_45] : memref<9x32x128xf32, #tpu.memory_space<vmem>>, vector<1x32x128xf32>
    %295 = vector.shape_cast %294 : vector<1x32x128xf32> to vector<32x128xf32>
    %296 = tpu.concatenate %271, %254, %293, %295 in 0 : vector<32x128xf32>, vector<32x128xf32>, vector<32x128xf32>, vector<32x128xf32> -> vector<128x128xf32>
    %297 = arith.truncf %296 : vector<128x128xf32> to vector<128x128xbf16>
    %c0_46 = arith.constant 0 : index
    %c0_47 = arith.constant 0 : index
    %298 = vector.load %arg2[%c0_46, %c0_47] : memref<448x128xbf16, #tpu.memory_space<vmem>>, vector<448x128xbf16>
    %cst_48 = arith.constant dense<0.000000e+00> : vector<448x128xf32>
    %299 = tpu.matmul %298, %297, %cst_48 {dimension_numbers = #tpu.dot_dimension_numbers<[1], [0], [0], [1], [0, 0, 1, 1], [], []>} : vector<448x128xbf16>, vector<128x128xbf16>, vector<448x128xf32> -> vector<448x128xf32>
    %300 = vector.extract_strided_slice %299 {offsets = [128, 0], sizes = [128, 128], strides = [1, 1]} : vector<448x128xf32> to vector<128x128xf32>
    %301 = vector.extract_strided_slice %300 {offsets = [0, 0], sizes = [96, 128], strides = [1, 1]} : vector<128x128xf32> to vector<96x128xf32>
    %302 = arith.negf %301 : vector<96x128xf32>
    %303 = math.exp %302 : vector<96x128xf32>
    %cst_49 = arith.constant 1.000000e+00 : f32
    %304 = vector.broadcast %cst_49 : f32 to vector<96x128xf32>
    %305 = arith.addf %304, %303 : vector<96x128xf32>
    %306 = arith.divf %304, %305 : vector<96x128xf32>
    %307 = vector.extract_strided_slice %300 {offsets = [96, 0], sizes = [32, 128], strides = [1, 1]} : vector<128x128xf32> to vector<32x128xf32>
    %308 = math.tanh %307 : vector<32x128xf32>
    %309 = vector.extract_strided_slice %306 {offsets = [0, 0], sizes = [32, 128], strides = [1, 1]} : vector<96x128xf32> to vector<32x128xf32>
    %310 = vector.extract_strided_slice %306 {offsets = [32, 0], sizes = [32, 128], strides = [1, 1]} : vector<96x128xf32> to vector<32x128xf32>
    %311 = vector.extract_strided_slice %306 {offsets = [64, 0], sizes = [32, 128], strides = [1, 1]} : vector<96x128xf32> to vector<32x128xf32>
    %312 = arith.mulf %310, %252 : vector<32x128xf32>
    %313 = arith.mulf %309, %308 : vector<32x128xf32>
    %314 = arith.addf %312, %313 : vector<32x128xf32>
    %315 = math.tanh %314 : vector<32x128xf32>
    %316 = arith.mulf %311, %315 : vector<32x128xf32>
    %317 = vector.extract_strided_slice %299 {offsets = [0, 0], sizes = [128, 128], strides = [1, 1]} : vector<448x128xf32> to vector<128x128xf32>
    %318 = vector.extract_strided_slice %317 {offsets = [0, 0], sizes = [96, 128], strides = [1, 1]} : vector<128x128xf32> to vector<96x128xf32>
    %319 = arith.negf %318 : vector<96x128xf32>
    %320 = math.exp %319 : vector<96x128xf32>
    %cst_50 = arith.constant 1.000000e+00 : f32
    %321 = vector.broadcast %cst_50 : f32 to vector<96x128xf32>
    %322 = arith.addf %321, %320 : vector<96x128xf32>
    %323 = arith.divf %321, %322 : vector<96x128xf32>
    %324 = vector.extract_strided_slice %317 {offsets = [96, 0], sizes = [32, 128], strides = [1, 1]} : vector<128x128xf32> to vector<32x128xf32>
    %325 = math.tanh %324 : vector<32x128xf32>
    %326 = vector.extract_strided_slice %323 {offsets = [0, 0], sizes = [32, 128], strides = [1, 1]} : vector<96x128xf32> to vector<32x128xf32>
    %327 = vector.extract_strided_slice %323 {offsets = [32, 0], sizes = [32, 128], strides = [1, 1]} : vector<96x128xf32> to vector<32x128xf32>
    %328 = vector.extract_strided_slice %323 {offsets = [64, 0], sizes = [32, 128], strides = [1, 1]} : vector<96x128xf32> to vector<32x128xf32>
    %329 = arith.mulf %327, %269 : vector<32x128xf32>
    %330 = arith.mulf %326, %325 : vector<32x128xf32>
    %331 = arith.addf %329, %330 : vector<32x128xf32>
    %332 = math.tanh %331 : vector<32x128xf32>
    %333 = arith.mulf %328, %332 : vector<32x128xf32>
    %334 = vector.extract_strided_slice %299 {offsets = [256, 0], sizes = [96, 128], strides = [1, 1]} : vector<448x128xf32> to vector<96x128xf32>
    %335 = vector.extract_strided_slice %299 {offsets = [352, 0], sizes = [96, 128], strides = [1, 1]} : vector<448x128xf32> to vector<96x128xf32>
    %336 = vector.extract_strided_slice %335 {offsets = [0, 0], sizes = [64, 128], strides = [1, 1]} : vector<96x128xf32> to vector<64x128xf32>
    %337 = vector.extract_strided_slice %334 {offsets = [0, 0], sizes = [64, 128], strides = [1, 1]} : vector<96x128xf32> to vector<64x128xf32>
    %338 = arith.addf %336, %337 : vector<64x128xf32>
    %339 = arith.negf %338 : vector<64x128xf32>
    %340 = math.exp %339 : vector<64x128xf32>
    %cst_51 = arith.constant 1.000000e+00 : f32
    %341 = vector.broadcast %cst_51 : f32 to vector<64x128xf32>
    %342 = arith.addf %341, %340 : vector<64x128xf32>
    %343 = arith.divf %341, %342 : vector<64x128xf32>
    %344 = vector.extract_strided_slice %343 {offsets = [0, 0], sizes = [32, 128], strides = [1, 1]} : vector<64x128xf32> to vector<32x128xf32>
    %345 = vector.extract_strided_slice %343 {offsets = [32, 0], sizes = [32, 128], strides = [1, 1]} : vector<64x128xf32> to vector<32x128xf32>
    %346 = vector.extract_strided_slice %335 {offsets = [64, 0], sizes = [32, 128], strides = [1, 1]} : vector<96x128xf32> to vector<32x128xf32>
    %347 = vector.extract_strided_slice %334 {offsets = [64, 0], sizes = [32, 128], strides = [1, 1]} : vector<96x128xf32> to vector<32x128xf32>
    %348 = arith.mulf %344, %347 : vector<32x128xf32>
    %349 = arith.addf %346, %348 : vector<32x128xf32>
    %350 = math.tanh %349 : vector<32x128xf32>
    %cst_52 = arith.constant 1.000000e+00 : f32
    %351 = vector.broadcast %cst_52 : f32 to vector<32x128xf32>
    %352 = arith.subf %351, %345 : vector<32x128xf32>
    %353 = arith.mulf %352, %350 : vector<32x128xf32>
    %354 = arith.mulf %345, %293 : vector<32x128xf32>
    %355 = arith.addf %353, %354 : vector<32x128xf32>
    %c6 = arith.constant 6 : index
    %c0_53 = arith.constant 0 : index
    %c0_54 = arith.constant 0 : index
    %356 = vector.load %arg1[%c6, %c0_53, %c0_54] : memref<9x32x128xf32, #tpu.memory_space<vmem>>, vector<1x32x128xf32>
    %357 = vector.shape_cast %356 : vector<1x32x128xf32> to vector<32x128xf32>
    %358 = tpu.concatenate %333, %316, %355, %357 in 0 : vector<32x128xf32>, vector<32x128xf32>, vector<32x128xf32>, vector<32x128xf32> -> vector<128x128xf32>
    %359 = arith.truncf %358 : vector<128x128xf32> to vector<128x128xbf16>
    %c0_55 = arith.constant 0 : index
    %c0_56 = arith.constant 0 : index
    %360 = vector.load %arg2[%c0_55, %c0_56] : memref<448x128xbf16, #tpu.memory_space<vmem>>, vector<448x128xbf16>
    %cst_57 = arith.constant dense<0.000000e+00> : vector<448x128xf32>
    %361 = tpu.matmul %360, %359, %cst_57 {dimension_numbers = #tpu.dot_dimension_numbers<[1], [0], [0], [1], [0, 0, 1, 1], [], []>} : vector<448x128xbf16>, vector<128x128xbf16>, vector<448x128xf32> -> vector<448x128xf32>
    %362 = vector.extract_strided_slice %361 {offsets = [128, 0], sizes = [128, 128], strides = [1, 1]} : vector<448x128xf32> to vector<128x128xf32>
    %363 = vector.extract_strided_slice %362 {offsets = [0, 0], sizes = [96, 128], strides = [1, 1]} : vector<128x128xf32> to vector<96x128xf32>
    %364 = arith.negf %363 : vector<96x128xf32>
    %365 = math.exp %364 : vector<96x128xf32>
    %cst_58 = arith.constant 1.000000e+00 : f32
    %366 = vector.broadcast %cst_58 : f32 to vector<96x128xf32>
    %367 = arith.addf %366, %365 : vector<96x128xf32>
    %368 = arith.divf %366, %367 : vector<96x128xf32>
    %369 = vector.extract_strided_slice %362 {offsets = [96, 0], sizes = [32, 128], strides = [1, 1]} : vector<128x128xf32> to vector<32x128xf32>
    %370 = math.tanh %369 : vector<32x128xf32>
    %371 = vector.extract_strided_slice %368 {offsets = [0, 0], sizes = [32, 128], strides = [1, 1]} : vector<96x128xf32> to vector<32x128xf32>
    %372 = vector.extract_strided_slice %368 {offsets = [32, 0], sizes = [32, 128], strides = [1, 1]} : vector<96x128xf32> to vector<32x128xf32>
    %373 = vector.extract_strided_slice %368 {offsets = [64, 0], sizes = [32, 128], strides = [1, 1]} : vector<96x128xf32> to vector<32x128xf32>
    %374 = arith.mulf %372, %314 : vector<32x128xf32>
    %375 = arith.mulf %371, %370 : vector<32x128xf32>
    %376 = arith.addf %374, %375 : vector<32x128xf32>
    %377 = math.tanh %376 : vector<32x128xf32>
    %378 = arith.mulf %373, %377 : vector<32x128xf32>
    %379 = vector.extract_strided_slice %361 {offsets = [0, 0], sizes = [128, 128], strides = [1, 1]} : vector<448x128xf32> to vector<128x128xf32>
    %380 = vector.extract_strided_slice %379 {offsets = [0, 0], sizes = [96, 128], strides = [1, 1]} : vector<128x128xf32> to vector<96x128xf32>
    %381 = arith.negf %380 : vector<96x128xf32>
    %382 = math.exp %381 : vector<96x128xf32>
    %cst_59 = arith.constant 1.000000e+00 : f32
    %383 = vector.broadcast %cst_59 : f32 to vector<96x128xf32>
    %384 = arith.addf %383, %382 : vector<96x128xf32>
    %385 = arith.divf %383, %384 : vector<96x128xf32>
    %386 = vector.extract_strided_slice %379 {offsets = [96, 0], sizes = [32, 128], strides = [1, 1]} : vector<128x128xf32> to vector<32x128xf32>
    %387 = math.tanh %386 : vector<32x128xf32>
    %388 = vector.extract_strided_slice %385 {offsets = [0, 0], sizes = [32, 128], strides = [1, 1]} : vector<96x128xf32> to vector<32x128xf32>
    %389 = vector.extract_strided_slice %385 {offsets = [32, 0], sizes = [32, 128], strides = [1, 1]} : vector<96x128xf32> to vector<32x128xf32>
    %390 = vector.extract_strided_slice %385 {offsets = [64, 0], sizes = [32, 128], strides = [1, 1]} : vector<96x128xf32> to vector<32x128xf32>
    %391 = arith.mulf %389, %331 : vector<32x128xf32>
    %392 = arith.mulf %388, %387 : vector<32x128xf32>
    %393 = arith.addf %391, %392 : vector<32x128xf32>
    %394 = math.tanh %393 : vector<32x128xf32>
    %395 = arith.mulf %390, %394 : vector<32x128xf32>
    %396 = vector.extract_strided_slice %361 {offsets = [256, 0], sizes = [96, 128], strides = [1, 1]} : vector<448x128xf32> to vector<96x128xf32>
    %397 = vector.extract_strided_slice %361 {offsets = [352, 0], sizes = [96, 128], strides = [1, 1]} : vector<448x128xf32> to vector<96x128xf32>
    %398 = vector.extract_strided_slice %397 {offsets = [0, 0], sizes = [64, 128], strides = [1, 1]} : vector<96x128xf32> to vector<64x128xf32>
    %399 = vector.extract_strided_slice %396 {offsets = [0, 0], sizes = [64, 128], strides = [1, 1]} : vector<96x128xf32> to vector<64x128xf32>
    %400 = arith.addf %398, %399 : vector<64x128xf32>
    %401 = arith.negf %400 : vector<64x128xf32>
    %402 = math.exp %401 : vector<64x128xf32>
    %cst_60 = arith.constant 1.000000e+00 : f32
    %403 = vector.broadcast %cst_60 : f32 to vector<64x128xf32>
    %404 = arith.addf %403, %402 : vector<64x128xf32>
    %405 = arith.divf %403, %404 : vector<64x128xf32>
    %406 = vector.extract_strided_slice %405 {offsets = [0, 0], sizes = [32, 128], strides = [1, 1]} : vector<64x128xf32> to vector<32x128xf32>
    %407 = vector.extract_strided_slice %405 {offsets = [32, 0], sizes = [32, 128], strides = [1, 1]} : vector<64x128xf32> to vector<32x128xf32>
    %408 = vector.extract_strided_slice %397 {offsets = [64, 0], sizes = [32, 128], strides = [1, 1]} : vector<96x128xf32> to vector<32x128xf32>
    %409 = vector.extract_strided_slice %396 {offsets = [64, 0], sizes = [32, 128], strides = [1, 1]} : vector<96x128xf32> to vector<32x128xf32>
    %410 = arith.mulf %406, %409 : vector<32x128xf32>
    %411 = arith.addf %408, %410 : vector<32x128xf32>
    %412 = math.tanh %411 : vector<32x128xf32>
    %cst_61 = arith.constant 1.000000e+00 : f32
    %413 = vector.broadcast %cst_61 : f32 to vector<32x128xf32>
    %414 = arith.subf %413, %407 : vector<32x128xf32>
    %415 = arith.mulf %414, %412 : vector<32x128xf32>
    %416 = arith.mulf %407, %355 : vector<32x128xf32>
    %417 = arith.addf %415, %416 : vector<32x128xf32>
    %c7 = arith.constant 7 : index
    %c0_62 = arith.constant 0 : index
    %c0_63 = arith.constant 0 : index
    %418 = vector.load %arg1[%c7, %c0_62, %c0_63] : memref<9x32x128xf32, #tpu.memory_space<vmem>>, vector<1x32x128xf32>
    %419 = vector.shape_cast %418 : vector<1x32x128xf32> to vector<32x128xf32>
    %420 = tpu.concatenate %395, %378, %417, %419 in 0 : vector<32x128xf32>, vector<32x128xf32>, vector<32x128xf32>, vector<32x128xf32> -> vector<128x128xf32>
    %421 = arith.truncf %420 : vector<128x128xf32> to vector<128x128xbf16>
    %c0_64 = arith.constant 0 : index
    %c0_65 = arith.constant 0 : index
    %422 = vector.load %arg2[%c0_64, %c0_65] : memref<448x128xbf16, #tpu.memory_space<vmem>>, vector<448x128xbf16>
    %cst_66 = arith.constant dense<0.000000e+00> : vector<448x128xf32>
    %423 = tpu.matmul %422, %421, %cst_66 {dimension_numbers = #tpu.dot_dimension_numbers<[1], [0], [0], [1], [0, 0, 1, 1], [], []>} : vector<448x128xbf16>, vector<128x128xbf16>, vector<448x128xf32> -> vector<448x128xf32>
    %424 = vector.extract_strided_slice %423 {offsets = [128, 0], sizes = [128, 128], strides = [1, 1]} : vector<448x128xf32> to vector<128x128xf32>
    %425 = vector.extract_strided_slice %424 {offsets = [0, 0], sizes = [96, 128], strides = [1, 1]} : vector<128x128xf32> to vector<96x128xf32>
    %426 = arith.negf %425 : vector<96x128xf32>
    %427 = math.exp %426 : vector<96x128xf32>
    %cst_67 = arith.constant 1.000000e+00 : f32
    %428 = vector.broadcast %cst_67 : f32 to vector<96x128xf32>
    %429 = arith.addf %428, %427 : vector<96x128xf32>
    %430 = arith.divf %428, %429 : vector<96x128xf32>
    %431 = vector.extract_strided_slice %424 {offsets = [96, 0], sizes = [32, 128], strides = [1, 1]} : vector<128x128xf32> to vector<32x128xf32>
    %432 = math.tanh %431 : vector<32x128xf32>
    %433 = vector.extract_strided_slice %430 {offsets = [0, 0], sizes = [32, 128], strides = [1, 1]} : vector<96x128xf32> to vector<32x128xf32>
    %434 = vector.extract_strided_slice %430 {offsets = [32, 0], sizes = [32, 128], strides = [1, 1]} : vector<96x128xf32> to vector<32x128xf32>
    %435 = vector.extract_strided_slice %430 {offsets = [64, 0], sizes = [32, 128], strides = [1, 1]} : vector<96x128xf32> to vector<32x128xf32>
    %436 = arith.mulf %434, %376 : vector<32x128xf32>
    %437 = arith.mulf %433, %432 : vector<32x128xf32>
    %438 = arith.addf %436, %437 : vector<32x128xf32>
    %439 = math.tanh %438 : vector<32x128xf32>
    %440 = arith.mulf %435, %439 : vector<32x128xf32>
    %441 = vector.extract_strided_slice %423 {offsets = [0, 0], sizes = [128, 128], strides = [1, 1]} : vector<448x128xf32> to vector<128x128xf32>
    %442 = vector.extract_strided_slice %441 {offsets = [0, 0], sizes = [96, 128], strides = [1, 1]} : vector<128x128xf32> to vector<96x128xf32>
    %443 = arith.negf %442 : vector<96x128xf32>
    %444 = math.exp %443 : vector<96x128xf32>
    %cst_68 = arith.constant 1.000000e+00 : f32
    %445 = vector.broadcast %cst_68 : f32 to vector<96x128xf32>
    %446 = arith.addf %445, %444 : vector<96x128xf32>
    %447 = arith.divf %445, %446 : vector<96x128xf32>
    %448 = vector.extract_strided_slice %441 {offsets = [96, 0], sizes = [32, 128], strides = [1, 1]} : vector<128x128xf32> to vector<32x128xf32>
    %449 = math.tanh %448 : vector<32x128xf32>
    %450 = vector.extract_strided_slice %447 {offsets = [0, 0], sizes = [32, 128], strides = [1, 1]} : vector<96x128xf32> to vector<32x128xf32>
    %451 = vector.extract_strided_slice %447 {offsets = [32, 0], sizes = [32, 128], strides = [1, 1]} : vector<96x128xf32> to vector<32x128xf32>
    %452 = vector.extract_strided_slice %447 {offsets = [64, 0], sizes = [32, 128], strides = [1, 1]} : vector<96x128xf32> to vector<32x128xf32>
    %453 = arith.mulf %451, %393 : vector<32x128xf32>
    %454 = arith.mulf %450, %449 : vector<32x128xf32>
    %455 = arith.addf %453, %454 : vector<32x128xf32>
    %456 = math.tanh %455 : vector<32x128xf32>
    %457 = arith.mulf %452, %456 : vector<32x128xf32>
    %458 = vector.extract_strided_slice %423 {offsets = [256, 0], sizes = [96, 128], strides = [1, 1]} : vector<448x128xf32> to vector<96x128xf32>
    %459 = vector.extract_strided_slice %423 {offsets = [352, 0], sizes = [96, 128], strides = [1, 1]} : vector<448x128xf32> to vector<96x128xf32>
    %460 = vector.extract_strided_slice %459 {offsets = [0, 0], sizes = [64, 128], strides = [1, 1]} : vector<96x128xf32> to vector<64x128xf32>
    %461 = vector.extract_strided_slice %458 {offsets = [0, 0], sizes = [64, 128], strides = [1, 1]} : vector<96x128xf32> to vector<64x128xf32>
    %462 = arith.addf %460, %461 : vector<64x128xf32>
    %463 = arith.negf %462 : vector<64x128xf32>
    %464 = math.exp %463 : vector<64x128xf32>
    %cst_69 = arith.constant 1.000000e+00 : f32
    %465 = vector.broadcast %cst_69 : f32 to vector<64x128xf32>
    %466 = arith.addf %465, %464 : vector<64x128xf32>
    %467 = arith.divf %465, %466 : vector<64x128xf32>
    %468 = vector.extract_strided_slice %467 {offsets = [0, 0], sizes = [32, 128], strides = [1, 1]} : vector<64x128xf32> to vector<32x128xf32>
    %469 = vector.extract_strided_slice %467 {offsets = [32, 0], sizes = [32, 128], strides = [1, 1]} : vector<64x128xf32> to vector<32x128xf32>
    %470 = vector.extract_strided_slice %459 {offsets = [64, 0], sizes = [32, 128], strides = [1, 1]} : vector<96x128xf32> to vector<32x128xf32>
    %471 = vector.extract_strided_slice %458 {offsets = [64, 0], sizes = [32, 128], strides = [1, 1]} : vector<96x128xf32> to vector<32x128xf32>
    %472 = arith.mulf %468, %471 : vector<32x128xf32>
    %473 = arith.addf %470, %472 : vector<32x128xf32>
    %474 = math.tanh %473 : vector<32x128xf32>
    %cst_70 = arith.constant 1.000000e+00 : f32
    %475 = vector.broadcast %cst_70 : f32 to vector<32x128xf32>
    %476 = arith.subf %475, %469 : vector<32x128xf32>
    %477 = arith.mulf %476, %474 : vector<32x128xf32>
    %478 = arith.mulf %469, %417 : vector<32x128xf32>
    %479 = arith.addf %477, %478 : vector<32x128xf32>
    %c8 = arith.constant 8 : index
    %c0_71 = arith.constant 0 : index
    %c0_72 = arith.constant 0 : index
    %480 = vector.load %arg1[%c8, %c0_71, %c0_72] : memref<9x32x128xf32, #tpu.memory_space<vmem>>, vector<1x32x128xf32>
    %481 = vector.shape_cast %480 : vector<1x32x128xf32> to vector<32x128xf32>
    %482 = tpu.concatenate %457, %440, %479, %481 in 0 : vector<32x128xf32>, vector<32x128xf32>, vector<32x128xf32>, vector<32x128xf32> -> vector<128x128xf32>
    %483 = arith.truncf %482 : vector<128x128xf32> to vector<128x128xbf16>
    %c0_73 = arith.constant 0 : index
    %c0_74 = arith.constant 0 : index
    %484 = vector.load %arg2[%c0_73, %c0_74] : memref<448x128xbf16, #tpu.memory_space<vmem>>, vector<448x128xbf16>
    %cst_75 = arith.constant dense<0.000000e+00> : vector<448x128xf32>
    %485 = tpu.matmul %484, %483, %cst_75 {dimension_numbers = #tpu.dot_dimension_numbers<[1], [0], [0], [1], [0, 0, 1, 1], [], []>} : vector<448x128xbf16>, vector<128x128xbf16>, vector<448x128xf32> -> vector<448x128xf32>
    %486 = vector.extract_strided_slice %485 {offsets = [128, 0], sizes = [128, 128], strides = [1, 1]} : vector<448x128xf32> to vector<128x128xf32>
    %487 = vector.extract_strided_slice %486 {offsets = [0, 0], sizes = [96, 128], strides = [1, 1]} : vector<128x128xf32> to vector<96x128xf32>
    %488 = arith.negf %487 : vector<96x128xf32>
    %489 = math.exp %488 : vector<96x128xf32>
    %cst_76 = arith.constant 1.000000e+00 : f32
    %490 = vector.broadcast %cst_76 : f32 to vector<96x128xf32>
    %491 = arith.addf %490, %489 : vector<96x128xf32>
    %492 = arith.divf %490, %491 : vector<96x128xf32>
    %493 = vector.extract_strided_slice %486 {offsets = [96, 0], sizes = [32, 128], strides = [1, 1]} : vector<128x128xf32> to vector<32x128xf32>
    %494 = math.tanh %493 : vector<32x128xf32>
    %495 = vector.extract_strided_slice %492 {offsets = [0, 0], sizes = [32, 128], strides = [1, 1]} : vector<96x128xf32> to vector<32x128xf32>
    %496 = vector.extract_strided_slice %492 {offsets = [32, 0], sizes = [32, 128], strides = [1, 1]} : vector<96x128xf32> to vector<32x128xf32>
    %497 = vector.extract_strided_slice %492 {offsets = [64, 0], sizes = [32, 128], strides = [1, 1]} : vector<96x128xf32> to vector<32x128xf32>
    %498 = arith.mulf %496, %438 : vector<32x128xf32>
    %499 = arith.mulf %495, %494 : vector<32x128xf32>
    %500 = arith.addf %498, %499 : vector<32x128xf32>
    %501 = math.tanh %500 : vector<32x128xf32>
    %502 = arith.mulf %497, %501 : vector<32x128xf32>
    %c0_77 = arith.constant 0 : index
    %c0_78 = arith.constant 0 : index
    %503 = vector.load %arg3[%c0_77, %c0_78] : memref<32x1xf32, #tpu.memory_space<vmem>>, vector<32x1xf32>
    %504 = vector.broadcast %503 : vector<32x1xf32> to vector<32x128xf32>
    %505 = arith.mulf %502, %504 : vector<32x128xf32>
    %c0_79 = arith.constant 0 : index
    %c0_80 = arith.constant 0 : index
    %506 = vector.load %arg4[%c0_79, %c0_80] : memref<32x1xf32, #tpu.memory_space<vmem>>, vector<32x1xf32>
    %507 = vector.broadcast %506 : vector<32x1xf32> to vector<32x128xf32>
    %508 = arith.mulf %479, %507 : vector<32x128xf32>
    %509 = arith.addf %505, %508 : vector<32x128xf32>
    %cst_81 = arith.constant dense<0.000000e+00> : vector<128xf32>
    %510 = vector.multi_reduction <add>, %509, %cst_81 [0] : vector<32x128xf32> to vector<128xf32>
    %511 = vector.shape_cast %510 : vector<128xf32> to vector<1x128xf32>
    %c0_82 = arith.constant 0 : index
    %c0_83 = arith.constant 0 : index
    %512 = vector.load %arg5[%c0_82, %c0_83] : memref<1x1xf32, #tpu.memory_space<vmem>>, vector<1x1xf32>
    %513 = vector.broadcast %512 : vector<1x1xf32> to vector<1x128xf32>
    %514 = arith.addf %511, %513 : vector<1x128xf32>
    %515 = arith.negf %514 : vector<1x128xf32>
    %516 = math.exp %515 : vector<1x128xf32>
    %cst_84 = arith.constant 1.000000e+00 : f32
    %517 = vector.broadcast %cst_84 : f32 to vector<1x128xf32>
    %518 = arith.addf %517, %516 : vector<1x128xf32>
    %519 = arith.divf %517, %518 : vector<1x128xf32>
    %c0_85 = arith.constant 0 : index
    %c0_86 = arith.constant 0 : index
    %520 = vector.load %arg6[%c0_85, %c0_86] : memref<1x128xf32, #tpu.memory_space<vmem>>, vector<1x128xf32>
    tpu.vector_store %arg6[%c0_85, %c0_86], %519 {strides = array<i32>} : memref<1x128xf32, #tpu.memory_space<vmem>>, vector<1x128xf32>,
    return
  }
  func.func @transform_0(%arg0: i32) -> (i32, i32, i32) {
    %c0_i32 = arith.constant 0 : i32
    %c0_i32_0 = arith.constant 0 : i32
    %c0_i32_1 = arith.constant 0 : i32
    return %c0_i32, %c0_i32_0, %arg0 : i32, i32, i32
  }
  func.func @transform_1(%arg0: i32) -> (i32, i32) {
    %c0_i32 = arith.constant 0 : i32
    %c0_i32_0 = arith.constant 0 : i32
    %c0_i32_1 = arith.constant 0 : i32
    return %c0_i32, %c0_i32_0 : i32, i32
  }
  func.func @transform_2(%arg0: i32) -> (i32, i32) {
    %c0_i32 = arith.constant 0 : i32
    %c0_i32_0 = arith.constant 0 : i32
    %c0_i32_1 = arith.constant 0 : i32
    return %c0_i32, %c0_i32_0 : i32, i32
  }
  func.func @transform_3(%arg0: i32) -> (i32, i32) {
    %c0_i32 = arith.constant 0 : i32
    %c0_i32_0 = arith.constant 0 : i32
    %c0_i32_1 = arith.constant 0 : i32
    return %c0_i32, %c0_i32_0 : i32, i32
  }
  func.func @transform_4(%arg0: i32) -> (i32, i32) {
    %c0_i32 = arith.constant 0 : i32
    %c0_i32_0 = arith.constant 0 : i32
    %c0_i32_1 = arith.constant 0 : i32
    return %c0_i32, %c0_i32_0 : i32, i32
  }
  func.func @transform_5(%arg0: i32) -> (i32, i32) {
    %c0_i32 = arith.constant 0 : i32
    %c0_i32_0 = arith.constant 0 : i32
    return %c0_i32, %arg0 : i32, i32
  }
}

</mosaic_0001>

<llo_original>
// kernel: tpu_custom_call.1
$region0: #{tpu_custom_call.1}
  #allocation0 [shape = 'u32[]', space=smem, size = 0x4, offset = 0x4, fixed_abs, tag = 'smem constant byte address 0x4 - core index']
  #allocation1 [shape = 'u32[72,128]{1,0:T(1,128)}', space=vmem, size = 0x9000, scoped, tag = 'internal scratch']
  #allocation2 [shape = 'f32[1,1]{1,0:T(1,128)S(1)}', space=vmem, size = 0x200, scoped, tag = 'scoped memory for tpu_custom_call.1']
  %s0 = inlined_call_operand.hbm [shape: f32[9,32,128], index: 0, kind: input, shape index: {}]
  %s1 = inlined_call_operand.hbm [shape: bf16[448,128], index: 1, kind: input, shape index: {}]
  %s2 = inlined_call_operand.vmem [shape: f32[32,1], index: 2, kind: input, shape index: {}]
  %s3 = inlined_call_operand.vmem [shape: f32[32,1], index: 3, kind: input, shape index: {}]
  %s4 = inlined_call_operand.<no memory space> [shape: f32[1,1], index: 4, kind: input, shape index: {}]
  %s5 = inlined_call_operand.hbm [shape: f32[1,128], index: 5, kind: output, shape index: {}]
  %s6 = sld [smem:[#allocation0]]
  $region38: #{tpu_custom_call.1} parent=0
    _
  %s8 = ssub.s32 1, %s6
  %s9 = scalar_select 0, %s8, %s6
  %v10 = vstv %s4
  %11 = vst [vmem:[#allocation2] sm:$0x1] %v10
  $region1: #{tpu_custom_call.1} parent=0
    #allocation3 [shape = 'u8[147456]{0}', space=vmem, size = 0x24000, scoped, tag = 'input window, operand 0, single buffered']
    #allocation4 [shape = 's32[1]{0}', space=sflag, size = 0x4, scoped, tag = 'scoped memory for tpu_custom_call.1']
    #allocation5 [shape = 's32[1]{0}', space=sflag, size = 0x4, scoped, tag = 'scoped memory for tpu_custom_call.1']
    #allocation6 [shape = 'u8[114688]{0}', space=vmem, size = 0x1c000, scoped, tag = 'input window, operand 1, single buffered']
    #allocation7 [shape = 's32[1]{0}', space=sflag, size = 0x4, scoped, tag = 'scoped memory for tpu_custom_call.1']
    #allocation8 [shape = 'u8[512]{0}', space=vmem, size = 0x400, scoped, tag = 'output window, operand 0, single buffered']
    %12 = vsyncpa [#allocation4], 0
    %13 = vsyncpa [#allocation7], 0
    %14 = vsyncpa [#allocation5], 0
    // Predicated region
    $region2: #{tpu_custom_call.1} parent=1 // pred_check
      _
    $region3: #{tpu_custom_call.1} parent=1 // pred_check_branch
      %16 = sbr.rel (0) target = $region5
    $region4: #{tpu_custom_call.1} parent=1 // pred_region
      %18 = vsyncadd [#allocation4], 0
      %s19 = sshll.u32 %s0, 4
      %s20 = int_to_ptr.hbm [resolvable:$true] %s19
      %s21 = sshll.u32 [#allocation3], 4
      %s22 = int_to_ptr.vmem [resolvable:$true] %s21
      %27 = dma.hbm_to_vmem [thread:$0]  %s20, 4608, %s22, [#allocation4], 128, 128, 8
    $region5: #{tpu_custom_call.1} parent=1 // pred_fallthru
      _
    // Predicated region
    $region6: #{tpu_custom_call.1} parent=1 // pred_check
      _
    $region7: #{tpu_custom_call.1} parent=1 // pred_check_branch
      %29 = sbr.rel (0) target = $region9
    $region8: #{tpu_custom_call.1} parent=1 // pred_region
      %31 = vsyncadd [#allocation7], 0
      %s32 = sshll.u32 %s1, 4
      %s33 = int_to_ptr.hbm [resolvable:$true] %s32
      %s34 = sshll.u32 [#allocation6], 4
      %s35 = int_to_ptr.vmem [resolvable:$true] %s34
      %40 = dma.hbm_to_vmem [thread:$0]  %s33, 3584, %s35, [#allocation7], 64, 64, 4
    $region9: #{tpu_custom_call.1} parent=1 // pred_fallthru
      _
    // Predicated region
    $region10: #{tpu_custom_call.1} parent=1 // pred_check
      _
    $region11: #{tpu_custom_call.1} parent=1 // pred_check_branch
      %42 = sbr.rel (0) target = $region13
    $region12: #{tpu_custom_call.1} parent=1 // pred_region
      _
    $region13: #{tpu_custom_call.1} parent=1 // pred_fallthru
      _
    // Predicated region
    $region14: #{tpu_custom_call.1} parent=1 // pred_check
      _
    $region15: #{tpu_custom_call.1} parent=1 // pred_check_branch
      %44 = sbr.rel (0) target = $region17
    $region16: #{tpu_custom_call.1} parent=1 // pred_region
      _
    $region17: #{tpu_custom_call.1} parent=1 // pred_fallthru
      _
    // Predicated region
    $region18: #{tpu_custom_call.1} parent=1 // pred_check
      _
    $region19: #{tpu_custom_call.1} parent=1 // pred_check_branch
      %46 = sbr.rel (0) target = $region21
    $region20: #{tpu_custom_call.1} parent=1 // pred_region
      _
    $region21: #{tpu_custom_call.1} parent=1 // pred_fallthru
      _
    // Predicated region
    $region22: #{tpu_custom_call.1} parent=1 // pred_check
      _
    $region23: #{tpu_custom_call.1} parent=1 // pred_check_branch
      %48 = sbr.rel (0) target = $region25
    $region24: #{tpu_custom_call.1} parent=1 // pred_region
      %50 = dma.done [#allocation4], 4608
    $region25: #{tpu_custom_call.1} parent=1 // pred_fallthru
      _
    // Predicated region
    $region26: #{tpu_custom_call.1} parent=1 // pred_check
      _
    $region27: #{tpu_custom_call.1} parent=1 // pred_check_branch
      %52 = sbr.rel (0) target = $region29
    $region28: #{tpu_custom_call.1} parent=1 // pred_region
      %54 = dma.done [#allocation7], 3584
    $region29: #{tpu_custom_call.1} parent=1 // pred_fallthru
      _
    %v55 = vld [vmem:[#allocation3] sm:$0xff]
    %v56 = vld [vmem:[#allocation3 + $0x8] sm:$0xff]
    %v57 = vld [vmem:[#allocation3 + $0x10] sm:$0xff]
    %v58 = vld [vmem:[#allocation3 + $0x18] sm:$0xff]
    %v59 = vpack.c.bf16 0.0, 0.0
    %v60 = vpack.c.bf16 %v56, %v55
    %v61 = vpack.c.bf16 %v58, %v57
    %v62 = vld [vmem:[#allocation6] sm:$0xf]
    %v63 = vld [vmem:[#allocation6 + $0x4] sm:$0xf]
    %v64 = vld [vmem:[#allocation6 + $0x8] sm:$0xf]
    %v65 = vld [vmem:[#allocation6 + $0xc] sm:$0xf]
    %v66 = vld [vmem:[#allocation6 + $0x10] sm:$0xf]
    %v67 = vld [vmem:[#allocation6 + $0x14] sm:$0xf]
    %v68 = vld [vmem:[#allocation6 + $0x18] sm:$0xf]
    %v69 = vld [vmem:[#allocation6 + $0x1c] sm:$0xf]
    %v70 = vld [vmem:[#allocation6 + $0x20] sm:$0xf]
    %v71 = vld [vmem:[#allocation6 + $0x24] sm:$0xf]
    %v72 = vld [vmem:[#allocation6 + $0x28] sm:$0xf]
    %v73 = vld [vmem:[#allocation6 + $0x2c] sm:$0xf]
    %v74 = vld [vmem:[#allocation6 + $0x30] sm:$0xf]
    %v75 = vld [vmem:[#allocation6 + $0x34] sm:$0xf]
    %v76 = vld [vmem:[#allocation6 + $0x38] sm:$0xf]
    %v77 = vld [vmem:[#allocation6 + $0x3c] sm:$0xf]
    %v78 = vld [vmem:[#allocation6 + $0x40] sm:$0xf]
    %v79 = vld [vmem:[#allocation6 + $0x44] sm:$0xf]
    %v80 = vld [vmem:[#allocation6 + $0x48] sm:$0xf]
    %v81 = vld [vmem:[#allocation6 + $0x4c] sm:$0xf]
    %v82 = vld [vmem:[#allocation6 + $0x50] sm:$0xf]
    %v83 = vld [vmem:[#allocation6 + $0x54] sm:$0xf]
    %v84 = vld [vmem:[#allocation6 + $0x58] sm:$0xf]
    %v85 = vld [vmem:[#allocation6 + $0x5c] sm:$0xf]
    %v86 = vld [vmem:[#allocation6 + $0x60] sm:$0xf]
    %v87 = vld [vmem:[#allocation6 + $0x64] sm:$0xf]
    %v88 = vld [vmem:[#allocation6 + $0x68] sm:$0xf]
    %v89 = vld [vmem:[#allocation6 + $0x6c] sm:$0xf]
    %v90 = vld [vmem:[#allocation6 + $0x70] sm:$0xf]
    %v91 = vld [vmem:[#allocation6 + $0x74] sm:$0xf]
    %v92 = vld [vmem:[#allocation6 + $0x78] sm:$0xf]
    %v93 = vld [vmem:[#allocation6 + $0x7c] sm:$0xf]
    %v94 = vld [vmem:[#allocation6 + $0x80] sm:$0xf]
    %v95 = vld [vmem:[#allocation6 + $0x84] sm:$0xf]
    %v96 = vld [vmem:[#allocation6 + $0x88] sm:$0xf]
    %v97 = vld [vmem:[#allocation6 + $0x8c] sm:$0xf]
    %v98 = vld [vmem:[#allocation6 + $0x90] sm:$0xf]
    %v99 = vld [vmem:[#allocation6 + $0x94] sm:$0xf]
    %v100 = vld [vmem:[#allocation6 + $0x98] sm:$0xf]
    %v101 = vld [vmem:[#allocation6 + $0x9c] sm:$0xf]
    %v102 = vld [vmem:[#allocation6 + $0xa0] sm:$0xf]
    %v103 = vld [vmem:[#allocation6 + $0xa4] sm:$0xf]
    %v104 = vld [vmem:[#allocation6 + $0xa8] sm:$0xf]
    %v105 = vld [vmem:[#allocation6 + $0xac] sm:$0xf]
    %v106 = vld [vmem:[#allocation6 + $0xb0] sm:$0xf]
    %v107 = vld [vmem:[#allocation6 + $0xb4] sm:$0xf]
    %v108 = vld [vmem:[#allocation6 + $0xb8] sm:$0xf]
    %v109 = vld [vmem:[#allocation6 + $0xbc] sm:$0xf]
    %v110 = vld [vmem:[#allocation6 + $0xc0] sm:$0xf]
    %v111 = vld [vmem:[#allocation6 + $0xc4] sm:$0xf]
    %v112 = vld [vmem:[#allocation6 + $0xc8] sm:$0xf]
    %v113 = vld [vmem:[#allocation6 + $0xcc] sm:$0xf]
    %v114 = vld [vmem:[#allocation6 + $0xd0] sm:$0xf]
    %v115 = vld [vmem:[#allocation6 + $0xd4] sm:$0xf]
    %v116 = vld [vmem:[#allocation6 + $0xd8] sm:$0xf]
    %v117 = vld [vmem:[#allocation6 + $0xdc] sm:$0xf]
    %v174 = vunpack.c.l.b16 %v62
    %v175 = vunpack.c.l.b16 %v63
    %v176 = vunpack.c.l.b16 %v64
    %v177 = vunpack.c.l.b16 %v65
    %v178 = vunpack.c.l.b16 %v66
    %v179 = vunpack.c.l.b16 %v67
    %v180 = vunpack.c.l.b16 %v68
    %v181 = vunpack.c.l.b16 %v69
    %v182 = vunpack.c.l.b16 %v70
    %v183 = vunpack.c.l.b16 %v71
    %v184 = vunpack.c.l.b16 %v72
    %v185 = vunpack.c.l.b16 %v73
    %v186 = vunpack.c.l.b16 %v74
    %v187 = vunpack.c.l.b16 %v75
    %v188 = vunpack.c.l.b16 %v76
    %v189 = vunpack.c.l.b16 %v77
    %v190 = vunpack.c.l.b16 %v78
    %v191 = vunpack.c.l.b16 %v79
    %v192 = vunpack.c.l.b16 %v80
    %v193 = vunpack.c.l.b16 %v81
    %v194 = vunpack.c.l.b16 %v82
    %v195 = vunpack.c.l.b16 %v83
    %v196 = vunpack.c.l.b16 %v84
    %v197 = vunpack.c.l.b16 %v85
    %v198 = vunpack.c.l.b16 %v86
    %v199 = vunpack.c.l.b16 %v87
    %v200 = vunpack.c.l.b16 %v88
    %v201 = vunpack.c.l.b16 %v89
    %v202 = vunpack.c.l.b16 %v90
    %v203 = vunpack.c.l.b16 %v91
    %v204 = vunpack.c.l.b16 %v92
    %v205 = vunpack.c.l.b16 %v93
    %v206 = vunpack.c.l.b16 %v94
    %v207 = vunpack.c.l.b16 %v95
    %v208 = vunpack.c.l.b16 %v96
    %v209 = vunpack.c.l.b16 %v97
    %v210 = vunpack.c.l.b16 %v98
    %v211 = vunpack.c.l.b16 %v99
    %v212 = vunpack.c.l.b16 %v100
    %v213 = vunpack.c.l.b16 %v101
    %v214 = vunpack.c.l.b16 %v102
    %v215 = vunpack.c.l.b16 %v103
    %v216 = vunpack.c.l.b16 %v104
    %v217 = vunpack.c.l.b16 %v105
    %v218 = vunpack.c.l.b16 %v106
    %v219 = vunpack.c.l.b16 %v107
    %v220 = vunpack.c.l.b16 %v108
    %v221 = vunpack.c.l.b16 %v109
    %v222 = vunpack.c.l.b16 %v110
    %v223 = vunpack.c.l.b16 %v111
    %v224 = vunpack.c.l.b16 %v112
    %v225 = vunpack.c.l.b16 %v113
    %v226 = vunpack.c.l.b16 %v114
    %v227 = vunpack.c.l.b16 %v115
    %v228 = vunpack.c.l.b16 %v116
    %v229 = vunpack.c.l.b16 %v117
    %v230 = vpack.c.b16 %v175, %v174
    %v231 = vpack.c.b16 %v177, %v176
    %v232 = vpack.c.b16 %v179, %v178
    %v233 = vpack.c.b16 %v181, %v180
    %v234 = vpack.c.b16 %v183, %v182
    %v235 = vpack.c.b16 %v185, %v184
    %v236 = vpack.c.b16 %v187, %v186
    %v237 = vpack.c.b16 %v189, %v188
    %v238 = vpack.c.b16 %v191, %v190
    %v239 = vpack.c.b16 %v193, %v192
    %v240 = vpack.c.b16 %v195, %v194
    %v241 = vpack.c.b16 %v197, %v196
    %v242 = vpack.c.b16 %v199, %v198
    %v243 = vpack.c.b16 %v201, %v200
    %v244 = vpack.c.b16 %v203, %v202
    %v245 = vpack.c.b16 %v205, %v204
    %v246 = vpack.c.b16 %v207, %v206
    %v247 = vpack.c.b16 %v209, %v208
    %v248 = vpack.c.b16 %v211, %v210
    %v249 = vpack.c.b16 %v213, %v212
    %v250 = vpack.c.b16 %v215, %v214
    %v251 = vpack.c.b16 %v217, %v216
    %v252 = vpack.c.b16 %v219, %v218
    %v253 = vpack.c.b16 %v221, %v220
    %v254 = vpack.c.b16 %v223, %v222
    %v255 = vpack.c.b16 %v225, %v224
    %v256 = vpack.c.b16 %v227, %v226
    %v257 = vpack.c.b16 %v229, %v228
    %286 = vmatpush.bf16.msra.mxu0 %v61
    %287 = vmatpush.bf16.msra.mxu0 %v60
    %288 = vmatpush.bf16.msra.mxu0 %v59
    %289 = vmatpush.bf16.msra.mxu0 %v59
    %290 = vmatpush.bf16.msra.mxu0 %v59
    %291 = vmatpush.bf16.msra.mxu0 %v59
    %292 = vmatpush.bf16.msra.mxu0 %v59
    %293 = vmatpush.bf16.msra.mxu0 %v59
    %294 = vmatmul.bf16.gmra.mxu0 %v230
    %v295 = vpop.f32.mrf.mxu0
    %v296 = vadd.f32 0.0, %v295
    %v297 = vpop.f32.mrf.mxu0
    %v298 = vadd.f32 0.0, %v297
    %299 = vmatmul.bf16.gmra.mxu0 %v231
    %v300 = vpop.f32.mrf.mxu0
    %v301 = vadd.f32 0.0, %v300
    %v302 = vpop.f32.mrf.mxu0
    %v303 = vadd.f32 0.0, %v302
    %304 = vmatmul.bf16.gmra.mxu0 %v232
    %v305 = vpop.f32.mrf.mxu0
    %v306 = vadd.f32 0.0, %v305
    %v307 = vpop.f32.mrf.mxu0
    %v308 = vadd.f32 0.0, %v307
    %309 = vmatmul.bf16.gmra.mxu0 %v233
    %v310 = vpop.f32.mrf.mxu0
    %v311 = vadd.f32 0.0, %v310
    %v312 = vpop.f32.mrf.mxu0
    %v313 = vadd.f32 0.0, %v312
    %314 = vmatmul.bf16.gmra.mxu0 %v234
    %v315 = vpop.f32.mrf.mxu0
    %v316 = vadd.f32 0.0, %v315
    %v317 = vpop.f32.mrf.mxu0
    %v318 = vadd.f32 0.0, %v317
    %319 = vmatmul.bf16.gmra.mxu0 %v235
    %v320 = vpop.f32.mrf.mxu0
    %v321 = vadd.f32 0.0, %v320
    %v322 = vpop.f32.mrf.mxu0
    %v323 = vadd.f32 0.0, %v322
    %324 = vmatmul.bf16.gmra.mxu0 %v236
    %v325 = vpop.f32.mrf.mxu0
    %v326 = vadd.f32 0.0, %v325
    %v327 = vpop.f32.mrf.mxu0
    %v328 = vadd.f32 0.0, %v327
    %329 = vmatmul.bf16.gmra.mxu0 %v237
    %v330 = vpop.f32.mrf.mxu0
    %v331 = vadd.f32 0.0, %v330
    %v332 = vpop.f32.mrf.mxu0
    %v333 = vadd.f32 0.0, %v332
    %334 = vmatmul.bf16.gmra.mxu0 %v238
    %v335 = vpop.f32.mrf.mxu0
    %v336 = vpop.f32.mrf.mxu0
    %337 = vmatmul.bf16.gmra.mxu0 %v239
    %v338 = vpop.f32.mrf.mxu0
    %v339 = vpop.f32.mrf.mxu0
    %340 = vmatmul.bf16.gmra.mxu0 %v240
    %v341 = vpop.f32.mrf.mxu0
    %v342 = vpop.f32.mrf.mxu0
    %343 = vmatmul.bf16.gmra.mxu0 %v241
    %v344 = vpop.f32.mrf.mxu0
    %v345 = vpop.f32.mrf.mxu0
    %346 = vmatmul.bf16.gmra.mxu0 %v242
    %v347 = vpop.f32.mrf.mxu0
    %v348 = vpop.f32.mrf.mxu0
    %349 = vmatmul.bf16.gmra.mxu0 %v243
    %v350 = vpop.f32.mrf.mxu0
    %v351 = vpop.f32.mrf.mxu0
    %352 = vmatmul.bf16.gmra.mxu0 %v244
    %v353 = vpop.f32.mrf.mxu0
    %v354 = vpop.f32.mrf.mxu0
    %355 = vmatmul.bf16.gmra.mxu0 %v245
    %v356 = vpop.f32.mrf.mxu0
    %v357 = vpop.f32.mrf.mxu0
    %358 = vmatmul.bf16.gmra.mxu0 %v246
    %v359 = vpop.f32.mrf.mxu0
    %v360 = vadd.f32 0.0, %v359
    %v361 = vpop.f32.mrf.mxu0
    %v362 = vadd.f32 0.0, %v361
    %363 = vmatmul.bf16.gmra.mxu0 %v247
    %v364 = vpop.f32.mrf.mxu0
    %v365 = vadd.f32 0.0, %v364
    %v366 = vpop.f32.mrf.mxu0
    %v367 = vadd.f32 0.0, %v366
    %368 = vmatmul.bf16.gmra.mxu0 %v248
    %v369 = vpop.f32.mrf.mxu0
    %v370 = vadd.f32 0.0, %v369
    %v371 = vpop.f32.mrf.mxu0
    %v372 = vadd.f32 0.0, %v371
    %373 = vmatmul.bf16.gmra.mxu0 %v249
    %v374 = vpop.f32.mrf.mxu0
    %v375 = vadd.f32 0.0, %v374
    %v376 = vpop.f32.mrf.mxu0
    %v377 = vadd.f32 0.0, %v376
    %378 = vmatmul.bf16.gmra.mxu0 %v250
    %v379 = vpop.f32.mrf.mxu0
    %v380 = vadd.f32 0.0, %v379
    %v381 = vpop.f32.mrf.mxu0
    %v382 = vadd.f32 0.0, %v381
    %383 = vmatmul.bf16.gmra.mxu0 %v251
    %v384 = vpop.f32.mrf.mxu0
    %v385 = vadd.f32 0.0, %v384
    %v386 = vpop.f32.mrf.mxu0
    %v387 = vadd.f32 0.0, %v386
    %388 = vmatmul.bf16.gmra.mxu0 %v252
    %v389 = vpop.f32.mrf.mxu0
    %v390 = vadd.f32 0.0, %v389
    %v391 = vpop.f32.mrf.mxu0
    %v392 = vadd.f32 0.0, %v391
    %393 = vmatmul.bf16.gmra.mxu0 %v253
    %v394 = vpop.f32.mrf.mxu0
    %v395 = vadd.f32 0.0, %v394
    %v396 = vpop.f32.mrf.mxu0
    %v397 = vadd.f32 0.0, %v396
    %398 = vmatmul.bf16.gmra.mxu0 %v254
    %v399 = vpop.f32.mrf.mxu0
    %v400 = vadd.f32 0.0, %v399
    %v401 = vpop.f32.mrf.mxu0
    %v402 = vadd.f32 0.0, %v401
    %403 = vmatmul.bf16.gmra.mxu0 %v255
    %v404 = vpop.f32.mrf.mxu0
    %v405 = vadd.f32 0.0, %v404
    %v406 = vpop.f32.mrf.mxu0
    %v407 = vadd.f32 0.0, %v406
    %408 = vmatmul.bf16.gmra.mxu0 %v256
    %v409 = vpop.f32.mrf.mxu0
    %v410 = vadd.f32 0.0, %v409
    %v411 = vpop.f32.mrf.mxu0
    %v412 = vadd.f32 0.0, %v411
    %413 = vmatmul.bf16.gmra.mxu0 %v257
    %v414 = vpop.f32.mrf.mxu0
    %v415 = vadd.f32 0.0, %v414
    %v416 = vpop.f32.mrf.mxu0
    %v417 = vadd.f32 0.0, %v416
    %418 = vdwg.mxu0
    %v419 = vxor.u32 %v296, 2147483648
    %v420 = vxor.u32 %v298, 2147483648
    %v421 = vxor.u32 %v301, 2147483648
    %v422 = vxor.u32 %v303, 2147483648
    %v423 = vxor.u32 %v306, 2147483648
    %v424 = vxor.u32 %v308, 2147483648
    %v425 = vxor.u32 %v311, 2147483648
    %v426 = vxor.u32 %v313, 2147483648
    %v427 = vxor.u32 %v316, 2147483648
    %v428 = vxor.u32 %v318, 2147483648
    %v429 = vxor.u32 %v321, 2147483648
    %v430 = vxor.u32 %v323, 2147483648
    %v431 = vmul.f32 %v419, 1.442695
    %v432 = vpow.pop %v431
    %v433 = vmul.f32 %v420, 1.442695
    %v434 = vpow.pop %v433
    %v435 = vmul.f32 %v421, 1.442695
    %v436 = vpow.pop %v435
    %v437 = vmul.f32 %v422, 1.442695
    %v438 = vpow.pop %v437
    %v439 = vmul.f32 %v423, 1.442695
    %v440 = vpow.pop %v439
    %v441 = vmul.f32 %v424, 1.442695
    %v442 = vpow.pop %v441
    %v443 = vmul.f32 %v425, 1.442695
    %v444 = vpow.pop %v443
    %v445 = vmul.f32 %v426, 1.442695
    %v446 = vpow.pop %v445
    %v447 = vmul.f32 %v427, 1.442695
    %v448 = vpow.pop %v447
    %v449 = vmul.f32 %v428, 1.442695
    %v450 = vpow.pop %v449
    %v451 = vmul.f32 %v429, 1.442695
    %v452 = vpow.pop %v451
    %v453 = vmul.f32 %v430, 1.442695
    %v454 = vpow.pop %v453
    %v455 = vadd.f32 %v432, 1.0
    %v456 = vadd.f32 %v434, 1.0
    %v457 = vadd.f32 %v436, 1.0
    %v458 = vadd.f32 %v438, 1.0
    %v459 = vadd.f32 %v440, 1.0
    %v460 = vadd.f32 %v442, 1.0
    %v461 = vadd.f32 %v444, 1.0
    %v462 = vadd.f32 %v446, 1.0
    %v463 = vadd.f32 %v448, 1.0
    %v464 = vadd.f32 %v450, 1.0
    %v465 = vadd.f32 %v452, 1.0
    %v466 = vadd.f32 %v454, 1.0
    %v467 = vrcp.pop %v455
    %v468 = vmul.f32 %v455, %v467
    %v469 = vsub.f32 1.0, %v468
    %v470 = vmul.f32 %v467, %v469
    %v471 = vadd.f32 %v467, %v470
    %vm472 = vweird.f32 %v455
    %vm473 = vweird.f32 %v467
    %vm474 = vmor %vm472, %vm473
    %v475 = vsel %vm474, %v467, %v471
    %v476 = vand.u32 2147483647, %v455
    %vm477 = vcmp.eq.f32.partialorder %v476, 8.507059e+37
    %v478 = vand.u32 %v455, 2147483648
    %v479 = vor.u32 1.1754944e-38, %v478
    %v480 = vsel %vm477, %v479, %v475
    %v481 = vmul.f32 1.0, %v480
    %v482 = vrcp.pop %v456
    %v483 = vmul.f32 %v456, %v482
    %v484 = vsub.f32 1.0, %v483
    %v485 = vmul.f32 %v482, %v484
    %v486 = vadd.f32 %v482, %v485
    %vm487 = vweird.f32 %v456
    %vm488 = vweird.f32 %v482
    %vm489 = vmor %vm487, %vm488
    %v490 = vsel %vm489, %v482, %v486
    %v491 = vand.u32 2147483647, %v456
    %vm492 = vcmp.eq.f32.partialorder %v491, 8.507059e+37
    %v493 = vand.u32 %v456, 2147483648
    %v494 = vor.u32 1.1754944e-38, %v493
    %v495 = vsel %vm492, %v494, %v490
    %v496 = vmul.f32 1.0, %v495
    %v497 = vrcp.pop %v457
    %v498 = vmul.f32 %v457, %v497
    %v499 = vsub.f32 1.0, %v498
    %v500 = vmul.f32 %v497, %v499
    %v501 = vadd.f32 %v497, %v500
    %vm502 = vweird.f32 %v457
    %vm503 = vweird.f32 %v497
    %vm504 = vmor %vm502, %vm503
    %v505 = vsel %vm504, %v497, %v501
    %v506 = vand.u32 2147483647, %v457
    %vm507 = vcmp.eq.f32.partialorder %v506, 8.507059e+37
    %v508 = vand.u32 %v457, 2147483648
    %v509 = vor.u32 1.1754944e-38, %v508
    %v510 = vsel %vm507, %v509, %v505
    %v511 = vmul.f32 1.0, %v510
    %v512 = vrcp.pop %v458
    %v513 = vmul.f32 %v458, %v512
    %v514 = vsub.f32 1.0, %v513
    %v515 = vmul.f32 %v512, %v514
    %v516 = vadd.f32 %v512, %v515
    %vm517 = vweird.f32 %v458
    %vm518 = vweird.f32 %v512
    %vm519 = vmor %vm517, %vm518
    %v520 = vsel %vm519, %v512, %v516
    %v521 = vand.u32 2147483647, %v458
    %vm522 = vcmp.eq.f32.partialorder %v521, 8.507059e+37
    %v523 = vand.u32 %v458, 2147483648
    %v524 = vor.u32 1.1754944e-38, %v523
    %v525 = vsel %vm522, %v524, %v520
    %v526 = vmul.f32 1.0, %v525
    %v527 = vrcp.pop %v459
    %v528 = vmul.f32 %v459, %v527
    %v529 = vsub.f32 1.0, %v528
    %v530 = vmul.f32 %v527, %v529
    %v531 = vadd.f32 %v527, %v530
    %vm532 = vweird.f32 %v459
    %vm533 = vweird.f32 %v527
    %vm534 = vmor %vm532, %vm533
    %v535 = vsel %vm534, %v527, %v531
    %v536 = vand.u32 2147483647, %v459
    %vm537 = vcmp.eq.f32.partialorder %v536, 8.507059e+37
    %v538 = vand.u32 %v459, 2147483648
    %v539 = vor.u32 1.1754944e-38, %v538
    %v540 = vsel %vm537, %v539, %v535
    %v541 = vmul.f32 1.0, %v540
    %v542 = vrcp.pop %v460
    %v543 = vmul.f32 %v460, %v542
    %v544 = vsub.f32 1.0, %v543
    %v545 = vmul.f32 %v542, %v544
    %v546 = vadd.f32 %v542, %v545
    %vm547 = vweird.f32 %v460
    %vm548 = vweird.f32 %v542
    %vm549 = vmor %vm547, %vm548
    %v550 = vsel %vm549, %v542, %v546
    %v551 = vand.u32 2147483647, %v460
    %vm552 = vcmp.eq.f32.partialorder %v551, 8.507059e+37
    %v553 = vand.u32 %v460, 2147483648
    %v554 = vor.u32 1.1754944e-38, %v553
    %v555 = vsel %vm552, %v554, %v550
    %v556 = vmul.f32 1.0, %v555
    %v557 = vrcp.pop %v461
    %v558 = vmul.f32 %v461, %v557
    %v559 = vsub.f32 1.0, %v558
    %v560 = vmul.f32 %v557, %v559
    %v561 = vadd.f32 %v557, %v560
    %vm562 = vweird.f32 %v461
    %vm563 = vweird.f32 %v557
    %vm564 = vmor %vm562, %vm563
    %v565 = vsel %vm564, %v557, %v561
    %v566 = vand.u32 2147483647, %v461
    %vm567 = vcmp.eq.f32.partialorder %v566, 8.507059e+37
    %v568 = vand.u32 %v461, 2147483648
    %v569 = vor.u32 1.1754944e-38, %v568
    %v570 = vsel %vm567, %v569, %v565
    %v571 = vmul.f32 1.0, %v570
    %v572 = vrcp.pop %v462
    %v573 = vmul.f32 %v462, %v572
    %v574 = vsub.f32 1.0, %v573
    %v575 = vmul.f32 %v572, %v574
    %v576 = vadd.f32 %v572, %v575
    %vm577 = vweird.f32 %v462
    %vm578 = vweird.f32 %v572
    %vm579 = vmor %vm577, %vm578
    %v580 = vsel %vm579, %v572, %v576
    %v581 = vand.u32 2147483647, %v462
    %vm582 = vcmp.eq.f32.partialorder %v581, 8.507059e+37
    %v583 = vand.u32 %v462, 2147483648
    %v584 = vor.u32 1.1754944e-38, %v583
    %v585 = vsel %vm582, %v584, %v580
    %v586 = vmul.f32 1.0, %v585
    %v587 = vrcp.pop %v463
    %v588 = vmul.f32 %v463, %v587
    %v589 = vsub.f32 1.0, %v588
    %v590 = vmul.f32 %v587, %v589
    %v591 = vadd.f32 %v587, %v590
    %vm592 = vweird.f32 %v463
    %vm593 = vweird.f32 %v587
    %vm594 = vmor %vm592, %vm593
    %v595 = vsel %vm594, %v587, %v591
    %v596 = vand.u32 2147483647, %v463
    %vm597 = vcmp.eq.f32.partialorder %v596, 8.507059e+37
    %v598 = vand.u32 %v463, 2147483648
    %v599 = vor.u32 1.1754944e-38, %v598
    %v600 = vsel %vm597, %v599, %v595
    %v601 = vmul.f32 1.0, %v600
    %v602 = vrcp.pop %v464
    %v603 = vmul.f32 %v464, %v602
    %v604 = vsub.f32 1.0, %v603
    %v605 = vmul.f32 %v602, %v604
    %v606 = vadd.f32 %v602, %v605
    %vm607 = vweird.f32 %v464
    %vm608 = vweird.f32 %v602
    %vm609 = vmor %vm607, %vm608
    %v610 = vsel %vm609, %v602, %v606
    %v611 = vand.u32 2147483647, %v464
    %vm612 = vcmp.eq.f32.partialorder %v611, 8.507059e+37
    %v613 = vand.u32 %v464, 2147483648
    %v614 = vor.u32 1.1754944e-38, %v613
    %v615 = vsel %vm612, %v614, %v610
    %v616 = vmul.f32 1.0, %v615
    %v617 = vrcp.pop %v465
    %v618 = vmul.f32 %v465, %v617
    %v619 = vsub.f32 1.0, %v618
    %v620 = vmul.f32 %v617, %v619
    %v621 = vadd.f32 %v617, %v620
    %vm622 = vweird.f32 %v465
    %vm623 = vweird.f32 %v617
    %vm624 = vmor %vm622, %vm623
    %v625 = vsel %vm624, %v617, %v621
    %v626 = vand.u32 2147483647, %v465
    %vm627 = vcmp.eq.f32.partialorder %v626, 8.507059e+37
    %v628 = vand.u32 %v465, 2147483648
    %v629 = vor.u32 1.1754944e-38, %v628
    %v630 = vsel %vm627, %v629, %v625
    %v631 = vmul.f32 1.0, %v630
    %v632 = vrcp.pop %v466
    %v633 = vmul.f32 %v466, %v632
    %v634 = vsub.f32 1.0, %v633
    %v635 = vmul.f32 %v632, %v634
    %v636 = vadd.f32 %v632, %v635
    %vm637 = vweird.f32 %v466
    %vm638 = vweird.f32 %v632
    %vm639 = vmor %vm637, %vm638
    %v640 = vsel %vm639, %v632, %v636
    %v641 = vand.u32 2147483647, %v466
    %vm642 = vcmp.eq.f32.partialorder %v641, 8.507059e+37
    %v643 = vand.u32 %v466, 2147483648
    %v644 = vor.u32 1.1754944e-38, %v643
    %v645 = vsel %vm642, %v644, %v640
    %v646 = vmul.f32 1.0, %v645
    %v647 = vtanh.pop %v326
    %v648 = vtanh.pop %v328
    %v649 = vtanh.pop %v331
    %v650 = vtanh.pop %v333
    %v651 = vmul.f32 %v541, 0.0
    %v652 = vmul.f32 %v556, 0.0
    %v653 = vmul.f32 %v571, 0.0
    %v654 = vmul.f32 %v586, 0.0
    %v655 = vmul.f32 %v481, %v647
    %v656 = vmul.f32 %v496, %v648
    %v657 = vmul.f32 %v511, %v649
    %v658 = vmul.f32 %v526, %v650
    %v659 = vadd.f32 %v651, %v655
    %v660 = vadd.f32 %v652, %v656
    %v661 = vadd.f32 %v653, %v657
    %v662 = vadd.f32 %v654, %v658
    %v663 = vtanh.pop %v659
    %v664 = vtanh.pop %v660
    %v665 = vtanh.pop %v661
    %v666 = vtanh.pop %v662
    %v667 = vmul.f32 %v601, %v663
    %v668 = vmul.f32 %v616, %v664
    %v669 = vmul.f32 %v631, %v665
    %v670 = vmul.f32 %v646, %v666
    %v671 = vadd.f32 %v390, %v360
    %v672 = vadd.f32 %v392, %v362
    %v673 = vadd.f32 %v395, %v365
    %v674 = vadd.f32 %v397, %v367
    %v675 = vadd.f32 %v400, %v370
    %v676 = vadd.f32 %v402, %v372
    %v677 = vadd.f32 %v405, %v375
    %v678 = vadd.f32 %v407, %v377
    %v679 = vxor.u32 %v671, 2147483648
    %v680 = vxor.u32 %v672, 2147483648
    %v681 = vxor.u32 %v673, 2147483648
    %v682 = vxor.u32 %v674, 2147483648
    %v683 = vxor.u32 %v675, 2147483648
    %v684 = vxor.u32 %v676, 2147483648
    %v685 = vxor.u32 %v677, 2147483648
    %v686 = vxor.u32 %v678, 2147483648
    %v687 = vmul.f32 %v679, 1.442695
    %v688 = vpow.pop %v687
    %v689 = vmul.f32 %v680, 1.442695
    %v690 = vpow.pop %v689
    %v691 = vmul.f32 %v681, 1.442695
    %v692 = vpow.pop %v691
    %v693 = vmul.f32 %v682, 1.442695
    %v694 = vpow.pop %v693
    %v695 = vmul.f32 %v683, 1.442695
    %v696 = vpow.pop %v695
    %v697 = vmul.f32 %v684, 1.442695
    %v698 = vpow.pop %v697
    %v699 = vmul.f32 %v685, 1.442695
    %v700 = vpow.pop %v699
    %v701 = vmul.f32 %v686, 1.442695
    %v702 = vpow.pop %v701
    %v703 = vadd.f32 %v688, 1.0
    %v704 = vadd.f32 %v690, 1.0
    %v705 = vadd.f32 %v692, 1.0
    %v706 = vadd.f32 %v694, 1.0
    %v707 = vadd.f32 %v696, 1.0
    %v708 = vadd.f32 %v698, 1.0
    %v709 = vadd.f32 %v700, 1.0
    %v710 = vadd.f32 %v702, 1.0
    %v711 = vrcp.pop %v703
    %v712 = vmul.f32 %v703, %v711
    %v713 = vsub.f32 1.0, %v712
    %v714 = vmul.f32 %v711, %v713
    %v715 = vadd.f32 %v711, %v714
    %vm716 = vweird.f32 %v703
    %vm717 = vweird.f32 %v711
    %vm718 = vmor %vm716, %vm717
    %v719 = vsel %vm718, %v711, %v715
    %v720 = vand.u32 2147483647, %v703
    %vm721 = vcmp.eq.f32.partialorder %v720, 8.507059e+37
    %v722 = vand.u32 %v703, 2147483648
    %v723 = vor.u32 1.1754944e-38, %v722
    %v724 = vsel %vm721, %v723, %v719
    %v725 = vmul.f32 1.0, %v724
    %v726 = vrcp.pop %v704
    %v727 = vmul.f32 %v704, %v726
    %v728 = vsub.f32 1.0, %v727
    %v729 = vmul.f32 %v726, %v728
    %v730 = vadd.f32 %v726, %v729
    %vm731 = vweird.f32 %v704
    %vm732 = vweird.f32 %v726
    %vm733 = vmor %vm731, %vm732
    %v734 = vsel %vm733, %v726, %v730
    %v735 = vand.u32 2147483647, %v704
    %vm736 = vcmp.eq.f32.partialorder %v735, 8.507059e+37
    %v737 = vand.u32 %v704, 2147483648
    %v738 = vor.u32 1.1754944e-38, %v737
    %v739 = vsel %vm736, %v738, %v734
    %v740 = vmul.f32 1.0, %v739
    %v741 = vrcp.pop %v705
    %v742 = vmul.f32 %v705, %v741
    %v743 = vsub.f32 1.0, %v742
    %v744 = vmul.f32 %v741, %v743
    %v745 = vadd.f32 %v741, %v744
    %vm746 = vweird.f32 %v705
    %vm747 = vweird.f32 %v741
    %vm748 = vmor %vm746, %vm747
    %v749 = vsel %vm748, %v741, %v745
    %v750 = vand.u32 2147483647, %v705
    %vm751 = vcmp.eq.f32.partialorder %v750, 8.507059e+37
    %v752 = vand.u32 %v705, 2147483648
    %v753 = vor.u32 1.1754944e-38, %v752
    %v754 = vsel %vm751, %v753, %v749
    %v755 = vmul.f32 1.0, %v754
    %v756 = vrcp.pop %v706
    %v757 = vmul.f32 %v706, %v756
    %v758 = vsub.f32 1.0, %v757
    %v759 = vmul.f32 %v756, %v758
    %v760 = vadd.f32 %v756, %v759
    %vm761 = vweird.f32 %v706
    %vm762 = vweird.f32 %v756
    %vm763 = vmor %vm761, %vm762
    %v764 = vsel %vm763, %v756, %v760
    %v765 = vand.u32 2147483647, %v706
    %vm766 = vcmp.eq.f32.partialorder %v765, 8.507059e+37
    %v767 = vand.u32 %v706, 2147483648
    %v768 = vor.u32 1.1754944e-38, %v767
    %v769 = vsel %vm766, %v768, %v764
    %v770 = vmul.f32 1.0, %v769
    %v771 = vrcp.pop %v707
    %v772 = vmul.f32 %v707, %v771
    %v773 = vsub.f32 1.0, %v772
    %v774 = vmul.f32 %v771, %v773
    %v775 = vadd.f32 %v771, %v774
    %vm776 = vweird.f32 %v707
    %vm777 = vweird.f32 %v771
    %vm778 = vmor %vm776, %vm777
    %v779 = vsel %vm778, %v771, %v775
    %v780 = vand.u32 2147483647, %v707
    %vm781 = vcmp.eq.f32.partialorder %v780, 8.507059e+37
    %v782 = vand.u32 %v707, 2147483648
    %v783 = vor.u32 1.1754944e-38, %v782
    %v784 = vsel %vm781, %v783, %v779
    %v785 = vmul.f32 1.0, %v784
    %v786 = vrcp.pop %v708
    %v787 = vmul.f32 %v708, %v786
    %v788 = vsub.f32 1.0, %v787
    %v789 = vmul.f32 %v786, %v788
    %v790 = vadd.f32 %v786, %v789
    %vm791 = vweird.f32 %v708
    %vm792 = vweird.f32 %v786
    %vm793 = vmor %vm791, %vm792
    %v794 = vsel %vm793, %v786, %v790
    %v795 = vand.u32 2147483647, %v708
    %vm796 = vcmp.eq.f32.partialorder %v795, 8.507059e+37
    %v797 = vand.u32 %v708, 2147483648
    %v798 = vor.u32 1.1754944e-38, %v797
    %v799 = vsel %vm796, %v798, %v794
    %v800 = vmul.f32 1.0, %v799
    %v801 = vrcp.pop %v709
    %v802 = vmul.f32 %v709, %v801
    %v803 = vsub.f32 1.0, %v802
    %v804 = vmul.f32 %v801, %v803
    %v805 = vadd.f32 %v801, %v804
    %vm806 = vweird.f32 %v709
    %vm807 = vweird.f32 %v801
    %vm808 = vmor %vm806, %vm807
    %v809 = vsel %vm808, %v801, %v805
    %v810 = vand.u32 2147483647, %v709
    %vm811 = vcmp.eq.f32.partialorder %v810, 8.507059e+37
    %v812 = vand.u32 %v709, 2147483648
    %v813 = vor.u32 1.1754944e-38, %v812
    %v814 = vsel %vm811, %v813, %v809
    %v815 = vmul.f32 1.0, %v814
    %v816 = vrcp.pop %v710
    %v817 = vmul.f32 %v710, %v816
    %v818 = vsub.f32 1.0, %v817
    %v819 = vmul.f32 %v816, %v818
    %v820 = vadd.f32 %v816, %v819
    %vm821 = vweird.f32 %v710
    %vm822 = vweird.f32 %v816
    %vm823 = vmor %vm821, %vm822
    %v824 = vsel %vm823, %v816, %v820
    %v825 = vand.u32 2147483647, %v710
    %vm826 = vcmp.eq.f32.partialorder %v825, 8.507059e+37
    %v827 = vand.u32 %v710, 2147483648
    %v828 = vor.u32 1.1754944e-38, %v827
    %v829 = vsel %vm826, %v828, %v824
    %v830 = vmul.f32 1.0, %v829
    %v831 = vmul.f32 %v725, %v380
    %v832 = vmul.f32 %v740, %v382
    %v833 = vmul.f32 %v755, %v385
    %v834 = vmul.f32 %v770, %v387
    %v835 = vadd.f32 %v410, %v831
    %v836 = vadd.f32 %v412, %v832
    %v837 = vadd.f32 %v415, %v833
    %v838 = vadd.f32 %v417, %v834
    %v839 = vtanh.pop %v835
    %v840 = vtanh.pop %v836
    %v841 = vtanh.pop %v837
    %v842 = vtanh.pop %v838
    %v843 = vsub.f32 1.0, %v785
    %v844 = vsub.f32 1.0, %v800
    %v845 = vsub.f32 1.0, %v815
    %v846 = vsub.f32 1.0, %v830
    %v847 = vmul.f32 %v843, %v839
    %v848 = vmul.f32 %v844, %v840
    %v849 = vmul.f32 %v845, %v841
    %v850 = vmul.f32 %v846, %v842
    %v851 = vmul.f32 %v785, 0.0
    %v852 = vmul.f32 %v800, 0.0
    %v853 = vmul.f32 %v815, 0.0
    %v854 = vmul.f32 %v830, 0.0
    %v855 = vadd.f32 %v847, %v851
    %v856 = vadd.f32 %v848, %v852
    %v857 = vadd.f32 %v849, %v853
    %v858 = vadd.f32 %v850, %v854
    %s859 = scalar_lea.vmem [#allocation3], 32
    %v860 = vld [vmem:[%s859] sm:$0xff]
    %v861 = vld [vmem:[%s859 + $0x8] sm:$0xff]
    %v862 = vld [vmem:[%s859 + $0x10] sm:$0xff]
    %v863 = vld [vmem:[%s859 + $0x18] sm:$0xff]
    %v864 = vpack.c.bf16 %v668, %v667
    %v865 = vpack.c.bf16 %v670, %v669
    %v866 = vpack.c.bf16 %v856, %v855
    %v867 = vpack.c.bf16 %v858, %v857
    %v868 = vpack.c.bf16 %v861, %v860
    %v869 = vpack.c.bf16 %v863, %v862
    %870 = vmatpush.bf16.msra.mxu0 %v869
    %871 = vmatpush.bf16.msra.mxu0 %v868
    %872 = vmatpush.bf16.msra.mxu0 %v867
    %873 = vmatpush.bf16.msra.mxu0 %v866
    %874 = vmatpush.bf16.msra.mxu0 %v59
    %875 = vmatpush.bf16.msra.mxu0 %v59
    %876 = vmatpush.bf16.msra.mxu0 %v865
    %877 = vmatpush.bf16.msra.mxu0 %v864
    %878 = vmatmul.bf16.gmra.mxu0 %v230
    %v879 = vpop.f32.mrf.mxu0
    %v880 = vadd.f32 0.0, %v879
    %v881 = vpop.f32.mrf.mxu0
    %v882 = vadd.f32 0.0, %v881
    %883 = vmatmul.bf16.gmra.mxu0 %v231
    %v884 = vpop.f32.mrf.mxu0
    %v885 = vadd.f32 0.0, %v884
    %v886 = vpop.f32.mrf.mxu0
    %v887 = vadd.f32 0.0, %v886
    %888 = vmatmul.bf16.gmra.mxu0 %v232
    %v889 = vpop.f32.mrf.mxu0
    %v890 = vadd.f32 0.0, %v889
    %v891 = vpop.f32.mrf.mxu0
    %v892 = vadd.f32 0.0, %v891
    %893 = vmatmul.bf16.gmra.mxu0 %v233
    %v894 = vpop.f32.mrf.mxu0
    %v895 = vadd.f32 0.0, %v894
    %v896 = vpop.f32.mrf.mxu0
    %v897 = vadd.f32 0.0, %v896
    %898 = vmatmul.bf16.gmra.mxu0 %v234
    %v899 = vpop.f32.mrf.mxu0
    %v900 = vadd.f32 0.0, %v899
    %v901 = vpop.f32.mrf.mxu0
    %v902 = vadd.f32 0.0, %v901
    %903 = vmatmul.bf16.gmra.mxu0 %v235
    %v904 = vpop.f32.mrf.mxu0
    %v905 = vadd.f32 0.0, %v904
    %v906 = vpop.f32.mrf.mxu0
    %v907 = vadd.f32 0.0, %v906
    %908 = vmatmul.bf16.gmra.mxu0 %v236
    %v909 = vpop.f32.mrf.mxu0
    %v910 = vadd.f32 0.0, %v909
    %v911 = vpop.f32.mrf.mxu0
    %v912 = vadd.f32 0.0, %v911
    %913 = vmatmul.bf16.gmra.mxu0 %v237
    %v914 = vpop.f32.mrf.mxu0
    %v915 = vadd.f32 0.0, %v914
    %v916 = vpop.f32.mrf.mxu0
    %v917 = vadd.f32 0.0, %v916
    %918 = vmatmul.bf16.gmra.mxu0 %v238
    %v919 = vpop.f32.mrf.mxu0
    %v920 = vadd.f32 0.0, %v919
    %v921 = vpop.f32.mrf.mxu0
    %v922 = vadd.f32 0.0, %v921
    %923 = vmatmul.bf16.gmra.mxu0 %v239
    %v924 = vpop.f32.mrf.mxu0
    %v925 = vadd.f32 0.0, %v924
    %v926 = vpop.f32.mrf.mxu0
    %v927 = vadd.f32 0.0, %v926
    %928 = vmatmul.bf16.gmra.mxu0 %v240
    %v929 = vpop.f32.mrf.mxu0
    %v930 = vadd.f32 0.0, %v929
    %v931 = vpop.f32.mrf.mxu0
    %v932 = vadd.f32 0.0, %v931
    %933 = vmatmul.bf16.gmra.mxu0 %v241
    %v934 = vpop.f32.mrf.mxu0
    %v935 = vadd.f32 0.0, %v934
    %v936 = vpop.f32.mrf.mxu0
    %v937 = vadd.f32 0.0, %v936
    %938 = vmatmul.bf16.gmra.mxu0 %v242
    %v939 = vpop.f32.mrf.mxu0
    %v940 = vadd.f32 0.0, %v939
    %v941 = vpop.f32.mrf.mxu0
    %v942 = vadd.f32 0.0, %v941
    %943 = vmatmul.bf16.gmra.mxu0 %v243
    %v944 = vpop.f32.mrf.mxu0
    %v945 = vadd.f32 0.0, %v944
    %v946 = vpop.f32.mrf.mxu0
    %v947 = vadd.f32 0.0, %v946
    %948 = vmatmul.bf16.gmra.mxu0 %v244
    %v949 = vpop.f32.mrf.mxu0
    %v950 = vadd.f32 0.0, %v949
    %v951 = vpop.f32.mrf.mxu0
    %v952 = vadd.f32 0.0, %v951
    %953 = vmatmul.bf16.gmra.mxu0 %v245
    %v954 = vpop.f32.mrf.mxu0
    %v955 = vadd.f32 0.0, %v954
    %v956 = vpop.f32.mrf.mxu0
    %v957 = vadd.f32 0.0, %v956
    %958 = vmatmul.bf16.gmra.mxu0 %v246
    %v959 = vpop.f32.mrf.mxu0
    %v960 = vadd.f32 0.0, %v959
    %v961 = vpop.f32.mrf.mxu0
    %v962 = vadd.f32 0.0, %v961
    %963 = vmatmul.bf16.gmra.mxu0 %v247
    %v964 = vpop.f32.mrf.mxu0
    %v965 = vadd.f32 0.0, %v964
    %v966 = vpop.f32.mrf.mxu0
    %v967 = vadd.f32 0.0, %v966
    %968 = vmatmul.bf16.gmra.mxu0 %v248
    %v969 = vpop.f32.mrf.mxu0
    %v970 = vadd.f32 0.0, %v969
    %v971 = vpop.f32.mrf.mxu0
    %v972 = vadd.f32 0.0, %v971
    %973 = vmatmul.bf16.gmra.mxu0 %v249
    %v974 = vpop.f32.mrf.mxu0
    %v975 = vadd.f32 0.0, %v974
    %v976 = vpop.f32.mrf.mxu0
    %v977 = vadd.f32 0.0, %v976
    %978 = vmatmul.bf16.gmra.mxu0 %v250
    %v979 = vpop.f32.mrf.mxu0
    %v980 = vadd.f32 0.0, %v979
    %v981 = vpop.f32.mrf.mxu0
    %v982 = vadd.f32 0.0, %v981
    %983 = vmatmul.bf16.gmra.mxu0 %v251
    %v984 = vpop.f32.mrf.mxu0
    %v985 = vadd.f32 0.0, %v984
    %v986 = vpop.f32.mrf.mxu0
    %v987 = vadd.f32 0.0, %v986
    %988 = vmatmul.bf16.gmra.mxu0 %v252
    %v989 = vpop.f32.mrf.mxu0
    %v990 = vadd.f32 0.0, %v989
    %v991 = vpop.f32.mrf.mxu0
    %v992 = vadd.f32 0.0, %v991
    %993 = vmatmul.bf16.gmra.mxu0 %v253
    %v994 = vpop.f32.mrf.mxu0
    %v995 = vadd.f32 0.0, %v994
    %v996 = vpop.f32.mrf.mxu0
    %v997 = vadd.f32 0.0, %v996
    %998 = vmatmul.bf16.gmra.mxu0 %v254
    %v999 = vpop.f32.mrf.mxu0
    %v1000 = vadd.f32 0.0, %v999
    %v1001 = vpop.f32.mrf.mxu0
    %v1002 = vadd.f32 0.0, %v1001
    %1003 = vmatmul.bf16.gmra.mxu0 %v255
    %v1004 = vpop.f32.mrf.mxu0
    %v1005 = vadd.f32 0.0, %v1004
    %v1006 = vpop.f32.mrf.mxu0
    %v1007 = vadd.f32 0.0, %v1006
    %1008 = vmatmul.bf16.gmra.mxu0 %v256
    %v1009 = vpop.f32.mrf.mxu0
    %v1010 = vadd.f32 0.0, %v1009
    %v1011 = vpop.f32.mrf.mxu0
    %v1012 = vadd.f32 0.0, %v1011
    %1013 = vmatmul.bf16.gmra.mxu0 %v257
    %v1014 = vpop.f32.mrf.mxu0
    %v1015 = vadd.f32 0.0, %v1014
    %v1016 = vpop.f32.mrf.mxu0
    %v1017 = vadd.f32 0.0, %v1016
    %1018 = vdwg.mxu0
    %v1019 = vxor.u32 %v920, 2147483648
    %v1020 = vxor.u32 %v922, 2147483648
    %v1021 = vxor.u32 %v925, 2147483648
    %v1022 = vxor.u32 %v927, 2147483648
    %v1023 = vxor.u32 %v930, 2147483648
    %v1024 = vxor.u32 %v932, 2147483648
    %v1025 = vxor.u32 %v935, 2147483648
    %v1026 = vxor.u32 %v937, 2147483648
    %v1027 = vxor.u32 %v940, 2147483648
    %v1028 = vxor.u32 %v942, 2147483648
    %v1029 = vxor.u32 %v945, 2147483648
    %v1030 = vxor.u32 %v947, 2147483648
    %v1031 = vmul.f32 %v1019, 1.442695
    %v1032 = vpow.pop %v1031
    %v1033 = vmul.f32 %v1020, 1.442695
    %v1034 = vpow.pop %v1033
    %v1035 = vmul.f32 %v1021, 1.442695
    %v1036 = vpow.pop %v1035
    %v1037 = vmul.f32 %v1022, 1.442695
    %v1038 = vpow.pop %v1037
    %v1039 = vmul.f32 %v1023, 1.442695
    %v1040 = vpow.pop %v1039
    %v1041 = vmul.f32 %v1024, 1.442695
    %v1042 = vpow.pop %v1041
    %v1043 = vmul.f32 %v1025, 1.442695
    %v1044 = vpow.pop %v1043
    %v1045 = vmul.f32 %v1026, 1.442695
    %v1046 = vpow.pop %v1045
    %v1047 = vmul.f32 %v1027, 1.442695
    %v1048 = vpow.pop %v1047
    %v1049 = vmul.f32 %v1028, 1.442695
    %v1050 = vpow.pop %v1049
    %v1051 = vmul.f32 %v1029, 1.442695
    %v1052 = vpow.pop %v1051
    %v1053 = vmul.f32 %v1030, 1.442695
    %v1054 = vpow.pop %v1053
    %v1055 = vadd.f32 %v1032, 1.0
    %v1056 = vadd.f32 %v1034, 1.0
    %v1057 = vadd.f32 %v1036, 1.0
    %v1058 = vadd.f32 %v1038, 1.0
    %v1059 = vadd.f32 %v1040, 1.0
    %v1060 = vadd.f32 %v1042, 1.0
    %v1061 = vadd.f32 %v1044, 1.0
    %v1062 = vadd.f32 %v1046, 1.0
    %v1063 = vadd.f32 %v1048, 1.0
    %v1064 = vadd.f32 %v1050, 1.0
    %v1065 = vadd.f32 %v1052, 1.0
    %v1066 = vadd.f32 %v1054, 1.0
    %v1067 = vrcp.pop %v1055
    %v1068 = vmul.f32 %v1055, %v1067
    %v1069 = vsub.f32 1.0, %v1068
    %v1070 = vmul.f32 %v1067, %v1069
    %v1071 = vadd.f32 %v1067, %v1070
    %vm1072 = vweird.f32 %v1055
    %vm1073 = vweird.f32 %v1067
    %vm1074 = vmor %vm1072, %vm1073
    %v1075 = vsel %vm1074, %v1067, %v1071
    %v1076 = vand.u32 2147483647, %v1055
    %vm1077 = vcmp.eq.f32.partialorder %v1076, 8.507059e+37
    %v1078 = vand.u32 %v1055, 2147483648
    %v1079 = vor.u32 1.1754944e-38, %v1078
    %v1080 = vsel %vm1077, %v1079, %v1075
    %v1081 = vmul.f32 1.0, %v1080
    %v1082 = vrcp.pop %v1056
    %v1083 = vmul.f32 %v1056, %v1082
    %v1084 = vsub.f32 1.0, %v1083
    %v1085 = vmul.f32 %v1082, %v1084
    %v1086 = vadd.f32 %v1082, %v1085
    %vm1087 = vweird.f32 %v1056
    %vm1088 = vweird.f32 %v1082
    %vm1089 = vmor %vm1087, %vm1088
    %v1090 = vsel %vm1089, %v1082, %v1086
    %v1091 = vand.u32 2147483647, %v1056
    %vm1092 = vcmp.eq.f32.partialorder %v1091, 8.507059e+37
    %v1093 = vand.u32 %v1056, 2147483648
    %v1094 = vor.u32 1.1754944e-38, %v1093
    %v1095 = vsel %vm1092, %v1094, %v1090
    %v1096 = vmul.f32 1.0, %v1095
    %v1097 = vrcp.pop %v1057
    %v1098 = vmul.f32 %v1057, %v1097
    %v1099 = vsub.f32 1.0, %v1098
    %v1100 = vmul.f32 %v1097, %v1099
    %v1101 = vadd.f32 %v1097, %v1100
    %vm1102 = vweird.f32 %v1057
    %vm1103 = vweird.f32 %v1097
    %vm1104 = vmor %vm1102, %vm1103
    %v1105 = vsel %vm1104, %v1097, %v1101
    %v1106 = vand.u32 2147483647, %v1057
    %vm1107 = vcmp.eq.f32.partialorder %v1106, 8.507059e+37
    %v1108 = vand.u32 %v1057, 2147483648
    %v1109 = vor.u32 1.1754944e-38, %v1108
    %v1110 = vsel %vm1107, %v1109, %v1105
    %v1111 = vmul.f32 1.0, %v1110
    %v1112 = vrcp.pop %v1058
    %v1113 = vmul.f32 %v1058, %v1112
    %v1114 = vsub.f32 1.0, %v1113
    %v1115 = vmul.f32 %v1112, %v1114
    %v1116 = vadd.f32 %v1112, %v1115
    %vm1117 = vweird.f32 %v1058
    %vm1118 = vweird.f32 %v1112
    %vm1119 = vmor %vm1117, %vm1118
    %v1120 = vsel %vm1119, %v1112, %v1116
    %v1121 = vand.u32 2147483647, %v1058
    %vm1122 = vcmp.eq.f32.partialorder %v1121, 8.507059e+37
    %v1123 = vand.u32 %v1058, 2147483648
    %v1124 = vor.u32 1.1754944e-38, %v1123
    %v1125 = vsel %vm1122, %v1124, %v1120
    %v1126 = vmul.f32 1.0, %v1125
    %v1127 = vrcp.pop %v1059
    %v1128 = vmul.f32 %v1059, %v1127
    %v1129 = vsub.f32 1.0, %v1128
    %v1130 = vmul.f32 %v1127, %v1129
    %v1131 = vadd.f32 %v1127, %v1130
    %vm1132 = vweird.f32 %v1059
    %vm1133 = vweird.f32 %v1127
    %vm1134 = vmor %vm1132, %vm1133
    %v1135 = vsel %vm1134, %v1127, %v1131
    %v1136 = vand.u32 2147483647, %v1059
    %vm1137 = vcmp.eq.f32.partialorder %v1136, 8.507059e+37
    %v1138 = vand.u32 %v1059, 2147483648
    %v1139 = vor.u32 1.1754944e-38, %v1138
    %v1140 = vsel %vm1137, %v1139, %v1135
    %v1141 = vmul.f32 1.0, %v1140
    %v1142 = vrcp.pop %v1060
    %v1143 = vmul.f32 %v1060, %v1142
    %v1144 = vsub.f32 1.0, %v1143
    %v1145 = vmul.f32 %v1142, %v1144
    %v1146 = vadd.f32 %v1142, %v1145
    %vm1147 = vweird.f32 %v1060
    %vm1148 = vweird.f32 %v1142
    %vm1149 = vmor %vm1147, %vm1148
    %v1150 = vsel %vm1149, %v1142, %v1146
    %v1151 = vand.u32 2147483647, %v1060
    %vm1152 = vcmp.eq.f32.partialorder %v1151, 8.507059e+37
    %v1153 = vand.u32 %v1060, 2147483648
    %v1154 = vor.u32 1.1754944e-38, %v1153
    %v1155 = vsel %vm1152, %v1154, %v1150
    %v1156 = vmul.f32 1.0, %v1155
    %v1157 = vrcp.pop %v1061
    %v1158 = vmul.f32 %v1061, %v1157
    %v1159 = vsub.f32 1.0, %v1158
    %v1160 = vmul.f32 %v1157, %v1159
    %v1161 = vadd.f32 %v1157, %v1160
    %vm1162 = vweird.f32 %v1061
    %vm1163 = vweird.f32 %v1157
    %vm1164 = vmor %vm1162, %vm1163
    %v1165 = vsel %vm1164, %v1157, %v1161
    %v1166 = vand.u32 2147483647, %v1061
    %vm1167 = vcmp.eq.f32.partialorder %v1166, 8.507059e+37
    %v1168 = vand.u32 %v1061, 2147483648
    %v1169 = vor.u32 1.1754944e-38, %v1168
    %v1170 = vsel %vm1167, %v1169, %v1165
    %v1171 = vmul.f32 1.0, %v1170
    %v1172 = vrcp.pop %v1062
    %v1173 = vmul.f32 %v1062, %v1172
    %v1174 = vsub.f32 1.0, %v1173
    %v1175 = vmul.f32 %v1172, %v1174
    %v1176 = vadd.f32 %v1172, %v1175
    %vm1177 = vweird.f32 %v1062
    %vm1178 = vweird.f32 %v1172
    %vm1179 = vmor %vm1177, %vm1178
    %v1180 = vsel %vm1179, %v1172, %v1176
    %v1181 = vand.u32 2147483647, %v1062
    %vm1182 = vcmp.eq.f32.partialorder %v1181, 8.507059e+37
    %v1183 = vand.u32 %v1062, 2147483648
    %v1184 = vor.u32 1.1754944e-38, %v1183
    %v1185 = vsel %vm1182, %v1184, %v1180
    %v1186 = vmul.f32 1.0, %v1185
    %v1187 = vrcp.pop %v1063
    %v1188 = vmul.f32 %v1063, %v1187
    %v1189 = vsub.f32 1.0, %v1188
    %v1190 = vmul.f32 %v1187, %v1189
    %v1191 = vadd.f32 %v1187, %v1190
    %vm1192 = vweird.f32 %v1063
    %vm1193 = vweird.f32 %v1187
    %vm1194 = vmor %vm1192, %vm1193
    %v1195 = vsel %vm1194, %v1187, %v1191
    %v1196 = vand.u32 2147483647, %v1063
    %vm1197 = vcmp.eq.f32.partialorder %v1196, 8.507059e+37
    %v1198 = vand.u32 %v1063, 2147483648
    %v1199 = vor.u32 1.1754944e-38, %v1198
    %v1200 = vsel %vm1197, %v1199, %v1195
    %v1201 = vmul.f32 1.0, %v1200
    %v1202 = vrcp.pop %v1064
    %v1203 = vmul.f32 %v1064, %v1202
    %v1204 = vsub.f32 1.0, %v1203
    %v1205 = vmul.f32 %v1202, %v1204
    %v1206 = vadd.f32 %v1202, %v1205
    %vm1207 = vweird.f32 %v1064
    %vm1208 = vweird.f32 %v1202
    %vm1209 = vmor %vm1207, %vm1208
    %v1210 = vsel %vm1209, %v1202, %v1206
    %v1211 = vand.u32 2147483647, %v1064
    %vm1212 = vcmp.eq.f32.partialorder %v1211, 8.507059e+37
    %v1213 = vand.u32 %v1064, 2147483648
    %v1214 = vor.u32 1.1754944e-38, %v1213
    %v1215 = vsel %vm1212, %v1214, %v1210
    %v1216 = vmul.f32 1.0, %v1215
    %v1217 = vrcp.pop %v1065
    %v1218 = vmul.f32 %v1065, %v1217
    %v1219 = vsub.f32 1.0, %v1218
    %v1220 = vmul.f32 %v1217, %v1219
    %v1221 = vadd.f32 %v1217, %v1220
    %vm1222 = vweird.f32 %v1065
    %vm1223 = vweird.f32 %v1217
    %vm1224 = vmor %vm1222, %vm1223
    %v1225 = vsel %vm1224, %v1217, %v1221
    %v1226 = vand.u32 2147483647, %v1065
    %vm1227 = vcmp.eq.f32.partialorder %v1226, 8.507059e+37
    %v1228 = vand.u32 %v1065, 2147483648
    %v1229 = vor.u32 1.1754944e-38, %v1228
    %v1230 = vsel %vm1227, %v1229, %v1225
    %v1231 = vmul.f32 1.0, %v1230
    %v1232 = vrcp.pop %v1066
    %v1233 = vmul.f32 %v1066, %v1232
    %v1234 = vsub.f32 1.0, %v1233
    %v1235 = vmul.f32 %v1232, %v1234
    %v1236 = vadd.f32 %v1232, %v1235
    %vm1237 = vweird.f32 %v1066
    %vm1238 = vweird.f32 %v1232
    %vm1239 = vmor %vm1237, %vm1238
    %v1240 = vsel %vm1239, %v1232, %v1236
    %v1241 = vand.u32 2147483647, %v1066
    %vm1242 = vcmp.eq.f32.partialorder %v1241, 8.507059e+37
    %v1243 = vand.u32 %v1066, 2147483648
    %v1244 = vor.u32 1.1754944e-38, %v1243
    %v1245 = vsel %vm1242, %v1244, %v1240
    %v1246 = vmul.f32 1.0, %v1245
    %v1247 = vtanh.pop %v950
    %v1248 = vtanh.pop %v952
    %v1249 = vtanh.pop %v955
    %v1250 = vtanh.pop %v957
    %v1251 = vmul.f32 %v1141, 0.0
    %v1252 = vmul.f32 %v1156, 0.0
    %v1253 = vmul.f32 %v1171, 0.0
    %v1254 = vmul.f32 %v1186, 0.0
    %v1255 = vmul.f32 %v1081, %v1247
    %v1256 = vmul.f32 %v1096, %v1248
    %v1257 = vmul.f32 %v1111, %v1249
    %v1258 = vmul.f32 %v1126, %v1250
    %v1259 = vadd.f32 %v1251, %v1255
    %v1260 = vadd.f32 %v1252, %v1256
    %v1261 = vadd.f32 %v1253, %v1257
    %v1262 = vadd.f32 %v1254, %v1258
    %v1263 = vtanh.pop %v1259
    %v1264 = vtanh.pop %v1260
    %v1265 = vtanh.pop %v1261
    %v1266 = vtanh.pop %v1262
    %v1267 = vmul.f32 %v1201, %v1263
    %v1268 = vmul.f32 %v1216, %v1264
    %v1269 = vmul.f32 %v1231, %v1265
    %v1270 = vmul.f32 %v1246, %v1266
    %v1271 = vxor.u32 %v880, 2147483648
    %v1272 = vxor.u32 %v882, 2147483648
    %v1273 = vxor.u32 %v885, 2147483648
    %v1274 = vxor.u32 %v887, 2147483648
    %v1275 = vxor.u32 %v890, 2147483648
    %v1276 = vxor.u32 %v892, 2147483648
    %v1277 = vxor.u32 %v895, 2147483648
    %v1278 = vxor.u32 %v897, 2147483648
    %v1279 = vxor.u32 %v900, 2147483648
    %v1280 = vxor.u32 %v902, 2147483648
    %v1281 = vxor.u32 %v905, 2147483648
    %v1282 = vxor.u32 %v907, 2147483648
    %v1283 = vmul.f32 %v1271, 1.442695
    %v1284 = vpow.pop %v1283
    %v1285 = vmul.f32 %v1272, 1.442695
    %v1286 = vpow.pop %v1285
    %v1287 = vmul.f32 %v1273, 1.442695
    %v1288 = vpow.pop %v1287
    %v1289 = vmul.f32 %v1274, 1.442695
    %v1290 = vpow.pop %v1289
    %v1291 = vmul.f32 %v1275, 1.442695
    %v1292 = vpow.pop %v1291
    %v1293 = vmul.f32 %v1276, 1.442695
    %v1294 = vpow.pop %v1293
    %v1295 = vmul.f32 %v1277, 1.442695
    %v1296 = vpow.pop %v1295
    %v1297 = vmul.f32 %v1278, 1.442695
    %v1298 = vpow.pop %v1297
    %v1299 = vmul.f32 %v1279, 1.442695
    %v1300 = vpow.pop %v1299
    %v1301 = vmul.f32 %v1280, 1.442695
    %v1302 = vpow.pop %v1301
    %v1303 = vmul.f32 %v1281, 1.442695
    %v1304 = vpow.pop %v1303
    %v1305 = vmul.f32 %v1282, 1.442695
    %v1306 = vpow.pop %v1305
    %v1307 = vadd.f32 %v1284, 1.0
    %v1308 = vadd.f32 %v1286, 1.0
    %v1309 = vadd.f32 %v1288, 1.0
    %v1310 = vadd.f32 %v1290, 1.0
    %v1311 = vadd.f32 %v1292, 1.0
    %v1312 = vadd.f32 %v1294, 1.0
    %v1313 = vadd.f32 %v1296, 1.0
    %v1314 = vadd.f32 %v1298, 1.0
    %v1315 = vadd.f32 %v1300, 1.0
    %v1316 = vadd.f32 %v1302, 1.0
    %v1317 = vadd.f32 %v1304, 1.0
    %v1318 = vadd.f32 %v1306, 1.0
    %v1319 = vrcp.pop %v1307
    %v1320 = vmul.f32 %v1307, %v1319
    %v1321 = vsub.f32 1.0, %v1320
    %v1322 = vmul.f32 %v1319, %v1321
    %v1323 = vadd.f32 %v1319, %v1322
    %vm1324 = vweird.f32 %v1307
    %vm1325 = vweird.f32 %v1319
    %vm1326 = vmor %vm1324, %vm1325
    %v1327 = vsel %vm1326, %v1319, %v1323
    %v1328 = vand.u32 2147483647, %v1307
    %vm1329 = vcmp.eq.f32.partialorder %v1328, 8.507059e+37
    %v1330 = vand.u32 %v1307, 2147483648
    %v1331 = vor.u32 1.1754944e-38, %v1330
    %v1332 = vsel %vm1329, %v1331, %v1327
    %v1333 = vmul.f32 1.0, %v1332
    %v1334 = vrcp.pop %v1308
    %v1335 = vmul.f32 %v1308, %v1334
    %v1336 = vsub.f32 1.0, %v1335
    %v1337 = vmul.f32 %v1334, %v1336
    %v1338 = vadd.f32 %v1334, %v1337
    %vm1339 = vweird.f32 %v1308
    %vm1340 = vweird.f32 %v1334
    %vm1341 = vmor %vm1339, %vm1340
    %v1342 = vsel %vm1341, %v1334, %v1338
    %v1343 = vand.u32 2147483647, %v1308
    %vm1344 = vcmp.eq.f32.partialorder %v1343, 8.507059e+37
    %v1345 = vand.u32 %v1308, 2147483648
    %v1346 = vor.u32 1.1754944e-38, %v1345
    %v1347 = vsel %vm1344, %v1346, %v1342
    %v1348 = vmul.f32 1.0, %v1347
    %v1349 = vrcp.pop %v1309
    %v1350 = vmul.f32 %v1309, %v1349
    %v1351 = vsub.f32 1.0, %v1350
    %v1352 = vmul.f32 %v1349, %v1351
    %v1353 = vadd.f32 %v1349, %v1352
    %vm1354 = vweird.f32 %v1309
    %vm1355 = vweird.f32 %v1349
    %vm1356 = vmor %vm1354, %vm1355
    %v1357 = vsel %vm1356, %v1349, %v1353
    %v1358 = vand.u32 2147483647, %v1309
    %vm1359 = vcmp.eq.f32.partialorder %v1358, 8.507059e+37
    %v1360 = vand.u32 %v1309, 2147483648
    %v1361 = vor.u32 1.1754944e-38, %v1360
    %v1362 = vsel %vm1359, %v1361, %v1357
    %v1363 = vmul.f32 1.0, %v1362
    %v1364 = vrcp.pop %v1310
    %v1365 = vmul.f32 %v1310, %v1364
    %v1366 = vsub.f32 1.0, %v1365
    %v1367 = vmul.f32 %v1364, %v1366
    %v1368 = vadd.f32 %v1364, %v1367
    %vm1369 = vweird.f32 %v1310
    %vm1370 = vweird.f32 %v1364
    %vm1371 = vmor %vm1369, %vm1370
    %v1372 = vsel %vm1371, %v1364, %v1368
    %v1373 = vand.u32 2147483647, %v1310
    %vm1374 = vcmp.eq.f32.partialorder %v1373, 8.507059e+37
    %v1375 = vand.u32 %v1310, 2147483648
    %v1376 = vor.u32 1.1754944e-38, %v1375
    %v1377 = vsel %vm1374, %v1376, %v1372
    %v1378 = vmul.f32 1.0, %v1377
    %v1379 = vrcp.pop %v1311
    %v1380 = vmul.f32 %v1311, %v1379
    %v1381 = vsub.f32 1.0, %v1380
    %v1382 = vmul.f32 %v1379, %v1381
    %v1383 = vadd.f32 %v1379, %v1382
    %vm1384 = vweird.f32 %v1311
    %vm1385 = vweird.f32 %v1379
    %vm1386 = vmor %vm1384, %vm1385
    %v1387 = vsel %vm1386, %v1379, %v1383
    %v1388 = vand.u32 2147483647, %v1311
    %vm1389 = vcmp.eq.f32.partialorder %v1388, 8.507059e+37
    %v1390 = vand.u32 %v1311, 2147483648
    %v1391 = vor.u32 1.1754944e-38, %v1390
    %v1392 = vsel %vm1389, %v1391, %v1387
    %v1393 = vmul.f32 1.0, %v1392
    %v1394 = vrcp.pop %v1312
    %v1395 = vmul.f32 %v1312, %v1394
    %v1396 = vsub.f32 1.0, %v1395
    %v1397 = vmul.f32 %v1394, %v1396
    %v1398 = vadd.f32 %v1394, %v1397
    %vm1399 = vweird.f32 %v1312
    %vm1400 = vweird.f32 %v1394
    %vm1401 = vmor %vm1399, %vm1400
    %v1402 = vsel %vm1401, %v1394, %v1398
    %v1403 = vand.u32 2147483647, %v1312
    %vm1404 = vcmp.eq.f32.partialorder %v1403, 8.507059e+37
    %v1405 = vand.u32 %v1312, 2147483648
    %v1406 = vor.u32 1.1754944e-38, %v1405
    %v1407 = vsel %vm1404, %v1406, %v1402
    %v1408 = vmul.f32 1.0, %v1407
    %v1409 = vrcp.pop %v1313
    %v1410 = vmul.f32 %v1313, %v1409
    %v1411 = vsub.f32 1.0, %v1410
    %v1412 = vmul.f32 %v1409, %v1411
    %v1413 = vadd.f32 %v1409, %v1412
    %vm1414 = vweird.f32 %v1313
    %vm1415 = vweird.f32 %v1409
    %vm1416 = vmor %vm1414, %vm1415
    %v1417 = vsel %vm1416, %v1409, %v1413
    %v1418 = vand.u32 2147483647, %v1313
    %vm1419 = vcmp.eq.f32.partialorder %v1418, 8.507059e+37
    %v1420 = vand.u32 %v1313, 2147483648
    %v1421 = vor.u32 1.1754944e-38, %v1420
    %v1422 = vsel %vm1419, %v1421, %v1417
    %v1423 = vmul.f32 1.0, %v1422
    %v1424 = vrcp.pop %v1314
    %v1425 = vmul.f32 %v1314, %v1424
    %v1426 = vsub.f32 1.0, %v1425
    %v1427 = vmul.f32 %v1424, %v1426
    %v1428 = vadd.f32 %v1424, %v1427
    %vm1429 = vweird.f32 %v1314
    %vm1430 = vweird.f32 %v1424
    %vm1431 = vmor %vm1429, %vm1430
    %v1432 = vsel %vm1431, %v1424, %v1428
    %v1433 = vand.u32 2147483647, %v1314
    %vm1434 = vcmp.eq.f32.partialorder %v1433, 8.507059e+37
    %v1435 = vand.u32 %v1314, 2147483648
    %v1436 = vor.u32 1.1754944e-38, %v1435
    %v1437 = vsel %vm1434, %v1436, %v1432
    %v1438 = vmul.f32 1.0, %v1437
    %v1439 = vrcp.pop %v1315
    %v1440 = vmul.f32 %v1315, %v1439
    %v1441 = vsub.f32 1.0, %v1440
    %v1442 = vmul.f32 %v1439, %v1441
    %v1443 = vadd.f32 %v1439, %v1442
    %vm1444 = vweird.f32 %v1315
    %vm1445 = vweird.f32 %v1439
    %vm1446 = vmor %vm1444, %vm1445
    %v1447 = vsel %vm1446, %v1439, %v1443
    %v1448 = vand.u32 2147483647, %v1315
    %vm1449 = vcmp.eq.f32.partialorder %v1448, 8.507059e+37
    %v1450 = vand.u32 %v1315, 2147483648
    %v1451 = vor.u32 1.1754944e-38, %v1450
    %v1452 = vsel %vm1449, %v1451, %v1447
    %v1453 = vmul.f32 1.0, %v1452
    %v1454 = vrcp.pop %v1316
    %v1455 = vmul.f32 %v1316, %v1454
    %v1456 = vsub.f32 1.0, %v1455
    %v1457 = vmul.f32 %v1454, %v1456
    %v1458 = vadd.f32 %v1454, %v1457
    %vm1459 = vweird.f32 %v1316
    %vm1460 = vweird.f32 %v1454
    %vm1461 = vmor %vm1459, %vm1460
    %v1462 = vsel %vm1461, %v1454, %v1458
    %v1463 = vand.u32 2147483647, %v1316
    %vm1464 = vcmp.eq.f32.partialorder %v1463, 8.507059e+37
    %v1465 = vand.u32 %v1316, 2147483648
    %v1466 = vor.u32 1.1754944e-38, %v1465
    %v1467 = vsel %vm1464, %v1466, %v1462
    %v1468 = vmul.f32 1.0, %v1467
    %v1469 = vrcp.pop %v1317
    %v1470 = vmul.f32 %v1317, %v1469
    %v1471 = vsub.f32 1.0, %v1470
    %v1472 = vmul.f32 %v1469, %v1471
    %v1473 = vadd.f32 %v1469, %v1472
    %vm1474 = vweird.f32 %v1317
    %vm1475 = vweird.f32 %v1469
    %vm1476 = vmor %vm1474, %vm1475
    %v1477 = vsel %vm1476, %v1469, %v1473
    %v1478 = vand.u32 2147483647, %v1317
    %vm1479 = vcmp.eq.f32.partialorder %v1478, 8.507059e+37
    %v1480 = vand.u32 %v1317, 2147483648
    %v1481 = vor.u32 1.1754944e-38, %v1480
    %v1482 = vsel %vm1479, %v1481, %v1477
    %v1483 = vmul.f32 1.0, %v1482
    %v1484 = vrcp.pop %v1318
    %v1485 = vmul.f32 %v1318, %v1484
    %v1486 = vsub.f32 1.0, %v1485
    %v1487 = vmul.f32 %v1484, %v1486
    %v1488 = vadd.f32 %v1484, %v1487
    %vm1489 = vweird.f32 %v1318
    %vm1490 = vweird.f32 %v1484
    %vm1491 = vmor %vm1489, %vm1490
    %v1492 = vsel %vm1491, %v1484, %v1488
    %v1493 = vand.u32 2147483647, %v1318
    %vm1494 = vcmp.eq.f32.partialorder %v1493, 8.507059e+37
    %v1495 = vand.u32 %v1318, 2147483648
    %v1496 = vor.u32 1.1754944e-38, %v1495
    %v1497 = vsel %vm1494, %v1496, %v1492
    %v1498 = vmul.f32 1.0, %v1497
    %v1499 = vtanh.pop %v910
    %v1500 = vtanh.pop %v912
    %v1501 = vtanh.pop %v915
    %v1502 = vtanh.pop %v917
    %v1503 = vmul.f32 %v1393, %v659
    %v1504 = vmul.f32 %v1408, %v660
    %v1505 = vmul.f32 %v1423, %v661
    %v1506 = vmul.f32 %v1438, %v662
    %v1507 = vmul.f32 %v1333, %v1499
    %v1508 = vmul.f32 %v1348, %v1500
    %v1509 = vmul.f32 %v1363, %v1501
    %v1510 = vmul.f32 %v1378, %v1502
    %v1511 = vadd.f32 %v1503, %v1507
    %v1512 = vadd.f32 %v1504, %v1508
    %v1513 = vadd.f32 %v1505, %v1509
    %v1514 = vadd.f32 %v1506, %v1510
    %v1515 = vtanh.pop %v1511
    %v1516 = vtanh.pop %v1512
    %v1517 = vtanh.pop %v1513
    %v1518 = vtanh.pop %v1514
    %v1519 = vmul.f32 %v1453, %v1515
    %v1520 = vmul.f32 %v1468, %v1516
    %v1521 = vmul.f32 %v1483, %v1517
    %v1522 = vmul.f32 %v1498, %v1518
    %v1523 = vadd.f32 %v990, %v960
    %v1524 = vadd.f32 %v992, %v962
    %v1525 = vadd.f32 %v995, %v965
    %v1526 = vadd.f32 %v997, %v967
    %v1527 = vadd.f32 %v1000, %v970
    %v1528 = vadd.f32 %v1002, %v972
    %v1529 = vadd.f32 %v1005, %v975
    %v1530 = vadd.f32 %v1007, %v977
    %v1531 = vxor.u32 %v1523, 2147483648
    %v1532 = vxor.u32 %v1524, 2147483648
    %v1533 = vxor.u32 %v1525, 2147483648
    %v1534 = vxor.u32 %v1526, 2147483648
    %v1535 = vxor.u32 %v1527, 2147483648
    %v1536 = vxor.u32 %v1528, 2147483648
    %v1537 = vxor.u32 %v1529, 2147483648
    %v1538 = vxor.u32 %v1530, 2147483648
    %v1539 = vmul.f32 %v1531, 1.442695
    %v1540 = vpow.pop %v1539
    %v1541 = vmul.f32 %v1532, 1.442695
    %v1542 = vpow.pop %v1541
    %v1543 = vmul.f32 %v1533, 1.442695
    %v1544 = vpow.pop %v1543
    %v1545 = vmul.f32 %v1534, 1.442695
    %v1546 = vpow.pop %v1545
    %v1547 = vmul.f32 %v1535, 1.442695
    %v1548 = vpow.pop %v1547
    %v1549 = vmul.f32 %v1536, 1.442695
    %v1550 = vpow.pop %v1549
    %v1551 = vmul.f32 %v1537, 1.442695
    %v1552 = vpow.pop %v1551
    %v1553 = vmul.f32 %v1538, 1.442695
    %v1554 = vpow.pop %v1553
    %v1555 = vadd.f32 %v1540, 1.0
    %v1556 = vadd.f32 %v1542, 1.0
    %v1557 = vadd.f32 %v1544, 1.0
    %v1558 = vadd.f32 %v1546, 1.0
    %v1559 = vadd.f32 %v1548, 1.0
    %v1560 = vadd.f32 %v1550, 1.0
    %v1561 = vadd.f32 %v1552, 1.0
    %v1562 = vadd.f32 %v1554, 1.0
    %v1563 = vrcp.pop %v1555
    %v1564 = vmul.f32 %v1555, %v1563
    %v1565 = vsub.f32 1.0, %v1564
    %v1566 = vmul.f32 %v1563, %v1565
    %v1567 = vadd.f32 %v1563, %v1566
    %vm1568 = vweird.f32 %v1555
    %vm1569 = vweird.f32 %v1563
    %vm1570 = vmor %vm1568, %vm1569
    %v1571 = vsel %vm1570, %v1563, %v1567
    %v1572 = vand.u32 2147483647, %v1555
    %vm1573 = vcmp.eq.f32.partialorder %v1572, 8.507059e+37
    %v1574 = vand.u32 %v1555, 2147483648
    %v1575 = vor.u32 1.1754944e-38, %v1574
    %v1576 = vsel %vm1573, %v1575, %v1571
    %v1577 = vmul.f32 1.0, %v1576
    %v1578 = vrcp.pop %v1556
    %v1579 = vmul.f32 %v1556, %v1578
    %v1580 = vsub.f32 1.0, %v1579
    %v1581 = vmul.f32 %v1578, %v1580
    %v1582 = vadd.f32 %v1578, %v1581
    %vm1583 = vweird.f32 %v1556
    %vm1584 = vweird.f32 %v1578
    %vm1585 = vmor %vm1583, %vm1584
    %v1586 = vsel %vm1585, %v1578, %v1582
    %v1587 = vand.u32 2147483647, %v1556
    %vm1588 = vcmp.eq.f32.partialorder %v1587, 8.507059e+37
    %v1589 = vand.u32 %v1556, 2147483648
    %v1590 = vor.u32 1.1754944e-38, %v1589
    %v1591 = vsel %vm1588, %v1590, %v1586
    %v1592 = vmul.f32 1.0, %v1591
    %v1593 = vrcp.pop %v1557
    %v1594 = vmul.f32 %v1557, %v1593
    %v1595 = vsub.f32 1.0, %v1594
    %v1596 = vmul.f32 %v1593, %v1595
    %v1597 = vadd.f32 %v1593, %v1596
    %vm1598 = vweird.f32 %v1557
    %vm1599 = vweird.f32 %v1593
    %vm1600 = vmor %vm1598, %vm1599
    %v1601 = vsel %vm1600, %v1593, %v1597
    %v1602 = vand.u32 2147483647, %v1557
    %vm1603 = vcmp.eq.f32.partialorder %v1602, 8.507059e+37
    %v1604 = vand.u32 %v1557, 2147483648
    %v1605 = vor.u32 1.1754944e-38, %v1604
    %v1606 = vsel %vm1603, %v1605, %v1601
    %v1607 = vmul.f32 1.0, %v1606
    %v1608 = vrcp.pop %v1558
    %v1609 = vmul.f32 %v1558, %v1608
    %v1610 = vsub.f32 1.0, %v1609
    %v1611 = vmul.f32 %v1608, %v1610
    %v1612 = vadd.f32 %v1608, %v1611
    %vm1613 = vweird.f32 %v1558
    %vm1614 = vweird.f32 %v1608
    %vm1615 = vmor %vm1613, %vm1614
    %v1616 = vsel %vm1615, %v1608, %v1612
    %v1617 = vand.u32 2147483647, %v1558
    %vm1618 = vcmp.eq.f32.partialorder %v1617, 8.507059e+37
    %v1619 = vand.u32 %v1558, 2147483648
    %v1620 = vor.u32 1.1754944e-38, %v1619
    %v1621 = vsel %vm1618, %v1620, %v1616
    %v1622 = vmul.f32 1.0, %v1621
    %v1623 = vrcp.pop %v1559
    %v1624 = vmul.f32 %v1559, %v1623
    %v1625 = vsub.f32 1.0, %v1624
    %v1626 = vmul.f32 %v1623, %v1625
    %v1627 = vadd.f32 %v1623, %v1626
    %vm1628 = vweird.f32 %v1559
    %vm1629 = vweird.f32 %v1623
    %vm1630 = vmor %vm1628, %vm1629
    %v1631 = vsel %vm1630, %v1623, %v1627
    %v1632 = vand.u32 2147483647, %v1559
    %vm1633 = vcmp.eq.f32.partialorder %v1632, 8.507059e+37
    %v1634 = vand.u32 %v1559, 2147483648
    %v1635 = vor.u32 1.1754944e-38, %v1634
    %v1636 = vsel %vm1633, %v1635, %v1631
    %v1637 = vmul.f32 1.0, %v1636
    %v1638 = vrcp.pop %v1560
    %v1639 = vmul.f32 %v1560, %v1638
    %v1640 = vsub.f32 1.0, %v1639
    %v1641 = vmul.f32 %v1638, %v1640
    %v1642 = vadd.f32 %v1638, %v1641
    %vm1643 = vweird.f32 %v1560
    %vm1644 = vweird.f32 %v1638
    %vm1645 = vmor %vm1643, %vm1644
    %v1646 = vsel %vm1645, %v1638, %v1642
    %v1647 = vand.u32 2147483647, %v1560
    %vm1648 = vcmp.eq.f32.partialorder %v1647, 8.507059e+37
    %v1649 = vand.u32 %v1560, 2147483648
    %v1650 = vor.u32 1.1754944e-38, %v1649
    %v1651 = vsel %vm1648, %v1650, %v1646
    %v1652 = vmul.f32 1.0, %v1651
    %v1653 = vrcp.pop %v1561
    %v1654 = vmul.f32 %v1561, %v1653
    %v1655 = vsub.f32 1.0, %v1654
    %v1656 = vmul.f32 %v1653, %v1655
    %v1657 = vadd.f32 %v1653, %v1656
    %vm1658 = vweird.f32 %v1561
    %vm1659 = vweird.f32 %v1653
    %vm1660 = vmor %vm1658, %vm1659
    %v1661 = vsel %vm1660, %v1653, %v1657
    %v1662 = vand.u32 2147483647, %v1561
    %vm1663 = vcmp.eq.f32.partialorder %v1662, 8.507059e+37
    %v1664 = vand.u32 %v1561, 2147483648
    %v1665 = vor.u32 1.1754944e-38, %v1664
    %v1666 = vsel %vm1663, %v1665, %v1661
    %v1667 = vmul.f32 1.0, %v1666
    %v1668 = vrcp.pop %v1562
    %v1669 = vmul.f32 %v1562, %v1668
    %v1670 = vsub.f32 1.0, %v1669
    %v1671 = vmul.f32 %v1668, %v1670
    %v1672 = vadd.f32 %v1668, %v1671
    %vm1673 = vweird.f32 %v1562
    %vm1674 = vweird.f32 %v1668
    %vm1675 = vmor %vm1673, %vm1674
    %v1676 = vsel %vm1675, %v1668, %v1672
    %v1677 = vand.u32 2147483647, %v1562
    %vm1678 = vcmp.eq.f32.partialorder %v1677, 8.507059e+37
    %v1679 = vand.u32 %v1562, 2147483648
    %v1680 = vor.u32 1.1754944e-38, %v1679
    %v1681 = vsel %vm1678, %v1680, %v1676
    %v1682 = vmul.f32 1.0, %v1681
    %v1683 = vmul.f32 %v1577, %v980
    %v1684 = vmul.f32 %v1592, %v982
    %v1685 = vmul.f32 %v1607, %v985
    %v1686 = vmul.f32 %v1622, %v987
    %v1687 = vadd.f32 %v1010, %v1683
    %v1688 = vadd.f32 %v1012, %v1684
    %v1689 = vadd.f32 %v1015, %v1685
    %v1690 = vadd.f32 %v1017, %v1686
    %v1691 = vtanh.pop %v1687
    %v1692 = vtanh.pop %v1688
    %v1693 = vtanh.pop %v1689
    %v1694 = vtanh.pop %v1690
    %v1695 = vsub.f32 1.0, %v1637
    %v1696 = vsub.f32 1.0, %v1652
    %v1697 = vsub.f32 1.0, %v1667
    %v1698 = vsub.f32 1.0, %v1682
    %v1699 = vmul.f32 %v1695, %v1691
    %v1700 = vmul.f32 %v1696, %v1692
    %v1701 = vmul.f32 %v1697, %v1693
    %v1702 = vmul.f32 %v1698, %v1694
    %v1703 = vmul.f32 %v1637, %v855
    %v1704 = vmul.f32 %v1652, %v856
    %v1705 = vmul.f32 %v1667, %v857
    %v1706 = vmul.f32 %v1682, %v858
    %v1707 = vadd.f32 %v1699, %v1703
    %v1708 = vadd.f32 %v1700, %v1704
    %v1709 = vadd.f32 %v1701, %v1705
    %v1710 = vadd.f32 %v1702, %v1706
    %s1711 = scalar_lea.vmem [#allocation3], 64
    %v1712 = vld [vmem:[%s1711] sm:$0xff]
    %v1713 = vld [vmem:[%s1711 + $0x8] sm:$0xff]
    %v1714 = vld [vmem:[%s1711 + $0x10] sm:$0xff]
    %v1715 = vld [vmem:[%s1711 + $0x18] sm:$0xff]
    %v1716 = vpack.c.bf16 %v1520, %v1519
    %v1717 = vpack.c.bf16 %v1522, %v1521
    %v1718 = vpack.c.bf16 %v1268, %v1267
    %v1719 = vpack.c.bf16 %v1270, %v1269
    %v1720 = vpack.c.bf16 %v1708, %v1707
    %v1721 = vpack.c.bf16 %v1710, %v1709
    %v1722 = vpack.c.bf16 %v1713, %v1712
    %v1723 = vpack.c.bf16 %v1715, %v1714
    %1724 = vmatpush.bf16.msra.mxu0 %v1723
    %1725 = vmatpush.bf16.msra.mxu0 %v1722
    %1726 = vmatpush.bf16.msra.mxu0 %v1721
    %1727 = vmatpush.bf16.msra.mxu0 %v1720
    %1728 = vmatpush.bf16.msra.mxu0 %v1719
    %1729 = vmatpush.bf16.msra.mxu0 %v1718
    %1730 = vmatpush.bf16.msra.mxu0 %v1717
    %1731 = vmatpush.bf16.msra.mxu0 %v1716
    %1732 = vmatmul.bf16.gmra.mxu0 %v230
    %v1733 = vpop.f32.mrf.mxu0
    %v1734 = vadd.f32 0.0, %v1733
    %v1735 = vpop.f32.mrf.mxu0
    %v1736 = vadd.f32 0.0, %v1735
    %1737 = vmatmul.bf16.gmra.mxu0 %v231
    %v1738 = vpop.f32.mrf.mxu0
    %v1739 = vadd.f32 0.0, %v1738
    %v1740 = vpop.f32.mrf.mxu0
    %v1741 = vadd.f32 0.0, %v1740
    %1742 = vmatmul.bf16.gmra.mxu0 %v232
    %v1743 = vpop.f32.mrf.mxu0
    %v1744 = vadd.f32 0.0, %v1743
    %v1745 = vpop.f32.mrf.mxu0
    %v1746 = vadd.f32 0.0, %v1745
    %1747 = vmatmul.bf16.gmra.mxu0 %v233
    %v1748 = vpop.f32.mrf.mxu0
    %v1749 = vadd.f32 0.0, %v1748
    %v1750 = vpop.f32.mrf.mxu0
    %v1751 = vadd.f32 0.0, %v1750
    %1752 = vmatmul.bf16.gmra.mxu0 %v234
    %v1753 = vpop.f32.mrf.mxu0
    %v1754 = vadd.f32 0.0, %v1753
    %v1755 = vpop.f32.mrf.mxu0
    %v1756 = vadd.f32 0.0, %v1755
    %1757 = vmatmul.bf16.gmra.mxu0 %v235
    %v1758 = vpop.f32.mrf.mxu0
    %v1759 = vadd.f32 0.0, %v1758
    %v1760 = vpop.f32.mrf.mxu0
    %v1761 = vadd.f32 0.0, %v1760
    %1762 = vmatmul.bf16.gmra.mxu0 %v236
    %v1763 = vpop.f32.mrf.mxu0
    %v1764 = vadd.f32 0.0, %v1763
    %v1765 = vpop.f32.mrf.mxu0
    %v1766 = vadd.f32 0.0, %v1765
    %1767 = vmatmul.bf16.gmra.mxu0 %v237
    %v1768 = vpop.f32.mrf.mxu0
    %v1769 = vadd.f32 0.0, %v1768
    %v1770 = vpop.f32.mrf.mxu0
    %v1771 = vadd.f32 0.0, %v1770
    %1772 = vmatmul.bf16.gmra.mxu0 %v238
    %v1773 = vpop.f32.mrf.mxu0
    %v1774 = vadd.f32 0.0, %v1773
    %v1775 = vpop.f32.mrf.mxu0
    %v1776 = vadd.f32 0.0, %v1775
    %1777 = vmatmul.bf16.gmra.mxu0 %v239
    %v1778 = vpop.f32.mrf.mxu0
    %v1779 = vadd.f32 0.0, %v1778
    %v1780 = vpop.f32.mrf.mxu0
    %v1781 = vadd.f32 0.0, %v1780
    %1782 = vmatmul.bf16.gmra.mxu0 %v240
    %v1783 = vpop.f32.mrf.mxu0
    %v1784 = vadd.f32 0.0, %v1783
    %v1785 = vpop.f32.mrf.mxu0
    %v1786 = vadd.f32 0.0, %v1785
    %1787 = vmatmul.bf16.gmra.mxu0 %v241
    %v1788 = vpop.f32.mrf.mxu0
    %v1789 = vadd.f32 0.0, %v1788
    %v1790 = vpop.f32.mrf.mxu0
    %v1791 = vadd.f32 0.0, %v1790
    %1792 = vmatmul.bf16.gmra.mxu0 %v242
    %v1793 = vpop.f32.mrf.mxu0
    %v1794 = vadd.f32 0.0, %v1793
    %v1795 = vpop.f32.mrf.mxu0
    %v1796 = vadd.f32 0.0, %v1795
    %1797 = vmatmul.bf16.gmra.mxu0 %v243
    %v1798 = vpop.f32.mrf.mxu0
    %v1799 = vadd.f32 0.0, %v1798
    %v1800 = vpop.f32.mrf.mxu0
    %v1801 = vadd.f32 0.0, %v1800
    %1802 = vmatmul.bf16.gmra.mxu0 %v244
    %v1803 = vpop.f32.mrf.mxu0
    %v1804 = vadd.f32 0.0, %v1803
    %v1805 = vpop.f32.mrf.mxu0
    %v1806 = vadd.f32 0.0, %v1805
    %1807 = vmatmul.bf16.gmra.mxu0 %v245
    %v1808 = vpop.f32.mrf.mxu0
    %v1809 = vadd.f32 0.0, %v1808
    %v1810 = vpop.f32.mrf.mxu0
    %v1811 = vadd.f32 0.0, %v1810
    %1812 = vmatmul.bf16.gmra.mxu0 %v246
    %v1813 = vpop.f32.mrf.mxu0
    %v1814 = vadd.f32 0.0, %v1813
    %v1815 = vpop.f32.mrf.mxu0
    %v1816 = vadd.f32 0.0, %v1815
    %1817 = vmatmul.bf16.gmra.mxu0 %v247
    %v1818 = vpop.f32.mrf.mxu0
    %v1819 = vadd.f32 0.0, %v1818
    %v1820 = vpop.f32.mrf.mxu0
    %v1821 = vadd.f32 0.0, %v1820
    %1822 = vmatmul.bf16.gmra.mxu0 %v248
    %v1823 = vpop.f32.mrf.mxu0
    %v1824 = vadd.f32 0.0, %v1823
    %v1825 = vpop.f32.mrf.mxu0
    %v1826 = vadd.f32 0.0, %v1825
    %1827 = vmatmul.bf16.gmra.mxu0 %v249
    %v1828 = vpop.f32.mrf.mxu0
    %v1829 = vadd.f32 0.0, %v1828
    %v1830 = vpop.f32.mrf.mxu0
    %v1831 = vadd.f32 0.0, %v1830
    %1832 = vmatmul.bf16.gmra.mxu0 %v250
    %v1833 = vpop.f32.mrf.mxu0
    %v1834 = vadd.f32 0.0, %v1833
    %v1835 = vpop.f32.mrf.mxu0
    %v1836 = vadd.f32 0.0, %v1835
    %1837 = vmatmul.bf16.gmra.mxu0 %v251
    %v1838 = vpop.f32.mrf.mxu0
    %v1839 = vadd.f32 0.0, %v1838
    %v1840 = vpop.f32.mrf.mxu0
    %v1841 = vadd.f32 0.0, %v1840
    %1842 = vmatmul.bf16.gmra.mxu0 %v252
    %v1843 = vpop.f32.mrf.mxu0
    %v1844 = vadd.f32 0.0, %v1843
    %v1845 = vpop.f32.mrf.mxu0
    %v1846 = vadd.f32 0.0, %v1845
    %1847 = vmatmul.bf16.gmra.mxu0 %v253
    %v1848 = vpop.f32.mrf.mxu0
    %v1849 = vadd.f32 0.0, %v1848
    %v1850 = vpop.f32.mrf.mxu0
    %v1851 = vadd.f32 0.0, %v1850
    %1852 = vmatmul.bf16.gmra.mxu0 %v254
    %v1853 = vpop.f32.mrf.mxu0
    %v1854 = vadd.f32 0.0, %v1853
    %v1855 = vpop.f32.mrf.mxu0
    %v1856 = vadd.f32 0.0, %v1855
    %1857 = vmatmul.bf16.gmra.mxu0 %v255
    %v1858 = vpop.f32.mrf.mxu0
    %v1859 = vadd.f32 0.0, %v1858
    %v1860 = vpop.f32.mrf.mxu0
    %v1861 = vadd.f32 0.0, %v1860
    %1862 = vmatmul.bf16.gmra.mxu0 %v256
    %v1863 = vpop.f32.mrf.mxu0
    %v1864 = vadd.f32 0.0, %v1863
    %v1865 = vpop.f32.mrf.mxu0
    %v1866 = vadd.f32 0.0, %v1865
    %1867 = vmatmul.bf16.gmra.mxu0 %v257
    %v1868 = vpop.f32.mrf.mxu0
    %v1869 = vadd.f32 0.0, %v1868
    %v1870 = vpop.f32.mrf.mxu0
    %v1871 = vadd.f32 0.0, %v1870
    %1872 = vdwg.mxu0
    %v1873 = vxor.u32 %v1774, 2147483648
    %v1874 = vxor.u32 %v1776, 2147483648
    %v1875 = vxor.u32 %v1779, 2147483648
    %v1876 = vxor.u32 %v1781, 2147483648
    %v1877 = vxor.u32 %v1784, 2147483648
    %v1878 = vxor.u32 %v1786, 2147483648
    %v1879 = vxor.u32 %v1789, 2147483648
    %v1880 = vxor.u32 %v1791, 2147483648
    %v1881 = vxor.u32 %v1794, 2147483648
    %v1882 = vxor.u32 %v1796, 2147483648
    %v1883 = vxor.u32 %v1799, 2147483648
    %v1884 = vxor.u32 %v1801, 2147483648
    %v1885 = vmul.f32 %v1873, 1.442695
    %v1886 = vpow.pop %v1885
    %v1887 = vmul.f32 %v1874, 1.442695
    %v1888 = vpow.pop %v1887
    %v1889 = vmul.f32 %v1875, 1.442695
    %v1890 = vpow.pop %v1889
    %v1891 = vmul.f32 %v1876, 1.442695
    %v1892 = vpow.pop %v1891
    %v1893 = vmul.f32 %v1877, 1.442695
    %v1894 = vpow.pop %v1893
    %v1895 = vmul.f32 %v1878, 1.442695
    %v1896 = vpow.pop %v1895
    %v1897 = vmul.f32 %v1879, 1.442695
    %v1898 = vpow.pop %v1897
    %v1899 = vmul.f32 %v1880, 1.442695
    %v1900 = vpow.pop %v1899
    %v1901 = vmul.f32 %v1881, 1.442695
    %v1902 = vpow.pop %v1901
    %v1903 = vmul.f32 %v1882, 1.442695
    %v1904 = vpow.pop %v1903
    %v1905 = vmul.f32 %v1883, 1.442695
    %v1906 = vpow.pop %v1905
    %v1907 = vmul.f32 %v1884, 1.442695
    %v1908 = vpow.pop %v1907
    %v1909 = vadd.f32 %v1886, 1.0
    %v1910 = vadd.f32 %v1888, 1.0
    %v1911 = vadd.f32 %v1890, 1.0
    %v1912 = vadd.f32 %v1892, 1.0
    %v1913 = vadd.f32 %v1894, 1.0
    %v1914 = vadd.f32 %v1896, 1.0
    %v1915 = vadd.f32 %v1898, 1.0
    %v1916 = vadd.f32 %v1900, 1.0
    %v1917 = vadd.f32 %v1902, 1.0
    %v1918 = vadd.f32 %v1904, 1.0
    %v1919 = vadd.f32 %v1906, 1.0
    %v1920 = vadd.f32 %v1908, 1.0
    %v1921 = vrcp.pop %v1909
    %v1922 = vmul.f32 %v1909, %v1921
    %v1923 = vsub.f32 1.0, %v1922
    %v1924 = vmul.f32 %v1921, %v1923
    %v1925 = vadd.f32 %v1921, %v1924
    %vm1926 = vweird.f32 %v1909
    %vm1927 = vweird.f32 %v1921
    %vm1928 = vmor %vm1926, %vm1927
    %v1929 = vsel %vm1928, %v1921, %v1925
    %v1930 = vand.u32 2147483647, %v1909
    %vm1931 = vcmp.eq.f32.partialorder %v1930, 8.507059e+37
    %v1932 = vand.u32 %v1909, 2147483648
    %v1933 = vor.u32 1.1754944e-38, %v1932
    %v1934 = vsel %vm1931, %v1933, %v1929
    %v1935 = vmul.f32 1.0, %v1934
    %v1936 = vrcp.pop %v1910
    %v1937 = vmul.f32 %v1910, %v1936
    %v1938 = vsub.f32 1.0, %v1937
    %v1939 = vmul.f32 %v1936, %v1938
    %v1940 = vadd.f32 %v1936, %v1939
    %vm1941 = vweird.f32 %v1910
    %vm1942 = vweird.f32 %v1936
    %vm1943 = vmor %vm1941, %vm1942
    %v1944 = vsel %vm1943, %v1936, %v1940
    %v1945 = vand.u32 2147483647, %v1910
    %vm1946 = vcmp.eq.f32.partialorder %v1945, 8.507059e+37
    %v1947 = vand.u32 %v1910, 2147483648
    %v1948 = vor.u32 1.1754944e-38, %v1947
    %v1949 = vsel %vm1946, %v1948, %v1944
    %v1950 = vmul.f32 1.0, %v1949
    %v1951 = vrcp.pop %v1911
    %v1952 = vmul.f32 %v1911, %v1951
    %v1953 = vsub.f32 1.0, %v1952
    %v1954 = vmul.f32 %v1951, %v1953
    %v1955 = vadd.f32 %v1951, %v1954
    %vm1956 = vweird.f32 %v1911
    %vm1957 = vweird.f32 %v1951
    %vm1958 = vmor %vm1956, %vm1957
    %v1959 = vsel %vm1958, %v1951, %v1955
    %v1960 = vand.u32 2147483647, %v1911
    %vm1961 = vcmp.eq.f32.partialorder %v1960, 8.507059e+37
    %v1962 = vand.u32 %v1911, 2147483648
    %v1963 = vor.u32 1.1754944e-38, %v1962
    %v1964 = vsel %vm1961, %v1963, %v1959
    %v1965 = vmul.f32 1.0, %v1964
    %v1966 = vrcp.pop %v1912
    %v1967 = vmul.f32 %v1912, %v1966
    %v1968 = vsub.f32 1.0, %v1967
    %v1969 = vmul.f32 %v1966, %v1968
    %v1970 = vadd.f32 %v1966, %v1969
    %vm1971 = vweird.f32 %v1912
    %vm1972 = vweird.f32 %v1966
    %vm1973 = vmor %vm1971, %vm1972
    %v1974 = vsel %vm1973, %v1966, %v1970
    %v1975 = vand.u32 2147483647, %v1912
    %vm1976 = vcmp.eq.f32.partialorder %v1975, 8.507059e+37
    %v1977 = vand.u32 %v1912, 2147483648
    %v1978 = vor.u32 1.1754944e-38, %v1977
    %v1979 = vsel %vm1976, %v1978, %v1974
    %v1980 = vmul.f32 1.0, %v1979
    %v1981 = vrcp.pop %v1913
    %v1982 = vmul.f32 %v1913, %v1981
    %v1983 = vsub.f32 1.0, %v1982
    %v1984 = vmul.f32 %v1981, %v1983
    %v1985 = vadd.f32 %v1981, %v1984
    %vm1986 = vweird.f32 %v1913
    %vm1987 = vweird.f32 %v1981
    %vm1988 = vmor %vm1986, %vm1987
    %v1989 = vsel %vm1988, %v1981, %v1985
    %v1990 = vand.u32 2147483647, %v1913
    %vm1991 = vcmp.eq.f32.partialorder %v1990, 8.507059e+37
    %v1992 = vand.u32 %v1913, 2147483648
    %v1993 = vor.u32 1.1754944e-38, %v1992
    %v1994 = vsel %vm1991, %v1993, %v1989
    %v1995 = vmul.f32 1.0, %v1994
    %v1996 = vrcp.pop %v1914
    %v1997 = vmul.f32 %v1914, %v1996
    %v1998 = vsub.f32 1.0, %v1997
    %v1999 = vmul.f32 %v1996, %v1998
    %v2000 = vadd.f32 %v1996, %v1999
    %vm2001 = vweird.f32 %v1914
    %vm2002 = vweird.f32 %v1996
    %vm2003 = vmor %vm2001, %vm2002
    %v2004 = vsel %vm2003, %v1996, %v2000
    %v2005 = vand.u32 2147483647, %v1914
    %vm2006 = vcmp.eq.f32.partialorder %v2005, 8.507059e+37
    %v2007 = vand.u32 %v1914, 2147483648
    %v2008 = vor.u32 1.1754944e-38, %v2007
    %v2009 = vsel %vm2006, %v2008, %v2004
    %v2010 = vmul.f32 1.0, %v2009
    %v2011 = vrcp.pop %v1915
    %v2012 = vmul.f32 %v1915, %v2011
    %v2013 = vsub.f32 1.0, %v2012
    %v2014 = vmul.f32 %v2011, %v2013
    %v2015 = vadd.f32 %v2011, %v2014
    %vm2016 = vweird.f32 %v1915
    %vm2017 = vweird.f32 %v2011
    %vm2018 = vmor %vm2016, %vm2017
    %v2019 = vsel %vm2018, %v2011, %v2015
    %v2020 = vand.u32 2147483647, %v1915
    %vm2021 = vcmp.eq.f32.partialorder %v2020, 8.507059e+37
    %v2022 = vand.u32 %v1915, 2147483648
    %v2023 = vor.u32 1.1754944e-38, %v2022
    %v2024 = vsel %vm2021, %v2023, %v2019
    %v2025 = vmul.f32 1.0, %v2024
    %v2026 = vrcp.pop %v1916
    %v2027 = vmul.f32 %v1916, %v2026
    %v2028 = vsub.f32 1.0, %v2027
    %v2029 = vmul.f32 %v2026, %v2028
    %v2030 = vadd.f32 %v2026, %v2029
    %vm2031 = vweird.f32 %v1916
    %vm2032 = vweird.f32 %v2026
    %vm2033 = vmor %vm2031, %vm2032
    %v2034 = vsel %vm2033, %v2026, %v2030
    %v2035 = vand.u32 2147483647, %v1916
    %vm2036 = vcmp.eq.f32.partialorder %v2035, 8.507059e+37
    %v2037 = vand.u32 %v1916, 2147483648
    %v2038 = vor.u32 1.1754944e-38, %v2037
    %v2039 = vsel %vm2036, %v2038, %v2034
    %v2040 = vmul.f32 1.0, %v2039
    %v2041 = vrcp.pop %v1917
    %v2042 = vmul.f32 %v1917, %v2041
    %v2043 = vsub.f32 1.0, %v2042
    %v2044 = vmul.f32 %v2041, %v2043
    %v2045 = vadd.f32 %v2041, %v2044
    %vm2046 = vweird.f32 %v1917
    %vm2047 = vweird.f32 %v2041
    %vm2048 = vmor %vm2046, %vm2047
    %v2049 = vsel %vm2048, %v2041, %v2045
    %v2050 = vand.u32 2147483647, %v1917
    %vm2051 = vcmp.eq.f32.partialorder %v2050, 8.507059e+37
    %v2052 = vand.u32 %v1917, 2147483648
    %v2053 = vor.u32 1.1754944e-38, %v2052
    %v2054 = vsel %vm2051, %v2053, %v2049
    %v2055 = vmul.f32 1.0, %v2054
    %v2056 = vrcp.pop %v1918
    %v2057 = vmul.f32 %v1918, %v2056
    %v2058 = vsub.f32 1.0, %v2057
    %v2059 = vmul.f32 %v2056, %v2058
    %v2060 = vadd.f32 %v2056, %v2059
    %vm2061 = vweird.f32 %v1918
    %vm2062 = vweird.f32 %v2056
    %vm2063 = vmor %vm2061, %vm2062
    %v2064 = vsel %vm2063, %v2056, %v2060
    %v2065 = vand.u32 2147483647, %v1918
    %vm2066 = vcmp.eq.f32.partialorder %v2065, 8.507059e+37
    %v2067 = vand.u32 %v1918, 2147483648
    %v2068 = vor.u32 1.1754944e-38, %v2067
    %v2069 = vsel %vm2066, %v2068, %v2064
    %v2070 = vmul.f32 1.0, %v2069
    %v2071 = vrcp.pop %v1919
    %v2072 = vmul.f32 %v1919, %v2071
    %v2073 = vsub.f32 1.0, %v2072
    %v2074 = vmul.f32 %v2071, %v2073
    %v2075 = vadd.f32 %v2071, %v2074
    %vm2076 = vweird.f32 %v1919
    %vm2077 = vweird.f32 %v2071
    %vm2078 = vmor %vm2076, %vm2077
    %v2079 = vsel %vm2078, %v2071, %v2075
    %v2080 = vand.u32 2147483647, %v1919
    %vm2081 = vcmp.eq.f32.partialorder %v2080, 8.507059e+37
    %v2082 = vand.u32 %v1919, 2147483648
    %v2083 = vor.u32 1.1754944e-38, %v2082
    %v2084 = vsel %vm2081, %v2083, %v2079
    %v2085 = vmul.f32 1.0, %v2084
    %v2086 = vrcp.pop %v1920
    %v2087 = vmul.f32 %v1920, %v2086
    %v2088 = vsub.f32 1.0, %v2087
    %v2089 = vmul.f32 %v2086, %v2088
    %v2090 = vadd.f32 %v2086, %v2089
    %vm2091 = vweird.f32 %v1920
    %vm2092 = vweird.f32 %v2086
    %vm2093 = vmor %vm2091, %vm2092
    %v2094 = vsel %vm2093, %v2086, %v2090
    %v2095 = vand.u32 2147483647, %v1920
    %vm2096 = vcmp.eq.f32.partialorder %v2095, 8.507059e+37
    %v2097 = vand.u32 %v1920, 2147483648
    %v2098 = vor.u32 1.1754944e-38, %v2097
    %v2099 = vsel %vm2096, %v2098, %v2094
    %v2100 = vmul.f32 1.0, %v2099
    %v2101 = vtanh.pop %v1804
    %v2102 = vtanh.pop %v1806
    %v2103 = vtanh.pop %v1809
    %v2104 = vtanh.pop %v1811
    %v2105 = vmul.f32 %v1995, %v1259
    %v2106 = vmul.f32 %v2010, %v1260
    %v2107 = vmul.f32 %v2025, %v1261
    %v2108 = vmul.f32 %v2040, %v1262
    %v2109 = vmul.f32 %v1935, %v2101
    %v2110 = vmul.f32 %v1950, %v2102
    %v2111 = vmul.f32 %v1965, %v2103
    %v2112 = vmul.f32 %v1980, %v2104
    %v2113 = vadd.f32 %v2105, %v2109
    %v2114 = vadd.f32 %v2106, %v2110
    %v2115 = vadd.f32 %v2107, %v2111
    %v2116 = vadd.f32 %v2108, %v2112
    %v2117 = vtanh.pop %v2113
    %v2118 = vtanh.pop %v2114
    %v2119 = vtanh.pop %v2115
    %v2120 = vtanh.pop %v2116
    %v2121 = vmul.f32 %v2055, %v2117
    %v2122 = vmul.f32 %v2070, %v2118
    %v2123 = vmul.f32 %v2085, %v2119
    %v2124 = vmul.f32 %v2100, %v2120
    %v2125 = vxor.u32 %v1734, 2147483648
    %v2126 = vxor.u32 %v1736, 2147483648
    %v2127 = vxor.u32 %v1739, 2147483648
    %v2128 = vxor.u32 %v1741, 2147483648
    %v2129 = vxor.u32 %v1744, 2147483648
    %v2130 = vxor.u32 %v1746, 2147483648
    %v2131 = vxor.u32 %v1749, 2147483648
    %v2132 = vxor.u32 %v1751, 2147483648
    %v2133 = vxor.u32 %v1754, 2147483648
    %v2134 = vxor.u32 %v1756, 2147483648
    %v2135 = vxor.u32 %v1759, 2147483648
    %v2136 = vxor.u32 %v1761, 2147483648
    %v2137 = vmul.f32 %v2125, 1.442695
    %v2138 = vpow.pop %v2137
    %v2139 = vmul.f32 %v2126, 1.442695
    %v2140 = vpow.pop %v2139
    %v2141 = vmul.f32 %v2127, 1.442695
    %v2142 = vpow.pop %v2141
    %v2143 = vmul.f32 %v2128, 1.442695
    %v2144 = vpow.pop %v2143
    %v2145 = vmul.f32 %v2129, 1.442695
    %v2146 = vpow.pop %v2145
    %v2147 = vmul.f32 %v2130, 1.442695
    %v2148 = vpow.pop %v2147
    %v2149 = vmul.f32 %v2131, 1.442695
    %v2150 = vpow.pop %v2149
    %v2151 = vmul.f32 %v2132, 1.442695
    %v2152 = vpow.pop %v2151
    %v2153 = vmul.f32 %v2133, 1.442695
    %v2154 = vpow.pop %v2153
    %v2155 = vmul.f32 %v2134, 1.442695
    %v2156 = vpow.pop %v2155
    %v2157 = vmul.f32 %v2135, 1.442695
    %v2158 = vpow.pop %v2157
    %v2159 = vmul.f32 %v2136, 1.442695
    %v2160 = vpow.pop %v2159
    %v2161 = vadd.f32 %v2138, 1.0
    %v2162 = vadd.f32 %v2140, 1.0
    %v2163 = vadd.f32 %v2142, 1.0
    %v2164 = vadd.f32 %v2144, 1.0
    %v2165 = vadd.f32 %v2146, 1.0
    %v2166 = vadd.f32 %v2148, 1.0
    %v2167 = vadd.f32 %v2150, 1.0
    %v2168 = vadd.f32 %v2152, 1.0
    %v2169 = vadd.f32 %v2154, 1.0
    %v2170 = vadd.f32 %v2156, 1.0
    %v2171 = vadd.f32 %v2158, 1.0
    %v2172 = vadd.f32 %v2160, 1.0
    %v2173 = vrcp.pop %v2161
    %v2174 = vmul.f32 %v2161, %v2173
    %v2175 = vsub.f32 1.0, %v2174
    %v2176 = vmul.f32 %v2173, %v2175
    %v2177 = vadd.f32 %v2173, %v2176
    %vm2178 = vweird.f32 %v2161
    %vm2179 = vweird.f32 %v2173
    %vm2180 = vmor %vm2178, %vm2179
    %v2181 = vsel %vm2180, %v2173, %v2177
    %v2182 = vand.u32 2147483647, %v2161
    %vm2183 = vcmp.eq.f32.partialorder %v2182, 8.507059e+37
    %v2184 = vand.u32 %v2161, 2147483648
    %v2185 = vor.u32 1.1754944e-38, %v2184
    %v2186 = vsel %vm2183, %v2185, %v2181
    %v2187 = vmul.f32 1.0, %v2186
    %v2188 = vrcp.pop %v2162
    %v2189 = vmul.f32 %v2162, %v2188
    %v2190 = vsub.f32 1.0, %v2189
    %v2191 = vmul.f32 %v2188, %v2190
    %v2192 = vadd.f32 %v2188, %v2191
    %vm2193 = vweird.f32 %v2162
    %vm2194 = vweird.f32 %v2188
    %vm2195 = vmor %vm2193, %vm2194
    %v2196 = vsel %vm2195, %v2188, %v2192
    %v2197 = vand.u32 2147483647, %v2162
    %vm2198 = vcmp.eq.f32.partialorder %v2197, 8.507059e+37
    %v2199 = vand.u32 %v2162, 2147483648
    %v2200 = vor.u32 1.1754944e-38, %v2199
    %v2201 = vsel %vm2198, %v2200, %v2196
    %v2202 = vmul.f32 1.0, %v2201
    %v2203 = vrcp.pop %v2163
    %v2204 = vmul.f32 %v2163, %v2203
    %v2205 = vsub.f32 1.0, %v2204
    %v2206 = vmul.f32 %v2203, %v2205
    %v2207 = vadd.f32 %v2203, %v2206
    %vm2208 = vweird.f32 %v2163
    %vm2209 = vweird.f32 %v2203
    %vm2210 = vmor %vm2208, %vm2209
    %v2211 = vsel %vm2210, %v2203, %v2207
    %v2212 = vand.u32 2147483647, %v2163
    %vm2213 = vcmp.eq.f32.partialorder %v2212, 8.507059e+37
    %v2214 = vand.u32 %v2163, 2147483648
    %v2215 = vor.u32 1.1754944e-38, %v2214
    %v2216 = vsel %vm2213, %v2215, %v2211
    %v2217 = vmul.f32 1.0, %v2216
    %v2218 = vrcp.pop %v2164
    %v2219 = vmul.f32 %v2164, %v2218
    %v2220 = vsub.f32 1.0, %v2219
    %v2221 = vmul.f32 %v2218, %v2220
    %v2222 = vadd.f32 %v2218, %v2221
    %vm2223 = vweird.f32 %v2164
    %vm2224 = vweird.f32 %v2218
    %vm2225 = vmor %vm2223, %vm2224
    %v2226 = vsel %vm2225, %v2218, %v2222
    %v2227 = vand.u32 2147483647, %v2164
    %vm2228 = vcmp.eq.f32.partialorder %v2227, 8.507059e+37
    %v2229 = vand.u32 %v2164, 2147483648
    %v2230 = vor.u32 1.1754944e-38, %v2229
    %v2231 = vsel %vm2228, %v2230, %v2226
    %v2232 = vmul.f32 1.0, %v2231
    %v2233 = vrcp.pop %v2165
    %v2234 = vmul.f32 %v2165, %v2233
    %v2235 = vsub.f32 1.0, %v2234
    %v2236 = vmul.f32 %v2233, %v2235
    %v2237 = vadd.f32 %v2233, %v2236
    %vm2238 = vweird.f32 %v2165
    %vm2239 = vweird.f32 %v2233
    %vm2240 = vmor %vm2238, %vm2239
    %v2241 = vsel %vm2240, %v2233, %v2237
    %v2242 = vand.u32 2147483647, %v2165
    %vm2243 = vcmp.eq.f32.partialorder %v2242, 8.507059e+37
    %v2244 = vand.u32 %v2165, 2147483648
    %v2245 = vor.u32 1.1754944e-38, %v2244
    %v2246 = vsel %vm2243, %v2245, %v2241
    %v2247 = vmul.f32 1.0, %v2246
    %v2248 = vrcp.pop %v2166
    %v2249 = vmul.f32 %v2166, %v2248
    %v2250 = vsub.f32 1.0, %v2249
    %v2251 = vmul.f32 %v2248, %v2250
    %v2252 = vadd.f32 %v2248, %v2251
    %vm2253 = vweird.f32 %v2166
    %vm2254 = vweird.f32 %v2248
    %vm2255 = vmor %vm2253, %vm2254
    %v2256 = vsel %vm2255, %v2248, %v2252
    %v2257 = vand.u32 2147483647, %v2166
    %vm2258 = vcmp.eq.f32.partialorder %v2257, 8.507059e+37
    %v2259 = vand.u32 %v2166, 2147483648
    %v2260 = vor.u32 1.1754944e-38, %v2259
    %v2261 = vsel %vm2258, %v2260, %v2256
    %v2262 = vmul.f32 1.0, %v2261
    %v2263 = vrcp.pop %v2167
    %v2264 = vmul.f32 %v2167, %v2263
    %v2265 = vsub.f32 1.0, %v2264
    %v2266 = vmul.f32 %v2263, %v2265
    %v2267 = vadd.f32 %v2263, %v2266
    %vm2268 = vweird.f32 %v2167
    %vm2269 = vweird.f32 %v2263
    %vm2270 = vmor %vm2268, %vm2269
    %v2271 = vsel %vm2270, %v2263, %v2267
    %v2272 = vand.u32 2147483647, %v2167
    %vm2273 = vcmp.eq.f32.partialorder %v2272, 8.507059e+37
    %v2274 = vand.u32 %v2167, 2147483648
    %v2275 = vor.u32 1.1754944e-38, %v2274
    %v2276 = vsel %vm2273, %v2275, %v2271
    %v2277 = vmul.f32 1.0, %v2276
    %v2278 = vrcp.pop %v2168
    %v2279 = vmul.f32 %v2168, %v2278
    %v2280 = vsub.f32 1.0, %v2279
    %v2281 = vmul.f32 %v2278, %v2280
    %v2282 = vadd.f32 %v2278, %v2281
    %vm2283 = vweird.f32 %v2168
    %vm2284 = vweird.f32 %v2278
    %vm2285 = vmor %vm2283, %vm2284
    %v2286 = vsel %vm2285, %v2278, %v2282
    %v2287 = vand.u32 2147483647, %v2168
    %vm2288 = vcmp.eq.f32.partialorder %v2287, 8.507059e+37
    %v2289 = vand.u32 %v2168, 2147483648
    %v2290 = vor.u32 1.1754944e-38, %v2289
    %v2291 = vsel %vm2288, %v2290, %v2286
    %v2292 = vmul.f32 1.0, %v2291
    %v2293 = vrcp.pop %v2169
    %v2294 = vmul.f32 %v2169, %v2293
    %v2295 = vsub.f32 1.0, %v2294
    %v2296 = vmul.f32 %v2293, %v2295
    %v2297 = vadd.f32 %v2293, %v2296
    %vm2298 = vweird.f32 %v2169
    %vm2299 = vweird.f32 %v2293
    %vm2300 = vmor %vm2298, %vm2299
    %v2301 = vsel %vm2300, %v2293, %v2297
    %v2302 = vand.u32 2147483647, %v2169
    %vm2303 = vcmp.eq.f32.partialorder %v2302, 8.507059e+37
    %v2304 = vand.u32 %v2169, 2147483648
    %v2305 = vor.u32 1.1754944e-38, %v2304
    %v2306 = vsel %vm2303, %v2305, %v2301
    %v2307 = vmul.f32 1.0, %v2306
    %v2308 = vrcp.pop %v2170
    %v2309 = vmul.f32 %v2170, %v2308
    %v2310 = vsub.f32 1.0, %v2309
    %v2311 = vmul.f32 %v2308, %v2310
    %v2312 = vadd.f32 %v2308, %v2311
    %vm2313 = vweird.f32 %v2170
    %vm2314 = vweird.f32 %v2308
    %vm2315 = vmor %vm2313, %vm2314
    %v2316 = vsel %vm2315, %v2308, %v2312
    %v2317 = vand.u32 2147483647, %v2170
    %vm2318 = vcmp.eq.f32.partialorder %v2317, 8.507059e+37
    %v2319 = vand.u32 %v2170, 2147483648
    %v2320 = vor.u32 1.1754944e-38, %v2319
    %v2321 = vsel %vm2318, %v2320, %v2316
    %v2322 = vmul.f32 1.0, %v2321
    %v2323 = vrcp.pop %v2171
    %v2324 = vmul.f32 %v2171, %v2323
    %v2325 = vsub.f32 1.0, %v2324
    %v2326 = vmul.f32 %v2323, %v2325
    %v2327 = vadd.f32 %v2323, %v2326
    %vm2328 = vweird.f32 %v2171
    %vm2329 = vweird.f32 %v2323
    %vm2330 = vmor %vm2328, %vm2329
    %v2331 = vsel %vm2330, %v2323, %v2327
    %v2332 = vand.u32 2147483647, %v2171
    %vm2333 = vcmp.eq.f32.partialorder %v2332, 8.507059e+37
    %v2334 = vand.u32 %v2171, 2147483648
    %v2335 = vor.u32 1.1754944e-38, %v2334
    %v2336 = vsel %vm2333, %v2335, %v2331
    %v2337 = vmul.f32 1.0, %v2336
    %v2338 = vrcp.pop %v2172
    %v2339 = vmul.f32 %v2172, %v2338
    %v2340 = vsub.f32 1.0, %v2339
    %v2341 = vmul.f32 %v2338, %v2340
    %v2342 = vadd.f32 %v2338, %v2341
    %vm2343 = vweird.f32 %v2172
    %vm2344 = vweird.f32 %v2338
    %vm2345 = vmor %vm2343, %vm2344
    %v2346 = vsel %vm2345, %v2338, %v2342
    %v2347 = vand.u32 2147483647, %v2172
    %vm2348 = vcmp.eq.f32.partialorder %v2347, 8.507059e+37
    %v2349 = vand.u32 %v2172, 2147483648
    %v2350 = vor.u32 1.1754944e-38, %v2349
    %v2351 = vsel %vm2348, %v2350, %v2346
    %v2352 = vmul.f32 1.0, %v2351
    %v2353 = vtanh.pop %v1764
    %v2354 = vtanh.pop %v1766
    %v2355 = vtanh.pop %v1769
    %v2356 = vtanh.pop %v1771
    %v2357 = vmul.f32 %v2247, %v1511
    %v2358 = vmul.f32 %v2262, %v1512
    %v2359 = vmul.f32 %v2277, %v1513
    %v2360 = vmul.f32 %v2292, %v1514
    %v2361 = vmul.f32 %v2187, %v2353
    %v2362 = vmul.f32 %v2202, %v2354
    %v2363 = vmul.f32 %v2217, %v2355
    %v2364 = vmul.f32 %v2232, %v2356
    %v2365 = vadd.f32 %v2357, %v2361
    %v2366 = vadd.f32 %v2358, %v2362
    %v2367 = vadd.f32 %v2359, %v2363
    %v2368 = vadd.f32 %v2360, %v2364
    %v2369 = vtanh.pop %v2365
    %v2370 = vtanh.pop %v2366
    %v2371 = vtanh.pop %v2367
    %v2372 = vtanh.pop %v2368
    %v2373 = vmul.f32 %v2307, %v2369
    %v2374 = vmul.f32 %v2322, %v2370
    %v2375 = vmul.f32 %v2337, %v2371
    %v2376 = vmul.f32 %v2352, %v2372
    %v2377 = vadd.f32 %v1844, %v1814
    %v2378 = vadd.f32 %v1846, %v1816
    %v2379 = vadd.f32 %v1849, %v1819
    %v2380 = vadd.f32 %v1851, %v1821
    %v2381 = vadd.f32 %v1854, %v1824
    %v2382 = vadd.f32 %v1856, %v1826
    %v2383 = vadd.f32 %v1859, %v1829
    %v2384 = vadd.f32 %v1861, %v1831
    %v2385 = vxor.u32 %v2377, 2147483648
    %v2386 = vxor.u32 %v2378, 2147483648
    %v2387 = vxor.u32 %v2379, 2147483648
    %v2388 = vxor.u32 %v2380, 2147483648
    %v2389 = vxor.u32 %v2381, 2147483648
    %v2390 = vxor.u32 %v2382, 2147483648
    %v2391 = vxor.u32 %v2383, 2147483648
    %v2392 = vxor.u32 %v2384, 2147483648
    %v2393 = vmul.f32 %v2385, 1.442695
    %v2394 = vpow.pop %v2393
    %v2395 = vmul.f32 %v2386, 1.442695
    %v2396 = vpow.pop %v2395
    %v2397 = vmul.f32 %v2387, 1.442695
    %v2398 = vpow.pop %v2397
    %v2399 = vmul.f32 %v2388, 1.442695
    %v2400 = vpow.pop %v2399
    %v2401 = vmul.f32 %v2389, 1.442695
    %v2402 = vpow.pop %v2401
    %v2403 = vmul.f32 %v2390, 1.442695
    %v2404 = vpow.pop %v2403
    %v2405 = vmul.f32 %v2391, 1.442695
    %v2406 = vpow.pop %v2405
    %v2407 = vmul.f32 %v2392, 1.442695
    %v2408 = vpow.pop %v2407
    %v2409 = vadd.f32 %v2394, 1.0
    %v2410 = vadd.f32 %v2396, 1.0
    %v2411 = vadd.f32 %v2398, 1.0
    %v2412 = vadd.f32 %v2400, 1.0
    %v2413 = vadd.f32 %v2402, 1.0
    %v2414 = vadd.f32 %v2404, 1.0
    %v2415 = vadd.f32 %v2406, 1.0
    %v2416 = vadd.f32 %v2408, 1.0
    %v2417 = vrcp.pop %v2409
    %v2418 = vmul.f32 %v2409, %v2417
    %v2419 = vsub.f32 1.0, %v2418
    %v2420 = vmul.f32 %v2417, %v2419
    %v2421 = vadd.f32 %v2417, %v2420
    %vm2422 = vweird.f32 %v2409
    %vm2423 = vweird.f32 %v2417
    %vm2424 = vmor %vm2422, %vm2423
    %v2425 = vsel %vm2424, %v2417, %v2421
    %v2426 = vand.u32 2147483647, %v2409
    %vm2427 = vcmp.eq.f32.partialorder %v2426, 8.507059e+37
    %v2428 = vand.u32 %v2409, 2147483648
    %v2429 = vor.u32 1.1754944e-38, %v2428
    %v2430 = vsel %vm2427, %v2429, %v2425
    %v2431 = vmul.f32 1.0, %v2430
    %v2432 = vrcp.pop %v2410
    %v2433 = vmul.f32 %v2410, %v2432
    %v2434 = vsub.f32 1.0, %v2433
    %v2435 = vmul.f32 %v2432, %v2434
    %v2436 = vadd.f32 %v2432, %v2435
    %vm2437 = vweird.f32 %v2410
    %vm2438 = vweird.f32 %v2432
    %vm2439 = vmor %vm2437, %vm2438
    %v2440 = vsel %vm2439, %v2432, %v2436
    %v2441 = vand.u32 2147483647, %v2410
    %vm2442 = vcmp.eq.f32.partialorder %v2441, 8.507059e+37
    %v2443 = vand.u32 %v2410, 2147483648
    %v2444 = vor.u32 1.1754944e-38, %v2443
    %v2445 = vsel %vm2442, %v2444, %v2440
    %v2446 = vmul.f32 1.0, %v2445
    %v2447 = vrcp.pop %v2411
    %v2448 = vmul.f32 %v2411, %v2447
    %v2449 = vsub.f32 1.0, %v2448
    %v2450 = vmul.f32 %v2447, %v2449
    %v2451 = vadd.f32 %v2447, %v2450
    %vm2452 = vweird.f32 %v2411
    %vm2453 = vweird.f32 %v2447
    %vm2454 = vmor %vm2452, %vm2453
    %v2455 = vsel %vm2454, %v2447, %v2451
    %v2456 = vand.u32 2147483647, %v2411
    %vm2457 = vcmp.eq.f32.partialorder %v2456, 8.507059e+37
    %v2458 = vand.u32 %v2411, 2147483648
    %v2459 = vor.u32 1.1754944e-38, %v2458
    %v2460 = vsel %vm2457, %v2459, %v2455
    %v2461 = vmul.f32 1.0, %v2460
    %v2462 = vrcp.pop %v2412
    %v2463 = vmul.f32 %v2412, %v2462
    %v2464 = vsub.f32 1.0, %v2463
    %v2465 = vmul.f32 %v2462, %v2464
    %v2466 = vadd.f32 %v2462, %v2465
    %vm2467 = vweird.f32 %v2412
    %vm2468 = vweird.f32 %v2462
    %vm2469 = vmor %vm2467, %vm2468
    %v2470 = vsel %vm2469, %v2462, %v2466
    %v2471 = vand.u32 2147483647, %v2412
    %vm2472 = vcmp.eq.f32.partialorder %v2471, 8.507059e+37
    %v2473 = vand.u32 %v2412, 2147483648
    %v2474 = vor.u32 1.1754944e-38, %v2473
    %v2475 = vsel %vm2472, %v2474, %v2470
    %v2476 = vmul.f32 1.0, %v2475
    %v2477 = vrcp.pop %v2413
    %v2478 = vmul.f32 %v2413, %v2477
    %v2479 = vsub.f32 1.0, %v2478
    %v2480 = vmul.f32 %v2477, %v2479
    %v2481 = vadd.f32 %v2477, %v2480
    %vm2482 = vweird.f32 %v2413
    %vm2483 = vweird.f32 %v2477
    %vm2484 = vmor %vm2482, %vm2483
    %v2485 = vsel %vm2484, %v2477, %v2481
    %v2486 = vand.u32 2147483647, %v2413
    %vm2487 = vcmp.eq.f32.partialorder %v2486, 8.507059e+37
    %v2488 = vand.u32 %v2413, 2147483648
    %v2489 = vor.u32 1.1754944e-38, %v2488
    %v2490 = vsel %vm2487, %v2489, %v2485
    %v2491 = vmul.f32 1.0, %v2490
    %v2492 = vrcp.pop %v2414
    %v2493 = vmul.f32 %v2414, %v2492
    %v2494 = vsub.f32 1.0, %v2493
    %v2495 = vmul.f32 %v2492, %v2494
    %v2496 = vadd.f32 %v2492, %v2495
    %vm2497 = vweird.f32 %v2414
    %vm2498 = vweird.f32 %v2492
    %vm2499 = vmor %vm2497, %vm2498
    %v2500 = vsel %vm2499, %v2492, %v2496
    %v2501 = vand.u32 2147483647, %v2414
    %vm2502 = vcmp.eq.f32.partialorder %v2501, 8.507059e+37
    %v2503 = vand.u32 %v2414, 2147483648
    %v2504 = vor.u32 1.1754944e-38, %v2503
    %v2505 = vsel %vm2502, %v2504, %v2500
    %v2506 = vmul.f32 1.0, %v2505
    %v2507 = vrcp.pop %v2415
    %v2508 = vmul.f32 %v2415, %v2507
    %v2509 = vsub.f32 1.0, %v2508
    %v2510 = vmul.f32 %v2507, %v2509
    %v2511 = vadd.f32 %v2507, %v2510
    %vm2512 = vweird.f32 %v2415
    %vm2513 = vweird.f32 %v2507
    %vm2514 = vmor %vm2512, %vm2513
    %v2515 = vsel %vm2514, %v2507, %v2511
    %v2516 = vand.u32 2147483647, %v2415
    %vm2517 = vcmp.eq.f32.partialorder %v2516, 8.507059e+37
    %v2518 = vand.u32 %v2415, 2147483648
    %v2519 = vor.u32 1.1754944e-38, %v2518
    %v2520 = vsel %vm2517, %v2519, %v2515
    %v2521 = vmul.f32 1.0, %v2520
    %v2522 = vrcp.pop %v2416
    %v2523 = vmul.f32 %v2416, %v2522
    %v2524 = vsub.f32 1.0, %v2523
    %v2525 = vmul.f32 %v2522, %v2524
    %v2526 = vadd.f32 %v2522, %v2525
    %vm2527 = vweird.f32 %v2416
    %vm2528 = vweird.f32 %v2522
    %vm2529 = vmor %vm2527, %vm2528
    %v2530 = vsel %vm2529, %v2522, %v2526
    %v2531 = vand.u32 2147483647, %v2416
    %vm2532 = vcmp.eq.f32.partialorder %v2531, 8.507059e+37
    %v2533 = vand.u32 %v2416, 2147483648
    %v2534 = vor.u32 1.1754944e-38, %v2533
    %v2535 = vsel %vm2532, %v2534, %v2530
    %v2536 = vmul.f32 1.0, %v2535
    %v2537 = vmul.f32 %v2431, %v1834
    %v2538 = vmul.f32 %v2446, %v1836
    %v2539 = vmul.f32 %v2461, %v1839
    %v2540 = vmul.f32 %v2476, %v1841
    %v2541 = vadd.f32 %v1864, %v2537
    %v2542 = vadd.f32 %v1866, %v2538
    %v2543 = vadd.f32 %v1869, %v2539
    %v2544 = vadd.f32 %v1871, %v2540
    %v2545 = vtanh.pop %v2541
    %v2546 = vtanh.pop %v2542
    %v2547 = vtanh.pop %v2543
    %v2548 = vtanh.pop %v2544
    %v2549 = vsub.f32 1.0, %v2491
    %v2550 = vsub.f32 1.0, %v2506
    %v2551 = vsub.f32 1.0, %v2521
    %v2552 = vsub.f32 1.0, %v2536
    %v2553 = vmul.f32 %v2549, %v2545
    %v2554 = vmul.f32 %v2550, %v2546
    %v2555 = vmul.f32 %v2551, %v2547
    %v2556 = vmul.f32 %v2552, %v2548
    %v2557 = vmul.f32 %v2491, %v1707
    %v2558 = vmul.f32 %v2506, %v1708
    %v2559 = vmul.f32 %v2521, %v1709
    %v2560 = vmul.f32 %v2536, %v1710
    %v2561 = vadd.f32 %v2553, %v2557
    %v2562 = vadd.f32 %v2554, %v2558
    %v2563 = vadd.f32 %v2555, %v2559
    %v2564 = vadd.f32 %v2556, %v2560
    %s2565 = scalar_lea.vmem [#allocation3], 96
    %v2566 = vld [vmem:[%s2565] sm:$0xff]
    %v2567 = vld [vmem:[%s2565 + $0x8] sm:$0xff]
    %v2568 = vld [vmem:[%s2565 + $0x10] sm:$0xff]
    %v2569 = vld [vmem:[%s2565 + $0x18] sm:$0xff]
    %v2570 = vpack.c.bf16 %v2374, %v2373
    %v2571 = vpack.c.bf16 %v2376, %v2375
    %v2572 = vpack.c.bf16 %v2122, %v2121
    %v2573 = vpack.c.bf16 %v2124, %v2123
    %v2574 = vpack.c.bf16 %v2562, %v2561
    %v2575 = vpack.c.bf16 %v2564, %v2563
    %v2576 = vpack.c.bf16 %v2567, %v2566
    %v2577 = vpack.c.bf16 %v2569, %v2568
    %2578 = vmatpush.bf16.msra.mxu0 %v2577
    %2579 = vmatpush.bf16.msra.mxu0 %v2576
    %2580 = vmatpush.bf16.msra.mxu0 %v2575
    %2581 = vmatpush.bf16.msra.mxu0 %v2574
    %2582 = vmatpush.bf16.msra.mxu0 %v2573
    %2583 = vmatpush.bf16.msra.mxu0 %v2572
    %2584 = vmatpush.bf16.msra.mxu0 %v2571
    %2585 = vmatpush.bf16.msra.mxu0 %v2570
    %2586 = vmatmul.bf16.gmra.mxu0 %v230
    %v2587 = vpop.f32.mrf.mxu0
    %v2588 = vadd.f32 0.0, %v2587
    %v2589 = vpop.f32.mrf.mxu0
    %v2590 = vadd.f32 0.0, %v2589
    %2591 = vmatmul.bf16.gmra.mxu0 %v231
    %v2592 = vpop.f32.mrf.mxu0
    %v2593 = vadd.f32 0.0, %v2592
    %v2594 = vpop.f32.mrf.mxu0
    %v2595 = vadd.f32 0.0, %v2594
    %2596 = vmatmul.bf16.gmra.mxu0 %v232
    %v2597 = vpop.f32.mrf.mxu0
    %v2598 = vadd.f32 0.0, %v2597
    %v2599 = vpop.f32.mrf.mxu0
    %v2600 = vadd.f32 0.0, %v2599
    %2601 = vmatmul.bf16.gmra.mxu0 %v233
    %v2602 = vpop.f32.mrf.mxu0
    %v2603 = vadd.f32 0.0, %v2602
    %v2604 = vpop.f32.mrf.mxu0
    %v2605 = vadd.f32 0.0, %v2604
    %2606 = vmatmul.bf16.gmra.mxu0 %v234
    %v2607 = vpop.f32.mrf.mxu0
    %v2608 = vadd.f32 0.0, %v2607
    %v2609 = vpop.f32.mrf.mxu0
    %v2610 = vadd.f32 0.0, %v2609
    %2611 = vmatmul.bf16.gmra.mxu0 %v235
    %v2612 = vpop.f32.mrf.mxu0
    %v2613 = vadd.f32 0.0, %v2612
    %v2614 = vpop.f32.mrf.mxu0
    %v2615 = vadd.f32 0.0, %v2614
    %2616 = vmatmul.bf16.gmra.mxu0 %v236
    %v2617 = vpop.f32.mrf.mxu0
    %v2618 = vadd.f32 0.0, %v2617
    %v2619 = vpop.f32.mrf.mxu0
    %v2620 = vadd.f32 0.0, %v2619
    %2621 = vmatmul.bf16.gmra.mxu0 %v237
    %v2622 = vpop.f32.mrf.mxu0
    %v2623 = vadd.f32 0.0, %v2622
    %v2624 = vpop.f32.mrf.mxu0
    %v2625 = vadd.f32 0.0, %v2624
    %2626 = vmatmul.bf16.gmra.mxu0 %v238
    %v2627 = vpop.f32.mrf.mxu0
    %v2628 = vadd.f32 0.0, %v2627
    %v2629 = vpop.f32.mrf.mxu0
    %v2630 = vadd.f32 0.0, %v2629
    %2631 = vmatmul.bf16.gmra.mxu0 %v239
    %v2632 = vpop.f32.mrf.mxu0
    %v2633 = vadd.f32 0.0, %v2632
    %v2634 = vpop.f32.mrf.mxu0
    %v2635 = vadd.f32 0.0, %v2634
    %2636 = vmatmul.bf16.gmra.mxu0 %v240
    %v2637 = vpop.f32.mrf.mxu0
    %v2638 = vadd.f32 0.0, %v2637
    %v2639 = vpop.f32.mrf.mxu0
    %v2640 = vadd.f32 0.0, %v2639
    %2641 = vmatmul.bf16.gmra.mxu0 %v241
    %v2642 = vpop.f32.mrf.mxu0
    %v2643 = vadd.f32 0.0, %v2642
    %v2644 = vpop.f32.mrf.mxu0
    %v2645 = vadd.f32 0.0, %v2644
    %2646 = vmatmul.bf16.gmra.mxu0 %v242
    %v2647 = vpop.f32.mrf.mxu0
    %v2648 = vadd.f32 0.0, %v2647
    %v2649 = vpop.f32.mrf.mxu0
    %v2650 = vadd.f32 0.0, %v2649
    %2651 = vmatmul.bf16.gmra.mxu0 %v243
    %v2652 = vpop.f32.mrf.mxu0
    %v2653 = vadd.f32 0.0, %v2652
    %v2654 = vpop.f32.mrf.mxu0
    %v2655 = vadd.f32 0.0, %v2654
    %2656 = vmatmul.bf16.gmra.mxu0 %v244
    %v2657 = vpop.f32.mrf.mxu0
    %v2658 = vadd.f32 0.0, %v2657
    %v2659 = vpop.f32.mrf.mxu0
    %v2660 = vadd.f32 0.0, %v2659
    %2661 = vmatmul.bf16.gmra.mxu0 %v245
    %v2662 = vpop.f32.mrf.mxu0
    %v2663 = vadd.f32 0.0, %v2662
    %v2664 = vpop.f32.mrf.mxu0
    %v2665 = vadd.f32 0.0, %v2664
    %2666 = vmatmul.bf16.gmra.mxu0 %v246
    %v2667 = vpop.f32.mrf.mxu0
    %v2668 = vadd.f32 0.0, %v2667
    %v2669 = vpop.f32.mrf.mxu0
    %v2670 = vadd.f32 0.0, %v2669
    %2671 = vmatmul.bf16.gmra.mxu0 %v247
    %v2672 = vpop.f32.mrf.mxu0
    %v2673 = vadd.f32 0.0, %v2672
    %v2674 = vpop.f32.mrf.mxu0
    %v2675 = vadd.f32 0.0, %v2674
    %2676 = vmatmul.bf16.gmra.mxu0 %v248
    %v2677 = vpop.f32.mrf.mxu0
    %v2678 = vadd.f32 0.0, %v2677
    %v2679 = vpop.f32.mrf.mxu0
    %v2680 = vadd.f32 0.0, %v2679
    %2681 = vmatmul.bf16.gmra.mxu0 %v249
    %v2682 = vpop.f32.mrf.mxu0
    %v2683 = vadd.f32 0.0, %v2682
    %v2684 = vpop.f32.mrf.mxu0
    %v2685 = vadd.f32 0.0, %v2684
    %2686 = vmatmul.bf16.gmra.mxu0 %v250
    %v2687 = vpop.f32.mrf.mxu0
    %v2688 = vadd.f32 0.0, %v2687
    %v2689 = vpop.f32.mrf.mxu0
    %v2690 = vadd.f32 0.0, %v2689
    %2691 = vmatmul.bf16.gmra.mxu0 %v251
    %v2692 = vpop.f32.mrf.mxu0
    %v2693 = vadd.f32 0.0, %v2692
    %v2694 = vpop.f32.mrf.mxu0
    %v2695 = vadd.f32 0.0, %v2694
    %2696 = vmatmul.bf16.gmra.mxu0 %v252
    %v2697 = vpop.f32.mrf.mxu0
    %v2698 = vadd.f32 0.0, %v2697
    %v2699 = vpop.f32.mrf.mxu0
    %v2700 = vadd.f32 0.0, %v2699
    %2701 = vmatmul.bf16.gmra.mxu0 %v253
    %v2702 = vpop.f32.mrf.mxu0
    %v2703 = vadd.f32 0.0, %v2702
    %v2704 = vpop.f32.mrf.mxu0
    %v2705 = vadd.f32 0.0, %v2704
    %2706 = vmatmul.bf16.gmra.mxu0 %v254
    %v2707 = vpop.f32.mrf.mxu0
    %v2708 = vadd.f32 0.0, %v2707
    %v2709 = vpop.f32.mrf.mxu0
    %v2710 = vadd.f32 0.0, %v2709
    %2711 = vmatmul.bf16.gmra.mxu0 %v255
    %v2712 = vpop.f32.mrf.mxu0
    %v2713 = vadd.f32 0.0, %v2712
    %v2714 = vpop.f32.mrf.mxu0
    %v2715 = vadd.f32 0.0, %v2714
    %2716 = vmatmul.bf16.gmra.mxu0 %v256
    %v2717 = vpop.f32.mrf.mxu0
    %v2718 = vadd.f32 0.0, %v2717
    %v2719 = vpop.f32.mrf.mxu0
    %v2720 = vadd.f32 0.0, %v2719
    %2721 = vmatmul.bf16.gmra.mxu0 %v257
    %v2722 = vpop.f32.mrf.mxu0
    %v2723 = vadd.f32 0.0, %v2722
    %v2724 = vpop.f32.mrf.mxu0
    %v2725 = vadd.f32 0.0, %v2724
    %2726 = vdwg.mxu0
    %v2727 = vxor.u32 %v2628, 2147483648
    %v2728 = vxor.u32 %v2630, 2147483648
    %v2729 = vxor.u32 %v2633, 2147483648
    %v2730 = vxor.u32 %v2635, 2147483648
    %v2731 = vxor.u32 %v2638, 2147483648
    %v2732 = vxor.u32 %v2640, 2147483648
    %v2733 = vxor.u32 %v2643, 2147483648
    %v2734 = vxor.u32 %v2645, 2147483648
    %v2735 = vxor.u32 %v2648, 2147483648
    %v2736 = vxor.u32 %v2650, 2147483648
    %v2737 = vxor.u32 %v2653, 2147483648
    %v2738 = vxor.u32 %v2655, 2147483648
    %v2739 = vmul.f32 %v2727, 1.442695
    %v2740 = vpow.pop %v2739
    %v2741 = vmul.f32 %v2728, 1.442695
    %v2742 = vpow.pop %v2741
    %v2743 = vmul.f32 %v2729, 1.442695
    %v2744 = vpow.pop %v2743
    %v2745 = vmul.f32 %v2730, 1.442695
    %v2746 = vpow.pop %v2745
    %v2747 = vmul.f32 %v2731, 1.442695
    %v2748 = vpow.pop %v2747
    %v2749 = vmul.f32 %v2732, 1.442695
    %v2750 = vpow.pop %v2749
    %v2751 = vmul.f32 %v2733, 1.442695
    %v2752 = vpow.pop %v2751
    %v2753 = vmul.f32 %v2734, 1.442695
    %v2754 = vpow.pop %v2753
    %v2755 = vmul.f32 %v2735, 1.442695
    %v2756 = vpow.pop %v2755
    %v2757 = vmul.f32 %v2736, 1.442695
    %v2758 = vpow.pop %v2757
    %v2759 = vmul.f32 %v2737, 1.442695
    %v2760 = vpow.pop %v2759
    %v2761 = vmul.f32 %v2738, 1.442695
    %v2762 = vpow.pop %v2761
    %v2763 = vadd.f32 %v2740, 1.0
    %v2764 = vadd.f32 %v2742, 1.0
    %v2765 = vadd.f32 %v2744, 1.0
    %v2766 = vadd.f32 %v2746, 1.0
    %v2767 = vadd.f32 %v2748, 1.0
    %v2768 = vadd.f32 %v2750, 1.0
    %v2769 = vadd.f32 %v2752, 1.0
    %v2770 = vadd.f32 %v2754, 1.0
    %v2771 = vadd.f32 %v2756, 1.0
    %v2772 = vadd.f32 %v2758, 1.0
    %v2773 = vadd.f32 %v2760, 1.0
    %v2774 = vadd.f32 %v2762, 1.0
    %v2775 = vrcp.pop %v2763
    %v2776 = vmul.f32 %v2763, %v2775
    %v2777 = vsub.f32 1.0, %v2776
    %v2778 = vmul.f32 %v2775, %v2777
    %v2779 = vadd.f32 %v2775, %v2778
    %vm2780 = vweird.f32 %v2763
    %vm2781 = vweird.f32 %v2775
    %vm2782 = vmor %vm2780, %vm2781
    %v2783 = vsel %vm2782, %v2775, %v2779
    %v2784 = vand.u32 2147483647, %v2763
    %vm2785 = vcmp.eq.f32.partialorder %v2784, 8.507059e+37
    %v2786 = vand.u32 %v2763, 2147483648
    %v2787 = vor.u32 1.1754944e-38, %v2786
    %v2788 = vsel %vm2785, %v2787, %v2783
    %v2789 = vmul.f32 1.0, %v2788
    %v2790 = vrcp.pop %v2764
    %v2791 = vmul.f32 %v2764, %v2790
    %v2792 = vsub.f32 1.0, %v2791
    %v2793 = vmul.f32 %v2790, %v2792
    %v2794 = vadd.f32 %v2790, %v2793
    %vm2795 = vweird.f32 %v2764
    %vm2796 = vweird.f32 %v2790
    %vm2797 = vmor %vm2795, %vm2796
    %v2798 = vsel %vm2797, %v2790, %v2794
    %v2799 = vand.u32 2147483647, %v2764
    %vm2800 = vcmp.eq.f32.partialorder %v2799, 8.507059e+37
    %v2801 = vand.u32 %v2764, 2147483648
    %v2802 = vor.u32 1.1754944e-38, %v2801
    %v2803 = vsel %vm2800, %v2802, %v2798
    %v2804 = vmul.f32 1.0, %v2803
    %v2805 = vrcp.pop %v2765
    %v2806 = vmul.f32 %v2765, %v2805
    %v2807 = vsub.f32 1.0, %v2806
    %v2808 = vmul.f32 %v2805, %v2807
    %v2809 = vadd.f32 %v2805, %v2808
    %vm2810 = vweird.f32 %v2765
    %vm2811 = vweird.f32 %v2805
    %vm2812 = vmor %vm2810, %vm2811
    %v2813 = vsel %vm2812, %v2805, %v2809
    %v2814 = vand.u32 2147483647, %v2765
    %vm2815 = vcmp.eq.f32.partialorder %v2814, 8.507059e+37
    %v2816 = vand.u32 %v2765, 2147483648
    %v2817 = vor.u32 1.1754944e-38, %v2816
    %v2818 = vsel %vm2815, %v2817, %v2813
    %v2819 = vmul.f32 1.0, %v2818
    %v2820 = vrcp.pop %v2766
    %v2821 = vmul.f32 %v2766, %v2820
    %v2822 = vsub.f32 1.0, %v2821
    %v2823 = vmul.f32 %v2820, %v2822
    %v2824 = vadd.f32 %v2820, %v2823
    %vm2825 = vweird.f32 %v2766
    %vm2826 = vweird.f32 %v2820
    %vm2827 = vmor %vm2825, %vm2826
    %v2828 = vsel %vm2827, %v2820, %v2824
    %v2829 = vand.u32 2147483647, %v2766
    %vm2830 = vcmp.eq.f32.partialorder %v2829, 8.507059e+37
    %v2831 = vand.u32 %v2766, 2147483648
    %v2832 = vor.u32 1.1754944e-38, %v2831
    %v2833 = vsel %vm2830, %v2832, %v2828
    %v2834 = vmul.f32 1.0, %v2833
    %v2835 = vrcp.pop %v2767
    %v2836 = vmul.f32 %v2767, %v2835
    %v2837 = vsub.f32 1.0, %v2836
    %v2838 = vmul.f32 %v2835, %v2837
    %v2839 = vadd.f32 %v2835, %v2838
    %vm2840 = vweird.f32 %v2767
    %vm2841 = vweird.f32 %v2835
    %vm2842 = vmor %vm2840, %vm2841
    %v2843 = vsel %vm2842, %v2835, %v2839
    %v2844 = vand.u32 2147483647, %v2767
    %vm2845 = vcmp.eq.f32.partialorder %v2844, 8.507059e+37
    %v2846 = vand.u32 %v2767, 2147483648
    %v2847 = vor.u32 1.1754944e-38, %v2846
    %v2848 = vsel %vm2845, %v2847, %v2843
    %v2849 = vmul.f32 1.0, %v2848
    %v2850 = vrcp.pop %v2768
    %v2851 = vmul.f32 %v2768, %v2850
    %v2852 = vsub.f32 1.0, %v2851
    %v2853 = vmul.f32 %v2850, %v2852
    %v2854 = vadd.f32 %v2850, %v2853
    %vm2855 = vweird.f32 %v2768
    %vm2856 = vweird.f32 %v2850
    %vm2857 = vmor %vm2855, %vm2856
    %v2858 = vsel %vm2857, %v2850, %v2854
    %v2859 = vand.u32 2147483647, %v2768
    %vm2860 = vcmp.eq.f32.partialorder %v2859, 8.507059e+37
    %v2861 = vand.u32 %v2768, 2147483648
    %v2862 = vor.u32 1.1754944e-38, %v2861
    %v2863 = vsel %vm2860, %v2862, %v2858
    %v2864 = vmul.f32 1.0, %v2863
    %v2865 = vrcp.pop %v2769
    %v2866 = vmul.f32 %v2769, %v2865
    %v2867 = vsub.f32 1.0, %v2866
    %v2868 = vmul.f32 %v2865, %v2867
    %v2869 = vadd.f32 %v2865, %v2868
    %vm2870 = vweird.f32 %v2769
    %vm2871 = vweird.f32 %v2865
    %vm2872 = vmor %vm2870, %vm2871
    %v2873 = vsel %vm2872, %v2865, %v2869
    %v2874 = vand.u32 2147483647, %v2769
    %vm2875 = vcmp.eq.f32.partialorder %v2874, 8.507059e+37
    %v2876 = vand.u32 %v2769, 2147483648
    %v2877 = vor.u32 1.1754944e-38, %v2876
    %v2878 = vsel %vm2875, %v2877, %v2873
    %v2879 = vmul.f32 1.0, %v2878
    %v2880 = vrcp.pop %v2770
    %v2881 = vmul.f32 %v2770, %v2880
    %v2882 = vsub.f32 1.0, %v2881
    %v2883 = vmul.f32 %v2880, %v2882
    %v2884 = vadd.f32 %v2880, %v2883
    %vm2885 = vweird.f32 %v2770
    %vm2886 = vweird.f32 %v2880
    %vm2887 = vmor %vm2885, %vm2886
    %v2888 = vsel %vm2887, %v2880, %v2884
    %v2889 = vand.u32 2147483647, %v2770
    %vm2890 = vcmp.eq.f32.partialorder %v2889, 8.507059e+37
    %v2891 = vand.u32 %v2770, 2147483648
    %v2892 = vor.u32 1.1754944e-38, %v2891
    %v2893 = vsel %vm2890, %v2892, %v2888
    %v2894 = vmul.f32 1.0, %v2893
    %v2895 = vrcp.pop %v2771
    %v2896 = vmul.f32 %v2771, %v2895
    %v2897 = vsub.f32 1.0, %v2896
    %v2898 = vmul.f32 %v2895, %v2897
    %v2899 = vadd.f32 %v2895, %v2898
    %vm2900 = vweird.f32 %v2771
    %vm2901 = vweird.f32 %v2895
    %vm2902 = vmor %vm2900, %vm2901
    %v2903 = vsel %vm2902, %v2895, %v2899
    %v2904 = vand.u32 2147483647, %v2771
    %vm2905 = vcmp.eq.f32.partialorder %v2904, 8.507059e+37
    %v2906 = vand.u32 %v2771, 2147483648
    %v2907 = vor.u32 1.1754944e-38, %v2906
    %v2908 = vsel %vm2905, %v2907, %v2903
    %v2909 = vmul.f32 1.0, %v2908
    %v2910 = vrcp.pop %v2772
    %v2911 = vmul.f32 %v2772, %v2910
    %v2912 = vsub.f32 1.0, %v2911
    %v2913 = vmul.f32 %v2910, %v2912
    %v2914 = vadd.f32 %v2910, %v2913
    %vm2915 = vweird.f32 %v2772
    %vm2916 = vweird.f32 %v2910
    %vm2917 = vmor %vm2915, %vm2916
    %v2918 = vsel %vm2917, %v2910, %v2914
    %v2919 = vand.u32 2147483647, %v2772
    %vm2920 = vcmp.eq.f32.partialorder %v2919, 8.507059e+37
    %v2921 = vand.u32 %v2772, 2147483648
    %v2922 = vor.u32 1.1754944e-38, %v2921
    %v2923 = vsel %vm2920, %v2922, %v2918
    %v2924 = vmul.f32 1.0, %v2923
    %v2925 = vrcp.pop %v2773
    %v2926 = vmul.f32 %v2773, %v2925
    %v2927 = vsub.f32 1.0, %v2926
    %v2928 = vmul.f32 %v2925, %v2927
    %v2929 = vadd.f32 %v2925, %v2928
    %vm2930 = vweird.f32 %v2773
    %vm2931 = vweird.f32 %v2925
    %vm2932 = vmor %vm2930, %vm2931
    %v2933 = vsel %vm2932, %v2925, %v2929
    %v2934 = vand.u32 2147483647, %v2773
    %vm2935 = vcmp.eq.f32.partialorder %v2934, 8.507059e+37
    %v2936 = vand.u32 %v2773, 2147483648
    %v2937 = vor.u32 1.1754944e-38, %v2936
    %v2938 = vsel %vm2935, %v2937, %v2933
    %v2939 = vmul.f32 1.0, %v2938
    %v2940 = vrcp.pop %v2774
    %v2941 = vmul.f32 %v2774, %v2940
    %v2942 = vsub.f32 1.0, %v2941
    %v2943 = vmul.f32 %v2940, %v2942
    %v2944 = vadd.f32 %v2940, %v2943
    %vm2945 = vweird.f32 %v2774
    %vm2946 = vweird.f32 %v2940
    %vm2947 = vmor %vm2945, %vm2946
    %v2948 = vsel %vm2947, %v2940, %v2944
    %v2949 = vand.u32 2147483647, %v2774
    %vm2950 = vcmp.eq.f32.partialorder %v2949, 8.507059e+37
    %v2951 = vand.u32 %v2774, 2147483648
    %v2952 = vor.u32 1.1754944e-38, %v2951
    %v2953 = vsel %vm2950, %v2952, %v2948
    %v2954 = vmul.f32 1.0, %v2953
    %v2955 = vtanh.pop %v2658
    %v2956 = vtanh.pop %v2660
    %v2957 = vtanh.pop %v2663
    %v2958 = vtanh.pop %v2665
    %v2959 = vmul.f32 %v2849, %v2113
    %v2960 = vmul.f32 %v2864, %v2114
    %v2961 = vmul.f32 %v2879, %v2115
    %v2962 = vmul.f32 %v2894, %v2116
    %v2963 = vmul.f32 %v2789, %v2955
    %v2964 = vmul.f32 %v2804, %v2956
    %v2965 = vmul.f32 %v2819, %v2957
    %v2966 = vmul.f32 %v2834, %v2958
    %v2967 = vadd.f32 %v2959, %v2963
    %v2968 = vadd.f32 %v2960, %v2964
    %v2969 = vadd.f32 %v2961, %v2965
    %v2970 = vadd.f32 %v2962, %v2966
    %v2971 = vtanh.pop %v2967
    %v2972 = vtanh.pop %v2968
    %v2973 = vtanh.pop %v2969
    %v2974 = vtanh.pop %v2970
    %v2975 = vmul.f32 %v2909, %v2971
    %v2976 = vmul.f32 %v2924, %v2972
    %v2977 = vmul.f32 %v2939, %v2973
    %v2978 = vmul.f32 %v2954, %v2974
    %v2979 = vxor.u32 %v2588, 2147483648
    %v2980 = vxor.u32 %v2590, 2147483648
    %v2981 = vxor.u32 %v2593, 2147483648
    %v2982 = vxor.u32 %v2595, 2147483648
    %v2983 = vxor.u32 %v2598, 2147483648
    %v2984 = vxor.u32 %v2600, 2147483648
    %v2985 = vxor.u32 %v2603, 2147483648
    %v2986 = vxor.u32 %v2605, 2147483648
    %v2987 = vxor.u32 %v2608, 2147483648
    %v2988 = vxor.u32 %v2610, 2147483648
    %v2989 = vxor.u32 %v2613, 2147483648
    %v2990 = vxor.u32 %v2615, 2147483648
    %v2991 = vmul.f32 %v2979, 1.442695
    %v2992 = vpow.pop %v2991
    %v2993 = vmul.f32 %v2980, 1.442695
    %v2994 = vpow.pop %v2993
    %v2995 = vmul.f32 %v2981, 1.442695
    %v2996 = vpow.pop %v2995
    %v2997 = vmul.f32 %v2982, 1.442695
    %v2998 = vpow.pop %v2997
    %v2999 = vmul.f32 %v2983, 1.442695
    %v3000 = vpow.pop %v2999
    %v3001 = vmul.f32 %v2984, 1.442695
    %v3002 = vpow.pop %v3001
    %v3003 = vmul.f32 %v2985, 1.442695
    %v3004 = vpow.pop %v3003
    %v3005 = vmul.f32 %v2986, 1.442695
    %v3006 = vpow.pop %v3005
    %v3007 = vmul.f32 %v2987, 1.442695
    %v3008 = vpow.pop %v3007
    %v3009 = vmul.f32 %v2988, 1.442695
    %v3010 = vpow.pop %v3009
    %v3011 = vmul.f32 %v2989, 1.442695
    %v3012 = vpow.pop %v3011
    %v3013 = vmul.f32 %v2990, 1.442695
    %v3014 = vpow.pop %v3013
    %v3015 = vadd.f32 %v2992, 1.0
    %v3016 = vadd.f32 %v2994, 1.0
    %v3017 = vadd.f32 %v2996, 1.0
    %v3018 = vadd.f32 %v2998, 1.0
    %v3019 = vadd.f32 %v3000, 1.0
    %v3020 = vadd.f32 %v3002, 1.0
    %v3021 = vadd.f32 %v3004, 1.0
    %v3022 = vadd.f32 %v3006, 1.0
    %v3023 = vadd.f32 %v3008, 1.0
    %v3024 = vadd.f32 %v3010, 1.0
    %v3025 = vadd.f32 %v3012, 1.0
    %v3026 = vadd.f32 %v3014, 1.0
    %v3027 = vrcp.pop %v3015
    %v3028 = vmul.f32 %v3015, %v3027
    %v3029 = vsub.f32 1.0, %v3028
    %v3030 = vmul.f32 %v3027, %v3029
    %v3031 = vadd.f32 %v3027, %v3030
    %vm3032 = vweird.f32 %v3015
    %vm3033 = vweird.f32 %v3027
    %vm3034 = vmor %vm3032, %vm3033
    %v3035 = vsel %vm3034, %v3027, %v3031
    %v3036 = vand.u32 2147483647, %v3015
    %vm3037 = vcmp.eq.f32.partialorder %v3036, 8.507059e+37
    %v3038 = vand.u32 %v3015, 2147483648
    %v3039 = vor.u32 1.1754944e-38, %v3038
    %v3040 = vsel %vm3037, %v3039, %v3035
    %v3041 = vmul.f32 1.0, %v3040
    %v3042 = vrcp.pop %v3016
    %v3043 = vmul.f32 %v3016, %v3042
    %v3044 = vsub.f32 1.0, %v3043
    %v3045 = vmul.f32 %v3042, %v3044
    %v3046 = vadd.f32 %v3042, %v3045
    %vm3047 = vweird.f32 %v3016
    %vm3048 = vweird.f32 %v3042
    %vm3049 = vmor %vm3047, %vm3048
    %v3050 = vsel %vm3049, %v3042, %v3046
    %v3051 = vand.u32 2147483647, %v3016
    %vm3052 = vcmp.eq.f32.partialorder %v3051, 8.507059e+37
    %v3053 = vand.u32 %v3016, 2147483648
    %v3054 = vor.u32 1.1754944e-38, %v3053
    %v3055 = vsel %vm3052, %v3054, %v3050
    %v3056 = vmul.f32 1.0, %v3055
    %v3057 = vrcp.pop %v3017
    %v3058 = vmul.f32 %v3017, %v3057
    %v3059 = vsub.f32 1.0, %v3058
    %v3060 = vmul.f32 %v3057, %v3059
    %v3061 = vadd.f32 %v3057, %v3060
    %vm3062 = vweird.f32 %v3017
    %vm3063 = vweird.f32 %v3057
    %vm3064 = vmor %vm3062, %vm3063
    %v3065 = vsel %vm3064, %v3057, %v3061
    %v3066 = vand.u32 2147483647, %v3017
    %vm3067 = vcmp.eq.f32.partialorder %v3066, 8.507059e+37
    %v3068 = vand.u32 %v3017, 2147483648
    %v3069 = vor.u32 1.1754944e-38, %v3068
    %v3070 = vsel %vm3067, %v3069, %v3065
    %v3071 = vmul.f32 1.0, %v3070
    %v3072 = vrcp.pop %v3018
    %v3073 = vmul.f32 %v3018, %v3072
    %v3074 = vsub.f32 1.0, %v3073
    %v3075 = vmul.f32 %v3072, %v3074
    %v3076 = vadd.f32 %v3072, %v3075
    %vm3077 = vweird.f32 %v3018
    %vm3078 = vweird.f32 %v3072
    %vm3079 = vmor %vm3077, %vm3078
    %v3080 = vsel %vm3079, %v3072, %v3076
    %v3081 = vand.u32 2147483647, %v3018
    %vm3082 = vcmp.eq.f32.partialorder %v3081, 8.507059e+37
    %v3083 = vand.u32 %v3018, 2147483648
    %v3084 = vor.u32 1.1754944e-38, %v3083
    %v3085 = vsel %vm3082, %v3084, %v3080
    %v3086 = vmul.f32 1.0, %v3085
    %v3087 = vrcp.pop %v3019
    %v3088 = vmul.f32 %v3019, %v3087
    %v3089 = vsub.f32 1.0, %v3088
    %v3090 = vmul.f32 %v3087, %v3089
    %v3091 = vadd.f32 %v3087, %v3090
    %vm3092 = vweird.f32 %v3019
    %vm3093 = vweird.f32 %v3087
    %vm3094 = vmor %vm3092, %vm3093
    %v3095 = vsel %vm3094, %v3087, %v3091
    %v3096 = vand.u32 2147483647, %v3019
    %vm3097 = vcmp.eq.f32.partialorder %v3096, 8.507059e+37
    %v3098 = vand.u32 %v3019, 2147483648
    %v3099 = vor.u32 1.1754944e-38, %v3098
    %v3100 = vsel %vm3097, %v3099, %v3095
    %v3101 = vmul.f32 1.0, %v3100
    %v3102 = vrcp.pop %v3020
    %v3103 = vmul.f32 %v3020, %v3102
    %v3104 = vsub.f32 1.0, %v3103
    %v3105 = vmul.f32 %v3102, %v3104
    %v3106 = vadd.f32 %v3102, %v3105
    %vm3107 = vweird.f32 %v3020
    %vm3108 = vweird.f32 %v3102
    %vm3109 = vmor %vm3107, %vm3108
    %v3110 = vsel %vm3109, %v3102, %v3106
    %v3111 = vand.u32 2147483647, %v3020
    %vm3112 = vcmp.eq.f32.partialorder %v3111, 8.507059e+37
    %v3113 = vand.u32 %v3020, 2147483648
    %v3114 = vor.u32 1.1754944e-38, %v3113
    %v3115 = vsel %vm3112, %v3114, %v3110
    %v3116 = vmul.f32 1.0, %v3115
    %v3117 = vrcp.pop %v3021
    %v3118 = vmul.f32 %v3021, %v3117
    %v3119 = vsub.f32 1.0, %v3118
    %v3120 = vmul.f32 %v3117, %v3119
    %v3121 = vadd.f32 %v3117, %v3120
    %vm3122 = vweird.f32 %v3021
    %vm3123 = vweird.f32 %v3117
    %vm3124 = vmor %vm3122, %vm3123
    %v3125 = vsel %vm3124, %v3117, %v3121
    %v3126 = vand.u32 2147483647, %v3021
    %vm3127 = vcmp.eq.f32.partialorder %v3126, 8.507059e+37
    %v3128 = vand.u32 %v3021, 2147483648
    %v3129 = vor.u32 1.1754944e-38, %v3128
    %v3130 = vsel %vm3127, %v3129, %v3125
    %v3131 = vmul.f32 1.0, %v3130
    %v3132 = vrcp.pop %v3022
    %v3133 = vmul.f32 %v3022, %v3132
    %v3134 = vsub.f32 1.0, %v3133
    %v3135 = vmul.f32 %v3132, %v3134
    %v3136 = vadd.f32 %v3132, %v3135
    %vm3137 = vweird.f32 %v3022
    %vm3138 = vweird.f32 %v3132
    %vm3139 = vmor %vm3137, %vm3138
    %v3140 = vsel %vm3139, %v3132, %v3136
    %v3141 = vand.u32 2147483647, %v3022
    %vm3142 = vcmp.eq.f32.partialorder %v3141, 8.507059e+37
    %v3143 = vand.u32 %v3022, 2147483648
    %v3144 = vor.u32 1.1754944e-38, %v3143
    %v3145 = vsel %vm3142, %v3144, %v3140
    %v3146 = vmul.f32 1.0, %v3145
    %v3147 = vrcp.pop %v3023
    %v3148 = vmul.f32 %v3023, %v3147
    %v3149 = vsub.f32 1.0, %v3148
    %v3150 = vmul.f32 %v3147, %v3149
    %v3151 = vadd.f32 %v3147, %v3150
    %vm3152 = vweird.f32 %v3023
    %vm3153 = vweird.f32 %v3147
    %vm3154 = vmor %vm3152, %vm3153
    %v3155 = vsel %vm3154, %v3147, %v3151
    %v3156 = vand.u32 2147483647, %v3023
    %vm3157 = vcmp.eq.f32.partialorder %v3156, 8.507059e+37
    %v3158 = vand.u32 %v3023, 2147483648
    %v3159 = vor.u32 1.1754944e-38, %v3158
    %v3160 = vsel %vm3157, %v3159, %v3155
    %v3161 = vmul.f32 1.0, %v3160
    %v3162 = vrcp.pop %v3024
    %v3163 = vmul.f32 %v3024, %v3162
    %v3164 = vsub.f32 1.0, %v3163
    %v3165 = vmul.f32 %v3162, %v3164
    %v3166 = vadd.f32 %v3162, %v3165
    %vm3167 = vweird.f32 %v3024
    %vm3168 = vweird.f32 %v3162
    %vm3169 = vmor %vm3167, %vm3168
    %v3170 = vsel %vm3169, %v3162, %v3166
    %v3171 = vand.u32 2147483647, %v3024
    %vm3172 = vcmp.eq.f32.partialorder %v3171, 8.507059e+37
    %v3173 = vand.u32 %v3024, 2147483648
    %v3174 = vor.u32 1.1754944e-38, %v3173
    %v3175 = vsel %vm3172, %v3174, %v3170
    %v3176 = vmul.f32 1.0, %v3175
    %v3177 = vrcp.pop %v3025
    %v3178 = vmul.f32 %v3025, %v3177
    %v3179 = vsub.f32 1.0, %v3178
    %v3180 = vmul.f32 %v3177, %v3179
    %v3181 = vadd.f32 %v3177, %v3180
    %vm3182 = vweird.f32 %v3025
    %vm3183 = vweird.f32 %v3177
    %vm3184 = vmor %vm3182, %vm3183
    %v3185 = vsel %vm3184, %v3177, %v3181
    %v3186 = vand.u32 2147483647, %v3025
    %vm3187 = vcmp.eq.f32.partialorder %v3186, 8.507059e+37
    %v3188 = vand.u32 %v3025, 2147483648
    %v3189 = vor.u32 1.1754944e-38, %v3188
    %v3190 = vsel %vm3187, %v3189, %v3185
    %v3191 = vmul.f32 1.0, %v3190
    %v3192 = vrcp.pop %v3026
    %v3193 = vmul.f32 %v3026, %v3192
    %v3194 = vsub.f32 1.0, %v3193
    %v3195 = vmul.f32 %v3192, %v3194
    %v3196 = vadd.f32 %v3192, %v3195
    %vm3197 = vweird.f32 %v3026
    %vm3198 = vweird.f32 %v3192
    %vm3199 = vmor %vm3197, %vm3198
    %v3200 = vsel %vm3199, %v3192, %v3196
    %v3201 = vand.u32 2147483647, %v3026
    %vm3202 = vcmp.eq.f32.partialorder %v3201, 8.507059e+37
    %v3203 = vand.u32 %v3026, 2147483648
    %v3204 = vor.u32 1.1754944e-38, %v3203
    %v3205 = vsel %vm3202, %v3204, %v3200
    %v3206 = vmul.f32 1.0, %v3205
    %v3207 = vtanh.pop %v2618
    %v3208 = vtanh.pop %v2620
    %v3209 = vtanh.pop %v2623
    %v3210 = vtanh.pop %v2625
    %v3211 = vmul.f32 %v3101, %v2365
    %v3212 = vmul.f32 %v3116, %v2366
    %v3213 = vmul.f32 %v3131, %v2367
    %v3214 = vmul.f32 %v3146, %v2368
    %v3215 = vmul.f32 %v3041, %v3207
    %v3216 = vmul.f32 %v3056, %v3208
    %v3217 = vmul.f32 %v3071, %v3209
    %v3218 = vmul.f32 %v3086, %v3210
    %v3219 = vadd.f32 %v3211, %v3215
    %v3220 = vadd.f32 %v3212, %v3216
    %v3221 = vadd.f32 %v3213, %v3217
    %v3222 = vadd.f32 %v3214, %v3218
    %v3223 = vtanh.pop %v3219
    %v3224 = vtanh.pop %v3220
    %v3225 = vtanh.pop %v3221
    %v3226 = vtanh.pop %v3222
    %v3227 = vmul.f32 %v3161, %v3223
    %v3228 = vmul.f32 %v3176, %v3224
    %v3229 = vmul.f32 %v3191, %v3225
    %v3230 = vmul.f32 %v3206, %v3226
    %v3231 = vadd.f32 %v2698, %v2668
    %v3232 = vadd.f32 %v2700, %v2670
    %v3233 = vadd.f32 %v2703, %v2673
    %v3234 = vadd.f32 %v2705, %v2675
    %v3235 = vadd.f32 %v2708, %v2678
    %v3236 = vadd.f32 %v2710, %v2680
    %v3237 = vadd.f32 %v2713, %v2683
    %v3238 = vadd.f32 %v2715, %v2685
    %v3239 = vxor.u32 %v3231, 2147483648
    %v3240 = vxor.u32 %v3232, 2147483648
    %v3241 = vxor.u32 %v3233, 2147483648
    %v3242 = vxor.u32 %v3234, 2147483648
    %v3243 = vxor.u32 %v3235, 2147483648
    %v3244 = vxor.u32 %v3236, 2147483648
    %v3245 = vxor.u32 %v3237, 2147483648
    %v3246 = vxor.u32 %v3238, 2147483648
    %v3247 = vmul.f32 %v3239, 1.442695
    %v3248 = vpow.pop %v3247
    %v3249 = vmul.f32 %v3240, 1.442695
    %v3250 = vpow.pop %v3249
    %v3251 = vmul.f32 %v3241, 1.442695
    %v3252 = vpow.pop %v3251
    %v3253 = vmul.f32 %v3242, 1.442695
    %v3254 = vpow.pop %v3253
    %v3255 = vmul.f32 %v3243, 1.442695
    %v3256 = vpow.pop %v3255
    %v3257 = vmul.f32 %v3244, 1.442695
    %v3258 = vpow.pop %v3257
    %v3259 = vmul.f32 %v3245, 1.442695
    %v3260 = vpow.pop %v3259
    %v3261 = vmul.f32 %v3246, 1.442695
    %v3262 = vpow.pop %v3261
    %v3263 = vadd.f32 %v3248, 1.0
    %v3264 = vadd.f32 %v3250, 1.0
    %v3265 = vadd.f32 %v3252, 1.0
    %v3266 = vadd.f32 %v3254, 1.0
    %v3267 = vadd.f32 %v3256, 1.0
    %v3268 = vadd.f32 %v3258, 1.0
    %v3269 = vadd.f32 %v3260, 1.0
    %v3270 = vadd.f32 %v3262, 1.0
    %v3271 = vrcp.pop %v3263
    %v3272 = vmul.f32 %v3263, %v3271
    %v3273 = vsub.f32 1.0, %v3272
    %v3274 = vmul.f32 %v3271, %v3273
    %v3275 = vadd.f32 %v3271, %v3274
    %vm3276 = vweird.f32 %v3263
    %vm3277 = vweird.f32 %v3271
    %vm3278 = vmor %vm3276, %vm3277
    %v3279 = vsel %vm3278, %v3271, %v3275
    %v3280 = vand.u32 2147483647, %v3263
    %vm3281 = vcmp.eq.f32.partialorder %v3280, 8.507059e+37
    %v3282 = vand.u32 %v3263, 2147483648
    %v3283 = vor.u32 1.1754944e-38, %v3282
    %v3284 = vsel %vm3281, %v3283, %v3279
    %v3285 = vmul.f32 1.0, %v3284
    %v3286 = vrcp.pop %v3264
    %v3287 = vmul.f32 %v3264, %v3286
    %v3288 = vsub.f32 1.0, %v3287
    %v3289 = vmul.f32 %v3286, %v3288
    %v3290 = vadd.f32 %v3286, %v3289
    %vm3291 = vweird.f32 %v3264
    %vm3292 = vweird.f32 %v3286
    %vm3293 = vmor %vm3291, %vm3292
    %v3294 = vsel %vm3293, %v3286, %v3290
    %v3295 = vand.u32 2147483647, %v3264
    %vm3296 = vcmp.eq.f32.partialorder %v3295, 8.507059e+37
    %v3297 = vand.u32 %v3264, 2147483648
    %v3298 = vor.u32 1.1754944e-38, %v3297
    %v3299 = vsel %vm3296, %v3298, %v3294
    %v3300 = vmul.f32 1.0, %v3299
    %v3301 = vrcp.pop %v3265
    %v3302 = vmul.f32 %v3265, %v3301
    %v3303 = vsub.f32 1.0, %v3302
    %v3304 = vmul.f32 %v3301, %v3303
    %v3305 = vadd.f32 %v3301, %v3304
    %vm3306 = vweird.f32 %v3265
    %vm3307 = vweird.f32 %v3301
    %vm3308 = vmor %vm3306, %vm3307
    %v3309 = vsel %vm3308, %v3301, %v3305
    %v3310 = vand.u32 2147483647, %v3265
    %vm3311 = vcmp.eq.f32.partialorder %v3310, 8.507059e+37
    %v3312 = vand.u32 %v3265, 2147483648
    %v3313 = vor.u32 1.1754944e-38, %v3312
    %v3314 = vsel %vm3311, %v3313, %v3309
    %v3315 = vmul.f32 1.0, %v3314
    %v3316 = vrcp.pop %v3266
    %v3317 = vmul.f32 %v3266, %v3316
    %v3318 = vsub.f32 1.0, %v3317
    %v3319 = vmul.f32 %v3316, %v3318
    %v3320 = vadd.f32 %v3316, %v3319
    %vm3321 = vweird.f32 %v3266
    %vm3322 = vweird.f32 %v3316
    %vm3323 = vmor %vm3321, %vm3322
    %v3324 = vsel %vm3323, %v3316, %v3320
    %v3325 = vand.u32 2147483647, %v3266
    %vm3326 = vcmp.eq.f32.partialorder %v3325, 8.507059e+37
    %v3327 = vand.u32 %v3266, 2147483648
    %v3328 = vor.u32 1.1754944e-38, %v3327
    %v3329 = vsel %vm3326, %v3328, %v3324
    %v3330 = vmul.f32 1.0, %v3329
    %v3331 = vrcp.pop %v3267
    %v3332 = vmul.f32 %v3267, %v3331
    %v3333 = vsub.f32 1.0, %v3332
    %v3334 = vmul.f32 %v3331, %v3333
    %v3335 = vadd.f32 %v3331, %v3334
    %vm3336 = vweird.f32 %v3267
    %vm3337 = vweird.f32 %v3331
    %vm3338 = vmor %vm3336, %vm3337
    %v3339 = vsel %vm3338, %v3331, %v3335
    %v3340 = vand.u32 2147483647, %v3267
    %vm3341 = vcmp.eq.f32.partialorder %v3340, 8.507059e+37
    %v3342 = vand.u32 %v3267, 2147483648
    %v3343 = vor.u32 1.1754944e-38, %v3342
    %v3344 = vsel %vm3341, %v3343, %v3339
    %v3345 = vmul.f32 1.0, %v3344
    %v3346 = vrcp.pop %v3268
    %v3347 = vmul.f32 %v3268, %v3346
    %v3348 = vsub.f32 1.0, %v3347
    %v3349 = vmul.f32 %v3346, %v3348
    %v3350 = vadd.f32 %v3346, %v3349
    %vm3351 = vweird.f32 %v3268
    %vm3352 = vweird.f32 %v3346
    %vm3353 = vmor %vm3351, %vm3352
    %v3354 = vsel %vm3353, %v3346, %v3350
    %v3355 = vand.u32 2147483647, %v3268
    %vm3356 = vcmp.eq.f32.partialorder %v3355, 8.507059e+37
    %v3357 = vand.u32 %v3268, 2147483648
    %v3358 = vor.u32 1.1754944e-38, %v3357
    %v3359 = vsel %vm3356, %v3358, %v3354
    %v3360 = vmul.f32 1.0, %v3359
    %v3361 = vrcp.pop %v3269
    %v3362 = vmul.f32 %v3269, %v3361
    %v3363 = vsub.f32 1.0, %v3362
    %v3364 = vmul.f32 %v3361, %v3363
    %v3365 = vadd.f32 %v3361, %v3364
    %vm3366 = vweird.f32 %v3269
    %vm3367 = vweird.f32 %v3361
    %vm3368 = vmor %vm3366, %vm3367
    %v3369 = vsel %vm3368, %v3361, %v3365
    %v3370 = vand.u32 2147483647, %v3269
    %vm3371 = vcmp.eq.f32.partialorder %v3370, 8.507059e+37
    %v3372 = vand.u32 %v3269, 2147483648
    %v3373 = vor.u32 1.1754944e-38, %v3372
    %v3374 = vsel %vm3371, %v3373, %v3369
    %v3375 = vmul.f32 1.0, %v3374
    %v3376 = vrcp.pop %v3270
    %v3377 = vmul.f32 %v3270, %v3376
    %v3378 = vsub.f32 1.0, %v3377
    %v3379 = vmul.f32 %v3376, %v3378
    %v3380 = vadd.f32 %v3376, %v3379
    %vm3381 = vweird.f32 %v3270
    %vm3382 = vweird.f32 %v3376
    %vm3383 = vmor %vm3381, %vm3382
    %v3384 = vsel %vm3383, %v3376, %v3380
    %v3385 = vand.u32 2147483647, %v3270
    %vm3386 = vcmp.eq.f32.partialorder %v3385, 8.507059e+37
    %v3387 = vand.u32 %v3270, 2147483648
    %v3388 = vor.u32 1.1754944e-38, %v3387
    %v3389 = vsel %vm3386, %v3388, %v3384
    %v3390 = vmul.f32 1.0, %v3389
    %v3391 = vmul.f32 %v3285, %v2688
    %v3392 = vmul.f32 %v3300, %v2690
    %v3393 = vmul.f32 %v3315, %v2693
    %v3394 = vmul.f32 %v3330, %v2695
    %v3395 = vadd.f32 %v2718, %v3391
    %v3396 = vadd.f32 %v2720, %v3392
    %v3397 = vadd.f32 %v2723, %v3393
    %v3398 = vadd.f32 %v2725, %v3394
    %v3399 = vtanh.pop %v3395
    %v3400 = vtanh.pop %v3396
    %v3401 = vtanh.pop %v3397
    %v3402 = vtanh.pop %v3398
    %v3403 = vsub.f32 1.0, %v3345
    %v3404 = vsub.f32 1.0, %v3360
    %v3405 = vsub.f32 1.0, %v3375
    %v3406 = vsub.f32 1.0, %v3390
    %v3407 = vmul.f32 %v3403, %v3399
    %v3408 = vmul.f32 %v3404, %v3400
    %v3409 = vmul.f32 %v3405, %v3401
    %v3410 = vmul.f32 %v3406, %v3402
    %v3411 = vmul.f32 %v3345, %v2561
    %v3412 = vmul.f32 %v3360, %v2562
    %v3413 = vmul.f32 %v3375, %v2563
    %v3414 = vmul.f32 %v3390, %v2564
    %v3415 = vadd.f32 %v3407, %v3411
    %v3416 = vadd.f32 %v3408, %v3412
    %v3417 = vadd.f32 %v3409, %v3413
    %v3418 = vadd.f32 %v3410, %v3414
    %s3419 = scalar_lea.vmem [#allocation3], 128
    %v3420 = vld [vmem:[%s3419] sm:$0xff]
    %v3421 = vld [vmem:[%s3419 + $0x8] sm:$0xff]
    %v3422 = vld [vmem:[%s3419 + $0x10] sm:$0xff]
    %v3423 = vld [vmem:[%s3419 + $0x18] sm:$0xff]
    %v3424 = vpack.c.bf16 %v3228, %v3227
    %v3425 = vpack.c.bf16 %v3230, %v3229
    %v3426 = vpack.c.bf16 %v2976, %v2975
    %v3427 = vpack.c.bf16 %v2978, %v2977
    %v3428 = vpack.c.bf16 %v3416, %v3415
    %v3429 = vpack.c.bf16 %v3418, %v3417
    %v3430 = vpack.c.bf16 %v3421, %v3420
    %v3431 = vpack.c.bf16 %v3423, %v3422
    %3432 = vmatpush.bf16.msra.mxu0 %v3431
    %3433 = vmatpush.bf16.msra.mxu0 %v3430
    %3434 = vmatpush.bf16.msra.mxu0 %v3429
    %3435 = vmatpush.bf16.msra.mxu0 %v3428
    %3436 = vmatpush.bf16.msra.mxu0 %v3427
    %3437 = vmatpush.bf16.msra.mxu0 %v3426
    %3438 = vmatpush.bf16.msra.mxu0 %v3425
    %3439 = vmatpush.bf16.msra.mxu0 %v3424
    %3440 = vmatmul.bf16.gmra.mxu0 %v230
    %v3441 = vpop.f32.mrf.mxu0
    %v3442 = vadd.f32 0.0, %v3441
    %v3443 = vpop.f32.mrf.mxu0
    %v3444 = vadd.f32 0.0, %v3443
    %3445 = vmatmul.bf16.gmra.mxu0 %v231
    %v3446 = vpop.f32.mrf.mxu0
    %v3447 = vadd.f32 0.0, %v3446
    %v3448 = vpop.f32.mrf.mxu0
    %v3449 = vadd.f32 0.0, %v3448
    %3450 = vmatmul.bf16.gmra.mxu0 %v232
    %v3451 = vpop.f32.mrf.mxu0
    %v3452 = vadd.f32 0.0, %v3451
    %v3453 = vpop.f32.mrf.mxu0
    %v3454 = vadd.f32 0.0, %v3453
    %3455 = vmatmul.bf16.gmra.mxu0 %v233
    %v3456 = vpop.f32.mrf.mxu0
    %v3457 = vadd.f32 0.0, %v3456
    %v3458 = vpop.f32.mrf.mxu0
    %v3459 = vadd.f32 0.0, %v3458
    %3460 = vmatmul.bf16.gmra.mxu0 %v234
    %v3461 = vpop.f32.mrf.mxu0
    %v3462 = vadd.f32 0.0, %v3461
    %v3463 = vpop.f32.mrf.mxu0
    %v3464 = vadd.f32 0.0, %v3463
    %3465 = vmatmul.bf16.gmra.mxu0 %v235
    %v3466 = vpop.f32.mrf.mxu0
    %v3467 = vadd.f32 0.0, %v3466
    %v3468 = vpop.f32.mrf.mxu0
    %v3469 = vadd.f32 0.0, %v3468
    %3470 = vmatmul.bf16.gmra.mxu0 %v236
    %v3471 = vpop.f32.mrf.mxu0
    %v3472 = vadd.f32 0.0, %v3471
    %v3473 = vpop.f32.mrf.mxu0
    %v3474 = vadd.f32 0.0, %v3473
    %3475 = vmatmul.bf16.gmra.mxu0 %v237
    %v3476 = vpop.f32.mrf.mxu0
    %v3477 = vadd.f32 0.0, %v3476
    %v3478 = vpop.f32.mrf.mxu0
    %v3479 = vadd.f32 0.0, %v3478
    %3480 = vmatmul.bf16.gmra.mxu0 %v238
    %v3481 = vpop.f32.mrf.mxu0
    %v3482 = vadd.f32 0.0, %v3481
    %v3483 = vpop.f32.mrf.mxu0
    %v3484 = vadd.f32 0.0, %v3483
    %3485 = vmatmul.bf16.gmra.mxu0 %v239
    %v3486 = vpop.f32.mrf.mxu0
    %v3487 = vadd.f32 0.0, %v3486
    %v3488 = vpop.f32.mrf.mxu0
    %v3489 = vadd.f32 0.0, %v3488
    %3490 = vmatmul.bf16.gmra.mxu0 %v240
    %v3491 = vpop.f32.mrf.mxu0
    %v3492 = vadd.f32 0.0, %v3491
    %v3493 = vpop.f32.mrf.mxu0
    %v3494 = vadd.f32 0.0, %v3493
    %3495 = vmatmul.bf16.gmra.mxu0 %v241
    %v3496 = vpop.f32.mrf.mxu0
    %v3497 = vadd.f32 0.0, %v3496
    %v3498 = vpop.f32.mrf.mxu0
    %v3499 = vadd.f32 0.0, %v3498
    %3500 = vmatmul.bf16.gmra.mxu0 %v242
    %v3501 = vpop.f32.mrf.mxu0
    %v3502 = vadd.f32 0.0, %v3501
    %v3503 = vpop.f32.mrf.mxu0
    %v3504 = vadd.f32 0.0, %v3503
    %3505 = vmatmul.bf16.gmra.mxu0 %v243
    %v3506 = vpop.f32.mrf.mxu0
    %v3507 = vadd.f32 0.0, %v3506
    %v3508 = vpop.f32.mrf.mxu0
    %v3509 = vadd.f32 0.0, %v3508
    %3510 = vmatmul.bf16.gmra.mxu0 %v244
    %v3511 = vpop.f32.mrf.mxu0
    %v3512 = vadd.f32 0.0, %v3511
    %v3513 = vpop.f32.mrf.mxu0
    %v3514 = vadd.f32 0.0, %v3513
    %3515 = vmatmul.bf16.gmra.mxu0 %v245
    %v3516 = vpop.f32.mrf.mxu0
    %v3517 = vadd.f32 0.0, %v3516
    %v3518 = vpop.f32.mrf.mxu0
    %v3519 = vadd.f32 0.0, %v3518
    %3520 = vmatmul.bf16.gmra.mxu0 %v246
    %v3521 = vpop.f32.mrf.mxu0
    %v3522 = vadd.f32 0.0, %v3521
    %v3523 = vpop.f32.mrf.mxu0
    %v3524 = vadd.f32 0.0, %v3523
    %3525 = vmatmul.bf16.gmra.mxu0 %v247
    %v3526 = vpop.f32.mrf.mxu0
    %v3527 = vadd.f32 0.0, %v3526
    %v3528 = vpop.f32.mrf.mxu0
    %v3529 = vadd.f32 0.0, %v3528
    %3530 = vmatmul.bf16.gmra.mxu0 %v248
    %v3531 = vpop.f32.mrf.mxu0
    %v3532 = vadd.f32 0.0, %v3531
    %v3533 = vpop.f32.mrf.mxu0
    %v3534 = vadd.f32 0.0, %v3533
    %3535 = vmatmul.bf16.gmra.mxu0 %v249
    %v3536 = vpop.f32.mrf.mxu0
    %v3537 = vadd.f32 0.0, %v3536
    %v3538 = vpop.f32.mrf.mxu0
    %v3539 = vadd.f32 0.0, %v3538
    %3540 = vmatmul.bf16.gmra.mxu0 %v250
    %v3541 = vpop.f32.mrf.mxu0
    %v3542 = vadd.f32 0.0, %v3541
    %v3543 = vpop.f32.mrf.mxu0
    %v3544 = vadd.f32 0.0, %v3543
    %3545 = vmatmul.bf16.gmra.mxu0 %v251
    %v3546 = vpop.f32.mrf.mxu0
    %v3547 = vadd.f32 0.0, %v3546
    %v3548 = vpop.f32.mrf.mxu0
    %v3549 = vadd.f32 0.0, %v3548
    %3550 = vmatmul.bf16.gmra.mxu0 %v252
    %v3551 = vpop.f32.mrf.mxu0
    %v3552 = vadd.f32 0.0, %v3551
    %v3553 = vpop.f32.mrf.mxu0
    %v3554 = vadd.f32 0.0, %v3553
    %3555 = vmatmul.bf16.gmra.mxu0 %v253
    %v3556 = vpop.f32.mrf.mxu0
    %v3557 = vadd.f32 0.0, %v3556
    %v3558 = vpop.f32.mrf.mxu0
    %v3559 = vadd.f32 0.0, %v3558
    %3560 = vmatmul.bf16.gmra.mxu0 %v254
    %v3561 = vpop.f32.mrf.mxu0
    %v3562 = vadd.f32 0.0, %v3561
    %v3563 = vpop.f32.mrf.mxu0
    %v3564 = vadd.f32 0.0, %v3563
    %3565 = vmatmul.bf16.gmra.mxu0 %v255
    %v3566 = vpop.f32.mrf.mxu0
    %v3567 = vadd.f32 0.0, %v3566
    %v3568 = vpop.f32.mrf.mxu0
    %v3569 = vadd.f32 0.0, %v3568
    %3570 = vmatmul.bf16.gmra.mxu0 %v256
    %v3571 = vpop.f32.mrf.mxu0
    %v3572 = vadd.f32 0.0, %v3571
    %v3573 = vpop.f32.mrf.mxu0
    %v3574 = vadd.f32 0.0, %v3573
    %3575 = vmatmul.bf16.gmra.mxu0 %v257
    %v3576 = vpop.f32.mrf.mxu0
    %v3577 = vadd.f32 0.0, %v3576
    %v3578 = vpop.f32.mrf.mxu0
    %v3579 = vadd.f32 0.0, %v3578
    %3580 = vdwg.mxu0
    %v3581 = vxor.u32 %v3482, 2147483648
    %v3582 = vxor.u32 %v3484, 2147483648
    %v3583 = vxor.u32 %v3487, 2147483648
    %v3584 = vxor.u32 %v3489, 2147483648
    %v3585 = vxor.u32 %v3492, 2147483648
    %v3586 = vxor.u32 %v3494, 2147483648
    %v3587 = vxor.u32 %v3497, 2147483648
    %v3588 = vxor.u32 %v3499, 2147483648
    %v3589 = vxor.u32 %v3502, 2147483648
    %v3590 = vxor.u32 %v3504, 2147483648
    %v3591 = vxor.u32 %v3507, 2147483648
    %v3592 = vxor.u32 %v3509, 2147483648
    %v3593 = vmul.f32 %v3581, 1.442695
    %v3594 = vpow.pop %v3593
    %v3595 = vmul.f32 %v3582, 1.442695
    %v3596 = vpow.pop %v3595
    %v3597 = vmul.f32 %v3583, 1.442695
    %v3598 = vpow.pop %v3597
    %v3599 = vmul.f32 %v3584, 1.442695
    %v3600 = vpow.pop %v3599
    %v3601 = vmul.f32 %v3585, 1.442695
    %v3602 = vpow.pop %v3601
    %v3603 = vmul.f32 %v3586, 1.442695
    %v3604 = vpow.pop %v3603
    %v3605 = vmul.f32 %v3587, 1.442695
    %v3606 = vpow.pop %v3605
    %v3607 = vmul.f32 %v3588, 1.442695
    %v3608 = vpow.pop %v3607
    %v3609 = vmul.f32 %v3589, 1.442695
    %v3610 = vpow.pop %v3609
    %v3611 = vmul.f32 %v3590, 1.442695
    %v3612 = vpow.pop %v3611
    %v3613 = vmul.f32 %v3591, 1.442695
    %v3614 = vpow.pop %v3613
    %v3615 = vmul.f32 %v3592, 1.442695
    %v3616 = vpow.pop %v3615
    %v3617 = vadd.f32 %v3594, 1.0
    %v3618 = vadd.f32 %v3596, 1.0
    %v3619 = vadd.f32 %v3598, 1.0
    %v3620 = vadd.f32 %v3600, 1.0
    %v3621 = vadd.f32 %v3602, 1.0
    %v3622 = vadd.f32 %v3604, 1.0
    %v3623 = vadd.f32 %v3606, 1.0
    %v3624 = vadd.f32 %v3608, 1.0
    %v3625 = vadd.f32 %v3610, 1.0
    %v3626 = vadd.f32 %v3612, 1.0
    %v3627 = vadd.f32 %v3614, 1.0
    %v3628 = vadd.f32 %v3616, 1.0
    %v3629 = vrcp.pop %v3617
    %v3630 = vmul.f32 %v3617, %v3629
    %v3631 = vsub.f32 1.0, %v3630
    %v3632 = vmul.f32 %v3629, %v3631
    %v3633 = vadd.f32 %v3629, %v3632
    %vm3634 = vweird.f32 %v3617
    %vm3635 = vweird.f32 %v3629
    %vm3636 = vmor %vm3634, %vm3635
    %v3637 = vsel %vm3636, %v3629, %v3633
    %v3638 = vand.u32 2147483647, %v3617
    %vm3639 = vcmp.eq.f32.partialorder %v3638, 8.507059e+37
    %v3640 = vand.u32 %v3617, 2147483648
    %v3641 = vor.u32 1.1754944e-38, %v3640
    %v3642 = vsel %vm3639, %v3641, %v3637
    %v3643 = vmul.f32 1.0, %v3642
    %v3644 = vrcp.pop %v3618
    %v3645 = vmul.f32 %v3618, %v3644
    %v3646 = vsub.f32 1.0, %v3645
    %v3647 = vmul.f32 %v3644, %v3646
    %v3648 = vadd.f32 %v3644, %v3647
    %vm3649 = vweird.f32 %v3618
    %vm3650 = vweird.f32 %v3644
    %vm3651 = vmor %vm3649, %vm3650
    %v3652 = vsel %vm3651, %v3644, %v3648
    %v3653 = vand.u32 2147483647, %v3618
    %vm3654 = vcmp.eq.f32.partialorder %v3653, 8.507059e+37
    %v3655 = vand.u32 %v3618, 2147483648
    %v3656 = vor.u32 1.1754944e-38, %v3655
    %v3657 = vsel %vm3654, %v3656, %v3652
    %v3658 = vmul.f32 1.0, %v3657
    %v3659 = vrcp.pop %v3619
    %v3660 = vmul.f32 %v3619, %v3659
    %v3661 = vsub.f32 1.0, %v3660
    %v3662 = vmul.f32 %v3659, %v3661
    %v3663 = vadd.f32 %v3659, %v3662
    %vm3664 = vweird.f32 %v3619
    %vm3665 = vweird.f32 %v3659
    %vm3666 = vmor %vm3664, %vm3665
    %v3667 = vsel %vm3666, %v3659, %v3663
    %v3668 = vand.u32 2147483647, %v3619
    %vm3669 = vcmp.eq.f32.partialorder %v3668, 8.507059e+37
    %v3670 = vand.u32 %v3619, 2147483648
    %v3671 = vor.u32 1.1754944e-38, %v3670
    %v3672 = vsel %vm3669, %v3671, %v3667
    %v3673 = vmul.f32 1.0, %v3672
    %v3674 = vrcp.pop %v3620
    %v3675 = vmul.f32 %v3620, %v3674
    %v3676 = vsub.f32 1.0, %v3675
    %v3677 = vmul.f32 %v3674, %v3676
    %v3678 = vadd.f32 %v3674, %v3677
    %vm3679 = vweird.f32 %v3620
    %vm3680 = vweird.f32 %v3674
    %vm3681 = vmor %vm3679, %vm3680
    %v3682 = vsel %vm3681, %v3674, %v3678
    %v3683 = vand.u32 2147483647, %v3620
    %vm3684 = vcmp.eq.f32.partialorder %v3683, 8.507059e+37
    %v3685 = vand.u32 %v3620, 2147483648
    %v3686 = vor.u32 1.1754944e-38, %v3685
    %v3687 = vsel %vm3684, %v3686, %v3682
    %v3688 = vmul.f32 1.0, %v3687
    %v3689 = vrcp.pop %v3621
    %v3690 = vmul.f32 %v3621, %v3689
    %v3691 = vsub.f32 1.0, %v3690
    %v3692 = vmul.f32 %v3689, %v3691
    %v3693 = vadd.f32 %v3689, %v3692
    %vm3694 = vweird.f32 %v3621
    %vm3695 = vweird.f32 %v3689
    %vm3696 = vmor %vm3694, %vm3695
    %v3697 = vsel %vm3696, %v3689, %v3693
    %v3698 = vand.u32 2147483647, %v3621
    %vm3699 = vcmp.eq.f32.partialorder %v3698, 8.507059e+37
    %v3700 = vand.u32 %v3621, 2147483648
    %v3701 = vor.u32 1.1754944e-38, %v3700
    %v3702 = vsel %vm3699, %v3701, %v3697
    %v3703 = vmul.f32 1.0, %v3702
    %v3704 = vrcp.pop %v3622
    %v3705 = vmul.f32 %v3622, %v3704
    %v3706 = vsub.f32 1.0, %v3705
    %v3707 = vmul.f32 %v3704, %v3706
    %v3708 = vadd.f32 %v3704, %v3707
    %vm3709 = vweird.f32 %v3622
    %vm3710 = vweird.f32 %v3704
    %vm3711 = vmor %vm3709, %vm3710
    %v3712 = vsel %vm3711, %v3704, %v3708
    %v3713 = vand.u32 2147483647, %v3622
    %vm3714 = vcmp.eq.f32.partialorder %v3713, 8.507059e+37
    %v3715 = vand.u32 %v3622, 2147483648
    %v3716 = vor.u32 1.1754944e-38, %v3715
    %v3717 = vsel %vm3714, %v3716, %v3712
    %v3718 = vmul.f32 1.0, %v3717
    %v3719 = vrcp.pop %v3623
    %v3720 = vmul.f32 %v3623, %v3719
    %v3721 = vsub.f32 1.0, %v3720
    %v3722 = vmul.f32 %v3719, %v3721
    %v3723 = vadd.f32 %v3719, %v3722
    %vm3724 = vweird.f32 %v3623
    %vm3725 = vweird.f32 %v3719
    %vm3726 = vmor %vm3724, %vm3725
    %v3727 = vsel %vm3726, %v3719, %v3723
    %v3728 = vand.u32 2147483647, %v3623
    %vm3729 = vcmp.eq.f32.partialorder %v3728, 8.507059e+37
    %v3730 = vand.u32 %v3623, 2147483648
    %v3731 = vor.u32 1.1754944e-38, %v3730
    %v3732 = vsel %vm3729, %v3731, %v3727
    %v3733 = vmul.f32 1.0, %v3732
    %v3734 = vrcp.pop %v3624
    %v3735 = vmul.f32 %v3624, %v3734
    %v3736 = vsub.f32 1.0, %v3735
    %v3737 = vmul.f32 %v3734, %v3736
    %v3738 = vadd.f32 %v3734, %v3737
    %vm3739 = vweird.f32 %v3624
    %vm3740 = vweird.f32 %v3734
    %vm3741 = vmor %vm3739, %vm3740
    %v3742 = vsel %vm3741, %v3734, %v3738
    %v3743 = vand.u32 2147483647, %v3624
    %vm3744 = vcmp.eq.f32.partialorder %v3743, 8.507059e+37
    %v3745 = vand.u32 %v3624, 2147483648
    %v3746 = vor.u32 1.1754944e-38, %v3745
    %v3747 = vsel %vm3744, %v3746, %v3742
    %v3748 = vmul.f32 1.0, %v3747
    %v3749 = vrcp.pop %v3625
    %v3750 = vmul.f32 %v3625, %v3749
    %v3751 = vsub.f32 1.0, %v3750
    %v3752 = vmul.f32 %v3749, %v3751
    %v3753 = vadd.f32 %v3749, %v3752
    %vm3754 = vweird.f32 %v3625
    %vm3755 = vweird.f32 %v3749
    %vm3756 = vmor %vm3754, %vm3755
    %v3757 = vsel %vm3756, %v3749, %v3753
    %v3758 = vand.u32 2147483647, %v3625
    %vm3759 = vcmp.eq.f32.partialorder %v3758, 8.507059e+37
    %v3760 = vand.u32 %v3625, 2147483648
    %v3761 = vor.u32 1.1754944e-38, %v3760
    %v3762 = vsel %vm3759, %v3761, %v3757
    %v3763 = vmul.f32 1.0, %v3762
    %v3764 = vrcp.pop %v3626
    %v3765 = vmul.f32 %v3626, %v3764
    %v3766 = vsub.f32 1.0, %v3765
    %v3767 = vmul.f32 %v3764, %v3766
    %v3768 = vadd.f32 %v3764, %v3767
    %vm3769 = vweird.f32 %v3626
    %vm3770 = vweird.f32 %v3764
    %vm3771 = vmor %vm3769, %vm3770
    %v3772 = vsel %vm3771, %v3764, %v3768
    %v3773 = vand.u32 2147483647, %v3626
    %vm3774 = vcmp.eq.f32.partialorder %v3773, 8.507059e+37
    %v3775 = vand.u32 %v3626, 2147483648
    %v3776 = vor.u32 1.1754944e-38, %v3775
    %v3777 = vsel %vm3774, %v3776, %v3772
    %v3778 = vmul.f32 1.0, %v3777
    %v3779 = vrcp.pop %v3627
    %v3780 = vmul.f32 %v3627, %v3779
    %v3781 = vsub.f32 1.0, %v3780
    %v3782 = vmul.f32 %v3779, %v3781
    %v3783 = vadd.f32 %v3779, %v3782
    %vm3784 = vweird.f32 %v3627
    %vm3785 = vweird.f32 %v3779
    %vm3786 = vmor %vm3784, %vm3785
    %v3787 = vsel %vm3786, %v3779, %v3783
    %v3788 = vand.u32 2147483647, %v3627
    %vm3789 = vcmp.eq.f32.partialorder %v3788, 8.507059e+37
    %v3790 = vand.u32 %v3627, 2147483648
    %v3791 = vor.u32 1.1754944e-38, %v3790
    %v3792 = vsel %vm3789, %v3791, %v3787
    %v3793 = vmul.f32 1.0, %v3792
    %v3794 = vrcp.pop %v3628
    %v3795 = vmul.f32 %v3628, %v3794
    %v3796 = vsub.f32 1.0, %v3795
    %v3797 = vmul.f32 %v3794, %v3796
    %v3798 = vadd.f32 %v3794, %v3797
    %vm3799 = vweird.f32 %v3628
    %vm3800 = vweird.f32 %v3794
    %vm3801 = vmor %vm3799, %vm3800
    %v3802 = vsel %vm3801, %v3794, %v3798
    %v3803 = vand.u32 2147483647, %v3628
    %vm3804 = vcmp.eq.f32.partialorder %v3803, 8.507059e+37
    %v3805 = vand.u32 %v3628, 2147483648
    %v3806 = vor.u32 1.1754944e-38, %v3805
    %v3807 = vsel %vm3804, %v3806, %v3802
    %v3808 = vmul.f32 1.0, %v3807
    %v3809 = vtanh.pop %v3512
    %v3810 = vtanh.pop %v3514
    %v3811 = vtanh.pop %v3517
    %v3812 = vtanh.pop %v3519
    %v3813 = vmul.f32 %v3703, %v2967
    %v3814 = vmul.f32 %v3718, %v2968
    %v3815 = vmul.f32 %v3733, %v2969
    %v3816 = vmul.f32 %v3748, %v2970
    %v3817 = vmul.f32 %v3643, %v3809
    %v3818 = vmul.f32 %v3658, %v3810
    %v3819 = vmul.f32 %v3673, %v3811
    %v3820 = vmul.f32 %v3688, %v3812
    %v3821 = vadd.f32 %v3813, %v3817
    %v3822 = vadd.f32 %v3814, %v3818
    %v3823 = vadd.f32 %v3815, %v3819
    %v3824 = vadd.f32 %v3816, %v3820
    %v3825 = vtanh.pop %v3821
    %v3826 = vtanh.pop %v3822
    %v3827 = vtanh.pop %v3823
    %v3828 = vtanh.pop %v3824
    %v3829 = vmul.f32 %v3763, %v3825
    %v3830 = vmul.f32 %v3778, %v3826
    %v3831 = vmul.f32 %v3793, %v3827
    %v3832 = vmul.f32 %v3808, %v3828
    %v3833 = vxor.u32 %v3442, 2147483648
    %v3834 = vxor.u32 %v3444, 2147483648
    %v3835 = vxor.u32 %v3447, 2147483648
    %v3836 = vxor.u32 %v3449, 2147483648
    %v3837 = vxor.u32 %v3452, 2147483648
    %v3838 = vxor.u32 %v3454, 2147483648
    %v3839 = vxor.u32 %v3457, 2147483648
    %v3840 = vxor.u32 %v3459, 2147483648
    %v3841 = vxor.u32 %v3462, 2147483648
    %v3842 = vxor.u32 %v3464, 2147483648
    %v3843 = vxor.u32 %v3467, 2147483648
    %v3844 = vxor.u32 %v3469, 2147483648
    %v3845 = vmul.f32 %v3833, 1.442695
    %v3846 = vpow.pop %v3845
    %v3847 = vmul.f32 %v3834, 1.442695
    %v3848 = vpow.pop %v3847
    %v3849 = vmul.f32 %v3835, 1.442695
    %v3850 = vpow.pop %v3849
    %v3851 = vmul.f32 %v3836, 1.442695
    %v3852 = vpow.pop %v3851
    %v3853 = vmul.f32 %v3837, 1.442695
    %v3854 = vpow.pop %v3853
    %v3855 = vmul.f32 %v3838, 1.442695
    %v3856 = vpow.pop %v3855
    %v3857 = vmul.f32 %v3839, 1.442695
    %v3858 = vpow.pop %v3857
    %v3859 = vmul.f32 %v3840, 1.442695
    %v3860 = vpow.pop %v3859
    %v3861 = vmul.f32 %v3841, 1.442695
    %v3862 = vpow.pop %v3861
    %v3863 = vmul.f32 %v3842, 1.442695
    %v3864 = vpow.pop %v3863
    %v3865 = vmul.f32 %v3843, 1.442695
    %v3866 = vpow.pop %v3865
    %v3867 = vmul.f32 %v3844, 1.442695
    %v3868 = vpow.pop %v3867
    %v3869 = vadd.f32 %v3846, 1.0
    %v3870 = vadd.f32 %v3848, 1.0
    %v3871 = vadd.f32 %v3850, 1.0
    %v3872 = vadd.f32 %v3852, 1.0
    %v3873 = vadd.f32 %v3854, 1.0
    %v3874 = vadd.f32 %v3856, 1.0
    %v3875 = vadd.f32 %v3858, 1.0
    %v3876 = vadd.f32 %v3860, 1.0
    %v3877 = vadd.f32 %v3862, 1.0
    %v3878 = vadd.f32 %v3864, 1.0
    %v3879 = vadd.f32 %v3866, 1.0
    %v3880 = vadd.f32 %v3868, 1.0
    %v3881 = vrcp.pop %v3869
    %v3882 = vmul.f32 %v3869, %v3881
    %v3883 = vsub.f32 1.0, %v3882
    %v3884 = vmul.f32 %v3881, %v3883
    %v3885 = vadd.f32 %v3881, %v3884
    %vm3886 = vweird.f32 %v3869
    %vm3887 = vweird.f32 %v3881
    %vm3888 = vmor %vm3886, %vm3887
    %v3889 = vsel %vm3888, %v3881, %v3885
    %v3890 = vand.u32 2147483647, %v3869
    %vm3891 = vcmp.eq.f32.partialorder %v3890, 8.507059e+37
    %v3892 = vand.u32 %v3869, 2147483648
    %v3893 = vor.u32 1.1754944e-38, %v3892
    %v3894 = vsel %vm3891, %v3893, %v3889
    %v3895 = vmul.f32 1.0, %v3894
    %v3896 = vrcp.pop %v3870
    %v3897 = vmul.f32 %v3870, %v3896
    %v3898 = vsub.f32 1.0, %v3897
    %v3899 = vmul.f32 %v3896, %v3898
    %v3900 = vadd.f32 %v3896, %v3899
    %vm3901 = vweird.f32 %v3870
    %vm3902 = vweird.f32 %v3896
    %vm3903 = vmor %vm3901, %vm3902
    %v3904 = vsel %vm3903, %v3896, %v3900
    %v3905 = vand.u32 2147483647, %v3870
    %vm3906 = vcmp.eq.f32.partialorder %v3905, 8.507059e+37
    %v3907 = vand.u32 %v3870, 2147483648
    %v3908 = vor.u32 1.1754944e-38, %v3907
    %v3909 = vsel %vm3906, %v3908, %v3904
    %v3910 = vmul.f32 1.0, %v3909
    %v3911 = vrcp.pop %v3871
    %v3912 = vmul.f32 %v3871, %v3911
    %v3913 = vsub.f32 1.0, %v3912
    %v3914 = vmul.f32 %v3911, %v3913
    %v3915 = vadd.f32 %v3911, %v3914
    %vm3916 = vweird.f32 %v3871
    %vm3917 = vweird.f32 %v3911
    %vm3918 = vmor %vm3916, %vm3917
    %v3919 = vsel %vm3918, %v3911, %v3915
    %v3920 = vand.u32 2147483647, %v3871
    %vm3921 = vcmp.eq.f32.partialorder %v3920, 8.507059e+37
    %v3922 = vand.u32 %v3871, 2147483648
    %v3923 = vor.u32 1.1754944e-38, %v3922
    %v3924 = vsel %vm3921, %v3923, %v3919
    %v3925 = vmul.f32 1.0, %v3924
    %v3926 = vrcp.pop %v3872
    %v3927 = vmul.f32 %v3872, %v3926
    %v3928 = vsub.f32 1.0, %v3927
    %v3929 = vmul.f32 %v3926, %v3928
    %v3930 = vadd.f32 %v3926, %v3929
    %vm3931 = vweird.f32 %v3872
    %vm3932 = vweird.f32 %v3926
    %vm3933 = vmor %vm3931, %vm3932
    %v3934 = vsel %vm3933, %v3926, %v3930
    %v3935 = vand.u32 2147483647, %v3872
    %vm3936 = vcmp.eq.f32.partialorder %v3935, 8.507059e+37
    %v3937 = vand.u32 %v3872, 2147483648
    %v3938 = vor.u32 1.1754944e-38, %v3937
    %v3939 = vsel %vm3936, %v3938, %v3934
    %v3940 = vmul.f32 1.0, %v3939
    %v3941 = vrcp.pop %v3873
    %v3942 = vmul.f32 %v3873, %v3941
    %v3943 = vsub.f32 1.0, %v3942
    %v3944 = vmul.f32 %v3941, %v3943
    %v3945 = vadd.f32 %v3941, %v3944
    %vm3946 = vweird.f32 %v3873
    %vm3947 = vweird.f32 %v3941
    %vm3948 = vmor %vm3946, %vm3947
    %v3949 = vsel %vm3948, %v3941, %v3945
    %v3950 = vand.u32 2147483647, %v3873
    %vm3951 = vcmp.eq.f32.partialorder %v3950, 8.507059e+37
    %v3952 = vand.u32 %v3873, 2147483648
    %v3953 = vor.u32 1.1754944e-38, %v3952
    %v3954 = vsel %vm3951, %v3953, %v3949
    %v3955 = vmul.f32 1.0, %v3954
    %v3956 = vrcp.pop %v3874
    %v3957 = vmul.f32 %v3874, %v3956
    %v3958 = vsub.f32 1.0, %v3957
    %v3959 = vmul.f32 %v3956, %v3958
    %v3960 = vadd.f32 %v3956, %v3959
    %vm3961 = vweird.f32 %v3874
    %vm3962 = vweird.f32 %v3956
    %vm3963 = vmor %vm3961, %vm3962
    %v3964 = vsel %vm3963, %v3956, %v3960
    %v3965 = vand.u32 2147483647, %v3874
    %vm3966 = vcmp.eq.f32.partialorder %v3965, 8.507059e+37
    %v3967 = vand.u32 %v3874, 2147483648
    %v3968 = vor.u32 1.1754944e-38, %v3967
    %v3969 = vsel %vm3966, %v3968, %v3964
    %v3970 = vmul.f32 1.0, %v3969
    %v3971 = vrcp.pop %v3875
    %v3972 = vmul.f32 %v3875, %v3971
    %v3973 = vsub.f32 1.0, %v3972
    %v3974 = vmul.f32 %v3971, %v3973
    %v3975 = vadd.f32 %v3971, %v3974
    %vm3976 = vweird.f32 %v3875
    %vm3977 = vweird.f32 %v3971
    %vm3978 = vmor %vm3976, %vm3977
    %v3979 = vsel %vm3978, %v3971, %v3975
    %v3980 = vand.u32 2147483647, %v3875
    %vm3981 = vcmp.eq.f32.partialorder %v3980, 8.507059e+37
    %v3982 = vand.u32 %v3875, 2147483648
    %v3983 = vor.u32 1.1754944e-38, %v3982
    %v3984 = vsel %vm3981, %v3983, %v3979
    %v3985 = vmul.f32 1.0, %v3984
    %v3986 = vrcp.pop %v3876
    %v3987 = vmul.f32 %v3876, %v3986
    %v3988 = vsub.f32 1.0, %v3987
    %v3989 = vmul.f32 %v3986, %v3988
    %v3990 = vadd.f32 %v3986, %v3989
    %vm3991 = vweird.f32 %v3876
    %vm3992 = vweird.f32 %v3986
    %vm3993 = vmor %vm3991, %vm3992
    %v3994 = vsel %vm3993, %v3986, %v3990
    %v3995 = vand.u32 2147483647, %v3876
    %vm3996 = vcmp.eq.f32.partialorder %v3995, 8.507059e+37
    %v3997 = vand.u32 %v3876, 2147483648
    %v3998 = vor.u32 1.1754944e-38, %v3997
    %v3999 = vsel %vm3996, %v3998, %v3994
    %v4000 = vmul.f32 1.0, %v3999
    %v4001 = vrcp.pop %v3877
    %v4002 = vmul.f32 %v3877, %v4001
    %v4003 = vsub.f32 1.0, %v4002
    %v4004 = vmul.f32 %v4001, %v4003
    %v4005 = vadd.f32 %v4001, %v4004
    %vm4006 = vweird.f32 %v3877
    %vm4007 = vweird.f32 %v4001
    %vm4008 = vmor %vm4006, %vm4007
    %v4009 = vsel %vm4008, %v4001, %v4005
    %v4010 = vand.u32 2147483647, %v3877
    %vm4011 = vcmp.eq.f32.partialorder %v4010, 8.507059e+37
    %v4012 = vand.u32 %v3877, 2147483648
    %v4013 = vor.u32 1.1754944e-38, %v4012
    %v4014 = vsel %vm4011, %v4013, %v4009
    %v4015 = vmul.f32 1.0, %v4014
    %v4016 = vrcp.pop %v3878
    %v4017 = vmul.f32 %v3878, %v4016
    %v4018 = vsub.f32 1.0, %v4017
    %v4019 = vmul.f32 %v4016, %v4018
    %v4020 = vadd.f32 %v4016, %v4019
    %vm4021 = vweird.f32 %v3878
    %vm4022 = vweird.f32 %v4016
    %vm4023 = vmor %vm4021, %vm4022
    %v4024 = vsel %vm4023, %v4016, %v4020
    %v4025 = vand.u32 2147483647, %v3878
    %vm4026 = vcmp.eq.f32.partialorder %v4025, 8.507059e+37
    %v4027 = vand.u32 %v3878, 2147483648
    %v4028 = vor.u32 1.1754944e-38, %v4027
    %v4029 = vsel %vm4026, %v4028, %v4024
    %v4030 = vmul.f32 1.0, %v4029
    %v4031 = vrcp.pop %v3879
    %v4032 = vmul.f32 %v3879, %v4031
    %v4033 = vsub.f32 1.0, %v4032
    %v4034 = vmul.f32 %v4031, %v4033
    %v4035 = vadd.f32 %v4031, %v4034
    %vm4036 = vweird.f32 %v3879
    %vm4037 = vweird.f32 %v4031
    %vm4038 = vmor %vm4036, %vm4037
    %v4039 = vsel %vm4038, %v4031, %v4035
    %v4040 = vand.u32 2147483647, %v3879
    %vm4041 = vcmp.eq.f32.partialorder %v4040, 8.507059e+37
    %v4042 = vand.u32 %v3879, 2147483648
    %v4043 = vor.u32 1.1754944e-38, %v4042
    %v4044 = vsel %vm4041, %v4043, %v4039
    %v4045 = vmul.f32 1.0, %v4044
    %v4046 = vrcp.pop %v3880
    %v4047 = vmul.f32 %v3880, %v4046
    %v4048 = vsub.f32 1.0, %v4047
    %v4049 = vmul.f32 %v4046, %v4048
    %v4050 = vadd.f32 %v4046, %v4049
    %vm4051 = vweird.f32 %v3880
    %vm4052 = vweird.f32 %v4046
    %vm4053 = vmor %vm4051, %vm4052
    %v4054 = vsel %vm4053, %v4046, %v4050
    %v4055 = vand.u32 2147483647, %v3880
    %vm4056 = vcmp.eq.f32.partialorder %v4055, 8.507059e+37
    %v4057 = vand.u32 %v3880, 2147483648
    %v4058 = vor.u32 1.1754944e-38, %v4057
    %v4059 = vsel %vm4056, %v4058, %v4054
    %v4060 = vmul.f32 1.0, %v4059
    %v4061 = vtanh.pop %v3472
    %v4062 = vtanh.pop %v3474
    %v4063 = vtanh.pop %v3477
    %v4064 = vtanh.pop %v3479
    %v4065 = vmul.f32 %v3955, %v3219
    %v4066 = vmul.f32 %v3970, %v3220
    %v4067 = vmul.f32 %v3985, %v3221
    %v4068 = vmul.f32 %v4000, %v3222
    %v4069 = vmul.f32 %v3895, %v4061
    %v4070 = vmul.f32 %v3910, %v4062
    %v4071 = vmul.f32 %v3925, %v4063
    %v4072 = vmul.f32 %v3940, %v4064
    %v4073 = vadd.f32 %v4065, %v4069
    %v4074 = vadd.f32 %v4066, %v4070
    %v4075 = vadd.f32 %v4067, %v4071
    %v4076 = vadd.f32 %v4068, %v4072
    %v4077 = vtanh.pop %v4073
    %v4078 = vtanh.pop %v4074
    %v4079 = vtanh.pop %v4075
    %v4080 = vtanh.pop %v4076
    %v4081 = vmul.f32 %v4015, %v4077
    %v4082 = vmul.f32 %v4030, %v4078
    %v4083 = vmul.f32 %v4045, %v4079
    %v4084 = vmul.f32 %v4060, %v4080
    %v4085 = vadd.f32 %v3552, %v3522
    %v4086 = vadd.f32 %v3554, %v3524
    %v4087 = vadd.f32 %v3557, %v3527
    %v4088 = vadd.f32 %v3559, %v3529
    %v4089 = vadd.f32 %v3562, %v3532
    %v4090 = vadd.f32 %v3564, %v3534
    %v4091 = vadd.f32 %v3567, %v3537
    %v4092 = vadd.f32 %v3569, %v3539
    %v4093 = vxor.u32 %v4085, 2147483648
    %v4094 = vxor.u32 %v4086, 2147483648
    %v4095 = vxor.u32 %v4087, 2147483648
    %v4096 = vxor.u32 %v4088, 2147483648
    %v4097 = vxor.u32 %v4089, 2147483648
    %v4098 = vxor.u32 %v4090, 2147483648
    %v4099 = vxor.u32 %v4091, 2147483648
    %v4100 = vxor.u32 %v4092, 2147483648
    %v4101 = vmul.f32 %v4093, 1.442695
    %v4102 = vpow.pop %v4101
    %v4103 = vmul.f32 %v4094, 1.442695
    %v4104 = vpow.pop %v4103
    %v4105 = vmul.f32 %v4095, 1.442695
    %v4106 = vpow.pop %v4105
    %v4107 = vmul.f32 %v4096, 1.442695
    %v4108 = vpow.pop %v4107
    %v4109 = vmul.f32 %v4097, 1.442695
    %v4110 = vpow.pop %v4109
    %v4111 = vmul.f32 %v4098, 1.442695
    %v4112 = vpow.pop %v4111
    %v4113 = vmul.f32 %v4099, 1.442695
    %v4114 = vpow.pop %v4113
    %v4115 = vmul.f32 %v4100, 1.442695
    %v4116 = vpow.pop %v4115
    %v4117 = vadd.f32 %v4102, 1.0
    %v4118 = vadd.f32 %v4104, 1.0
    %v4119 = vadd.f32 %v4106, 1.0
    %v4120 = vadd.f32 %v4108, 1.0
    %v4121 = vadd.f32 %v4110, 1.0
    %v4122 = vadd.f32 %v4112, 1.0
    %v4123 = vadd.f32 %v4114, 1.0
    %v4124 = vadd.f32 %v4116, 1.0
    %v4125 = vrcp.pop %v4117
    %v4126 = vmul.f32 %v4117, %v4125
    %v4127 = vsub.f32 1.0, %v4126
    %v4128 = vmul.f32 %v4125, %v4127
    %v4129 = vadd.f32 %v4125, %v4128
    %vm4130 = vweird.f32 %v4117
    %vm4131 = vweird.f32 %v4125
    %vm4132 = vmor %vm4130, %vm4131
    %v4133 = vsel %vm4132, %v4125, %v4129
    %v4134 = vand.u32 2147483647, %v4117
    %vm4135 = vcmp.eq.f32.partialorder %v4134, 8.507059e+37
    %v4136 = vand.u32 %v4117, 2147483648
    %v4137 = vor.u32 1.1754944e-38, %v4136
    %v4138 = vsel %vm4135, %v4137, %v4133
    %v4139 = vmul.f32 1.0, %v4138
    %v4140 = vrcp.pop %v4118
    %v4141 = vmul.f32 %v4118, %v4140
    %v4142 = vsub.f32 1.0, %v4141
    %v4143 = vmul.f32 %v4140, %v4142
    %v4144 = vadd.f32 %v4140, %v4143
    %vm4145 = vweird.f32 %v4118
    %vm4146 = vweird.f32 %v4140
    %vm4147 = vmor %vm4145, %vm4146
    %v4148 = vsel %vm4147, %v4140, %v4144
    %v4149 = vand.u32 2147483647, %v4118
    %vm4150 = vcmp.eq.f32.partialorder %v4149, 8.507059e+37
    %v4151 = vand.u32 %v4118, 2147483648
    %v4152 = vor.u32 1.1754944e-38, %v4151
    %v4153 = vsel %vm4150, %v4152, %v4148
    %v4154 = vmul.f32 1.0, %v4153
    %v4155 = vrcp.pop %v4119
    %v4156 = vmul.f32 %v4119, %v4155
    %v4157 = vsub.f32 1.0, %v4156
    %v4158 = vmul.f32 %v4155, %v4157
    %v4159 = vadd.f32 %v4155, %v4158
    %vm4160 = vweird.f32 %v4119
    %vm4161 = vweird.f32 %v4155
    %vm4162 = vmor %vm4160, %vm4161
    %v4163 = vsel %vm4162, %v4155, %v4159
    %v4164 = vand.u32 2147483647, %v4119
    %vm4165 = vcmp.eq.f32.partialorder %v4164, 8.507059e+37
    %v4166 = vand.u32 %v4119, 2147483648
    %v4167 = vor.u32 1.1754944e-38, %v4166
    %v4168 = vsel %vm4165, %v4167, %v4163
    %v4169 = vmul.f32 1.0, %v4168
    %v4170 = vrcp.pop %v4120
    %v4171 = vmul.f32 %v4120, %v4170
    %v4172 = vsub.f32 1.0, %v4171
    %v4173 = vmul.f32 %v4170, %v4172
    %v4174 = vadd.f32 %v4170, %v4173
    %vm4175 = vweird.f32 %v4120
    %vm4176 = vweird.f32 %v4170
    %vm4177 = vmor %vm4175, %vm4176
    %v4178 = vsel %vm4177, %v4170, %v4174
    %v4179 = vand.u32 2147483647, %v4120
    %vm4180 = vcmp.eq.f32.partialorder %v4179, 8.507059e+37
    %v4181 = vand.u32 %v4120, 2147483648
    %v4182 = vor.u32 1.1754944e-38, %v4181
    %v4183 = vsel %vm4180, %v4182, %v4178
    %v4184 = vmul.f32 1.0, %v4183
    %v4185 = vrcp.pop %v4121
    %v4186 = vmul.f32 %v4121, %v4185
    %v4187 = vsub.f32 1.0, %v4186
    %v4188 = vmul.f32 %v4185, %v4187
    %v4189 = vadd.f32 %v4185, %v4188
    %vm4190 = vweird.f32 %v4121
    %vm4191 = vweird.f32 %v4185
    %vm4192 = vmor %vm4190, %vm4191
    %v4193 = vsel %vm4192, %v4185, %v4189
    %v4194 = vand.u32 2147483647, %v4121
    %vm4195 = vcmp.eq.f32.partialorder %v4194, 8.507059e+37
    %v4196 = vand.u32 %v4121, 2147483648
    %v4197 = vor.u32 1.1754944e-38, %v4196
    %v4198 = vsel %vm4195, %v4197, %v4193
    %v4199 = vmul.f32 1.0, %v4198
    %v4200 = vrcp.pop %v4122
    %v4201 = vmul.f32 %v4122, %v4200
    %v4202 = vsub.f32 1.0, %v4201
    %v4203 = vmul.f32 %v4200, %v4202
    %v4204 = vadd.f32 %v4200, %v4203
    %vm4205 = vweird.f32 %v4122
    %vm4206 = vweird.f32 %v4200
    %vm4207 = vmor %vm4205, %vm4206
    %v4208 = vsel %vm4207, %v4200, %v4204
    %v4209 = vand.u32 2147483647, %v4122
    %vm4210 = vcmp.eq.f32.partialorder %v4209, 8.507059e+37
    %v4211 = vand.u32 %v4122, 2147483648
    %v4212 = vor.u32 1.1754944e-38, %v4211
    %v4213 = vsel %vm4210, %v4212, %v4208
    %v4214 = vmul.f32 1.0, %v4213
    %v4215 = vrcp.pop %v4123
    %v4216 = vmul.f32 %v4123, %v4215
    %v4217 = vsub.f32 1.0, %v4216
    %v4218 = vmul.f32 %v4215, %v4217
    %v4219 = vadd.f32 %v4215, %v4218
    %vm4220 = vweird.f32 %v4123
    %vm4221 = vweird.f32 %v4215
    %vm4222 = vmor %vm4220, %vm4221
    %v4223 = vsel %vm4222, %v4215, %v4219
    %v4224 = vand.u32 2147483647, %v4123
    %vm4225 = vcmp.eq.f32.partialorder %v4224, 8.507059e+37
    %v4226 = vand.u32 %v4123, 2147483648
    %v4227 = vor.u32 1.1754944e-38, %v4226
    %v4228 = vsel %vm4225, %v4227, %v4223
    %v4229 = vmul.f32 1.0, %v4228
    %v4230 = vrcp.pop %v4124
    %v4231 = vmul.f32 %v4124, %v4230
    %v4232 = vsub.f32 1.0, %v4231
    %v4233 = vmul.f32 %v4230, %v4232
    %v4234 = vadd.f32 %v4230, %v4233
    %vm4235 = vweird.f32 %v4124
    %vm4236 = vweird.f32 %v4230
    %vm4237 = vmor %vm4235, %vm4236
    %v4238 = vsel %vm4237, %v4230, %v4234
    %v4239 = vand.u32 2147483647, %v4124
    %vm4240 = vcmp.eq.f32.partialorder %v4239, 8.507059e+37
    %v4241 = vand.u32 %v4124, 2147483648
    %v4242 = vor.u32 1.1754944e-38, %v4241
    %v4243 = vsel %vm4240, %v4242, %v4238
    %v4244 = vmul.f32 1.0, %v4243
    %v4245 = vmul.f32 %v4139, %v3542
    %v4246 = vmul.f32 %v4154, %v3544
    %v4247 = vmul.f32 %v4169, %v3547
    %v4248 = vmul.f32 %v4184, %v3549
    %v4249 = vadd.f32 %v3572, %v4245
    %v4250 = vadd.f32 %v3574, %v4246
    %v4251 = vadd.f32 %v3577, %v4247
    %v4252 = vadd.f32 %v3579, %v4248
    %v4253 = vtanh.pop %v4249
    %v4254 = vtanh.pop %v4250
    %v4255 = vtanh.pop %v4251
    %v4256 = vtanh.pop %v4252
    %v4257 = vsub.f32 1.0, %v4199
    %v4258 = vsub.f32 1.0, %v4214
    %v4259 = vsub.f32 1.0, %v4229
    %v4260 = vsub.f32 1.0, %v4244
    %v4261 = vmul.f32 %v4257, %v4253
    %v4262 = vmul.f32 %v4258, %v4254
    %v4263 = vmul.f32 %v4259, %v4255
    %v4264 = vmul.f32 %v4260, %v4256
    %v4265 = vmul.f32 %v4199, %v3415
    %v4266 = vmul.f32 %v4214, %v3416
    %v4267 = vmul.f32 %v4229, %v3417
    %v4268 = vmul.f32 %v4244, %v3418
    %v4269 = vadd.f32 %v4261, %v4265
    %v4270 = vadd.f32 %v4262, %v4266
    %v4271 = vadd.f32 %v4263, %v4267
    %v4272 = vadd.f32 %v4264, %v4268
    %s4273 = scalar_lea.vmem [#allocation3], 160
    %v4274 = vld [vmem:[%s4273] sm:$0xff]
    %v4275 = vld [vmem:[%s4273 + $0x8] sm:$0xff]
    %v4276 = vld [vmem:[%s4273 + $0x10] sm:$0xff]
    %v4277 = vld [vmem:[%s4273 + $0x18] sm:$0xff]
    %v4278 = vpack.c.bf16 %v4082, %v4081
    %v4279 = vpack.c.bf16 %v4084, %v4083
    %v4280 = vpack.c.bf16 %v3830, %v3829
    %v4281 = vpack.c.bf16 %v3832, %v3831
    %v4282 = vpack.c.bf16 %v4270, %v4269
    %v4283 = vpack.c.bf16 %v4272, %v4271
    %v4284 = vpack.c.bf16 %v4275, %v4274
    %v4285 = vpack.c.bf16 %v4277, %v4276
    %4286 = vmatpush.bf16.msra.mxu0 %v4285
    %4287 = vmatpush.bf16.msra.mxu0 %v4284
    %4288 = vmatpush.bf16.msra.mxu0 %v4283
    %4289 = vmatpush.bf16.msra.mxu0 %v4282
    %4290 = vmatpush.bf16.msra.mxu0 %v4281
    %4291 = vmatpush.bf16.msra.mxu0 %v4280
    %4292 = vmatpush.bf16.msra.mxu0 %v4279
    %4293 = vmatpush.bf16.msra.mxu0 %v4278
    %4294 = vmatmul.bf16.gmra.mxu0 %v230
    %v4295 = vpop.f32.mrf.mxu0
    %v4296 = vadd.f32 0.0, %v4295
    %v4297 = vpop.f32.mrf.mxu0
    %v4298 = vadd.f32 0.0, %v4297
    %4299 = vmatmul.bf16.gmra.mxu0 %v231
    %v4300 = vpop.f32.mrf.mxu0
    %v4301 = vadd.f32 0.0, %v4300
    %v4302 = vpop.f32.mrf.mxu0
    %v4303 = vadd.f32 0.0, %v4302
    %4304 = vmatmul.bf16.gmra.mxu0 %v232
    %v4305 = vpop.f32.mrf.mxu0
    %v4306 = vadd.f32 0.0, %v4305
    %v4307 = vpop.f32.mrf.mxu0
    %v4308 = vadd.f32 0.0, %v4307
    %4309 = vmatmul.bf16.gmra.mxu0 %v233
    %v4310 = vpop.f32.mrf.mxu0
    %v4311 = vadd.f32 0.0, %v4310
    %v4312 = vpop.f32.mrf.mxu0
    %v4313 = vadd.f32 0.0, %v4312
    %4314 = vmatmul.bf16.gmra.mxu0 %v234
    %v4315 = vpop.f32.mrf.mxu0
    %v4316 = vadd.f32 0.0, %v4315
    %v4317 = vpop.f32.mrf.mxu0
    %v4318 = vadd.f32 0.0, %v4317
    %4319 = vmatmul.bf16.gmra.mxu0 %v235
    %v4320 = vpop.f32.mrf.mxu0
    %v4321 = vadd.f32 0.0, %v4320
    %v4322 = vpop.f32.mrf.mxu0
    %v4323 = vadd.f32 0.0, %v4322
    %4324 = vmatmul.bf16.gmra.mxu0 %v236
    %v4325 = vpop.f32.mrf.mxu0
    %v4326 = vadd.f32 0.0, %v4325
    %v4327 = vpop.f32.mrf.mxu0
    %v4328 = vadd.f32 0.0, %v4327
    %4329 = vmatmul.bf16.gmra.mxu0 %v237
    %v4330 = vpop.f32.mrf.mxu0
    %v4331 = vadd.f32 0.0, %v4330
    %v4332 = vpop.f32.mrf.mxu0
    %v4333 = vadd.f32 0.0, %v4332
    %4334 = vmatmul.bf16.gmra.mxu0 %v238
    %v4335 = vpop.f32.mrf.mxu0
    %v4336 = vadd.f32 0.0, %v4335
    %v4337 = vpop.f32.mrf.mxu0
    %v4338 = vadd.f32 0.0, %v4337
    %4339 = vmatmul.bf16.gmra.mxu0 %v239
    %v4340 = vpop.f32.mrf.mxu0
    %v4341 = vadd.f32 0.0, %v4340
    %v4342 = vpop.f32.mrf.mxu0
    %v4343 = vadd.f32 0.0, %v4342
    %4344 = vmatmul.bf16.gmra.mxu0 %v240
    %v4345 = vpop.f32.mrf.mxu0
    %v4346 = vadd.f32 0.0, %v4345
    %v4347 = vpop.f32.mrf.mxu0
    %v4348 = vadd.f32 0.0, %v4347
    %4349 = vmatmul.bf16.gmra.mxu0 %v241
    %v4350 = vpop.f32.mrf.mxu0
    %v4351 = vadd.f32 0.0, %v4350
    %v4352 = vpop.f32.mrf.mxu0
    %v4353 = vadd.f32 0.0, %v4352
    %4354 = vmatmul.bf16.gmra.mxu0 %v242
    %v4355 = vpop.f32.mrf.mxu0
    %v4356 = vadd.f32 0.0, %v4355
    %v4357 = vpop.f32.mrf.mxu0
    %v4358 = vadd.f32 0.0, %v4357
    %4359 = vmatmul.bf16.gmra.mxu0 %v243
    %v4360 = vpop.f32.mrf.mxu0
    %v4361 = vadd.f32 0.0, %v4360
    %v4362 = vpop.f32.mrf.mxu0
    %v4363 = vadd.f32 0.0, %v4362
    %4364 = vmatmul.bf16.gmra.mxu0 %v244
    %v4365 = vpop.f32.mrf.mxu0
    %v4366 = vadd.f32 0.0, %v4365
    %v4367 = vpop.f32.mrf.mxu0
    %v4368 = vadd.f32 0.0, %v4367
    %4369 = vmatmul.bf16.gmra.mxu0 %v245
    %v4370 = vpop.f32.mrf.mxu0
    %v4371 = vadd.f32 0.0, %v4370
    %v4372 = vpop.f32.mrf.mxu0
    %v4373 = vadd.f32 0.0, %v4372
    %4374 = vmatmul.bf16.gmra.mxu0 %v246
    %v4375 = vpop.f32.mrf.mxu0
    %v4376 = vadd.f32 0.0, %v4375
    %v4377 = vpop.f32.mrf.mxu0
    %v4378 = vadd.f32 0.0, %v4377
    %4379 = vmatmul.bf16.gmra.mxu0 %v247
    %v4380 = vpop.f32.mrf.mxu0
    %v4381 = vadd.f32 0.0, %v4380
    %v4382 = vpop.f32.mrf.mxu0
    %v4383 = vadd.f32 0.0, %v4382
    %4384 = vmatmul.bf16.gmra.mxu0 %v248
    %v4385 = vpop.f32.mrf.mxu0
    %v4386 = vadd.f32 0.0, %v4385
    %v4387 = vpop.f32.mrf.mxu0
    %v4388 = vadd.f32 0.0, %v4387
    %4389 = vmatmul.bf16.gmra.mxu0 %v249
    %v4390 = vpop.f32.mrf.mxu0
    %v4391 = vadd.f32 0.0, %v4390
    %v4392 = vpop.f32.mrf.mxu0
    %v4393 = vadd.f32 0.0, %v4392
    %4394 = vmatmul.bf16.gmra.mxu0 %v250
    %v4395 = vpop.f32.mrf.mxu0
    %v4396 = vadd.f32 0.0, %v4395
    %v4397 = vpop.f32.mrf.mxu0
    %v4398 = vadd.f32 0.0, %v4397
    %4399 = vmatmul.bf16.gmra.mxu0 %v251
    %v4400 = vpop.f32.mrf.mxu0
    %v4401 = vadd.f32 0.0, %v4400
    %v4402 = vpop.f32.mrf.mxu0
    %v4403 = vadd.f32 0.0, %v4402
    %4404 = vmatmul.bf16.gmra.mxu0 %v252
    %v4405 = vpop.f32.mrf.mxu0
    %v4406 = vadd.f32 0.0, %v4405
    %v4407 = vpop.f32.mrf.mxu0
    %v4408 = vadd.f32 0.0, %v4407
    %4409 = vmatmul.bf16.gmra.mxu0 %v253
    %v4410 = vpop.f32.mrf.mxu0
    %v4411 = vadd.f32 0.0, %v4410
    %v4412 = vpop.f32.mrf.mxu0
    %v4413 = vadd.f32 0.0, %v4412
    %4414 = vmatmul.bf16.gmra.mxu0 %v254
    %v4415 = vpop.f32.mrf.mxu0
    %v4416 = vadd.f32 0.0, %v4415
    %v4417 = vpop.f32.mrf.mxu0
    %v4418 = vadd.f32 0.0, %v4417
    %4419 = vmatmul.bf16.gmra.mxu0 %v255
    %v4420 = vpop.f32.mrf.mxu0
    %v4421 = vadd.f32 0.0, %v4420
    %v4422 = vpop.f32.mrf.mxu0
    %v4423 = vadd.f32 0.0, %v4422
    %4424 = vmatmul.bf16.gmra.mxu0 %v256
    %v4425 = vpop.f32.mrf.mxu0
    %v4426 = vadd.f32 0.0, %v4425
    %v4427 = vpop.f32.mrf.mxu0
    %v4428 = vadd.f32 0.0, %v4427
    %4429 = vmatmul.bf16.gmra.mxu0 %v257
    %v4430 = vpop.f32.mrf.mxu0
    %v4431 = vadd.f32 0.0, %v4430
    %v4432 = vpop.f32.mrf.mxu0
    %v4433 = vadd.f32 0.0, %v4432
    %4434 = vdwg.mxu0
    %v4435 = vxor.u32 %v4336, 2147483648
    %v4436 = vxor.u32 %v4338, 2147483648
    %v4437 = vxor.u32 %v4341, 2147483648
    %v4438 = vxor.u32 %v4343, 2147483648
    %v4439 = vxor.u32 %v4346, 2147483648
    %v4440 = vxor.u32 %v4348, 2147483648
    %v4441 = vxor.u32 %v4351, 2147483648
    %v4442 = vxor.u32 %v4353, 2147483648
    %v4443 = vxor.u32 %v4356, 2147483648
    %v4444 = vxor.u32 %v4358, 2147483648
    %v4445 = vxor.u32 %v4361, 2147483648
    %v4446 = vxor.u32 %v4363, 2147483648
    %v4447 = vmul.f32 %v4435, 1.442695
    %v4448 = vpow.pop %v4447
    %v4449 = vmul.f32 %v4436, 1.442695
    %v4450 = vpow.pop %v4449
    %v4451 = vmul.f32 %v4437, 1.442695
    %v4452 = vpow.pop %v4451
    %v4453 = vmul.f32 %v4438, 1.442695
    %v4454 = vpow.pop %v4453
    %v4455 = vmul.f32 %v4439, 1.442695
    %v4456 = vpow.pop %v4455
    %v4457 = vmul.f32 %v4440, 1.442695
    %v4458 = vpow.pop %v4457
    %v4459 = vmul.f32 %v4441, 1.442695
    %v4460 = vpow.pop %v4459
    %v4461 = vmul.f32 %v4442, 1.442695
    %v4462 = vpow.pop %v4461
    %v4463 = vmul.f32 %v4443, 1.442695
    %v4464 = vpow.pop %v4463
    %v4465 = vmul.f32 %v4444, 1.442695
    %v4466 = vpow.pop %v4465
    %v4467 = vmul.f32 %v4445, 1.442695
    %v4468 = vpow.pop %v4467
    %v4469 = vmul.f32 %v4446, 1.442695
    %v4470 = vpow.pop %v4469
    %v4471 = vadd.f32 %v4448, 1.0
    %v4472 = vadd.f32 %v4450, 1.0
    %v4473 = vadd.f32 %v4452, 1.0
    %v4474 = vadd.f32 %v4454, 1.0
    %v4475 = vadd.f32 %v4456, 1.0
    %v4476 = vadd.f32 %v4458, 1.0
    %v4477 = vadd.f32 %v4460, 1.0
    %v4478 = vadd.f32 %v4462, 1.0
    %v4479 = vadd.f32 %v4464, 1.0
    %v4480 = vadd.f32 %v4466, 1.0
    %v4481 = vadd.f32 %v4468, 1.0
    %v4482 = vadd.f32 %v4470, 1.0
    %v4483 = vrcp.pop %v4471
    %v4484 = vmul.f32 %v4471, %v4483
    %v4485 = vsub.f32 1.0, %v4484
    %v4486 = vmul.f32 %v4483, %v4485
    %v4487 = vadd.f32 %v4483, %v4486
    %vm4488 = vweird.f32 %v4471
    %vm4489 = vweird.f32 %v4483
    %vm4490 = vmor %vm4488, %vm4489
    %v4491 = vsel %vm4490, %v4483, %v4487
    %v4492 = vand.u32 2147483647, %v4471
    %vm4493 = vcmp.eq.f32.partialorder %v4492, 8.507059e+37
    %v4494 = vand.u32 %v4471, 2147483648
    %v4495 = vor.u32 1.1754944e-38, %v4494
    %v4496 = vsel %vm4493, %v4495, %v4491
    %v4497 = vmul.f32 1.0, %v4496
    %v4498 = vrcp.pop %v4472
    %v4499 = vmul.f32 %v4472, %v4498
    %v4500 = vsub.f32 1.0, %v4499
    %v4501 = vmul.f32 %v4498, %v4500
    %v4502 = vadd.f32 %v4498, %v4501
    %vm4503 = vweird.f32 %v4472
    %vm4504 = vweird.f32 %v4498
    %vm4505 = vmor %vm4503, %vm4504
    %v4506 = vsel %vm4505, %v4498, %v4502
    %v4507 = vand.u32 2147483647, %v4472
    %vm4508 = vcmp.eq.f32.partialorder %v4507, 8.507059e+37
    %v4509 = vand.u32 %v4472, 2147483648
    %v4510 = vor.u32 1.1754944e-38, %v4509
    %v4511 = vsel %vm4508, %v4510, %v4506
    %v4512 = vmul.f32 1.0, %v4511
    %v4513 = vrcp.pop %v4473
    %v4514 = vmul.f32 %v4473, %v4513
    %v4515 = vsub.f32 1.0, %v4514
    %v4516 = vmul.f32 %v4513, %v4515
    %v4517 = vadd.f32 %v4513, %v4516
    %vm4518 = vweird.f32 %v4473
    %vm4519 = vweird.f32 %v4513
    %vm4520 = vmor %vm4518, %vm4519
    %v4521 = vsel %vm4520, %v4513, %v4517
    %v4522 = vand.u32 2147483647, %v4473
    %vm4523 = vcmp.eq.f32.partialorder %v4522, 8.507059e+37
    %v4524 = vand.u32 %v4473, 2147483648
    %v4525 = vor.u32 1.1754944e-38, %v4524
    %v4526 = vsel %vm4523, %v4525, %v4521
    %v4527 = vmul.f32 1.0, %v4526
    %v4528 = vrcp.pop %v4474
    %v4529 = vmul.f32 %v4474, %v4528
    %v4530 = vsub.f32 1.0, %v4529
    %v4531 = vmul.f32 %v4528, %v4530
    %v4532 = vadd.f32 %v4528, %v4531
    %vm4533 = vweird.f32 %v4474
    %vm4534 = vweird.f32 %v4528
    %vm4535 = vmor %vm4533, %vm4534
    %v4536 = vsel %vm4535, %v4528, %v4532
    %v4537 = vand.u32 2147483647, %v4474
    %vm4538 = vcmp.eq.f32.partialorder %v4537, 8.507059e+37
    %v4539 = vand.u32 %v4474, 2147483648
    %v4540 = vor.u32 1.1754944e-38, %v4539
    %v4541 = vsel %vm4538, %v4540, %v4536
    %v4542 = vmul.f32 1.0, %v4541
    %v4543 = vrcp.pop %v4475
    %v4544 = vmul.f32 %v4475, %v4543
    %v4545 = vsub.f32 1.0, %v4544
    %v4546 = vmul.f32 %v4543, %v4545
    %v4547 = vadd.f32 %v4543, %v4546
    %vm4548 = vweird.f32 %v4475
    %vm4549 = vweird.f32 %v4543
    %vm4550 = vmor %vm4548, %vm4549
    %v4551 = vsel %vm4550, %v4543, %v4547
    %v4552 = vand.u32 2147483647, %v4475
    %vm4553 = vcmp.eq.f32.partialorder %v4552, 8.507059e+37
    %v4554 = vand.u32 %v4475, 2147483648
    %v4555 = vor.u32 1.1754944e-38, %v4554
    %v4556 = vsel %vm4553, %v4555, %v4551
    %v4557 = vmul.f32 1.0, %v4556
    %v4558 = vrcp.pop %v4476
    %v4559 = vmul.f32 %v4476, %v4558
    %v4560 = vsub.f32 1.0, %v4559
    %v4561 = vmul.f32 %v4558, %v4560
    %v4562 = vadd.f32 %v4558, %v4561
    %vm4563 = vweird.f32 %v4476
    %vm4564 = vweird.f32 %v4558
    %vm4565 = vmor %vm4563, %vm4564
    %v4566 = vsel %vm4565, %v4558, %v4562
    %v4567 = vand.u32 2147483647, %v4476
    %vm4568 = vcmp.eq.f32.partialorder %v4567, 8.507059e+37
    %v4569 = vand.u32 %v4476, 2147483648
    %v4570 = vor.u32 1.1754944e-38, %v4569
    %v4571 = vsel %vm4568, %v4570, %v4566
    %v4572 = vmul.f32 1.0, %v4571
    %v4573 = vrcp.pop %v4477
    %v4574 = vmul.f32 %v4477, %v4573
    %v4575 = vsub.f32 1.0, %v4574
    %v4576 = vmul.f32 %v4573, %v4575
    %v4577 = vadd.f32 %v4573, %v4576
    %vm4578 = vweird.f32 %v4477
    %vm4579 = vweird.f32 %v4573
    %vm4580 = vmor %vm4578, %vm4579
    %v4581 = vsel %vm4580, %v4573, %v4577
    %v4582 = vand.u32 2147483647, %v4477
    %vm4583 = vcmp.eq.f32.partialorder %v4582, 8.507059e+37
    %v4584 = vand.u32 %v4477, 2147483648
    %v4585 = vor.u32 1.1754944e-38, %v4584
    %v4586 = vsel %vm4583, %v4585, %v4581
    %v4587 = vmul.f32 1.0, %v4586
    %v4588 = vrcp.pop %v4478
    %v4589 = vmul.f32 %v4478, %v4588
    %v4590 = vsub.f32 1.0, %v4589
    %v4591 = vmul.f32 %v4588, %v4590
    %v4592 = vadd.f32 %v4588, %v4591
    %vm4593 = vweird.f32 %v4478
    %vm4594 = vweird.f32 %v4588
    %vm4595 = vmor %vm4593, %vm4594
    %v4596 = vsel %vm4595, %v4588, %v4592
    %v4597 = vand.u32 2147483647, %v4478
    %vm4598 = vcmp.eq.f32.partialorder %v4597, 8.507059e+37
    %v4599 = vand.u32 %v4478, 2147483648
    %v4600 = vor.u32 1.1754944e-38, %v4599
    %v4601 = vsel %vm4598, %v4600, %v4596
    %v4602 = vmul.f32 1.0, %v4601
    %v4603 = vrcp.pop %v4479
    %v4604 = vmul.f32 %v4479, %v4603
    %v4605 = vsub.f32 1.0, %v4604
    %v4606 = vmul.f32 %v4603, %v4605
    %v4607 = vadd.f32 %v4603, %v4606
    %vm4608 = vweird.f32 %v4479
    %vm4609 = vweird.f32 %v4603
    %vm4610 = vmor %vm4608, %vm4609
    %v4611 = vsel %vm4610, %v4603, %v4607
    %v4612 = vand.u32 2147483647, %v4479
    %vm4613 = vcmp.eq.f32.partialorder %v4612, 8.507059e+37
    %v4614 = vand.u32 %v4479, 2147483648
    %v4615 = vor.u32 1.1754944e-38, %v4614
    %v4616 = vsel %vm4613, %v4615, %v4611
    %v4617 = vmul.f32 1.0, %v4616
    %v4618 = vrcp.pop %v4480
    %v4619 = vmul.f32 %v4480, %v4618
    %v4620 = vsub.f32 1.0, %v4619
    %v4621 = vmul.f32 %v4618, %v4620
    %v4622 = vadd.f32 %v4618, %v4621
    %vm4623 = vweird.f32 %v4480
    %vm4624 = vweird.f32 %v4618
    %vm4625 = vmor %vm4623, %vm4624
    %v4626 = vsel %vm4625, %v4618, %v4622
    %v4627 = vand.u32 2147483647, %v4480
    %vm4628 = vcmp.eq.f32.partialorder %v4627, 8.507059e+37
    %v4629 = vand.u32 %v4480, 2147483648
    %v4630 = vor.u32 1.1754944e-38, %v4629
    %v4631 = vsel %vm4628, %v4630, %v4626
    %v4632 = vmul.f32 1.0, %v4631
    %v4633 = vrcp.pop %v4481
    %v4634 = vmul.f32 %v4481, %v4633
    %v4635 = vsub.f32 1.0, %v4634
    %v4636 = vmul.f32 %v4633, %v4635
    %v4637 = vadd.f32 %v4633, %v4636
    %vm4638 = vweird.f32 %v4481
    %vm4639 = vweird.f32 %v4633
    %vm4640 = vmor %vm4638, %vm4639
    %v4641 = vsel %vm4640, %v4633, %v4637
    %v4642 = vand.u32 2147483647, %v4481
    %vm4643 = vcmp.eq.f32.partialorder %v4642, 8.507059e+37
    %v4644 = vand.u32 %v4481, 2147483648
    %v4645 = vor.u32 1.1754944e-38, %v4644
    %v4646 = vsel %vm4643, %v4645, %v4641
    %v4647 = vmul.f32 1.0, %v4646
    %v4648 = vrcp.pop %v4482
    %v4649 = vmul.f32 %v4482, %v4648
    %v4650 = vsub.f32 1.0, %v4649
    %v4651 = vmul.f32 %v4648, %v4650
    %v4652 = vadd.f32 %v4648, %v4651
    %vm4653 = vweird.f32 %v4482
    %vm4654 = vweird.f32 %v4648
    %vm4655 = vmor %vm4653, %vm4654
    %v4656 = vsel %vm4655, %v4648, %v4652
    %v4657 = vand.u32 2147483647, %v4482
    %vm4658 = vcmp.eq.f32.partialorder %v4657, 8.507059e+37
    %v4659 = vand.u32 %v4482, 2147483648
    %v4660 = vor.u32 1.1754944e-38, %v4659
    %v4661 = vsel %vm4658, %v4660, %v4656
    %v4662 = vmul.f32 1.0, %v4661
    %v4663 = vtanh.pop %v4366
    %v4664 = vtanh.pop %v4368
    %v4665 = vtanh.pop %v4371
    %v4666 = vtanh.pop %v4373
    %v4667 = vmul.f32 %v4557, %v3821
    %v4668 = vmul.f32 %v4572, %v3822
    %v4669 = vmul.f32 %v4587, %v3823
    %v4670 = vmul.f32 %v4602, %v3824
    %v4671 = vmul.f32 %v4497, %v4663
    %v4672 = vmul.f32 %v4512, %v4664
    %v4673 = vmul.f32 %v4527, %v4665
    %v4674 = vmul.f32 %v4542, %v4666
    %v4675 = vadd.f32 %v4667, %v4671
    %v4676 = vadd.f32 %v4668, %v4672
    %v4677 = vadd.f32 %v4669, %v4673
    %v4678 = vadd.f32 %v4670, %v4674
    %v4679 = vtanh.pop %v4675
    %v4680 = vtanh.pop %v4676
    %v4681 = vtanh.pop %v4677
    %v4682 = vtanh.pop %v4678
    %v4683 = vmul.f32 %v4617, %v4679
    %v4684 = vmul.f32 %v4632, %v4680
    %v4685 = vmul.f32 %v4647, %v4681
    %v4686 = vmul.f32 %v4662, %v4682
    %v4687 = vxor.u32 %v4296, 2147483648
    %v4688 = vxor.u32 %v4298, 2147483648
    %v4689 = vxor.u32 %v4301, 2147483648
    %v4690 = vxor.u32 %v4303, 2147483648
    %v4691 = vxor.u32 %v4306, 2147483648
    %v4692 = vxor.u32 %v4308, 2147483648
    %v4693 = vxor.u32 %v4311, 2147483648
    %v4694 = vxor.u32 %v4313, 2147483648
    %v4695 = vxor.u32 %v4316, 2147483648
    %v4696 = vxor.u32 %v4318, 2147483648
    %v4697 = vxor.u32 %v4321, 2147483648
    %v4698 = vxor.u32 %v4323, 2147483648
    %v4699 = vmul.f32 %v4687, 1.442695
    %v4700 = vpow.pop %v4699
    %v4701 = vmul.f32 %v4688, 1.442695
    %v4702 = vpow.pop %v4701
    %v4703 = vmul.f32 %v4689, 1.442695
    %v4704 = vpow.pop %v4703
    %v4705 = vmul.f32 %v4690, 1.442695
    %v4706 = vpow.pop %v4705
    %v4707 = vmul.f32 %v4691, 1.442695
    %v4708 = vpow.pop %v4707
    %v4709 = vmul.f32 %v4692, 1.442695
    %v4710 = vpow.pop %v4709
    %v4711 = vmul.f32 %v4693, 1.442695
    %v4712 = vpow.pop %v4711
    %v4713 = vmul.f32 %v4694, 1.442695
    %v4714 = vpow.pop %v4713
    %v4715 = vmul.f32 %v4695, 1.442695
    %v4716 = vpow.pop %v4715
    %v4717 = vmul.f32 %v4696, 1.442695
    %v4718 = vpow.pop %v4717
    %v4719 = vmul.f32 %v4697, 1.442695
    %v4720 = vpow.pop %v4719
    %v4721 = vmul.f32 %v4698, 1.442695
    %v4722 = vpow.pop %v4721
    %v4723 = vadd.f32 %v4700, 1.0
    %v4724 = vadd.f32 %v4702, 1.0
    %v4725 = vadd.f32 %v4704, 1.0
    %v4726 = vadd.f32 %v4706, 1.0
    %v4727 = vadd.f32 %v4708, 1.0
    %v4728 = vadd.f32 %v4710, 1.0
    %v4729 = vadd.f32 %v4712, 1.0
    %v4730 = vadd.f32 %v4714, 1.0
    %v4731 = vadd.f32 %v4716, 1.0
    %v4732 = vadd.f32 %v4718, 1.0
    %v4733 = vadd.f32 %v4720, 1.0
    %v4734 = vadd.f32 %v4722, 1.0
    %v4735 = vrcp.pop %v4723
    %v4736 = vmul.f32 %v4723, %v4735
    %v4737 = vsub.f32 1.0, %v4736
    %v4738 = vmul.f32 %v4735, %v4737
    %v4739 = vadd.f32 %v4735, %v4738
    %vm4740 = vweird.f32 %v4723
    %vm4741 = vweird.f32 %v4735
    %vm4742 = vmor %vm4740, %vm4741
    %v4743 = vsel %vm4742, %v4735, %v4739
    %v4744 = vand.u32 2147483647, %v4723
    %vm4745 = vcmp.eq.f32.partialorder %v4744, 8.507059e+37
    %v4746 = vand.u32 %v4723, 2147483648
    %v4747 = vor.u32 1.1754944e-38, %v4746
    %v4748 = vsel %vm4745, %v4747, %v4743
    %v4749 = vmul.f32 1.0, %v4748
    %v4750 = vrcp.pop %v4724
    %v4751 = vmul.f32 %v4724, %v4750
    %v4752 = vsub.f32 1.0, %v4751
    %v4753 = vmul.f32 %v4750, %v4752
    %v4754 = vadd.f32 %v4750, %v4753
    %vm4755 = vweird.f32 %v4724
    %vm4756 = vweird.f32 %v4750
    %vm4757 = vmor %vm4755, %vm4756
    %v4758 = vsel %vm4757, %v4750, %v4754
    %v4759 = vand.u32 2147483647, %v4724
    %vm4760 = vcmp.eq.f32.partialorder %v4759, 8.507059e+37
    %v4761 = vand.u32 %v4724, 2147483648
    %v4762 = vor.u32 1.1754944e-38, %v4761
    %v4763 = vsel %vm4760, %v4762, %v4758
    %v4764 = vmul.f32 1.0, %v4763
    %v4765 = vrcp.pop %v4725
    %v4766 = vmul.f32 %v4725, %v4765
    %v4767 = vsub.f32 1.0, %v4766
    %v4768 = vmul.f32 %v4765, %v4767
    %v4769 = vadd.f32 %v4765, %v4768
    %vm4770 = vweird.f32 %v4725
    %vm4771 = vweird.f32 %v4765
    %vm4772 = vmor %vm4770, %vm4771
    %v4773 = vsel %vm4772, %v4765, %v4769
    %v4774 = vand.u32 2147483647, %v4725
    %vm4775 = vcmp.eq.f32.partialorder %v4774, 8.507059e+37
    %v4776 = vand.u32 %v4725, 2147483648
    %v4777 = vor.u32 1.1754944e-38, %v4776
    %v4778 = vsel %vm4775, %v4777, %v4773
    %v4779 = vmul.f32 1.0, %v4778
    %v4780 = vrcp.pop %v4726
    %v4781 = vmul.f32 %v4726, %v4780
    %v4782 = vsub.f32 1.0, %v4781
    %v4783 = vmul.f32 %v4780, %v4782
    %v4784 = vadd.f32 %v4780, %v4783
    %vm4785 = vweird.f32 %v4726
    %vm4786 = vweird.f32 %v4780
    %vm4787 = vmor %vm4785, %vm4786
    %v4788 = vsel %vm4787, %v4780, %v4784
    %v4789 = vand.u32 2147483647, %v4726
    %vm4790 = vcmp.eq.f32.partialorder %v4789, 8.507059e+37
    %v4791 = vand.u32 %v4726, 2147483648
    %v4792 = vor.u32 1.1754944e-38, %v4791
    %v4793 = vsel %vm4790, %v4792, %v4788
    %v4794 = vmul.f32 1.0, %v4793
    %v4795 = vrcp.pop %v4727
    %v4796 = vmul.f32 %v4727, %v4795
    %v4797 = vsub.f32 1.0, %v4796
    %v4798 = vmul.f32 %v4795, %v4797
    %v4799 = vadd.f32 %v4795, %v4798
    %vm4800 = vweird.f32 %v4727
    %vm4801 = vweird.f32 %v4795
    %vm4802 = vmor %vm4800, %vm4801
    %v4803 = vsel %vm4802, %v4795, %v4799
    %v4804 = vand.u32 2147483647, %v4727
    %vm4805 = vcmp.eq.f32.partialorder %v4804, 8.507059e+37
    %v4806 = vand.u32 %v4727, 2147483648
    %v4807 = vor.u32 1.1754944e-38, %v4806
    %v4808 = vsel %vm4805, %v4807, %v4803
    %v4809 = vmul.f32 1.0, %v4808
    %v4810 = vrcp.pop %v4728
    %v4811 = vmul.f32 %v4728, %v4810
    %v4812 = vsub.f32 1.0, %v4811
    %v4813 = vmul.f32 %v4810, %v4812
    %v4814 = vadd.f32 %v4810, %v4813
    %vm4815 = vweird.f32 %v4728
    %vm4816 = vweird.f32 %v4810
    %vm4817 = vmor %vm4815, %vm4816
    %v4818 = vsel %vm4817, %v4810, %v4814
    %v4819 = vand.u32 2147483647, %v4728
    %vm4820 = vcmp.eq.f32.partialorder %v4819, 8.507059e+37
    %v4821 = vand.u32 %v4728, 2147483648
    %v4822 = vor.u32 1.1754944e-38, %v4821
    %v4823 = vsel %vm4820, %v4822, %v4818
    %v4824 = vmul.f32 1.0, %v4823
    %v4825 = vrcp.pop %v4729
    %v4826 = vmul.f32 %v4729, %v4825
    %v4827 = vsub.f32 1.0, %v4826
    %v4828 = vmul.f32 %v4825, %v4827
    %v4829 = vadd.f32 %v4825, %v4828
    %vm4830 = vweird.f32 %v4729
    %vm4831 = vweird.f32 %v4825
    %vm4832 = vmor %vm4830, %vm4831
    %v4833 = vsel %vm4832, %v4825, %v4829
    %v4834 = vand.u32 2147483647, %v4729
    %vm4835 = vcmp.eq.f32.partialorder %v4834, 8.507059e+37
    %v4836 = vand.u32 %v4729, 2147483648
    %v4837 = vor.u32 1.1754944e-38, %v4836
    %v4838 = vsel %vm4835, %v4837, %v4833
    %v4839 = vmul.f32 1.0, %v4838
    %v4840 = vrcp.pop %v4730
    %v4841 = vmul.f32 %v4730, %v4840
    %v4842 = vsub.f32 1.0, %v4841
    %v4843 = vmul.f32 %v4840, %v4842
    %v4844 = vadd.f32 %v4840, %v4843
    %vm4845 = vweird.f32 %v4730
    %vm4846 = vweird.f32 %v4840
    %vm4847 = vmor %vm4845, %vm4846
    %v4848 = vsel %vm4847, %v4840, %v4844
    %v4849 = vand.u32 2147483647, %v4730
    %vm4850 = vcmp.eq.f32.partialorder %v4849, 8.507059e+37
    %v4851 = vand.u32 %v4730, 2147483648
    %v4852 = vor.u32 1.1754944e-38, %v4851
    %v4853 = vsel %vm4850, %v4852, %v4848
    %v4854 = vmul.f32 1.0, %v4853
    %v4855 = vrcp.pop %v4731
    %v4856 = vmul.f32 %v4731, %v4855
    %v4857 = vsub.f32 1.0, %v4856
    %v4858 = vmul.f32 %v4855, %v4857
    %v4859 = vadd.f32 %v4855, %v4858
    %vm4860 = vweird.f32 %v4731
    %vm4861 = vweird.f32 %v4855
    %vm4862 = vmor %vm4860, %vm4861
    %v4863 = vsel %vm4862, %v4855, %v4859
    %v4864 = vand.u32 2147483647, %v4731
    %vm4865 = vcmp.eq.f32.partialorder %v4864, 8.507059e+37
    %v4866 = vand.u32 %v4731, 2147483648
    %v4867 = vor.u32 1.1754944e-38, %v4866
    %v4868 = vsel %vm4865, %v4867, %v4863
    %v4869 = vmul.f32 1.0, %v4868
    %v4870 = vrcp.pop %v4732
    %v4871 = vmul.f32 %v4732, %v4870
    %v4872 = vsub.f32 1.0, %v4871
    %v4873 = vmul.f32 %v4870, %v4872
    %v4874 = vadd.f32 %v4870, %v4873
    %vm4875 = vweird.f32 %v4732
    %vm4876 = vweird.f32 %v4870
    %vm4877 = vmor %vm4875, %vm4876
    %v4878 = vsel %vm4877, %v4870, %v4874
    %v4879 = vand.u32 2147483647, %v4732
    %vm4880 = vcmp.eq.f32.partialorder %v4879, 8.507059e+37
    %v4881 = vand.u32 %v4732, 2147483648
    %v4882 = vor.u32 1.1754944e-38, %v4881
    %v4883 = vsel %vm4880, %v4882, %v4878
    %v4884 = vmul.f32 1.0, %v4883
    %v4885 = vrcp.pop %v4733
    %v4886 = vmul.f32 %v4733, %v4885
    %v4887 = vsub.f32 1.0, %v4886
    %v4888 = vmul.f32 %v4885, %v4887
    %v4889 = vadd.f32 %v4885, %v4888
    %vm4890 = vweird.f32 %v4733
    %vm4891 = vweird.f32 %v4885
    %vm4892 = vmor %vm4890, %vm4891
    %v4893 = vsel %vm4892, %v4885, %v4889
    %v4894 = vand.u32 2147483647, %v4733
    %vm4895 = vcmp.eq.f32.partialorder %v4894, 8.507059e+37
    %v4896 = vand.u32 %v4733, 2147483648
    %v4897 = vor.u32 1.1754944e-38, %v4896
    %v4898 = vsel %vm4895, %v4897, %v4893
    %v4899 = vmul.f32 1.0, %v4898
    %v4900 = vrcp.pop %v4734
    %v4901 = vmul.f32 %v4734, %v4900
    %v4902 = vsub.f32 1.0, %v4901
    %v4903 = vmul.f32 %v4900, %v4902
    %v4904 = vadd.f32 %v4900, %v4903
    %vm4905 = vweird.f32 %v4734
    %vm4906 = vweird.f32 %v4900
    %vm4907 = vmor %vm4905, %vm4906
    %v4908 = vsel %vm4907, %v4900, %v4904
    %v4909 = vand.u32 2147483647, %v4734
    %vm4910 = vcmp.eq.f32.partialorder %v4909, 8.507059e+37
    %v4911 = vand.u32 %v4734, 2147483648
    %v4912 = vor.u32 1.1754944e-38, %v4911
    %v4913 = vsel %vm4910, %v4912, %v4908
    %v4914 = vmul.f32 1.0, %v4913
    %v4915 = vtanh.pop %v4326
    %v4916 = vtanh.pop %v4328
    %v4917 = vtanh.pop %v4331
    %v4918 = vtanh.pop %v4333
    %v4919 = vmul.f32 %v4809, %v4073
    %v4920 = vmul.f32 %v4824, %v4074
    %v4921 = vmul.f32 %v4839, %v4075
    %v4922 = vmul.f32 %v4854, %v4076
    %v4923 = vmul.f32 %v4749, %v4915
    %v4924 = vmul.f32 %v4764, %v4916
    %v4925 = vmul.f32 %v4779, %v4917
    %v4926 = vmul.f32 %v4794, %v4918
    %v4927 = vadd.f32 %v4919, %v4923
    %v4928 = vadd.f32 %v4920, %v4924
    %v4929 = vadd.f32 %v4921, %v4925
    %v4930 = vadd.f32 %v4922, %v4926
    %v4931 = vtanh.pop %v4927
    %v4932 = vtanh.pop %v4928
    %v4933 = vtanh.pop %v4929
    %v4934 = vtanh.pop %v4930
    %v4935 = vmul.f32 %v4869, %v4931
    %v4936 = vmul.f32 %v4884, %v4932
    %v4937 = vmul.f32 %v4899, %v4933
    %v4938 = vmul.f32 %v4914, %v4934
    %v4939 = vadd.f32 %v4406, %v4376
    %v4940 = vadd.f32 %v4408, %v4378
    %v4941 = vadd.f32 %v4411, %v4381
    %v4942 = vadd.f32 %v4413, %v4383
    %v4943 = vadd.f32 %v4416, %v4386
    %v4944 = vadd.f32 %v4418, %v4388
    %v4945 = vadd.f32 %v4421, %v4391
    %v4946 = vadd.f32 %v4423, %v4393
    %v4947 = vxor.u32 %v4939, 2147483648
    %v4948 = vxor.u32 %v4940, 2147483648
    %v4949 = vxor.u32 %v4941, 2147483648
    %v4950 = vxor.u32 %v4942, 2147483648
    %v4951 = vxor.u32 %v4943, 2147483648
    %v4952 = vxor.u32 %v4944, 2147483648
    %v4953 = vxor.u32 %v4945, 2147483648
    %v4954 = vxor.u32 %v4946, 2147483648
    %v4955 = vmul.f32 %v4947, 1.442695
    %v4956 = vpow.pop %v4955
    %v4957 = vmul.f32 %v4948, 1.442695
    %v4958 = vpow.pop %v4957
    %v4959 = vmul.f32 %v4949, 1.442695
    %v4960 = vpow.pop %v4959
    %v4961 = vmul.f32 %v4950, 1.442695
    %v4962 = vpow.pop %v4961
    %v4963 = vmul.f32 %v4951, 1.442695
    %v4964 = vpow.pop %v4963
    %v4965 = vmul.f32 %v4952, 1.442695
    %v4966 = vpow.pop %v4965
    %v4967 = vmul.f32 %v4953, 1.442695
    %v4968 = vpow.pop %v4967
    %v4969 = vmul.f32 %v4954, 1.442695
    %v4970 = vpow.pop %v4969
    %v4971 = vadd.f32 %v4956, 1.0
    %v4972 = vadd.f32 %v4958, 1.0
    %v4973 = vadd.f32 %v4960, 1.0
    %v4974 = vadd.f32 %v4962, 1.0
    %v4975 = vadd.f32 %v4964, 1.0
    %v4976 = vadd.f32 %v4966, 1.0
    %v4977 = vadd.f32 %v4968, 1.0
    %v4978 = vadd.f32 %v4970, 1.0
    %v4979 = vrcp.pop %v4971
    %v4980 = vmul.f32 %v4971, %v4979
    %v4981 = vsub.f32 1.0, %v4980
    %v4982 = vmul.f32 %v4979, %v4981
    %v4983 = vadd.f32 %v4979, %v4982
    %vm4984 = vweird.f32 %v4971
    %vm4985 = vweird.f32 %v4979
    %vm4986 = vmor %vm4984, %vm4985
    %v4987 = vsel %vm4986, %v4979, %v4983
    %v4988 = vand.u32 2147483647, %v4971
    %vm4989 = vcmp.eq.f32.partialorder %v4988, 8.507059e+37
    %v4990 = vand.u32 %v4971, 2147483648
    %v4991 = vor.u32 1.1754944e-38, %v4990
    %v4992 = vsel %vm4989, %v4991, %v4987
    %v4993 = vmul.f32 1.0, %v4992
    %v4994 = vrcp.pop %v4972
    %v4995 = vmul.f32 %v4972, %v4994
    %v4996 = vsub.f32 1.0, %v4995
    %v4997 = vmul.f32 %v4994, %v4996
    %v4998 = vadd.f32 %v4994, %v4997
    %vm4999 = vweird.f32 %v4972
    %vm5000 = vweird.f32 %v4994
    %vm5001 = vmor %vm4999, %vm5000
    %v5002 = vsel %vm5001, %v4994, %v4998
    %v5003 = vand.u32 2147483647, %v4972
    %vm5004 = vcmp.eq.f32.partialorder %v5003, 8.507059e+37
    %v5005 = vand.u32 %v4972, 2147483648
    %v5006 = vor.u32 1.1754944e-38, %v5005
    %v5007 = vsel %vm5004, %v5006, %v5002
    %v5008 = vmul.f32 1.0, %v5007
    %v5009 = vrcp.pop %v4973
    %v5010 = vmul.f32 %v4973, %v5009
    %v5011 = vsub.f32 1.0, %v5010
    %v5012 = vmul.f32 %v5009, %v5011
    %v5013 = vadd.f32 %v5009, %v5012
    %vm5014 = vweird.f32 %v4973
    %vm5015 = vweird.f32 %v5009
    %vm5016 = vmor %vm5014, %vm5015
    %v5017 = vsel %vm5016, %v5009, %v5013
    %v5018 = vand.u32 2147483647, %v4973
    %vm5019 = vcmp.eq.f32.partialorder %v5018, 8.507059e+37
    %v5020 = vand.u32 %v4973, 2147483648
    %v5021 = vor.u32 1.1754944e-38, %v5020
    %v5022 = vsel %vm5019, %v5021, %v5017
    %v5023 = vmul.f32 1.0, %v5022
    %v5024 = vrcp.pop %v4974
    %v5025 = vmul.f32 %v4974, %v5024
    %v5026 = vsub.f32 1.0, %v5025
    %v5027 = vmul.f32 %v5024, %v5026
    %v5028 = vadd.f32 %v5024, %v5027
    %vm5029 = vweird.f32 %v4974
    %vm5030 = vweird.f32 %v5024
    %vm5031 = vmor %vm5029, %vm5030
    %v5032 = vsel %vm5031, %v5024, %v5028
    %v5033 = vand.u32 2147483647, %v4974
    %vm5034 = vcmp.eq.f32.partialorder %v5033, 8.507059e+37
    %v5035 = vand.u32 %v4974, 2147483648
    %v5036 = vor.u32 1.1754944e-38, %v5035
    %v5037 = vsel %vm5034, %v5036, %v5032
    %v5038 = vmul.f32 1.0, %v5037
    %v5039 = vrcp.pop %v4975
    %v5040 = vmul.f32 %v4975, %v5039
    %v5041 = vsub.f32 1.0, %v5040
    %v5042 = vmul.f32 %v5039, %v5041
    %v5043 = vadd.f32 %v5039, %v5042
    %vm5044 = vweird.f32 %v4975
    %vm5045 = vweird.f32 %v5039
    %vm5046 = vmor %vm5044, %vm5045
    %v5047 = vsel %vm5046, %v5039, %v5043
    %v5048 = vand.u32 2147483647, %v4975
    %vm5049 = vcmp.eq.f32.partialorder %v5048, 8.507059e+37
    %v5050 = vand.u32 %v4975, 2147483648
    %v5051 = vor.u32 1.1754944e-38, %v5050
    %v5052 = vsel %vm5049, %v5051, %v5047
    %v5053 = vmul.f32 1.0, %v5052
    %v5054 = vrcp.pop %v4976
    %v5055 = vmul.f32 %v4976, %v5054
    %v5056 = vsub.f32 1.0, %v5055
    %v5057 = vmul.f32 %v5054, %v5056
    %v5058 = vadd.f32 %v5054, %v5057
    %vm5059 = vweird.f32 %v4976
    %vm5060 = vweird.f32 %v5054
    %vm5061 = vmor %vm5059, %vm5060
    %v5062 = vsel %vm5061, %v5054, %v5058
    %v5063 = vand.u32 2147483647, %v4976
    %vm5064 = vcmp.eq.f32.partialorder %v5063, 8.507059e+37
    %v5065 = vand.u32 %v4976, 2147483648
    %v5066 = vor.u32 1.1754944e-38, %v5065
    %v5067 = vsel %vm5064, %v5066, %v5062
    %v5068 = vmul.f32 1.0, %v5067
    %v5069 = vrcp.pop %v4977
    %v5070 = vmul.f32 %v4977, %v5069
    %v5071 = vsub.f32 1.0, %v5070
    %v5072 = vmul.f32 %v5069, %v5071
    %v5073 = vadd.f32 %v5069, %v5072
    %vm5074 = vweird.f32 %v4977
    %vm5075 = vweird.f32 %v5069
    %vm5076 = vmor %vm5074, %vm5075
    %v5077 = vsel %vm5076, %v5069, %v5073
    %v5078 = vand.u32 2147483647, %v4977
    %vm5079 = vcmp.eq.f32.partialorder %v5078, 8.507059e+37
    %v5080 = vand.u32 %v4977, 2147483648
    %v5081 = vor.u32 1.1754944e-38, %v5080
    %v5082 = vsel %vm5079, %v5081, %v5077
    %v5083 = vmul.f32 1.0, %v5082
    %v5084 = vrcp.pop %v4978
    %v5085 = vmul.f32 %v4978, %v5084
    %v5086 = vsub.f32 1.0, %v5085
    %v5087 = vmul.f32 %v5084, %v5086
    %v5088 = vadd.f32 %v5084, %v5087
    %vm5089 = vweird.f32 %v4978
    %vm5090 = vweird.f32 %v5084
    %vm5091 = vmor %vm5089, %vm5090
    %v5092 = vsel %vm5091, %v5084, %v5088
    %v5093 = vand.u32 2147483647, %v4978
    %vm5094 = vcmp.eq.f32.partialorder %v5093, 8.507059e+37
    %v5095 = vand.u32 %v4978, 2147483648
    %v5096 = vor.u32 1.1754944e-38, %v5095
    %v5097 = vsel %vm5094, %v5096, %v5092
    %v5098 = vmul.f32 1.0, %v5097
    %v5099 = vmul.f32 %v4993, %v4396
    %v5100 = vmul.f32 %v5008, %v4398
    %v5101 = vmul.f32 %v5023, %v4401
    %v5102 = vmul.f32 %v5038, %v4403
    %v5103 = vadd.f32 %v4426, %v5099
    %v5104 = vadd.f32 %v4428, %v5100
    %v5105 = vadd.f32 %v4431, %v5101
    %v5106 = vadd.f32 %v4433, %v5102
    %v5107 = vtanh.pop %v5103
    %v5108 = vtanh.pop %v5104
    %v5109 = vtanh.pop %v5105
    %v5110 = vtanh.pop %v5106
    %v5111 = vsub.f32 1.0, %v5053
    %v5112 = vsub.f32 1.0, %v5068
    %v5113 = vsub.f32 1.0, %v5083
    %v5114 = vsub.f32 1.0, %v5098
    %v5115 = vmul.f32 %v5111, %v5107
    %v5116 = vmul.f32 %v5112, %v5108
    %v5117 = vmul.f32 %v5113, %v5109
    %v5118 = vmul.f32 %v5114, %v5110
    %v5119 = vmul.f32 %v5053, %v4269
    %v5120 = vmul.f32 %v5068, %v4270
    %v5121 = vmul.f32 %v5083, %v4271
    %v5122 = vmul.f32 %v5098, %v4272
    %v5123 = vadd.f32 %v5115, %v5119
    %v5124 = vadd.f32 %v5116, %v5120
    %v5125 = vadd.f32 %v5117, %v5121
    %v5126 = vadd.f32 %v5118, %v5122
    %s5127 = scalar_lea.vmem [#allocation3], 192
    %v5128 = vld [vmem:[%s5127] sm:$0xff]
    %v5129 = vld [vmem:[%s5127 + $0x8] sm:$0xff]
    %v5130 = vld [vmem:[%s5127 + $0x10] sm:$0xff]
    %v5131 = vld [vmem:[%s5127 + $0x18] sm:$0xff]
    %v5132 = vpack.c.bf16 %v4936, %v4935
    %v5133 = vpack.c.bf16 %v4938, %v4937
    %v5134 = vpack.c.bf16 %v4684, %v4683
    %v5135 = vpack.c.bf16 %v4686, %v4685
    %v5136 = vpack.c.bf16 %v5124, %v5123
    %v5137 = vpack.c.bf16 %v5126, %v5125
    %v5138 = vpack.c.bf16 %v5129, %v5128
    %v5139 = vpack.c.bf16 %v5131, %v5130
    %5140 = vmatpush.bf16.msra.mxu0 %v5139
    %5141 = vmatpush.bf16.msra.mxu0 %v5138
    %5142 = vmatpush.bf16.msra.mxu0 %v5137
    %5143 = vmatpush.bf16.msra.mxu0 %v5136
    %5144 = vmatpush.bf16.msra.mxu0 %v5135
    %5145 = vmatpush.bf16.msra.mxu0 %v5134
    %5146 = vmatpush.bf16.msra.mxu0 %v5133
    %5147 = vmatpush.bf16.msra.mxu0 %v5132
    %5148 = vmatmul.bf16.gmra.mxu0 %v230
    %v5149 = vpop.f32.mrf.mxu0
    %v5150 = vadd.f32 0.0, %v5149
    %v5151 = vpop.f32.mrf.mxu0
    %v5152 = vadd.f32 0.0, %v5151
    %5153 = vmatmul.bf16.gmra.mxu0 %v231
    %v5154 = vpop.f32.mrf.mxu0
    %v5155 = vadd.f32 0.0, %v5154
    %v5156 = vpop.f32.mrf.mxu0
    %v5157 = vadd.f32 0.0, %v5156
    %5158 = vmatmul.bf16.gmra.mxu0 %v232
    %v5159 = vpop.f32.mrf.mxu0
    %v5160 = vadd.f32 0.0, %v5159
    %v5161 = vpop.f32.mrf.mxu0
    %v5162 = vadd.f32 0.0, %v5161
    %5163 = vmatmul.bf16.gmra.mxu0 %v233
    %v5164 = vpop.f32.mrf.mxu0
    %v5165 = vadd.f32 0.0, %v5164
    %v5166 = vpop.f32.mrf.mxu0
    %v5167 = vadd.f32 0.0, %v5166
    %5168 = vmatmul.bf16.gmra.mxu0 %v234
    %v5169 = vpop.f32.mrf.mxu0
    %v5170 = vadd.f32 0.0, %v5169
    %v5171 = vpop.f32.mrf.mxu0
    %v5172 = vadd.f32 0.0, %v5171
    %5173 = vmatmul.bf16.gmra.mxu0 %v235
    %v5174 = vpop.f32.mrf.mxu0
    %v5175 = vadd.f32 0.0, %v5174
    %v5176 = vpop.f32.mrf.mxu0
    %v5177 = vadd.f32 0.0, %v5176
    %5178 = vmatmul.bf16.gmra.mxu0 %v236
    %v5179 = vpop.f32.mrf.mxu0
    %v5180 = vadd.f32 0.0, %v5179
    %v5181 = vpop.f32.mrf.mxu0
    %v5182 = vadd.f32 0.0, %v5181
    %5183 = vmatmul.bf16.gmra.mxu0 %v237
    %v5184 = vpop.f32.mrf.mxu0
    %v5185 = vadd.f32 0.0, %v5184
    %v5186 = vpop.f32.mrf.mxu0
    %v5187 = vadd.f32 0.0, %v5186
    %5188 = vmatmul.bf16.gmra.mxu0 %v238
    %v5189 = vpop.f32.mrf.mxu0
    %v5190 = vadd.f32 0.0, %v5189
    %v5191 = vpop.f32.mrf.mxu0
    %v5192 = vadd.f32 0.0, %v5191
    %5193 = vmatmul.bf16.gmra.mxu0 %v239
    %v5194 = vpop.f32.mrf.mxu0
    %v5195 = vadd.f32 0.0, %v5194
    %v5196 = vpop.f32.mrf.mxu0
    %v5197 = vadd.f32 0.0, %v5196
    %5198 = vmatmul.bf16.gmra.mxu0 %v240
    %v5199 = vpop.f32.mrf.mxu0
    %v5200 = vadd.f32 0.0, %v5199
    %v5201 = vpop.f32.mrf.mxu0
    %v5202 = vadd.f32 0.0, %v5201
    %5203 = vmatmul.bf16.gmra.mxu0 %v241
    %v5204 = vpop.f32.mrf.mxu0
    %v5205 = vadd.f32 0.0, %v5204
    %v5206 = vpop.f32.mrf.mxu0
    %v5207 = vadd.f32 0.0, %v5206
    %5208 = vmatmul.bf16.gmra.mxu0 %v242
    %v5209 = vpop.f32.mrf.mxu0
    %v5210 = vadd.f32 0.0, %v5209
    %v5211 = vpop.f32.mrf.mxu0
    %v5212 = vadd.f32 0.0, %v5211
    %5213 = vmatmul.bf16.gmra.mxu0 %v243
    %v5214 = vpop.f32.mrf.mxu0
    %v5215 = vadd.f32 0.0, %v5214
    %v5216 = vpop.f32.mrf.mxu0
    %v5217 = vadd.f32 0.0, %v5216
    %5218 = vmatmul.bf16.gmra.mxu0 %v244
    %v5219 = vpop.f32.mrf.mxu0
    %v5220 = vadd.f32 0.0, %v5219
    %v5221 = vpop.f32.mrf.mxu0
    %v5222 = vadd.f32 0.0, %v5221
    %5223 = vmatmul.bf16.gmra.mxu0 %v245
    %v5224 = vpop.f32.mrf.mxu0
    %v5225 = vadd.f32 0.0, %v5224
    %v5226 = vpop.f32.mrf.mxu0
    %v5227 = vadd.f32 0.0, %v5226
    %5228 = vmatmul.bf16.gmra.mxu0 %v246
    %v5229 = vpop.f32.mrf.mxu0
    %v5230 = vadd.f32 0.0, %v5229
    %v5231 = vpop.f32.mrf.mxu0
    %v5232 = vadd.f32 0.0, %v5231
    %5233 = vmatmul.bf16.gmra.mxu0 %v247
    %v5234 = vpop.f32.mrf.mxu0
    %v5235 = vadd.f32 0.0, %v5234
    %v5236 = vpop.f32.mrf.mxu0
    %v5237 = vadd.f32 0.0, %v5236
    %5238 = vmatmul.bf16.gmra.mxu0 %v248
    %v5239 = vpop.f32.mrf.mxu0
    %v5240 = vadd.f32 0.0, %v5239
    %v5241 = vpop.f32.mrf.mxu0
    %v5242 = vadd.f32 0.0, %v5241
    %5243 = vmatmul.bf16.gmra.mxu0 %v249
    %v5244 = vpop.f32.mrf.mxu0
    %v5245 = vadd.f32 0.0, %v5244
    %v5246 = vpop.f32.mrf.mxu0
    %v5247 = vadd.f32 0.0, %v5246
    %5248 = vmatmul.bf16.gmra.mxu0 %v250
    %v5249 = vpop.f32.mrf.mxu0
    %v5250 = vadd.f32 0.0, %v5249
    %v5251 = vpop.f32.mrf.mxu0
    %v5252 = vadd.f32 0.0, %v5251
    %5253 = vmatmul.bf16.gmra.mxu0 %v251
    %v5254 = vpop.f32.mrf.mxu0
    %v5255 = vadd.f32 0.0, %v5254
    %v5256 = vpop.f32.mrf.mxu0
    %v5257 = vadd.f32 0.0, %v5256
    %5258 = vmatmul.bf16.gmra.mxu0 %v252
    %v5259 = vpop.f32.mrf.mxu0
    %v5260 = vadd.f32 0.0, %v5259
    %v5261 = vpop.f32.mrf.mxu0
    %v5262 = vadd.f32 0.0, %v5261
    %5263 = vmatmul.bf16.gmra.mxu0 %v253
    %v5264 = vpop.f32.mrf.mxu0
    %v5265 = vadd.f32 0.0, %v5264
    %v5266 = vpop.f32.mrf.mxu0
    %v5267 = vadd.f32 0.0, %v5266
    %5268 = vmatmul.bf16.gmra.mxu0 %v254
    %v5269 = vpop.f32.mrf.mxu0
    %v5270 = vadd.f32 0.0, %v5269
    %v5271 = vpop.f32.mrf.mxu0
    %v5272 = vadd.f32 0.0, %v5271
    %5273 = vmatmul.bf16.gmra.mxu0 %v255
    %v5274 = vpop.f32.mrf.mxu0
    %v5275 = vadd.f32 0.0, %v5274
    %v5276 = vpop.f32.mrf.mxu0
    %v5277 = vadd.f32 0.0, %v5276
    %5278 = vmatmul.bf16.gmra.mxu0 %v256
    %v5279 = vpop.f32.mrf.mxu0
    %v5280 = vadd.f32 0.0, %v5279
    %v5281 = vpop.f32.mrf.mxu0
    %v5282 = vadd.f32 0.0, %v5281
    %5283 = vmatmul.bf16.gmra.mxu0 %v257
    %v5284 = vpop.f32.mrf.mxu0
    %v5285 = vadd.f32 0.0, %v5284
    %v5286 = vpop.f32.mrf.mxu0
    %v5287 = vadd.f32 0.0, %v5286
    %5288 = vdwg.mxu0
    %v5289 = vxor.u32 %v5190, 2147483648
    %v5290 = vxor.u32 %v5192, 2147483648
    %v5291 = vxor.u32 %v5195, 2147483648
    %v5292 = vxor.u32 %v5197, 2147483648
    %v5293 = vxor.u32 %v5200, 2147483648
    %v5294 = vxor.u32 %v5202, 2147483648
    %v5295 = vxor.u32 %v5205, 2147483648
    %v5296 = vxor.u32 %v5207, 2147483648
    %v5297 = vxor.u32 %v5210, 2147483648
    %v5298 = vxor.u32 %v5212, 2147483648
    %v5299 = vxor.u32 %v5215, 2147483648
    %v5300 = vxor.u32 %v5217, 2147483648
    %v5301 = vmul.f32 %v5289, 1.442695
    %v5302 = vpow.pop %v5301
    %v5303 = vmul.f32 %v5290, 1.442695
    %v5304 = vpow.pop %v5303
    %v5305 = vmul.f32 %v5291, 1.442695
    %v5306 = vpow.pop %v5305
    %v5307 = vmul.f32 %v5292, 1.442695
    %v5308 = vpow.pop %v5307
    %v5309 = vmul.f32 %v5293, 1.442695
    %v5310 = vpow.pop %v5309
    %v5311 = vmul.f32 %v5294, 1.442695
    %v5312 = vpow.pop %v5311
    %v5313 = vmul.f32 %v5295, 1.442695
    %v5314 = vpow.pop %v5313
    %v5315 = vmul.f32 %v5296, 1.442695
    %v5316 = vpow.pop %v5315
    %v5317 = vmul.f32 %v5297, 1.442695
    %v5318 = vpow.pop %v5317
    %v5319 = vmul.f32 %v5298, 1.442695
    %v5320 = vpow.pop %v5319
    %v5321 = vmul.f32 %v5299, 1.442695
    %v5322 = vpow.pop %v5321
    %v5323 = vmul.f32 %v5300, 1.442695
    %v5324 = vpow.pop %v5323
    %v5325 = vadd.f32 %v5302, 1.0
    %v5326 = vadd.f32 %v5304, 1.0
    %v5327 = vadd.f32 %v5306, 1.0
    %v5328 = vadd.f32 %v5308, 1.0
    %v5329 = vadd.f32 %v5310, 1.0
    %v5330 = vadd.f32 %v5312, 1.0
    %v5331 = vadd.f32 %v5314, 1.0
    %v5332 = vadd.f32 %v5316, 1.0
    %v5333 = vadd.f32 %v5318, 1.0
    %v5334 = vadd.f32 %v5320, 1.0
    %v5335 = vadd.f32 %v5322, 1.0
    %v5336 = vadd.f32 %v5324, 1.0
    %v5337 = vrcp.pop %v5325
    %v5338 = vmul.f32 %v5325, %v5337
    %v5339 = vsub.f32 1.0, %v5338
    %v5340 = vmul.f32 %v5337, %v5339
    %v5341 = vadd.f32 %v5337, %v5340
    %vm5342 = vweird.f32 %v5325
    %vm5343 = vweird.f32 %v5337
    %vm5344 = vmor %vm5342, %vm5343
    %v5345 = vsel %vm5344, %v5337, %v5341
    %v5346 = vand.u32 2147483647, %v5325
    %vm5347 = vcmp.eq.f32.partialorder %v5346, 8.507059e+37
    %v5348 = vand.u32 %v5325, 2147483648
    %v5349 = vor.u32 1.1754944e-38, %v5348
    %v5350 = vsel %vm5347, %v5349, %v5345
    %v5351 = vmul.f32 1.0, %v5350
    %v5352 = vrcp.pop %v5326
    %v5353 = vmul.f32 %v5326, %v5352
    %v5354 = vsub.f32 1.0, %v5353
    %v5355 = vmul.f32 %v5352, %v5354
    %v5356 = vadd.f32 %v5352, %v5355
    %vm5357 = vweird.f32 %v5326
    %vm5358 = vweird.f32 %v5352
    %vm5359 = vmor %vm5357, %vm5358
    %v5360 = vsel %vm5359, %v5352, %v5356
    %v5361 = vand.u32 2147483647, %v5326
    %vm5362 = vcmp.eq.f32.partialorder %v5361, 8.507059e+37
    %v5363 = vand.u32 %v5326, 2147483648
    %v5364 = vor.u32 1.1754944e-38, %v5363
    %v5365 = vsel %vm5362, %v5364, %v5360
    %v5366 = vmul.f32 1.0, %v5365
    %v5367 = vrcp.pop %v5327
    %v5368 = vmul.f32 %v5327, %v5367
    %v5369 = vsub.f32 1.0, %v5368
    %v5370 = vmul.f32 %v5367, %v5369
    %v5371 = vadd.f32 %v5367, %v5370
    %vm5372 = vweird.f32 %v5327
    %vm5373 = vweird.f32 %v5367
    %vm5374 = vmor %vm5372, %vm5373
    %v5375 = vsel %vm5374, %v5367, %v5371
    %v5376 = vand.u32 2147483647, %v5327
    %vm5377 = vcmp.eq.f32.partialorder %v5376, 8.507059e+37
    %v5378 = vand.u32 %v5327, 2147483648
    %v5379 = vor.u32 1.1754944e-38, %v5378
    %v5380 = vsel %vm5377, %v5379, %v5375
    %v5381 = vmul.f32 1.0, %v5380
    %v5382 = vrcp.pop %v5328
    %v5383 = vmul.f32 %v5328, %v5382
    %v5384 = vsub.f32 1.0, %v5383
    %v5385 = vmul.f32 %v5382, %v5384
    %v5386 = vadd.f32 %v5382, %v5385
    %vm5387 = vweird.f32 %v5328
    %vm5388 = vweird.f32 %v5382
    %vm5389 = vmor %vm5387, %vm5388
    %v5390 = vsel %vm5389, %v5382, %v5386
    %v5391 = vand.u32 2147483647, %v5328
    %vm5392 = vcmp.eq.f32.partialorder %v5391, 8.507059e+37
    %v5393 = vand.u32 %v5328, 2147483648
    %v5394 = vor.u32 1.1754944e-38, %v5393
    %v5395 = vsel %vm5392, %v5394, %v5390
    %v5396 = vmul.f32 1.0, %v5395
    %v5397 = vrcp.pop %v5329
    %v5398 = vmul.f32 %v5329, %v5397
    %v5399 = vsub.f32 1.0, %v5398
    %v5400 = vmul.f32 %v5397, %v5399
    %v5401 = vadd.f32 %v5397, %v5400
    %vm5402 = vweird.f32 %v5329
    %vm5403 = vweird.f32 %v5397
    %vm5404 = vmor %vm5402, %vm5403
    %v5405 = vsel %vm5404, %v5397, %v5401
    %v5406 = vand.u32 2147483647, %v5329
    %vm5407 = vcmp.eq.f32.partialorder %v5406, 8.507059e+37
    %v5408 = vand.u32 %v5329, 2147483648
    %v5409 = vor.u32 1.1754944e-38, %v5408
    %v5410 = vsel %vm5407, %v5409, %v5405
    %v5411 = vmul.f32 1.0, %v5410
    %v5412 = vrcp.pop %v5330
    %v5413 = vmul.f32 %v5330, %v5412
    %v5414 = vsub.f32 1.0, %v5413
    %v5415 = vmul.f32 %v5412, %v5414
    %v5416 = vadd.f32 %v5412, %v5415
    %vm5417 = vweird.f32 %v5330
    %vm5418 = vweird.f32 %v5412
    %vm5419 = vmor %vm5417, %vm5418
    %v5420 = vsel %vm5419, %v5412, %v5416
    %v5421 = vand.u32 2147483647, %v5330
    %vm5422 = vcmp.eq.f32.partialorder %v5421, 8.507059e+37
    %v5423 = vand.u32 %v5330, 2147483648
    %v5424 = vor.u32 1.1754944e-38, %v5423
    %v5425 = vsel %vm5422, %v5424, %v5420
    %v5426 = vmul.f32 1.0, %v5425
    %v5427 = vrcp.pop %v5331
    %v5428 = vmul.f32 %v5331, %v5427
    %v5429 = vsub.f32 1.0, %v5428
    %v5430 = vmul.f32 %v5427, %v5429
    %v5431 = vadd.f32 %v5427, %v5430
    %vm5432 = vweird.f32 %v5331
    %vm5433 = vweird.f32 %v5427
    %vm5434 = vmor %vm5432, %vm5433
    %v5435 = vsel %vm5434, %v5427, %v5431
    %v5436 = vand.u32 2147483647, %v5331
    %vm5437 = vcmp.eq.f32.partialorder %v5436, 8.507059e+37
    %v5438 = vand.u32 %v5331, 2147483648
    %v5439 = vor.u32 1.1754944e-38, %v5438
    %v5440 = vsel %vm5437, %v5439, %v5435
    %v5441 = vmul.f32 1.0, %v5440
    %v5442 = vrcp.pop %v5332
    %v5443 = vmul.f32 %v5332, %v5442
    %v5444 = vsub.f32 1.0, %v5443
    %v5445 = vmul.f32 %v5442, %v5444
    %v5446 = vadd.f32 %v5442, %v5445
    %vm5447 = vweird.f32 %v5332
    %vm5448 = vweird.f32 %v5442
    %vm5449 = vmor %vm5447, %vm5448
    %v5450 = vsel %vm5449, %v5442, %v5446
    %v5451 = vand.u32 2147483647, %v5332
    %vm5452 = vcmp.eq.f32.partialorder %v5451, 8.507059e+37
    %v5453 = vand.u32 %v5332, 2147483648
    %v5454 = vor.u32 1.1754944e-38, %v5453
    %v5455 = vsel %vm5452, %v5454, %v5450
    %v5456 = vmul.f32 1.0, %v5455
    %v5457 = vrcp.pop %v5333
    %v5458 = vmul.f32 %v5333, %v5457
    %v5459 = vsub.f32 1.0, %v5458
    %v5460 = vmul.f32 %v5457, %v5459
    %v5461 = vadd.f32 %v5457, %v5460
    %vm5462 = vweird.f32 %v5333
    %vm5463 = vweird.f32 %v5457
    %vm5464 = vmor %vm5462, %vm5463
    %v5465 = vsel %vm5464, %v5457, %v5461
    %v5466 = vand.u32 2147483647, %v5333
    %vm5467 = vcmp.eq.f32.partialorder %v5466, 8.507059e+37
    %v5468 = vand.u32 %v5333, 2147483648
    %v5469 = vor.u32 1.1754944e-38, %v5468
    %v5470 = vsel %vm5467, %v5469, %v5465
    %v5471 = vmul.f32 1.0, %v5470
    %v5472 = vrcp.pop %v5334
    %v5473 = vmul.f32 %v5334, %v5472
    %v5474 = vsub.f32 1.0, %v5473
    %v5475 = vmul.f32 %v5472, %v5474
    %v5476 = vadd.f32 %v5472, %v5475
    %vm5477 = vweird.f32 %v5334
    %vm5478 = vweird.f32 %v5472
    %vm5479 = vmor %vm5477, %vm5478
    %v5480 = vsel %vm5479, %v5472, %v5476
    %v5481 = vand.u32 2147483647, %v5334
    %vm5482 = vcmp.eq.f32.partialorder %v5481, 8.507059e+37
    %v5483 = vand.u32 %v5334, 2147483648
    %v5484 = vor.u32 1.1754944e-38, %v5483
    %v5485 = vsel %vm5482, %v5484, %v5480
    %v5486 = vmul.f32 1.0, %v5485
    %v5487 = vrcp.pop %v5335
    %v5488 = vmul.f32 %v5335, %v5487
    %v5489 = vsub.f32 1.0, %v5488
    %v5490 = vmul.f32 %v5487, %v5489
    %v5491 = vadd.f32 %v5487, %v5490
    %vm5492 = vweird.f32 %v5335
    %vm5493 = vweird.f32 %v5487
    %vm5494 = vmor %vm5492, %vm5493
    %v5495 = vsel %vm5494, %v5487, %v5491
    %v5496 = vand.u32 2147483647, %v5335
    %vm5497 = vcmp.eq.f32.partialorder %v5496, 8.507059e+37
    %v5498 = vand.u32 %v5335, 2147483648
    %v5499 = vor.u32 1.1754944e-38, %v5498
    %v5500 = vsel %vm5497, %v5499, %v5495
    %v5501 = vmul.f32 1.0, %v5500
    %v5502 = vrcp.pop %v5336
    %v5503 = vmul.f32 %v5336, %v5502
    %v5504 = vsub.f32 1.0, %v5503
    %v5505 = vmul.f32 %v5502, %v5504
    %v5506 = vadd.f32 %v5502, %v5505
    %vm5507 = vweird.f32 %v5336
    %vm5508 = vweird.f32 %v5502
    %vm5509 = vmor %vm5507, %vm5508
    %v5510 = vsel %vm5509, %v5502, %v5506
    %v5511 = vand.u32 2147483647, %v5336
    %vm5512 = vcmp.eq.f32.partialorder %v5511, 8.507059e+37
    %v5513 = vand.u32 %v5336, 2147483648
    %v5514 = vor.u32 1.1754944e-38, %v5513
    %v5515 = vsel %vm5512, %v5514, %v5510
    %v5516 = vmul.f32 1.0, %v5515
    %v5517 = vtanh.pop %v5220
    %v5518 = vtanh.pop %v5222
    %v5519 = vtanh.pop %v5225
    %v5520 = vtanh.pop %v5227
    %v5521 = vmul.f32 %v5411, %v4675
    %v5522 = vmul.f32 %v5426, %v4676
    %v5523 = vmul.f32 %v5441, %v4677
    %v5524 = vmul.f32 %v5456, %v4678
    %v5525 = vmul.f32 %v5351, %v5517
    %v5526 = vmul.f32 %v5366, %v5518
    %v5527 = vmul.f32 %v5381, %v5519
    %v5528 = vmul.f32 %v5396, %v5520
    %v5529 = vadd.f32 %v5521, %v5525
    %v5530 = vadd.f32 %v5522, %v5526
    %v5531 = vadd.f32 %v5523, %v5527
    %v5532 = vadd.f32 %v5524, %v5528
    %v5533 = vtanh.pop %v5529
    %v5534 = vtanh.pop %v5530
    %v5535 = vtanh.pop %v5531
    %v5536 = vtanh.pop %v5532
    %v5537 = vmul.f32 %v5471, %v5533
    %v5538 = vmul.f32 %v5486, %v5534
    %v5539 = vmul.f32 %v5501, %v5535
    %v5540 = vmul.f32 %v5516, %v5536
    %v5541 = vxor.u32 %v5150, 2147483648
    %v5542 = vxor.u32 %v5152, 2147483648
    %v5543 = vxor.u32 %v5155, 2147483648
    %v5544 = vxor.u32 %v5157, 2147483648
    %v5545 = vxor.u32 %v5160, 2147483648
    %v5546 = vxor.u32 %v5162, 2147483648
    %v5547 = vxor.u32 %v5165, 2147483648
    %v5548 = vxor.u32 %v5167, 2147483648
    %v5549 = vxor.u32 %v5170, 2147483648
    %v5550 = vxor.u32 %v5172, 2147483648
    %v5551 = vxor.u32 %v5175, 2147483648
    %v5552 = vxor.u32 %v5177, 2147483648
    %v5553 = vmul.f32 %v5541, 1.442695
    %v5554 = vpow.pop %v5553
    %v5555 = vmul.f32 %v5542, 1.442695
    %v5556 = vpow.pop %v5555
    %v5557 = vmul.f32 %v5543, 1.442695
    %v5558 = vpow.pop %v5557
    %v5559 = vmul.f32 %v5544, 1.442695
    %v5560 = vpow.pop %v5559
    %v5561 = vmul.f32 %v5545, 1.442695
    %v5562 = vpow.pop %v5561
    %v5563 = vmul.f32 %v5546, 1.442695
    %v5564 = vpow.pop %v5563
    %v5565 = vmul.f32 %v5547, 1.442695
    %v5566 = vpow.pop %v5565
    %v5567 = vmul.f32 %v5548, 1.442695
    %v5568 = vpow.pop %v5567
    %v5569 = vmul.f32 %v5549, 1.442695
    %v5570 = vpow.pop %v5569
    %v5571 = vmul.f32 %v5550, 1.442695
    %v5572 = vpow.pop %v5571
    %v5573 = vmul.f32 %v5551, 1.442695
    %v5574 = vpow.pop %v5573
    %v5575 = vmul.f32 %v5552, 1.442695
    %v5576 = vpow.pop %v5575
    %v5577 = vadd.f32 %v5554, 1.0
    %v5578 = vadd.f32 %v5556, 1.0
    %v5579 = vadd.f32 %v5558, 1.0
    %v5580 = vadd.f32 %v5560, 1.0
    %v5581 = vadd.f32 %v5562, 1.0
    %v5582 = vadd.f32 %v5564, 1.0
    %v5583 = vadd.f32 %v5566, 1.0
    %v5584 = vadd.f32 %v5568, 1.0
    %v5585 = vadd.f32 %v5570, 1.0
    %v5586 = vadd.f32 %v5572, 1.0
    %v5587 = vadd.f32 %v5574, 1.0
    %v5588 = vadd.f32 %v5576, 1.0
    %v5589 = vrcp.pop %v5577
    %v5590 = vmul.f32 %v5577, %v5589
    %v5591 = vsub.f32 1.0, %v5590
    %v5592 = vmul.f32 %v5589, %v5591
    %v5593 = vadd.f32 %v5589, %v5592
    %vm5594 = vweird.f32 %v5577
    %vm5595 = vweird.f32 %v5589
    %vm5596 = vmor %vm5594, %vm5595
    %v5597 = vsel %vm5596, %v5589, %v5593
    %v5598 = vand.u32 2147483647, %v5577
    %vm5599 = vcmp.eq.f32.partialorder %v5598, 8.507059e+37
    %v5600 = vand.u32 %v5577, 2147483648
    %v5601 = vor.u32 1.1754944e-38, %v5600
    %v5602 = vsel %vm5599, %v5601, %v5597
    %v5603 = vmul.f32 1.0, %v5602
    %v5604 = vrcp.pop %v5578
    %v5605 = vmul.f32 %v5578, %v5604
    %v5606 = vsub.f32 1.0, %v5605
    %v5607 = vmul.f32 %v5604, %v5606
    %v5608 = vadd.f32 %v5604, %v5607
    %vm5609 = vweird.f32 %v5578
    %vm5610 = vweird.f32 %v5604
    %vm5611 = vmor %vm5609, %vm5610
    %v5612 = vsel %vm5611, %v5604, %v5608
    %v5613 = vand.u32 2147483647, %v5578
    %vm5614 = vcmp.eq.f32.partialorder %v5613, 8.507059e+37
    %v5615 = vand.u32 %v5578, 2147483648
    %v5616 = vor.u32 1.1754944e-38, %v5615
    %v5617 = vsel %vm5614, %v5616, %v5612
    %v5618 = vmul.f32 1.0, %v5617
    %v5619 = vrcp.pop %v5579
    %v5620 = vmul.f32 %v5579, %v5619
    %v5621 = vsub.f32 1.0, %v5620
    %v5622 = vmul.f32 %v5619, %v5621
    %v5623 = vadd.f32 %v5619, %v5622
    %vm5624 = vweird.f32 %v5579
    %vm5625 = vweird.f32 %v5619
    %vm5626 = vmor %vm5624, %vm5625
    %v5627 = vsel %vm5626, %v5619, %v5623
    %v5628 = vand.u32 2147483647, %v5579
    %vm5629 = vcmp.eq.f32.partialorder %v5628, 8.507059e+37
    %v5630 = vand.u32 %v5579, 2147483648
    %v5631 = vor.u32 1.1754944e-38, %v5630
    %v5632 = vsel %vm5629, %v5631, %v5627
    %v5633 = vmul.f32 1.0, %v5632
    %v5634 = vrcp.pop %v5580
    %v5635 = vmul.f32 %v5580, %v5634
    %v5636 = vsub.f32 1.0, %v5635
    %v5637 = vmul.f32 %v5634, %v5636
    %v5638 = vadd.f32 %v5634, %v5637
    %vm5639 = vweird.f32 %v5580
    %vm5640 = vweird.f32 %v5634
    %vm5641 = vmor %vm5639, %vm5640
    %v5642 = vsel %vm5641, %v5634, %v5638
    %v5643 = vand.u32 2147483647, %v5580
    %vm5644 = vcmp.eq.f32.partialorder %v5643, 8.507059e+37
    %v5645 = vand.u32 %v5580, 2147483648
    %v5646 = vor.u32 1.1754944e-38, %v5645
    %v5647 = vsel %vm5644, %v5646, %v5642
    %v5648 = vmul.f32 1.0, %v5647
    %v5649 = vrcp.pop %v5581
    %v5650 = vmul.f32 %v5581, %v5649
    %v5651 = vsub.f32 1.0, %v5650
    %v5652 = vmul.f32 %v5649, %v5651
    %v5653 = vadd.f32 %v5649, %v5652
    %vm5654 = vweird.f32 %v5581
    %vm5655 = vweird.f32 %v5649
    %vm5656 = vmor %vm5654, %vm5655
    %v5657 = vsel %vm5656, %v5649, %v5653
    %v5658 = vand.u32 2147483647, %v5581
    %vm5659 = vcmp.eq.f32.partialorder %v5658, 8.507059e+37
    %v5660 = vand.u32 %v5581, 2147483648
    %v5661 = vor.u32 1.1754944e-38, %v5660
    %v5662 = vsel %vm5659, %v5661, %v5657
    %v5663 = vmul.f32 1.0, %v5662
    %v5664 = vrcp.pop %v5582
    %v5665 = vmul.f32 %v5582, %v5664
    %v5666 = vsub.f32 1.0, %v5665
    %v5667 = vmul.f32 %v5664, %v5666
    %v5668 = vadd.f32 %v5664, %v5667
    %vm5669 = vweird.f32 %v5582
    %vm5670 = vweird.f32 %v5664
    %vm5671 = vmor %vm5669, %vm5670
    %v5672 = vsel %vm5671, %v5664, %v5668
    %v5673 = vand.u32 2147483647, %v5582
    %vm5674 = vcmp.eq.f32.partialorder %v5673, 8.507059e+37
    %v5675 = vand.u32 %v5582, 2147483648
    %v5676 = vor.u32 1.1754944e-38, %v5675
    %v5677 = vsel %vm5674, %v5676, %v5672
    %v5678 = vmul.f32 1.0, %v5677
    %v5679 = vrcp.pop %v5583
    %v5680 = vmul.f32 %v5583, %v5679
    %v5681 = vsub.f32 1.0, %v5680
    %v5682 = vmul.f32 %v5679, %v5681
    %v5683 = vadd.f32 %v5679, %v5682
    %vm5684 = vweird.f32 %v5583
    %vm5685 = vweird.f32 %v5679
    %vm5686 = vmor %vm5684, %vm5685
    %v5687 = vsel %vm5686, %v5679, %v5683
    %v5688 = vand.u32 2147483647, %v5583
    %vm5689 = vcmp.eq.f32.partialorder %v5688, 8.507059e+37
    %v5690 = vand.u32 %v5583, 2147483648
    %v5691 = vor.u32 1.1754944e-38, %v5690
    %v5692 = vsel %vm5689, %v5691, %v5687
    %v5693 = vmul.f32 1.0, %v5692
    %v5694 = vrcp.pop %v5584
    %v5695 = vmul.f32 %v5584, %v5694
    %v5696 = vsub.f32 1.0, %v5695
    %v5697 = vmul.f32 %v5694, %v5696
    %v5698 = vadd.f32 %v5694, %v5697
    %vm5699 = vweird.f32 %v5584
    %vm5700 = vweird.f32 %v5694
    %vm5701 = vmor %vm5699, %vm5700
    %v5702 = vsel %vm5701, %v5694, %v5698
    %v5703 = vand.u32 2147483647, %v5584
    %vm5704 = vcmp.eq.f32.partialorder %v5703, 8.507059e+37
    %v5705 = vand.u32 %v5584, 2147483648
    %v5706 = vor.u32 1.1754944e-38, %v5705
    %v5707 = vsel %vm5704, %v5706, %v5702
    %v5708 = vmul.f32 1.0, %v5707
    %v5709 = vrcp.pop %v5585
    %v5710 = vmul.f32 %v5585, %v5709
    %v5711 = vsub.f32 1.0, %v5710
    %v5712 = vmul.f32 %v5709, %v5711
    %v5713 = vadd.f32 %v5709, %v5712
    %vm5714 = vweird.f32 %v5585
    %vm5715 = vweird.f32 %v5709
    %vm5716 = vmor %vm5714, %vm5715
    %v5717 = vsel %vm5716, %v5709, %v5713
    %v5718 = vand.u32 2147483647, %v5585
    %vm5719 = vcmp.eq.f32.partialorder %v5718, 8.507059e+37
    %v5720 = vand.u32 %v5585, 2147483648
    %v5721 = vor.u32 1.1754944e-38, %v5720
    %v5722 = vsel %vm5719, %v5721, %v5717
    %v5723 = vmul.f32 1.0, %v5722
    %v5724 = vrcp.pop %v5586
    %v5725 = vmul.f32 %v5586, %v5724
    %v5726 = vsub.f32 1.0, %v5725
    %v5727 = vmul.f32 %v5724, %v5726
    %v5728 = vadd.f32 %v5724, %v5727
    %vm5729 = vweird.f32 %v5586
    %vm5730 = vweird.f32 %v5724
    %vm5731 = vmor %vm5729, %vm5730
    %v5732 = vsel %vm5731, %v5724, %v5728
    %v5733 = vand.u32 2147483647, %v5586
    %vm5734 = vcmp.eq.f32.partialorder %v5733, 8.507059e+37
    %v5735 = vand.u32 %v5586, 2147483648
    %v5736 = vor.u32 1.1754944e-38, %v5735
    %v5737 = vsel %vm5734, %v5736, %v5732
    %v5738 = vmul.f32 1.0, %v5737
    %v5739 = vrcp.pop %v5587
    %v5740 = vmul.f32 %v5587, %v5739
    %v5741 = vsub.f32 1.0, %v5740
    %v5742 = vmul.f32 %v5739, %v5741
    %v5743 = vadd.f32 %v5739, %v5742
    %vm5744 = vweird.f32 %v5587
    %vm5745 = vweird.f32 %v5739
    %vm5746 = vmor %vm5744, %vm5745
    %v5747 = vsel %vm5746, %v5739, %v5743
    %v5748 = vand.u32 2147483647, %v5587
    %vm5749 = vcmp.eq.f32.partialorder %v5748, 8.507059e+37
    %v5750 = vand.u32 %v5587, 2147483648
    %v5751 = vor.u32 1.1754944e-38, %v5750
    %v5752 = vsel %vm5749, %v5751, %v5747
    %v5753 = vmul.f32 1.0, %v5752
    %v5754 = vrcp.pop %v5588
    %v5755 = vmul.f32 %v5588, %v5754
    %v5756 = vsub.f32 1.0, %v5755
    %v5757 = vmul.f32 %v5754, %v5756
    %v5758 = vadd.f32 %v5754, %v5757
    %vm5759 = vweird.f32 %v5588
    %vm5760 = vweird.f32 %v5754
    %vm5761 = vmor %vm5759, %vm5760
    %v5762 = vsel %vm5761, %v5754, %v5758
    %v5763 = vand.u32 2147483647, %v5588
    %vm5764 = vcmp.eq.f32.partialorder %v5763, 8.507059e+37
    %v5765 = vand.u32 %v5588, 2147483648
    %v5766 = vor.u32 1.1754944e-38, %v5765
    %v5767 = vsel %vm5764, %v5766, %v5762
    %v5768 = vmul.f32 1.0, %v5767
    %v5769 = vtanh.pop %v5180
    %v5770 = vtanh.pop %v5182
    %v5771 = vtanh.pop %v5185
    %v5772 = vtanh.pop %v5187
    %v5773 = vmul.f32 %v5663, %v4927
    %v5774 = vmul.f32 %v5678, %v4928
    %v5775 = vmul.f32 %v5693, %v4929
    %v5776 = vmul.f32 %v5708, %v4930
    %v5777 = vmul.f32 %v5603, %v5769
    %v5778 = vmul.f32 %v5618, %v5770
    %v5779 = vmul.f32 %v5633, %v5771
    %v5780 = vmul.f32 %v5648, %v5772
    %v5781 = vadd.f32 %v5773, %v5777
    %v5782 = vadd.f32 %v5774, %v5778
    %v5783 = vadd.f32 %v5775, %v5779
    %v5784 = vadd.f32 %v5776, %v5780
    %v5785 = vtanh.pop %v5781
    %v5786 = vtanh.pop %v5782
    %v5787 = vtanh.pop %v5783
    %v5788 = vtanh.pop %v5784
    %v5789 = vmul.f32 %v5723, %v5785
    %v5790 = vmul.f32 %v5738, %v5786
    %v5791 = vmul.f32 %v5753, %v5787
    %v5792 = vmul.f32 %v5768, %v5788
    %v5793 = vadd.f32 %v5260, %v5230
    %v5794 = vadd.f32 %v5262, %v5232
    %v5795 = vadd.f32 %v5265, %v5235
    %v5796 = vadd.f32 %v5267, %v5237
    %v5797 = vadd.f32 %v5270, %v5240
    %v5798 = vadd.f32 %v5272, %v5242
    %v5799 = vadd.f32 %v5275, %v5245
    %v5800 = vadd.f32 %v5277, %v5247
    %v5801 = vxor.u32 %v5793, 2147483648
    %v5802 = vxor.u32 %v5794, 2147483648
    %v5803 = vxor.u32 %v5795, 2147483648
    %v5804 = vxor.u32 %v5796, 2147483648
    %v5805 = vxor.u32 %v5797, 2147483648
    %v5806 = vxor.u32 %v5798, 2147483648
    %v5807 = vxor.u32 %v5799, 2147483648
    %v5808 = vxor.u32 %v5800, 2147483648
    %v5809 = vmul.f32 %v5801, 1.442695
    %v5810 = vpow.pop %v5809
    %v5811 = vmul.f32 %v5802, 1.442695
    %v5812 = vpow.pop %v5811
    %v5813 = vmul.f32 %v5803, 1.442695
    %v5814 = vpow.pop %v5813
    %v5815 = vmul.f32 %v5804, 1.442695
    %v5816 = vpow.pop %v5815
    %v5817 = vmul.f32 %v5805, 1.442695
    %v5818 = vpow.pop %v5817
    %v5819 = vmul.f32 %v5806, 1.442695
    %v5820 = vpow.pop %v5819
    %v5821 = vmul.f32 %v5807, 1.442695
    %v5822 = vpow.pop %v5821
    %v5823 = vmul.f32 %v5808, 1.442695
    %v5824 = vpow.pop %v5823
    %v5825 = vadd.f32 %v5810, 1.0
    %v5826 = vadd.f32 %v5812, 1.0
    %v5827 = vadd.f32 %v5814, 1.0
    %v5828 = vadd.f32 %v5816, 1.0
    %v5829 = vadd.f32 %v5818, 1.0
    %v5830 = vadd.f32 %v5820, 1.0
    %v5831 = vadd.f32 %v5822, 1.0
    %v5832 = vadd.f32 %v5824, 1.0
    %v5833 = vrcp.pop %v5825
    %v5834 = vmul.f32 %v5825, %v5833
    %v5835 = vsub.f32 1.0, %v5834
    %v5836 = vmul.f32 %v5833, %v5835
    %v5837 = vadd.f32 %v5833, %v5836
    %vm5838 = vweird.f32 %v5825
    %vm5839 = vweird.f32 %v5833
    %vm5840 = vmor %vm5838, %vm5839
    %v5841 = vsel %vm5840, %v5833, %v5837
    %v5842 = vand.u32 2147483647, %v5825
    %vm5843 = vcmp.eq.f32.partialorder %v5842, 8.507059e+37
    %v5844 = vand.u32 %v5825, 2147483648
    %v5845 = vor.u32 1.1754944e-38, %v5844
    %v5846 = vsel %vm5843, %v5845, %v5841
    %v5847 = vmul.f32 1.0, %v5846
    %v5848 = vrcp.pop %v5826
    %v5849 = vmul.f32 %v5826, %v5848
    %v5850 = vsub.f32 1.0, %v5849
    %v5851 = vmul.f32 %v5848, %v5850
    %v5852 = vadd.f32 %v5848, %v5851
    %vm5853 = vweird.f32 %v5826
    %vm5854 = vweird.f32 %v5848
    %vm5855 = vmor %vm5853, %vm5854
    %v5856 = vsel %vm5855, %v5848, %v5852
    %v5857 = vand.u32 2147483647, %v5826
    %vm5858 = vcmp.eq.f32.partialorder %v5857, 8.507059e+37
    %v5859 = vand.u32 %v5826, 2147483648
    %v5860 = vor.u32 1.1754944e-38, %v5859
    %v5861 = vsel %vm5858, %v5860, %v5856
    %v5862 = vmul.f32 1.0, %v5861
    %v5863 = vrcp.pop %v5827
    %v5864 = vmul.f32 %v5827, %v5863
    %v5865 = vsub.f32 1.0, %v5864
    %v5866 = vmul.f32 %v5863, %v5865
    %v5867 = vadd.f32 %v5863, %v5866
    %vm5868 = vweird.f32 %v5827
    %vm5869 = vweird.f32 %v5863
    %vm5870 = vmor %vm5868, %vm5869
    %v5871 = vsel %vm5870, %v5863, %v5867
    %v5872 = vand.u32 2147483647, %v5827
    %vm5873 = vcmp.eq.f32.partialorder %v5872, 8.507059e+37
    %v5874 = vand.u32 %v5827, 2147483648
    %v5875 = vor.u32 1.1754944e-38, %v5874
    %v5876 = vsel %vm5873, %v5875, %v5871
    %v5877 = vmul.f32 1.0, %v5876
    %v5878 = vrcp.pop %v5828
    %v5879 = vmul.f32 %v5828, %v5878
    %v5880 = vsub.f32 1.0, %v5879
    %v5881 = vmul.f32 %v5878, %v5880
    %v5882 = vadd.f32 %v5878, %v5881
    %vm5883 = vweird.f32 %v5828
    %vm5884 = vweird.f32 %v5878
    %vm5885 = vmor %vm5883, %vm5884
    %v5886 = vsel %vm5885, %v5878, %v5882
    %v5887 = vand.u32 2147483647, %v5828
    %vm5888 = vcmp.eq.f32.partialorder %v5887, 8.507059e+37
    %v5889 = vand.u32 %v5828, 2147483648
    %v5890 = vor.u32 1.1754944e-38, %v5889
    %v5891 = vsel %vm5888, %v5890, %v5886
    %v5892 = vmul.f32 1.0, %v5891
    %v5893 = vrcp.pop %v5829
    %v5894 = vmul.f32 %v5829, %v5893
    %v5895 = vsub.f32 1.0, %v5894
    %v5896 = vmul.f32 %v5893, %v5895
    %v5897 = vadd.f32 %v5893, %v5896
    %vm5898 = vweird.f32 %v5829
    %vm5899 = vweird.f32 %v5893
    %vm5900 = vmor %vm5898, %vm5899
    %v5901 = vsel %vm5900, %v5893, %v5897
    %v5902 = vand.u32 2147483647, %v5829
    %vm5903 = vcmp.eq.f32.partialorder %v5902, 8.507059e+37
    %v5904 = vand.u32 %v5829, 2147483648
    %v5905 = vor.u32 1.1754944e-38, %v5904
    %v5906 = vsel %vm5903, %v5905, %v5901
    %v5907 = vmul.f32 1.0, %v5906
    %v5908 = vrcp.pop %v5830
    %v5909 = vmul.f32 %v5830, %v5908
    %v5910 = vsub.f32 1.0, %v5909
    %v5911 = vmul.f32 %v5908, %v5910
    %v5912 = vadd.f32 %v5908, %v5911
    %vm5913 = vweird.f32 %v5830
    %vm5914 = vweird.f32 %v5908
    %vm5915 = vmor %vm5913, %vm5914
    %v5916 = vsel %vm5915, %v5908, %v5912
    %v5917 = vand.u32 2147483647, %v5830
    %vm5918 = vcmp.eq.f32.partialorder %v5917, 8.507059e+37
    %v5919 = vand.u32 %v5830, 2147483648
    %v5920 = vor.u32 1.1754944e-38, %v5919
    %v5921 = vsel %vm5918, %v5920, %v5916
    %v5922 = vmul.f32 1.0, %v5921
    %v5923 = vrcp.pop %v5831
    %v5924 = vmul.f32 %v5831, %v5923
    %v5925 = vsub.f32 1.0, %v5924
    %v5926 = vmul.f32 %v5923, %v5925
    %v5927 = vadd.f32 %v5923, %v5926
    %vm5928 = vweird.f32 %v5831
    %vm5929 = vweird.f32 %v5923
    %vm5930 = vmor %vm5928, %vm5929
    %v5931 = vsel %vm5930, %v5923, %v5927
    %v5932 = vand.u32 2147483647, %v5831
    %vm5933 = vcmp.eq.f32.partialorder %v5932, 8.507059e+37
    %v5934 = vand.u32 %v5831, 2147483648
    %v5935 = vor.u32 1.1754944e-38, %v5934
    %v5936 = vsel %vm5933, %v5935, %v5931
    %v5937 = vmul.f32 1.0, %v5936
    %v5938 = vrcp.pop %v5832
    %v5939 = vmul.f32 %v5832, %v5938
    %v5940 = vsub.f32 1.0, %v5939
    %v5941 = vmul.f32 %v5938, %v5940
    %v5942 = vadd.f32 %v5938, %v5941
    %vm5943 = vweird.f32 %v5832
    %vm5944 = vweird.f32 %v5938
    %vm5945 = vmor %vm5943, %vm5944
    %v5946 = vsel %vm5945, %v5938, %v5942
    %v5947 = vand.u32 2147483647, %v5832
    %vm5948 = vcmp.eq.f32.partialorder %v5947, 8.507059e+37
    %v5949 = vand.u32 %v5832, 2147483648
    %v5950 = vor.u32 1.1754944e-38, %v5949
    %v5951 = vsel %vm5948, %v5950, %v5946
    %v5952 = vmul.f32 1.0, %v5951
    %v5953 = vmul.f32 %v5847, %v5250
    %v5954 = vmul.f32 %v5862, %v5252
    %v5955 = vmul.f32 %v5877, %v5255
    %v5956 = vmul.f32 %v5892, %v5257
    %v5957 = vadd.f32 %v5280, %v5953
    %v5958 = vadd.f32 %v5282, %v5954
    %v5959 = vadd.f32 %v5285, %v5955
    %v5960 = vadd.f32 %v5287, %v5956
    %v5961 = vtanh.pop %v5957
    %v5962 = vtanh.pop %v5958
    %v5963 = vtanh.pop %v5959
    %v5964 = vtanh.pop %v5960
    %v5965 = vsub.f32 1.0, %v5907
    %v5966 = vsub.f32 1.0, %v5922
    %v5967 = vsub.f32 1.0, %v5937
    %v5968 = vsub.f32 1.0, %v5952
    %v5969 = vmul.f32 %v5965, %v5961
    %v5970 = vmul.f32 %v5966, %v5962
    %v5971 = vmul.f32 %v5967, %v5963
    %v5972 = vmul.f32 %v5968, %v5964
    %v5973 = vmul.f32 %v5907, %v5123
    %v5974 = vmul.f32 %v5922, %v5124
    %v5975 = vmul.f32 %v5937, %v5125
    %v5976 = vmul.f32 %v5952, %v5126
    %v5977 = vadd.f32 %v5969, %v5973
    %v5978 = vadd.f32 %v5970, %v5974
    %v5979 = vadd.f32 %v5971, %v5975
    %v5980 = vadd.f32 %v5972, %v5976
    %s5981 = scalar_lea.vmem [#allocation3], 224
    %v5982 = vld [vmem:[%s5981] sm:$0xff]
    %v5983 = vld [vmem:[%s5981 + $0x8] sm:$0xff]
    %v5984 = vld [vmem:[%s5981 + $0x10] sm:$0xff]
    %v5985 = vld [vmem:[%s5981 + $0x18] sm:$0xff]
    %v5986 = vpack.c.bf16 %v5790, %v5789
    %v5987 = vpack.c.bf16 %v5792, %v5791
    %v5988 = vpack.c.bf16 %v5538, %v5537
    %v5989 = vpack.c.bf16 %v5540, %v5539
    %v5990 = vpack.c.bf16 %v5978, %v5977
    %v5991 = vpack.c.bf16 %v5980, %v5979
    %v5992 = vpack.c.bf16 %v5983, %v5982
    %v5993 = vpack.c.bf16 %v5985, %v5984
    %5994 = vmatpush.bf16.msra.mxu0 %v5993
    %5995 = vmatpush.bf16.msra.mxu0 %v5992
    %5996 = vmatpush.bf16.msra.mxu0 %v5991
    %5997 = vmatpush.bf16.msra.mxu0 %v5990
    %5998 = vmatpush.bf16.msra.mxu0 %v5989
    %5999 = vmatpush.bf16.msra.mxu0 %v5988
    %6000 = vmatpush.bf16.msra.mxu0 %v5987
    %6001 = vmatpush.bf16.msra.mxu0 %v5986
    %6002 = vmatmul.bf16.gmra.mxu0 %v230
    %v6003 = vpop.f32.mrf.mxu0
    %v6004 = vadd.f32 0.0, %v6003
    %v6005 = vpop.f32.mrf.mxu0
    %v6006 = vadd.f32 0.0, %v6005
    %6007 = vmatmul.bf16.gmra.mxu0 %v231
    %v6008 = vpop.f32.mrf.mxu0
    %v6009 = vadd.f32 0.0, %v6008
    %v6010 = vpop.f32.mrf.mxu0
    %v6011 = vadd.f32 0.0, %v6010
    %6012 = vmatmul.bf16.gmra.mxu0 %v232
    %v6013 = vpop.f32.mrf.mxu0
    %v6014 = vadd.f32 0.0, %v6013
    %v6015 = vpop.f32.mrf.mxu0
    %v6016 = vadd.f32 0.0, %v6015
    %6017 = vmatmul.bf16.gmra.mxu0 %v233
    %v6018 = vpop.f32.mrf.mxu0
    %v6019 = vadd.f32 0.0, %v6018
    %v6020 = vpop.f32.mrf.mxu0
    %v6021 = vadd.f32 0.0, %v6020
    %6022 = vmatmul.bf16.gmra.mxu0 %v234
    %v6023 = vpop.f32.mrf.mxu0
    %v6024 = vadd.f32 0.0, %v6023
    %v6025 = vpop.f32.mrf.mxu0
    %v6026 = vadd.f32 0.0, %v6025
    %6027 = vmatmul.bf16.gmra.mxu0 %v235
    %v6028 = vpop.f32.mrf.mxu0
    %v6029 = vadd.f32 0.0, %v6028
    %v6030 = vpop.f32.mrf.mxu0
    %v6031 = vadd.f32 0.0, %v6030
    %6032 = vmatmul.bf16.gmra.mxu0 %v236
    %v6033 = vpop.f32.mrf.mxu0
    %v6034 = vadd.f32 0.0, %v6033
    %v6035 = vpop.f32.mrf.mxu0
    %v6036 = vadd.f32 0.0, %v6035
    %6037 = vmatmul.bf16.gmra.mxu0 %v237
    %v6038 = vpop.f32.mrf.mxu0
    %v6039 = vadd.f32 0.0, %v6038
    %v6040 = vpop.f32.mrf.mxu0
    %v6041 = vadd.f32 0.0, %v6040
    %6042 = vmatmul.bf16.gmra.mxu0 %v238
    %v6043 = vpop.f32.mrf.mxu0
    %v6044 = vadd.f32 0.0, %v6043
    %v6045 = vpop.f32.mrf.mxu0
    %v6046 = vadd.f32 0.0, %v6045
    %6047 = vmatmul.bf16.gmra.mxu0 %v239
    %v6048 = vpop.f32.mrf.mxu0
    %v6049 = vadd.f32 0.0, %v6048
    %v6050 = vpop.f32.mrf.mxu0
    %v6051 = vadd.f32 0.0, %v6050
    %6052 = vmatmul.bf16.gmra.mxu0 %v240
    %v6053 = vpop.f32.mrf.mxu0
    %v6054 = vadd.f32 0.0, %v6053
    %v6055 = vpop.f32.mrf.mxu0
    %v6056 = vadd.f32 0.0, %v6055
    %6057 = vmatmul.bf16.gmra.mxu0 %v241
    %v6058 = vpop.f32.mrf.mxu0
    %v6059 = vadd.f32 0.0, %v6058
    %v6060 = vpop.f32.mrf.mxu0
    %v6061 = vadd.f32 0.0, %v6060
    %6062 = vmatmul.bf16.gmra.mxu0 %v242
    %v6063 = vpop.f32.mrf.mxu0
    %v6064 = vadd.f32 0.0, %v6063
    %v6065 = vpop.f32.mrf.mxu0
    %v6066 = vadd.f32 0.0, %v6065
    %6067 = vmatmul.bf16.gmra.mxu0 %v243
    %v6068 = vpop.f32.mrf.mxu0
    %v6069 = vadd.f32 0.0, %v6068
    %v6070 = vpop.f32.mrf.mxu0
    %v6071 = vadd.f32 0.0, %v6070
    %6072 = vmatmul.bf16.gmra.mxu0 %v244
    %v6073 = vpop.f32.mrf.mxu0
    %v6074 = vadd.f32 0.0, %v6073
    %v6075 = vpop.f32.mrf.mxu0
    %v6076 = vadd.f32 0.0, %v6075
    %6077 = vmatmul.bf16.gmra.mxu0 %v245
    %v6078 = vpop.f32.mrf.mxu0
    %v6079 = vadd.f32 0.0, %v6078
    %v6080 = vpop.f32.mrf.mxu0
    %v6081 = vadd.f32 0.0, %v6080
    %6082 = vmatmul.bf16.gmra.mxu0 %v246
    %v6083 = vpop.f32.mrf.mxu0
    %v6084 = vadd.f32 0.0, %v6083
    %v6085 = vpop.f32.mrf.mxu0
    %v6086 = vadd.f32 0.0, %v6085
    %6087 = vmatmul.bf16.gmra.mxu0 %v247
    %v6088 = vpop.f32.mrf.mxu0
    %v6089 = vadd.f32 0.0, %v6088
    %v6090 = vpop.f32.mrf.mxu0
    %v6091 = vadd.f32 0.0, %v6090
    %6092 = vmatmul.bf16.gmra.mxu0 %v248
    %v6093 = vpop.f32.mrf.mxu0
    %v6094 = vadd.f32 0.0, %v6093
    %v6095 = vpop.f32.mrf.mxu0
    %v6096 = vadd.f32 0.0, %v6095
    %6097 = vmatmul.bf16.gmra.mxu0 %v249
    %v6098 = vpop.f32.mrf.mxu0
    %v6099 = vadd.f32 0.0, %v6098
    %v6100 = vpop.f32.mrf.mxu0
    %v6101 = vadd.f32 0.0, %v6100
    %6102 = vmatmul.bf16.gmra.mxu0 %v250
    %v6103 = vpop.f32.mrf.mxu0
    %v6104 = vadd.f32 0.0, %v6103
    %v6105 = vpop.f32.mrf.mxu0
    %v6106 = vadd.f32 0.0, %v6105
    %6107 = vmatmul.bf16.gmra.mxu0 %v251
    %v6108 = vpop.f32.mrf.mxu0
    %v6109 = vadd.f32 0.0, %v6108
    %v6110 = vpop.f32.mrf.mxu0
    %v6111 = vadd.f32 0.0, %v6110
    %6112 = vmatmul.bf16.gmra.mxu0 %v252
    %v6113 = vpop.f32.mrf.mxu0
    %v6114 = vadd.f32 0.0, %v6113
    %v6115 = vpop.f32.mrf.mxu0
    %v6116 = vadd.f32 0.0, %v6115
    %6117 = vmatmul.bf16.gmra.mxu0 %v253
    %v6118 = vpop.f32.mrf.mxu0
    %v6119 = vadd.f32 0.0, %v6118
    %v6120 = vpop.f32.mrf.mxu0
    %v6121 = vadd.f32 0.0, %v6120
    %6122 = vmatmul.bf16.gmra.mxu0 %v254
    %v6123 = vpop.f32.mrf.mxu0
    %v6124 = vadd.f32 0.0, %v6123
    %v6125 = vpop.f32.mrf.mxu0
    %v6126 = vadd.f32 0.0, %v6125
    %6127 = vmatmul.bf16.gmra.mxu0 %v255
    %v6128 = vpop.f32.mrf.mxu0
    %v6129 = vadd.f32 0.0, %v6128
    %v6130 = vpop.f32.mrf.mxu0
    %v6131 = vadd.f32 0.0, %v6130
    %6132 = vmatmul.bf16.gmra.mxu0 %v256
    %v6133 = vpop.f32.mrf.mxu0
    %v6134 = vadd.f32 0.0, %v6133
    %v6135 = vpop.f32.mrf.mxu0
    %v6136 = vadd.f32 0.0, %v6135
    %6137 = vmatmul.bf16.gmra.mxu0 %v257
    %v6138 = vpop.f32.mrf.mxu0
    %v6139 = vadd.f32 0.0, %v6138
    %v6140 = vpop.f32.mrf.mxu0
    %v6141 = vadd.f32 0.0, %v6140
    %6142 = vdwg.mxu0
    %v6143 = vxor.u32 %v6044, 2147483648
    %v6144 = vxor.u32 %v6046, 2147483648
    %v6145 = vxor.u32 %v6049, 2147483648
    %v6146 = vxor.u32 %v6051, 2147483648
    %v6147 = vxor.u32 %v6054, 2147483648
    %v6148 = vxor.u32 %v6056, 2147483648
    %v6149 = vxor.u32 %v6059, 2147483648
    %v6150 = vxor.u32 %v6061, 2147483648
    %v6151 = vxor.u32 %v6064, 2147483648
    %v6152 = vxor.u32 %v6066, 2147483648
    %v6153 = vxor.u32 %v6069, 2147483648
    %v6154 = vxor.u32 %v6071, 2147483648
    %v6155 = vmul.f32 %v6143, 1.442695
    %v6156 = vpow.pop %v6155
    %v6157 = vmul.f32 %v6144, 1.442695
    %v6158 = vpow.pop %v6157
    %v6159 = vmul.f32 %v6145, 1.442695
    %v6160 = vpow.pop %v6159
    %v6161 = vmul.f32 %v6146, 1.442695
    %v6162 = vpow.pop %v6161
    %v6163 = vmul.f32 %v6147, 1.442695
    %v6164 = vpow.pop %v6163
    %v6165 = vmul.f32 %v6148, 1.442695
    %v6166 = vpow.pop %v6165
    %v6167 = vmul.f32 %v6149, 1.442695
    %v6168 = vpow.pop %v6167
    %v6169 = vmul.f32 %v6150, 1.442695
    %v6170 = vpow.pop %v6169
    %v6171 = vmul.f32 %v6151, 1.442695
    %v6172 = vpow.pop %v6171
    %v6173 = vmul.f32 %v6152, 1.442695
    %v6174 = vpow.pop %v6173
    %v6175 = vmul.f32 %v6153, 1.442695
    %v6176 = vpow.pop %v6175
    %v6177 = vmul.f32 %v6154, 1.442695
    %v6178 = vpow.pop %v6177
    %v6179 = vadd.f32 %v6156, 1.0
    %v6180 = vadd.f32 %v6158, 1.0
    %v6181 = vadd.f32 %v6160, 1.0
    %v6182 = vadd.f32 %v6162, 1.0
    %v6183 = vadd.f32 %v6164, 1.0
    %v6184 = vadd.f32 %v6166, 1.0
    %v6185 = vadd.f32 %v6168, 1.0
    %v6186 = vadd.f32 %v6170, 1.0
    %v6187 = vadd.f32 %v6172, 1.0
    %v6188 = vadd.f32 %v6174, 1.0
    %v6189 = vadd.f32 %v6176, 1.0
    %v6190 = vadd.f32 %v6178, 1.0
    %v6191 = vrcp.pop %v6179
    %v6192 = vmul.f32 %v6179, %v6191
    %v6193 = vsub.f32 1.0, %v6192
    %v6194 = vmul.f32 %v6191, %v6193
    %v6195 = vadd.f32 %v6191, %v6194
    %vm6196 = vweird.f32 %v6179
    %vm6197 = vweird.f32 %v6191
    %vm6198 = vmor %vm6196, %vm6197
    %v6199 = vsel %vm6198, %v6191, %v6195
    %v6200 = vand.u32 2147483647, %v6179
    %vm6201 = vcmp.eq.f32.partialorder %v6200, 8.507059e+37
    %v6202 = vand.u32 %v6179, 2147483648
    %v6203 = vor.u32 1.1754944e-38, %v6202
    %v6204 = vsel %vm6201, %v6203, %v6199
    %v6205 = vmul.f32 1.0, %v6204
    %v6206 = vrcp.pop %v6180
    %v6207 = vmul.f32 %v6180, %v6206
    %v6208 = vsub.f32 1.0, %v6207
    %v6209 = vmul.f32 %v6206, %v6208
    %v6210 = vadd.f32 %v6206, %v6209
    %vm6211 = vweird.f32 %v6180
    %vm6212 = vweird.f32 %v6206
    %vm6213 = vmor %vm6211, %vm6212
    %v6214 = vsel %vm6213, %v6206, %v6210
    %v6215 = vand.u32 2147483647, %v6180
    %vm6216 = vcmp.eq.f32.partialorder %v6215, 8.507059e+37
    %v6217 = vand.u32 %v6180, 2147483648
    %v6218 = vor.u32 1.1754944e-38, %v6217
    %v6219 = vsel %vm6216, %v6218, %v6214
    %v6220 = vmul.f32 1.0, %v6219
    %v6221 = vrcp.pop %v6181
    %v6222 = vmul.f32 %v6181, %v6221
    %v6223 = vsub.f32 1.0, %v6222
    %v6224 = vmul.f32 %v6221, %v6223
    %v6225 = vadd.f32 %v6221, %v6224
    %vm6226 = vweird.f32 %v6181
    %vm6227 = vweird.f32 %v6221
    %vm6228 = vmor %vm6226, %vm6227
    %v6229 = vsel %vm6228, %v6221, %v6225
    %v6230 = vand.u32 2147483647, %v6181
    %vm6231 = vcmp.eq.f32.partialorder %v6230, 8.507059e+37
    %v6232 = vand.u32 %v6181, 2147483648
    %v6233 = vor.u32 1.1754944e-38, %v6232
    %v6234 = vsel %vm6231, %v6233, %v6229
    %v6235 = vmul.f32 1.0, %v6234
    %v6236 = vrcp.pop %v6182
    %v6237 = vmul.f32 %v6182, %v6236
    %v6238 = vsub.f32 1.0, %v6237
    %v6239 = vmul.f32 %v6236, %v6238
    %v6240 = vadd.f32 %v6236, %v6239
    %vm6241 = vweird.f32 %v6182
    %vm6242 = vweird.f32 %v6236
    %vm6243 = vmor %vm6241, %vm6242
    %v6244 = vsel %vm6243, %v6236, %v6240
    %v6245 = vand.u32 2147483647, %v6182
    %vm6246 = vcmp.eq.f32.partialorder %v6245, 8.507059e+37
    %v6247 = vand.u32 %v6182, 2147483648
    %v6248 = vor.u32 1.1754944e-38, %v6247
    %v6249 = vsel %vm6246, %v6248, %v6244
    %v6250 = vmul.f32 1.0, %v6249
    %v6251 = vrcp.pop %v6183
    %v6252 = vmul.f32 %v6183, %v6251
    %v6253 = vsub.f32 1.0, %v6252
    %v6254 = vmul.f32 %v6251, %v6253
    %v6255 = vadd.f32 %v6251, %v6254
    %vm6256 = vweird.f32 %v6183
    %vm6257 = vweird.f32 %v6251
    %vm6258 = vmor %vm6256, %vm6257
    %v6259 = vsel %vm6258, %v6251, %v6255
    %v6260 = vand.u32 2147483647, %v6183
    %vm6261 = vcmp.eq.f32.partialorder %v6260, 8.507059e+37
    %v6262 = vand.u32 %v6183, 2147483648
    %v6263 = vor.u32 1.1754944e-38, %v6262
    %v6264 = vsel %vm6261, %v6263, %v6259
    %v6265 = vmul.f32 1.0, %v6264
    %v6266 = vrcp.pop %v6184
    %v6267 = vmul.f32 %v6184, %v6266
    %v6268 = vsub.f32 1.0, %v6267
    %v6269 = vmul.f32 %v6266, %v6268
    %v6270 = vadd.f32 %v6266, %v6269
    %vm6271 = vweird.f32 %v6184
    %vm6272 = vweird.f32 %v6266
    %vm6273 = vmor %vm6271, %vm6272
    %v6274 = vsel %vm6273, %v6266, %v6270
    %v6275 = vand.u32 2147483647, %v6184
    %vm6276 = vcmp.eq.f32.partialorder %v6275, 8.507059e+37
    %v6277 = vand.u32 %v6184, 2147483648
    %v6278 = vor.u32 1.1754944e-38, %v6277
    %v6279 = vsel %vm6276, %v6278, %v6274
    %v6280 = vmul.f32 1.0, %v6279
    %v6281 = vrcp.pop %v6185
    %v6282 = vmul.f32 %v6185, %v6281
    %v6283 = vsub.f32 1.0, %v6282
    %v6284 = vmul.f32 %v6281, %v6283
    %v6285 = vadd.f32 %v6281, %v6284
    %vm6286 = vweird.f32 %v6185
    %vm6287 = vweird.f32 %v6281
    %vm6288 = vmor %vm6286, %vm6287
    %v6289 = vsel %vm6288, %v6281, %v6285
    %v6290 = vand.u32 2147483647, %v6185
    %vm6291 = vcmp.eq.f32.partialorder %v6290, 8.507059e+37
    %v6292 = vand.u32 %v6185, 2147483648
    %v6293 = vor.u32 1.1754944e-38, %v6292
    %v6294 = vsel %vm6291, %v6293, %v6289
    %v6295 = vmul.f32 1.0, %v6294
    %v6296 = vrcp.pop %v6186
    %v6297 = vmul.f32 %v6186, %v6296
    %v6298 = vsub.f32 1.0, %v6297
    %v6299 = vmul.f32 %v6296, %v6298
    %v6300 = vadd.f32 %v6296, %v6299
    %vm6301 = vweird.f32 %v6186
    %vm6302 = vweird.f32 %v6296
    %vm6303 = vmor %vm6301, %vm6302
    %v6304 = vsel %vm6303, %v6296, %v6300
    %v6305 = vand.u32 2147483647, %v6186
    %vm6306 = vcmp.eq.f32.partialorder %v6305, 8.507059e+37
    %v6307 = vand.u32 %v6186, 2147483648
    %v6308 = vor.u32 1.1754944e-38, %v6307
    %v6309 = vsel %vm6306, %v6308, %v6304
    %v6310 = vmul.f32 1.0, %v6309
    %v6311 = vrcp.pop %v6187
    %v6312 = vmul.f32 %v6187, %v6311
    %v6313 = vsub.f32 1.0, %v6312
    %v6314 = vmul.f32 %v6311, %v6313
    %v6315 = vadd.f32 %v6311, %v6314
    %vm6316 = vweird.f32 %v6187
    %vm6317 = vweird.f32 %v6311
    %vm6318 = vmor %vm6316, %vm6317
    %v6319 = vsel %vm6318, %v6311, %v6315
    %v6320 = vand.u32 2147483647, %v6187
    %vm6321 = vcmp.eq.f32.partialorder %v6320, 8.507059e+37
    %v6322 = vand.u32 %v6187, 2147483648
    %v6323 = vor.u32 1.1754944e-38, %v6322
    %v6324 = vsel %vm6321, %v6323, %v6319
    %v6325 = vmul.f32 1.0, %v6324
    %v6326 = vrcp.pop %v6188
    %v6327 = vmul.f32 %v6188, %v6326
    %v6328 = vsub.f32 1.0, %v6327
    %v6329 = vmul.f32 %v6326, %v6328
    %v6330 = vadd.f32 %v6326, %v6329
    %vm6331 = vweird.f32 %v6188
    %vm6332 = vweird.f32 %v6326
    %vm6333 = vmor %vm6331, %vm6332
    %v6334 = vsel %vm6333, %v6326, %v6330
    %v6335 = vand.u32 2147483647, %v6188
    %vm6336 = vcmp.eq.f32.partialorder %v6335, 8.507059e+37
    %v6337 = vand.u32 %v6188, 2147483648
    %v6338 = vor.u32 1.1754944e-38, %v6337
    %v6339 = vsel %vm6336, %v6338, %v6334
    %v6340 = vmul.f32 1.0, %v6339
    %v6341 = vrcp.pop %v6189
    %v6342 = vmul.f32 %v6189, %v6341
    %v6343 = vsub.f32 1.0, %v6342
    %v6344 = vmul.f32 %v6341, %v6343
    %v6345 = vadd.f32 %v6341, %v6344
    %vm6346 = vweird.f32 %v6189
    %vm6347 = vweird.f32 %v6341
    %vm6348 = vmor %vm6346, %vm6347
    %v6349 = vsel %vm6348, %v6341, %v6345
    %v6350 = vand.u32 2147483647, %v6189
    %vm6351 = vcmp.eq.f32.partialorder %v6350, 8.507059e+37
    %v6352 = vand.u32 %v6189, 2147483648
    %v6353 = vor.u32 1.1754944e-38, %v6352
    %v6354 = vsel %vm6351, %v6353, %v6349
    %v6355 = vmul.f32 1.0, %v6354
    %v6356 = vrcp.pop %v6190
    %v6357 = vmul.f32 %v6190, %v6356
    %v6358 = vsub.f32 1.0, %v6357
    %v6359 = vmul.f32 %v6356, %v6358
    %v6360 = vadd.f32 %v6356, %v6359
    %vm6361 = vweird.f32 %v6190
    %vm6362 = vweird.f32 %v6356
    %vm6363 = vmor %vm6361, %vm6362
    %v6364 = vsel %vm6363, %v6356, %v6360
    %v6365 = vand.u32 2147483647, %v6190
    %vm6366 = vcmp.eq.f32.partialorder %v6365, 8.507059e+37
    %v6367 = vand.u32 %v6190, 2147483648
    %v6368 = vor.u32 1.1754944e-38, %v6367
    %v6369 = vsel %vm6366, %v6368, %v6364
    %v6370 = vmul.f32 1.0, %v6369
    %v6371 = vtanh.pop %v6074
    %v6372 = vtanh.pop %v6076
    %v6373 = vtanh.pop %v6079
    %v6374 = vtanh.pop %v6081
    %v6375 = vmul.f32 %v6265, %v5529
    %v6376 = vmul.f32 %v6280, %v5530
    %v6377 = vmul.f32 %v6295, %v5531
    %v6378 = vmul.f32 %v6310, %v5532
    %v6379 = vmul.f32 %v6205, %v6371
    %v6380 = vmul.f32 %v6220, %v6372
    %v6381 = vmul.f32 %v6235, %v6373
    %v6382 = vmul.f32 %v6250, %v6374
    %v6383 = vadd.f32 %v6375, %v6379
    %v6384 = vadd.f32 %v6376, %v6380
    %v6385 = vadd.f32 %v6377, %v6381
    %v6386 = vadd.f32 %v6378, %v6382
    %v6387 = vtanh.pop %v6383
    %v6388 = vtanh.pop %v6384
    %v6389 = vtanh.pop %v6385
    %v6390 = vtanh.pop %v6386
    %v6391 = vmul.f32 %v6325, %v6387
    %v6392 = vmul.f32 %v6340, %v6388
    %v6393 = vmul.f32 %v6355, %v6389
    %v6394 = vmul.f32 %v6370, %v6390
    %v6395 = vxor.u32 %v6004, 2147483648
    %v6396 = vxor.u32 %v6006, 2147483648
    %v6397 = vxor.u32 %v6009, 2147483648
    %v6398 = vxor.u32 %v6011, 2147483648
    %v6399 = vxor.u32 %v6014, 2147483648
    %v6400 = vxor.u32 %v6016, 2147483648
    %v6401 = vxor.u32 %v6019, 2147483648
    %v6402 = vxor.u32 %v6021, 2147483648
    %v6403 = vxor.u32 %v6024, 2147483648
    %v6404 = vxor.u32 %v6026, 2147483648
    %v6405 = vxor.u32 %v6029, 2147483648
    %v6406 = vxor.u32 %v6031, 2147483648
    %v6407 = vmul.f32 %v6395, 1.442695
    %v6408 = vpow.pop %v6407
    %v6409 = vmul.f32 %v6396, 1.442695
    %v6410 = vpow.pop %v6409
    %v6411 = vmul.f32 %v6397, 1.442695
    %v6412 = vpow.pop %v6411
    %v6413 = vmul.f32 %v6398, 1.442695
    %v6414 = vpow.pop %v6413
    %v6415 = vmul.f32 %v6399, 1.442695
    %v6416 = vpow.pop %v6415
    %v6417 = vmul.f32 %v6400, 1.442695
    %v6418 = vpow.pop %v6417
    %v6419 = vmul.f32 %v6401, 1.442695
    %v6420 = vpow.pop %v6419
    %v6421 = vmul.f32 %v6402, 1.442695
    %v6422 = vpow.pop %v6421
    %v6423 = vmul.f32 %v6403, 1.442695
    %v6424 = vpow.pop %v6423
    %v6425 = vmul.f32 %v6404, 1.442695
    %v6426 = vpow.pop %v6425
    %v6427 = vmul.f32 %v6405, 1.442695
    %v6428 = vpow.pop %v6427
    %v6429 = vmul.f32 %v6406, 1.442695
    %v6430 = vpow.pop %v6429
    %v6431 = vadd.f32 %v6408, 1.0
    %v6432 = vadd.f32 %v6410, 1.0
    %v6433 = vadd.f32 %v6412, 1.0
    %v6434 = vadd.f32 %v6414, 1.0
    %v6435 = vadd.f32 %v6416, 1.0
    %v6436 = vadd.f32 %v6418, 1.0
    %v6437 = vadd.f32 %v6420, 1.0
    %v6438 = vadd.f32 %v6422, 1.0
    %v6439 = vadd.f32 %v6424, 1.0
    %v6440 = vadd.f32 %v6426, 1.0
    %v6441 = vadd.f32 %v6428, 1.0
    %v6442 = vadd.f32 %v6430, 1.0
    %v6443 = vrcp.pop %v6431
    %v6444 = vmul.f32 %v6431, %v6443
    %v6445 = vsub.f32 1.0, %v6444
    %v6446 = vmul.f32 %v6443, %v6445
    %v6447 = vadd.f32 %v6443, %v6446
    %vm6448 = vweird.f32 %v6431
    %vm6449 = vweird.f32 %v6443
    %vm6450 = vmor %vm6448, %vm6449
    %v6451 = vsel %vm6450, %v6443, %v6447
    %v6452 = vand.u32 2147483647, %v6431
    %vm6453 = vcmp.eq.f32.partialorder %v6452, 8.507059e+37
    %v6454 = vand.u32 %v6431, 2147483648
    %v6455 = vor.u32 1.1754944e-38, %v6454
    %v6456 = vsel %vm6453, %v6455, %v6451
    %v6457 = vmul.f32 1.0, %v6456
    %v6458 = vrcp.pop %v6432
    %v6459 = vmul.f32 %v6432, %v6458
    %v6460 = vsub.f32 1.0, %v6459
    %v6461 = vmul.f32 %v6458, %v6460
    %v6462 = vadd.f32 %v6458, %v6461
    %vm6463 = vweird.f32 %v6432
    %vm6464 = vweird.f32 %v6458
    %vm6465 = vmor %vm6463, %vm6464
    %v6466 = vsel %vm6465, %v6458, %v6462
    %v6467 = vand.u32 2147483647, %v6432
    %vm6468 = vcmp.eq.f32.partialorder %v6467, 8.507059e+37
    %v6469 = vand.u32 %v6432, 2147483648
    %v6470 = vor.u32 1.1754944e-38, %v6469
    %v6471 = vsel %vm6468, %v6470, %v6466
    %v6472 = vmul.f32 1.0, %v6471
    %v6473 = vrcp.pop %v6433
    %v6474 = vmul.f32 %v6433, %v6473
    %v6475 = vsub.f32 1.0, %v6474
    %v6476 = vmul.f32 %v6473, %v6475
    %v6477 = vadd.f32 %v6473, %v6476
    %vm6478 = vweird.f32 %v6433
    %vm6479 = vweird.f32 %v6473
    %vm6480 = vmor %vm6478, %vm6479
    %v6481 = vsel %vm6480, %v6473, %v6477
    %v6482 = vand.u32 2147483647, %v6433
    %vm6483 = vcmp.eq.f32.partialorder %v6482, 8.507059e+37
    %v6484 = vand.u32 %v6433, 2147483648
    %v6485 = vor.u32 1.1754944e-38, %v6484
    %v6486 = vsel %vm6483, %v6485, %v6481
    %v6487 = vmul.f32 1.0, %v6486
    %v6488 = vrcp.pop %v6434
    %v6489 = vmul.f32 %v6434, %v6488
    %v6490 = vsub.f32 1.0, %v6489
    %v6491 = vmul.f32 %v6488, %v6490
    %v6492 = vadd.f32 %v6488, %v6491
    %vm6493 = vweird.f32 %v6434
    %vm6494 = vweird.f32 %v6488
    %vm6495 = vmor %vm6493, %vm6494
    %v6496 = vsel %vm6495, %v6488, %v6492
    %v6497 = vand.u32 2147483647, %v6434
    %vm6498 = vcmp.eq.f32.partialorder %v6497, 8.507059e+37
    %v6499 = vand.u32 %v6434, 2147483648
    %v6500 = vor.u32 1.1754944e-38, %v6499
    %v6501 = vsel %vm6498, %v6500, %v6496
    %v6502 = vmul.f32 1.0, %v6501
    %v6503 = vrcp.pop %v6435
    %v6504 = vmul.f32 %v6435, %v6503
    %v6505 = vsub.f32 1.0, %v6504
    %v6506 = vmul.f32 %v6503, %v6505
    %v6507 = vadd.f32 %v6503, %v6506
    %vm6508 = vweird.f32 %v6435
    %vm6509 = vweird.f32 %v6503
    %vm6510 = vmor %vm6508, %vm6509
    %v6511 = vsel %vm6510, %v6503, %v6507
    %v6512 = vand.u32 2147483647, %v6435
    %vm6513 = vcmp.eq.f32.partialorder %v6512, 8.507059e+37
    %v6514 = vand.u32 %v6435, 2147483648
    %v6515 = vor.u32 1.1754944e-38, %v6514
    %v6516 = vsel %vm6513, %v6515, %v6511
    %v6517 = vmul.f32 1.0, %v6516
    %v6518 = vrcp.pop %v6436
    %v6519 = vmul.f32 %v6436, %v6518
    %v6520 = vsub.f32 1.0, %v6519
    %v6521 = vmul.f32 %v6518, %v6520
    %v6522 = vadd.f32 %v6518, %v6521
    %vm6523 = vweird.f32 %v6436
    %vm6524 = vweird.f32 %v6518
    %vm6525 = vmor %vm6523, %vm6524
    %v6526 = vsel %vm6525, %v6518, %v6522
    %v6527 = vand.u32 2147483647, %v6436
    %vm6528 = vcmp.eq.f32.partialorder %v6527, 8.507059e+37
    %v6529 = vand.u32 %v6436, 2147483648
    %v6530 = vor.u32 1.1754944e-38, %v6529
    %v6531 = vsel %vm6528, %v6530, %v6526
    %v6532 = vmul.f32 1.0, %v6531
    %v6533 = vrcp.pop %v6437
    %v6534 = vmul.f32 %v6437, %v6533
    %v6535 = vsub.f32 1.0, %v6534
    %v6536 = vmul.f32 %v6533, %v6535
    %v6537 = vadd.f32 %v6533, %v6536
    %vm6538 = vweird.f32 %v6437
    %vm6539 = vweird.f32 %v6533
    %vm6540 = vmor %vm6538, %vm6539
    %v6541 = vsel %vm6540, %v6533, %v6537
    %v6542 = vand.u32 2147483647, %v6437
    %vm6543 = vcmp.eq.f32.partialorder %v6542, 8.507059e+37
    %v6544 = vand.u32 %v6437, 2147483648
    %v6545 = vor.u32 1.1754944e-38, %v6544
    %v6546 = vsel %vm6543, %v6545, %v6541
    %v6547 = vmul.f32 1.0, %v6546
    %v6548 = vrcp.pop %v6438
    %v6549 = vmul.f32 %v6438, %v6548
    %v6550 = vsub.f32 1.0, %v6549
    %v6551 = vmul.f32 %v6548, %v6550
    %v6552 = vadd.f32 %v6548, %v6551
    %vm6553 = vweird.f32 %v6438
    %vm6554 = vweird.f32 %v6548
    %vm6555 = vmor %vm6553, %vm6554
    %v6556 = vsel %vm6555, %v6548, %v6552
    %v6557 = vand.u32 2147483647, %v6438
    %vm6558 = vcmp.eq.f32.partialorder %v6557, 8.507059e+37
    %v6559 = vand.u32 %v6438, 2147483648
    %v6560 = vor.u32 1.1754944e-38, %v6559
    %v6561 = vsel %vm6558, %v6560, %v6556
    %v6562 = vmul.f32 1.0, %v6561
    %v6563 = vrcp.pop %v6439
    %v6564 = vmul.f32 %v6439, %v6563
    %v6565 = vsub.f32 1.0, %v6564
    %v6566 = vmul.f32 %v6563, %v6565
    %v6567 = vadd.f32 %v6563, %v6566
    %vm6568 = vweird.f32 %v6439
    %vm6569 = vweird.f32 %v6563
    %vm6570 = vmor %vm6568, %vm6569
    %v6571 = vsel %vm6570, %v6563, %v6567
    %v6572 = vand.u32 2147483647, %v6439
    %vm6573 = vcmp.eq.f32.partialorder %v6572, 8.507059e+37
    %v6574 = vand.u32 %v6439, 2147483648
    %v6575 = vor.u32 1.1754944e-38, %v6574
    %v6576 = vsel %vm6573, %v6575, %v6571
    %v6577 = vmul.f32 1.0, %v6576
    %v6578 = vrcp.pop %v6440
    %v6579 = vmul.f32 %v6440, %v6578
    %v6580 = vsub.f32 1.0, %v6579
    %v6581 = vmul.f32 %v6578, %v6580
    %v6582 = vadd.f32 %v6578, %v6581
    %vm6583 = vweird.f32 %v6440
    %vm6584 = vweird.f32 %v6578
    %vm6585 = vmor %vm6583, %vm6584
    %v6586 = vsel %vm6585, %v6578, %v6582
    %v6587 = vand.u32 2147483647, %v6440
    %vm6588 = vcmp.eq.f32.partialorder %v6587, 8.507059e+37
    %v6589 = vand.u32 %v6440, 2147483648
    %v6590 = vor.u32 1.1754944e-38, %v6589
    %v6591 = vsel %vm6588, %v6590, %v6586
    %v6592 = vmul.f32 1.0, %v6591
    %v6593 = vrcp.pop %v6441
    %v6594 = vmul.f32 %v6441, %v6593
    %v6595 = vsub.f32 1.0, %v6594
    %v6596 = vmul.f32 %v6593, %v6595
    %v6597 = vadd.f32 %v6593, %v6596
    %vm6598 = vweird.f32 %v6441
    %vm6599 = vweird.f32 %v6593
    %vm6600 = vmor %vm6598, %vm6599
    %v6601 = vsel %vm6600, %v6593, %v6597
    %v6602 = vand.u32 2147483647, %v6441
    %vm6603 = vcmp.eq.f32.partialorder %v6602, 8.507059e+37
    %v6604 = vand.u32 %v6441, 2147483648
    %v6605 = vor.u32 1.1754944e-38, %v6604
    %v6606 = vsel %vm6603, %v6605, %v6601
    %v6607 = vmul.f32 1.0, %v6606
    %v6608 = vrcp.pop %v6442
    %v6609 = vmul.f32 %v6442, %v6608
    %v6610 = vsub.f32 1.0, %v6609
    %v6611 = vmul.f32 %v6608, %v6610
    %v6612 = vadd.f32 %v6608, %v6611
    %vm6613 = vweird.f32 %v6442
    %vm6614 = vweird.f32 %v6608
    %vm6615 = vmor %vm6613, %vm6614
    %v6616 = vsel %vm6615, %v6608, %v6612
    %v6617 = vand.u32 2147483647, %v6442
    %vm6618 = vcmp.eq.f32.partialorder %v6617, 8.507059e+37
    %v6619 = vand.u32 %v6442, 2147483648
    %v6620 = vor.u32 1.1754944e-38, %v6619
    %v6621 = vsel %vm6618, %v6620, %v6616
    %v6622 = vmul.f32 1.0, %v6621
    %v6623 = vtanh.pop %v6034
    %v6624 = vtanh.pop %v6036
    %v6625 = vtanh.pop %v6039
    %v6626 = vtanh.pop %v6041
    %v6627 = vmul.f32 %v6517, %v5781
    %v6628 = vmul.f32 %v6532, %v5782
    %v6629 = vmul.f32 %v6547, %v5783
    %v6630 = vmul.f32 %v6562, %v5784
    %v6631 = vmul.f32 %v6457, %v6623
    %v6632 = vmul.f32 %v6472, %v6624
    %v6633 = vmul.f32 %v6487, %v6625
    %v6634 = vmul.f32 %v6502, %v6626
    %v6635 = vadd.f32 %v6627, %v6631
    %v6636 = vadd.f32 %v6628, %v6632
    %v6637 = vadd.f32 %v6629, %v6633
    %v6638 = vadd.f32 %v6630, %v6634
    %v6639 = vtanh.pop %v6635
    %v6640 = vtanh.pop %v6636
    %v6641 = vtanh.pop %v6637
    %v6642 = vtanh.pop %v6638
    %v6643 = vmul.f32 %v6577, %v6639
    %v6644 = vmul.f32 %v6592, %v6640
    %v6645 = vmul.f32 %v6607, %v6641
    %v6646 = vmul.f32 %v6622, %v6642
    %v6647 = vadd.f32 %v6114, %v6084
    %v6648 = vadd.f32 %v6116, %v6086
    %v6649 = vadd.f32 %v6119, %v6089
    %v6650 = vadd.f32 %v6121, %v6091
    %v6651 = vadd.f32 %v6124, %v6094
    %v6652 = vadd.f32 %v6126, %v6096
    %v6653 = vadd.f32 %v6129, %v6099
    %v6654 = vadd.f32 %v6131, %v6101
    %v6655 = vxor.u32 %v6647, 2147483648
    %v6656 = vxor.u32 %v6648, 2147483648
    %v6657 = vxor.u32 %v6649, 2147483648
    %v6658 = vxor.u32 %v6650, 2147483648
    %v6659 = vxor.u32 %v6651, 2147483648
    %v6660 = vxor.u32 %v6652, 2147483648
    %v6661 = vxor.u32 %v6653, 2147483648
    %v6662 = vxor.u32 %v6654, 2147483648
    %v6663 = vmul.f32 %v6655, 1.442695
    %v6664 = vpow.pop %v6663
    %v6665 = vmul.f32 %v6656, 1.442695
    %v6666 = vpow.pop %v6665
    %v6667 = vmul.f32 %v6657, 1.442695
    %v6668 = vpow.pop %v6667
    %v6669 = vmul.f32 %v6658, 1.442695
    %v6670 = vpow.pop %v6669
    %v6671 = vmul.f32 %v6659, 1.442695
    %v6672 = vpow.pop %v6671
    %v6673 = vmul.f32 %v6660, 1.442695
    %v6674 = vpow.pop %v6673
    %v6675 = vmul.f32 %v6661, 1.442695
    %v6676 = vpow.pop %v6675
    %v6677 = vmul.f32 %v6662, 1.442695
    %v6678 = vpow.pop %v6677
    %v6679 = vadd.f32 %v6664, 1.0
    %v6680 = vadd.f32 %v6666, 1.0
    %v6681 = vadd.f32 %v6668, 1.0
    %v6682 = vadd.f32 %v6670, 1.0
    %v6683 = vadd.f32 %v6672, 1.0
    %v6684 = vadd.f32 %v6674, 1.0
    %v6685 = vadd.f32 %v6676, 1.0
    %v6686 = vadd.f32 %v6678, 1.0
    %v6687 = vrcp.pop %v6679
    %v6688 = vmul.f32 %v6679, %v6687
    %v6689 = vsub.f32 1.0, %v6688
    %v6690 = vmul.f32 %v6687, %v6689
    %v6691 = vadd.f32 %v6687, %v6690
    %vm6692 = vweird.f32 %v6679
    %vm6693 = vweird.f32 %v6687
    %vm6694 = vmor %vm6692, %vm6693
    %v6695 = vsel %vm6694, %v6687, %v6691
    %v6696 = vand.u32 2147483647, %v6679
    %vm6697 = vcmp.eq.f32.partialorder %v6696, 8.507059e+37
    %v6698 = vand.u32 %v6679, 2147483648
    %v6699 = vor.u32 1.1754944e-38, %v6698
    %v6700 = vsel %vm6697, %v6699, %v6695
    %v6701 = vmul.f32 1.0, %v6700
    %v6702 = vrcp.pop %v6680
    %v6703 = vmul.f32 %v6680, %v6702
    %v6704 = vsub.f32 1.0, %v6703
    %v6705 = vmul.f32 %v6702, %v6704
    %v6706 = vadd.f32 %v6702, %v6705
    %vm6707 = vweird.f32 %v6680
    %vm6708 = vweird.f32 %v6702
    %vm6709 = vmor %vm6707, %vm6708
    %v6710 = vsel %vm6709, %v6702, %v6706
    %v6711 = vand.u32 2147483647, %v6680
    %vm6712 = vcmp.eq.f32.partialorder %v6711, 8.507059e+37
    %v6713 = vand.u32 %v6680, 2147483648
    %v6714 = vor.u32 1.1754944e-38, %v6713
    %v6715 = vsel %vm6712, %v6714, %v6710
    %v6716 = vmul.f32 1.0, %v6715
    %v6717 = vrcp.pop %v6681
    %v6718 = vmul.f32 %v6681, %v6717
    %v6719 = vsub.f32 1.0, %v6718
    %v6720 = vmul.f32 %v6717, %v6719
    %v6721 = vadd.f32 %v6717, %v6720
    %vm6722 = vweird.f32 %v6681
    %vm6723 = vweird.f32 %v6717
    %vm6724 = vmor %vm6722, %vm6723
    %v6725 = vsel %vm6724, %v6717, %v6721
    %v6726 = vand.u32 2147483647, %v6681
    %vm6727 = vcmp.eq.f32.partialorder %v6726, 8.507059e+37
    %v6728 = vand.u32 %v6681, 2147483648
    %v6729 = vor.u32 1.1754944e-38, %v6728
    %v6730 = vsel %vm6727, %v6729, %v6725
    %v6731 = vmul.f32 1.0, %v6730
    %v6732 = vrcp.pop %v6682
    %v6733 = vmul.f32 %v6682, %v6732
    %v6734 = vsub.f32 1.0, %v6733
    %v6735 = vmul.f32 %v6732, %v6734
    %v6736 = vadd.f32 %v6732, %v6735
    %vm6737 = vweird.f32 %v6682
    %vm6738 = vweird.f32 %v6732
    %vm6739 = vmor %vm6737, %vm6738
    %v6740 = vsel %vm6739, %v6732, %v6736
    %v6741 = vand.u32 2147483647, %v6682
    %vm6742 = vcmp.eq.f32.partialorder %v6741, 8.507059e+37
    %v6743 = vand.u32 %v6682, 2147483648
    %v6744 = vor.u32 1.1754944e-38, %v6743
    %v6745 = vsel %vm6742, %v6744, %v6740
    %v6746 = vmul.f32 1.0, %v6745
    %v6747 = vrcp.pop %v6683
    %v6748 = vmul.f32 %v6683, %v6747
    %v6749 = vsub.f32 1.0, %v6748
    %v6750 = vmul.f32 %v6747, %v6749
    %v6751 = vadd.f32 %v6747, %v6750
    %vm6752 = vweird.f32 %v6683
    %vm6753 = vweird.f32 %v6747
    %vm6754 = vmor %vm6752, %vm6753
    %v6755 = vsel %vm6754, %v6747, %v6751
    %v6756 = vand.u32 2147483647, %v6683
    %vm6757 = vcmp.eq.f32.partialorder %v6756, 8.507059e+37
    %v6758 = vand.u32 %v6683, 2147483648
    %v6759 = vor.u32 1.1754944e-38, %v6758
    %v6760 = vsel %vm6757, %v6759, %v6755
    %v6761 = vmul.f32 1.0, %v6760
    %v6762 = vrcp.pop %v6684
    %v6763 = vmul.f32 %v6684, %v6762
    %v6764 = vsub.f32 1.0, %v6763
    %v6765 = vmul.f32 %v6762, %v6764
    %v6766 = vadd.f32 %v6762, %v6765
    %vm6767 = vweird.f32 %v6684
    %vm6768 = vweird.f32 %v6762
    %vm6769 = vmor %vm6767, %vm6768
    %v6770 = vsel %vm6769, %v6762, %v6766
    %v6771 = vand.u32 2147483647, %v6684
    %vm6772 = vcmp.eq.f32.partialorder %v6771, 8.507059e+37
    %v6773 = vand.u32 %v6684, 2147483648
    %v6774 = vor.u32 1.1754944e-38, %v6773
    %v6775 = vsel %vm6772, %v6774, %v6770
    %v6776 = vmul.f32 1.0, %v6775
    %v6777 = vrcp.pop %v6685
    %v6778 = vmul.f32 %v6685, %v6777
    %v6779 = vsub.f32 1.0, %v6778
    %v6780 = vmul.f32 %v6777, %v6779
    %v6781 = vadd.f32 %v6777, %v6780
    %vm6782 = vweird.f32 %v6685
    %vm6783 = vweird.f32 %v6777
    %vm6784 = vmor %vm6782, %vm6783
    %v6785 = vsel %vm6784, %v6777, %v6781
    %v6786 = vand.u32 2147483647, %v6685
    %vm6787 = vcmp.eq.f32.partialorder %v6786, 8.507059e+37
    %v6788 = vand.u32 %v6685, 2147483648
    %v6789 = vor.u32 1.1754944e-38, %v6788
    %v6790 = vsel %vm6787, %v6789, %v6785
    %v6791 = vmul.f32 1.0, %v6790
    %v6792 = vrcp.pop %v6686
    %v6793 = vmul.f32 %v6686, %v6792
    %v6794 = vsub.f32 1.0, %v6793
    %v6795 = vmul.f32 %v6792, %v6794
    %v6796 = vadd.f32 %v6792, %v6795
    %vm6797 = vweird.f32 %v6686
    %vm6798 = vweird.f32 %v6792
    %vm6799 = vmor %vm6797, %vm6798
    %v6800 = vsel %vm6799, %v6792, %v6796
    %v6801 = vand.u32 2147483647, %v6686
    %vm6802 = vcmp.eq.f32.partialorder %v6801, 8.507059e+37
    %v6803 = vand.u32 %v6686, 2147483648
    %v6804 = vor.u32 1.1754944e-38, %v6803
    %v6805 = vsel %vm6802, %v6804, %v6800
    %v6806 = vmul.f32 1.0, %v6805
    %v6807 = vmul.f32 %v6701, %v6104
    %v6808 = vmul.f32 %v6716, %v6106
    %v6809 = vmul.f32 %v6731, %v6109
    %v6810 = vmul.f32 %v6746, %v6111
    %v6811 = vadd.f32 %v6134, %v6807
    %v6812 = vadd.f32 %v6136, %v6808
    %v6813 = vadd.f32 %v6139, %v6809
    %v6814 = vadd.f32 %v6141, %v6810
    %v6815 = vtanh.pop %v6811
    %v6816 = vtanh.pop %v6812
    %v6817 = vtanh.pop %v6813
    %v6818 = vtanh.pop %v6814
    %v6819 = vsub.f32 1.0, %v6761
    %v6820 = vsub.f32 1.0, %v6776
    %v6821 = vsub.f32 1.0, %v6791
    %v6822 = vsub.f32 1.0, %v6806
    %v6823 = vmul.f32 %v6819, %v6815
    %v6824 = vmul.f32 %v6820, %v6816
    %v6825 = vmul.f32 %v6821, %v6817
    %v6826 = vmul.f32 %v6822, %v6818
    %v6827 = vmul.f32 %v6761, %v5977
    %v6828 = vmul.f32 %v6776, %v5978
    %v6829 = vmul.f32 %v6791, %v5979
    %v6830 = vmul.f32 %v6806, %v5980
    %v6831 = vadd.f32 %v6823, %v6827
    %v6832 = vadd.f32 %v6824, %v6828
    %v6833 = vadd.f32 %v6825, %v6829
    %v6834 = vadd.f32 %v6826, %v6830
    %s6835 = scalar_lea.vmem [#allocation3], 256
    %v6836 = vld [vmem:[%s6835] sm:$0xff]
    %v6837 = vld [vmem:[%s6835 + $0x8] sm:$0xff]
    %v6838 = vld [vmem:[%s6835 + $0x10] sm:$0xff]
    %v6839 = vld [vmem:[%s6835 + $0x18] sm:$0xff]
    %v6840 = vpack.c.bf16 %v6644, %v6643
    %v6841 = vpack.c.bf16 %v6646, %v6645
    %v6842 = vpack.c.bf16 %v6392, %v6391
    %v6843 = vpack.c.bf16 %v6394, %v6393
    %v6844 = vpack.c.bf16 %v6832, %v6831
    %v6845 = vpack.c.bf16 %v6834, %v6833
    %v6846 = vpack.c.bf16 %v6837, %v6836
    %v6847 = vpack.c.bf16 %v6839, %v6838
    %6848 = vmatpush.bf16.msra.mxu0 %v6847
    %6849 = vmatpush.bf16.msra.mxu0 %v6846
    %6850 = vmatpush.bf16.msra.mxu0 %v6845
    %6851 = vmatpush.bf16.msra.mxu0 %v6844
    %6852 = vmatpush.bf16.msra.mxu0 %v6843
    %6853 = vmatpush.bf16.msra.mxu0 %v6842
    %6854 = vmatpush.bf16.msra.mxu0 %v6841
    %6855 = vmatpush.bf16.msra.mxu0 %v6840
    %6856 = vmatmul.bf16.gmra.mxu0 %v230
    %v6857 = vpop.f32.mrf.mxu0
    %v6858 = vpop.f32.mrf.mxu0
    %6859 = vmatmul.bf16.gmra.mxu0 %v231
    %v6860 = vpop.f32.mrf.mxu0
    %v6861 = vpop.f32.mrf.mxu0
    %6862 = vmatmul.bf16.gmra.mxu0 %v232
    %v6863 = vpop.f32.mrf.mxu0
    %v6864 = vpop.f32.mrf.mxu0
    %6865 = vmatmul.bf16.gmra.mxu0 %v233
    %v6866 = vpop.f32.mrf.mxu0
    %v6867 = vpop.f32.mrf.mxu0
    %6868 = vmatmul.bf16.gmra.mxu0 %v234
    %v6869 = vpop.f32.mrf.mxu0
    %v6870 = vpop.f32.mrf.mxu0
    %6871 = vmatmul.bf16.gmra.mxu0 %v235
    %v6872 = vpop.f32.mrf.mxu0
    %v6873 = vpop.f32.mrf.mxu0
    %6874 = vmatmul.bf16.gmra.mxu0 %v236
    %v6875 = vpop.f32.mrf.mxu0
    %v6876 = vpop.f32.mrf.mxu0
    %6877 = vmatmul.bf16.gmra.mxu0 %v237
    %v6878 = vpop.f32.mrf.mxu0
    %v6879 = vpop.f32.mrf.mxu0
    %6880 = vmatmul.bf16.gmra.mxu0 %v238
    %v6881 = vpop.f32.mrf.mxu0
    %v6882 = vadd.f32 0.0, %v6881
    %v6883 = vpop.f32.mrf.mxu0
    %v6884 = vadd.f32 0.0, %v6883
    %6885 = vmatmul.bf16.gmra.mxu0 %v239
    %v6886 = vpop.f32.mrf.mxu0
    %v6887 = vadd.f32 0.0, %v6886
    %v6888 = vpop.f32.mrf.mxu0
    %v6889 = vadd.f32 0.0, %v6888
    %6890 = vmatmul.bf16.gmra.mxu0 %v240
    %v6891 = vpop.f32.mrf.mxu0
    %v6892 = vadd.f32 0.0, %v6891
    %v6893 = vpop.f32.mrf.mxu0
    %v6894 = vadd.f32 0.0, %v6893
    %6895 = vmatmul.bf16.gmra.mxu0 %v241
    %v6896 = vpop.f32.mrf.mxu0
    %v6897 = vadd.f32 0.0, %v6896
    %v6898 = vpop.f32.mrf.mxu0
    %v6899 = vadd.f32 0.0, %v6898
    %6900 = vmatmul.bf16.gmra.mxu0 %v242
    %v6901 = vpop.f32.mrf.mxu0
    %v6902 = vadd.f32 0.0, %v6901
    %v6903 = vpop.f32.mrf.mxu0
    %v6904 = vadd.f32 0.0, %v6903
    %6905 = vmatmul.bf16.gmra.mxu0 %v243
    %v6906 = vpop.f32.mrf.mxu0
    %v6907 = vadd.f32 0.0, %v6906
    %v6908 = vpop.f32.mrf.mxu0
    %v6909 = vadd.f32 0.0, %v6908
    %6910 = vmatmul.bf16.gmra.mxu0 %v244
    %v6911 = vpop.f32.mrf.mxu0
    %v6912 = vadd.f32 0.0, %v6911
    %v6913 = vpop.f32.mrf.mxu0
    %v6914 = vadd.f32 0.0, %v6913
    %6915 = vmatmul.bf16.gmra.mxu0 %v245
    %v6916 = vpop.f32.mrf.mxu0
    %v6917 = vadd.f32 0.0, %v6916
    %v6918 = vpop.f32.mrf.mxu0
    %v6919 = vadd.f32 0.0, %v6918
    %6920 = vmatmul.bf16.gmra.mxu0 %v246
    %v6921 = vpop.f32.mrf.mxu0
    %v6922 = vpop.f32.mrf.mxu0
    %6923 = vmatmul.bf16.gmra.mxu0 %v247
    %v6924 = vpop.f32.mrf.mxu0
    %v6925 = vpop.f32.mrf.mxu0
    %6926 = vmatmul.bf16.gmra.mxu0 %v248
    %v6927 = vpop.f32.mrf.mxu0
    %v6928 = vpop.f32.mrf.mxu0
    %6929 = vmatmul.bf16.gmra.mxu0 %v249
    %v6930 = vpop.f32.mrf.mxu0
    %v6931 = vpop.f32.mrf.mxu0
    %6932 = vmatmul.bf16.gmra.mxu0 %v250
    %v6933 = vpop.f32.mrf.mxu0
    %v6934 = vpop.f32.mrf.mxu0
    %6935 = vmatmul.bf16.gmra.mxu0 %v251
    %v6936 = vpop.f32.mrf.mxu0
    %v6937 = vpop.f32.mrf.mxu0
    %6938 = vmatmul.bf16.gmra.mxu0 %v252
    %v6939 = vpop.f32.mrf.mxu0
    %v6940 = vpop.f32.mrf.mxu0
    %6941 = vmatmul.bf16.gmra.mxu0 %v253
    %v6942 = vpop.f32.mrf.mxu0
    %v6943 = vpop.f32.mrf.mxu0
    %6944 = vmatmul.bf16.gmra.mxu0 %v254
    %v6945 = vpop.f32.mrf.mxu0
    %v6946 = vpop.f32.mrf.mxu0
    %6947 = vmatmul.bf16.gmra.mxu0 %v255
    %v6948 = vpop.f32.mrf.mxu0
    %v6949 = vpop.f32.mrf.mxu0
    %6950 = vmatmul.bf16.gmra.mxu0 %v256
    %v6951 = vpop.f32.mrf.mxu0
    %v6952 = vpop.f32.mrf.mxu0
    %6953 = vmatmul.bf16.gmra.mxu0 %v257
    %v6954 = vpop.f32.mrf.mxu0
    %v6955 = vpop.f32.mrf.mxu0
    %6956 = vdwg.mxu0
    %v6957 = vxor.u32 %v6882, 2147483648
    %v6958 = vxor.u32 %v6884, 2147483648
    %v6959 = vxor.u32 %v6887, 2147483648
    %v6960 = vxor.u32 %v6889, 2147483648
    %v6961 = vxor.u32 %v6892, 2147483648
    %v6962 = vxor.u32 %v6894, 2147483648
    %v6963 = vxor.u32 %v6897, 2147483648
    %v6964 = vxor.u32 %v6899, 2147483648
    %v6965 = vxor.u32 %v6902, 2147483648
    %v6966 = vxor.u32 %v6904, 2147483648
    %v6967 = vxor.u32 %v6907, 2147483648
    %v6968 = vxor.u32 %v6909, 2147483648
    %v6969 = vmul.f32 %v6957, 1.442695
    %v6970 = vpow.pop %v6969
    %v6971 = vmul.f32 %v6958, 1.442695
    %v6972 = vpow.pop %v6971
    %v6973 = vmul.f32 %v6959, 1.442695
    %v6974 = vpow.pop %v6973
    %v6975 = vmul.f32 %v6960, 1.442695
    %v6976 = vpow.pop %v6975
    %v6977 = vmul.f32 %v6961, 1.442695
    %v6978 = vpow.pop %v6977
    %v6979 = vmul.f32 %v6962, 1.442695
    %v6980 = vpow.pop %v6979
    %v6981 = vmul.f32 %v6963, 1.442695
    %v6982 = vpow.pop %v6981
    %v6983 = vmul.f32 %v6964, 1.442695
    %v6984 = vpow.pop %v6983
    %v6985 = vmul.f32 %v6965, 1.442695
    %v6986 = vpow.pop %v6985
    %v6987 = vmul.f32 %v6966, 1.442695
    %v6988 = vpow.pop %v6987
    %v6989 = vmul.f32 %v6967, 1.442695
    %v6990 = vpow.pop %v6989
    %v6991 = vmul.f32 %v6968, 1.442695
    %v6992 = vpow.pop %v6991
    %v6993 = vadd.f32 %v6970, 1.0
    %v6994 = vadd.f32 %v6972, 1.0
    %v6995 = vadd.f32 %v6974, 1.0
    %v6996 = vadd.f32 %v6976, 1.0
    %v6997 = vadd.f32 %v6978, 1.0
    %v6998 = vadd.f32 %v6980, 1.0
    %v6999 = vadd.f32 %v6982, 1.0
    %v7000 = vadd.f32 %v6984, 1.0
    %v7001 = vadd.f32 %v6986, 1.0
    %v7002 = vadd.f32 %v6988, 1.0
    %v7003 = vadd.f32 %v6990, 1.0
    %v7004 = vadd.f32 %v6992, 1.0
    %v7005 = vrcp.pop %v6993
    %v7006 = vmul.f32 %v6993, %v7005
    %v7007 = vsub.f32 1.0, %v7006
    %v7008 = vmul.f32 %v7005, %v7007
    %v7009 = vadd.f32 %v7005, %v7008
    %vm7010 = vweird.f32 %v6993
    %vm7011 = vweird.f32 %v7005
    %vm7012 = vmor %vm7010, %vm7011
    %v7013 = vsel %vm7012, %v7005, %v7009
    %v7014 = vand.u32 2147483647, %v6993
    %vm7015 = vcmp.eq.f32.partialorder %v7014, 8.507059e+37
    %v7016 = vand.u32 %v6993, 2147483648
    %v7017 = vor.u32 1.1754944e-38, %v7016
    %v7018 = vsel %vm7015, %v7017, %v7013
    %v7019 = vmul.f32 1.0, %v7018
    %v7020 = vrcp.pop %v6994
    %v7021 = vmul.f32 %v6994, %v7020
    %v7022 = vsub.f32 1.0, %v7021
    %v7023 = vmul.f32 %v7020, %v7022
    %v7024 = vadd.f32 %v7020, %v7023
    %vm7025 = vweird.f32 %v6994
    %vm7026 = vweird.f32 %v7020
    %vm7027 = vmor %vm7025, %vm7026
    %v7028 = vsel %vm7027, %v7020, %v7024
    %v7029 = vand.u32 2147483647, %v6994
    %vm7030 = vcmp.eq.f32.partialorder %v7029, 8.507059e+37
    %v7031 = vand.u32 %v6994, 2147483648
    %v7032 = vor.u32 1.1754944e-38, %v7031
    %v7033 = vsel %vm7030, %v7032, %v7028
    %v7034 = vmul.f32 1.0, %v7033
    %v7035 = vrcp.pop %v6995
    %v7036 = vmul.f32 %v6995, %v7035
    %v7037 = vsub.f32 1.0, %v7036
    %v7038 = vmul.f32 %v7035, %v7037
    %v7039 = vadd.f32 %v7035, %v7038
    %vm7040 = vweird.f32 %v6995
    %vm7041 = vweird.f32 %v7035
    %vm7042 = vmor %vm7040, %vm7041
    %v7043 = vsel %vm7042, %v7035, %v7039
    %v7044 = vand.u32 2147483647, %v6995
    %vm7045 = vcmp.eq.f32.partialorder %v7044, 8.507059e+37
    %v7046 = vand.u32 %v6995, 2147483648
    %v7047 = vor.u32 1.1754944e-38, %v7046
    %v7048 = vsel %vm7045, %v7047, %v7043
    %v7049 = vmul.f32 1.0, %v7048
    %v7050 = vrcp.pop %v6996
    %v7051 = vmul.f32 %v6996, %v7050
    %v7052 = vsub.f32 1.0, %v7051
    %v7053 = vmul.f32 %v7050, %v7052
    %v7054 = vadd.f32 %v7050, %v7053
    %vm7055 = vweird.f32 %v6996
    %vm7056 = vweird.f32 %v7050
    %vm7057 = vmor %vm7055, %vm7056
    %v7058 = vsel %vm7057, %v7050, %v7054
    %v7059 = vand.u32 2147483647, %v6996
    %vm7060 = vcmp.eq.f32.partialorder %v7059, 8.507059e+37
    %v7061 = vand.u32 %v6996, 2147483648
    %v7062 = vor.u32 1.1754944e-38, %v7061
    %v7063 = vsel %vm7060, %v7062, %v7058
    %v7064 = vmul.f32 1.0, %v7063
    %v7065 = vrcp.pop %v6997
    %v7066 = vmul.f32 %v6997, %v7065
    %v7067 = vsub.f32 1.0, %v7066
    %v7068 = vmul.f32 %v7065, %v7067
    %v7069 = vadd.f32 %v7065, %v7068
    %vm7070 = vweird.f32 %v6997
    %vm7071 = vweird.f32 %v7065
    %vm7072 = vmor %vm7070, %vm7071
    %v7073 = vsel %vm7072, %v7065, %v7069
    %v7074 = vand.u32 2147483647, %v6997
    %vm7075 = vcmp.eq.f32.partialorder %v7074, 8.507059e+37
    %v7076 = vand.u32 %v6997, 2147483648
    %v7077 = vor.u32 1.1754944e-38, %v7076
    %v7078 = vsel %vm7075, %v7077, %v7073
    %v7079 = vmul.f32 1.0, %v7078
    %v7080 = vrcp.pop %v6998
    %v7081 = vmul.f32 %v6998, %v7080
    %v7082 = vsub.f32 1.0, %v7081
    %v7083 = vmul.f32 %v7080, %v7082
    %v7084 = vadd.f32 %v7080, %v7083
    %vm7085 = vweird.f32 %v6998
    %vm7086 = vweird.f32 %v7080
    %vm7087 = vmor %vm7085, %vm7086
    %v7088 = vsel %vm7087, %v7080, %v7084
    %v7089 = vand.u32 2147483647, %v6998
    %vm7090 = vcmp.eq.f32.partialorder %v7089, 8.507059e+37
    %v7091 = vand.u32 %v6998, 2147483648
    %v7092 = vor.u32 1.1754944e-38, %v7091
    %v7093 = vsel %vm7090, %v7092, %v7088
    %v7094 = vmul.f32 1.0, %v7093
    %v7095 = vrcp.pop %v6999
    %v7096 = vmul.f32 %v6999, %v7095
    %v7097 = vsub.f32 1.0, %v7096
    %v7098 = vmul.f32 %v7095, %v7097
    %v7099 = vadd.f32 %v7095, %v7098
    %vm7100 = vweird.f32 %v6999
    %vm7101 = vweird.f32 %v7095
    %vm7102 = vmor %vm7100, %vm7101
    %v7103 = vsel %vm7102, %v7095, %v7099
    %v7104 = vand.u32 2147483647, %v6999
    %vm7105 = vcmp.eq.f32.partialorder %v7104, 8.507059e+37
    %v7106 = vand.u32 %v6999, 2147483648
    %v7107 = vor.u32 1.1754944e-38, %v7106
    %v7108 = vsel %vm7105, %v7107, %v7103
    %v7109 = vmul.f32 1.0, %v7108
    %v7110 = vrcp.pop %v7000
    %v7111 = vmul.f32 %v7000, %v7110
    %v7112 = vsub.f32 1.0, %v7111
    %v7113 = vmul.f32 %v7110, %v7112
    %v7114 = vadd.f32 %v7110, %v7113
    %vm7115 = vweird.f32 %v7000
    %vm7116 = vweird.f32 %v7110
    %vm7117 = vmor %vm7115, %vm7116
    %v7118 = vsel %vm7117, %v7110, %v7114
    %v7119 = vand.u32 2147483647, %v7000
    %vm7120 = vcmp.eq.f32.partialorder %v7119, 8.507059e+37
    %v7121 = vand.u32 %v7000, 2147483648
    %v7122 = vor.u32 1.1754944e-38, %v7121
    %v7123 = vsel %vm7120, %v7122, %v7118
    %v7124 = vmul.f32 1.0, %v7123
    %v7125 = vrcp.pop %v7001
    %v7126 = vmul.f32 %v7001, %v7125
    %v7127 = vsub.f32 1.0, %v7126
    %v7128 = vmul.f32 %v7125, %v7127
    %v7129 = vadd.f32 %v7125, %v7128
    %vm7130 = vweird.f32 %v7001
    %vm7131 = vweird.f32 %v7125
    %vm7132 = vmor %vm7130, %vm7131
    %v7133 = vsel %vm7132, %v7125, %v7129
    %v7134 = vand.u32 2147483647, %v7001
    %vm7135 = vcmp.eq.f32.partialorder %v7134, 8.507059e+37
    %v7136 = vand.u32 %v7001, 2147483648
    %v7137 = vor.u32 1.1754944e-38, %v7136
    %v7138 = vsel %vm7135, %v7137, %v7133
    %v7139 = vmul.f32 1.0, %v7138
    %v7140 = vrcp.pop %v7002
    %v7141 = vmul.f32 %v7002, %v7140
    %v7142 = vsub.f32 1.0, %v7141
    %v7143 = vmul.f32 %v7140, %v7142
    %v7144 = vadd.f32 %v7140, %v7143
    %vm7145 = vweird.f32 %v7002
    %vm7146 = vweird.f32 %v7140
    %vm7147 = vmor %vm7145, %vm7146
    %v7148 = vsel %vm7147, %v7140, %v7144
    %v7149 = vand.u32 2147483647, %v7002
    %vm7150 = vcmp.eq.f32.partialorder %v7149, 8.507059e+37
    %v7151 = vand.u32 %v7002, 2147483648
    %v7152 = vor.u32 1.1754944e-38, %v7151
    %v7153 = vsel %vm7150, %v7152, %v7148
    %v7154 = vmul.f32 1.0, %v7153
    %v7155 = vrcp.pop %v7003
    %v7156 = vmul.f32 %v7003, %v7155
    %v7157 = vsub.f32 1.0, %v7156
    %v7158 = vmul.f32 %v7155, %v7157
    %v7159 = vadd.f32 %v7155, %v7158
    %vm7160 = vweird.f32 %v7003
    %vm7161 = vweird.f32 %v7155
    %vm7162 = vmor %vm7160, %vm7161
    %v7163 = vsel %vm7162, %v7155, %v7159
    %v7164 = vand.u32 2147483647, %v7003
    %vm7165 = vcmp.eq.f32.partialorder %v7164, 8.507059e+37
    %v7166 = vand.u32 %v7003, 2147483648
    %v7167 = vor.u32 1.1754944e-38, %v7166
    %v7168 = vsel %vm7165, %v7167, %v7163
    %v7169 = vmul.f32 1.0, %v7168
    %v7170 = vrcp.pop %v7004
    %v7171 = vmul.f32 %v7004, %v7170
    %v7172 = vsub.f32 1.0, %v7171
    %v7173 = vmul.f32 %v7170, %v7172
    %v7174 = vadd.f32 %v7170, %v7173
    %vm7175 = vweird.f32 %v7004
    %vm7176 = vweird.f32 %v7170
    %vm7177 = vmor %vm7175, %vm7176
    %v7178 = vsel %vm7177, %v7170, %v7174
    %v7179 = vand.u32 2147483647, %v7004
    %vm7180 = vcmp.eq.f32.partialorder %v7179, 8.507059e+37
    %v7181 = vand.u32 %v7004, 2147483648
    %v7182 = vor.u32 1.1754944e-38, %v7181
    %v7183 = vsel %vm7180, %v7182, %v7178
    %v7184 = vmul.f32 1.0, %v7183
    %v7185 = vtanh.pop %v6912
    %v7186 = vtanh.pop %v6914
    %v7187 = vtanh.pop %v6917
    %v7188 = vtanh.pop %v6919
    %v7189 = vmul.f32 %v7079, %v6383
    %v7190 = vmul.f32 %v7094, %v6384
    %v7191 = vmul.f32 %v7109, %v6385
    %v7192 = vmul.f32 %v7124, %v6386
    %v7193 = vmul.f32 %v7019, %v7185
    %v7194 = vmul.f32 %v7034, %v7186
    %v7195 = vmul.f32 %v7049, %v7187
    %v7196 = vmul.f32 %v7064, %v7188
    %v7197 = vadd.f32 %v7189, %v7193
    %v7198 = vadd.f32 %v7190, %v7194
    %v7199 = vadd.f32 %v7191, %v7195
    %v7200 = vadd.f32 %v7192, %v7196
    %v7201 = vtanh.pop %v7197
    %v7202 = vtanh.pop %v7198
    %v7203 = vtanh.pop %v7199
    %v7204 = vtanh.pop %v7200
    %v7205 = vmul.f32 %v7139, %v7201
    %v7206 = vmul.f32 %v7154, %v7202
    %v7207 = vmul.f32 %v7169, %v7203
    %v7208 = vmul.f32 %v7184, %v7204
    %v7209 = vld [vmem:[%s2] sm:$0xff]
    %v7210 = vld [vmem:[%s2 + $0x8] sm:$0xff]
    %v7211 = vld [vmem:[%s2 + $0x10] sm:$0xff]
    %v7212 = vld [vmem:[%s2 + $0x18] sm:$0xff]
    %7214 = vset.pattern.permute.xlu0 0
    %7215 = vperm.xlu0 %7214, %v7209
    %v7216 = vpop.permute.xlu0 %7215
    %7219 = vset.pattern.permute.xlu0 0
    %7220 = vperm.xlu0 %7219, %v7210
    %v7221 = vpop.permute.xlu0 %7220
    %7224 = vset.pattern.permute.xlu0 0
    %7225 = vperm.xlu0 %7224, %v7211
    %v7226 = vpop.permute.xlu0 %7225
    %7229 = vset.pattern.permute.xlu0 0
    %7230 = vperm.xlu0 %7229, %v7212
    %v7231 = vpop.permute.xlu0 %7230
    %v7233 = vmul.f32 %v7205, %v7216
    %v7234 = vmul.f32 %v7206, %v7221
    %v7235 = vmul.f32 %v7207, %v7226
    %v7236 = vmul.f32 %v7208, %v7231
    %v7237 = vld [vmem:[%s3] sm:$0xff]
    %v7238 = vld [vmem:[%s3 + $0x8] sm:$0xff]
    %v7239 = vld [vmem:[%s3 + $0x10] sm:$0xff]
    %v7240 = vld [vmem:[%s3 + $0x18] sm:$0xff]
    %7242 = vset.pattern.permute.xlu0 0
    %7243 = vperm.xlu0 %7242, %v7237
    %v7244 = vpop.permute.xlu0 %7243
    %7247 = vset.pattern.permute.xlu0 0
    %7248 = vperm.xlu0 %7247, %v7238
    %v7249 = vpop.permute.xlu0 %7248
    %7252 = vset.pattern.permute.xlu0 0
    %7253 = vperm.xlu0 %7252, %v7239
    %v7254 = vpop.permute.xlu0 %7253
    %7257 = vset.pattern.permute.xlu0 0
    %7258 = vperm.xlu0 %7257, %v7240
    %v7259 = vpop.permute.xlu0 %7258
    %v7261 = vmul.f32 %v6831, %v7244
    %v7262 = vmul.f32 %v6832, %v7249
    %v7263 = vmul.f32 %v6833, %v7254
    %v7264 = vmul.f32 %v6834, %v7259
    %v7265 = vadd.f32 %v7233, %v7261
    %v7266 = vadd.f32 %v7234, %v7262
    %v7267 = vadd.f32 %v7235, %v7263
    %v7268 = vadd.f32 %v7236, %v7264
    %v7269 = vadd.f32 %v7265, %v7266
    %v7270 = vadd.f32 %v7269, %v7267
    %v7271 = vadd.f32 %v7270, %v7268
    %v7272 = vrot.slane %v7271, 4
    %v7273 = vadd.f32 %v7271, %v7272
    %v7274 = vrot.slane %v7273, 2
    %v7275 = vadd.f32 %v7273, %v7274
    %v7276 = vrot.slane %v7275, 1
    %v7277 = vadd.f32 %v7275, %v7276
    %v7278 = vld [vmem:[#allocation2] sm:$0x1]
    %7280 = vset.pattern.permute.xlu0 0
    %7281 = vperm.xlu0 %7280, %v7278
    %v7282 = vpop.permute.xlu0 %7281
    %v7284 = vperm.slane %v7282, 0
    %v7285 = vadd.f32 %v7277, %v7284
    %v7286 = vxor.u32 %v7285, 2147483648
    %v7287 = vmul.f32 %v7286, 1.442695
    %v7288 = vpow.pop %v7287
    %v7289 = vadd.f32 %v7288, 1.0
    %v7290 = vrcp.pop %v7289
    %v7291 = vmul.f32 %v7289, %v7290
    %v7292 = vsub.f32 1.0, %v7291
    %v7293 = vmul.f32 %v7290, %v7292
    %v7294 = vadd.f32 %v7290, %v7293
    %vm7295 = vweird.f32 %v7289
    %vm7296 = vweird.f32 %v7290
    %vm7297 = vmor %vm7295, %vm7296
    %v7298 = vsel %vm7297, %v7290, %v7294
    %v7299 = vand.u32 2147483647, %v7289
    %vm7300 = vcmp.eq.f32.partialorder %v7299, 8.507059e+37
    %v7301 = vand.u32 %v7289, 2147483648
    %v7302 = vor.u32 1.1754944e-38, %v7301
    %v7303 = vsel %vm7300, %v7302, %v7298
    %v7304 = vmul.f32 1.0, %v7303
    %7305 = vst [vmem:[#allocation8] sm:$0x1] %v7304
    // Predicated region
    $region30: #{tpu_custom_call.1} parent=1 // pred_check
      _
    $region31: #{tpu_custom_call.1} parent=1 // pred_check_branch
      %7307 = sbr.rel (0) target = $region33
    $region32: #{tpu_custom_call.1} parent=1 // pred_region
      %7309 = vsyncadd [#allocation5], 0
      %s7311 = sshll.u32 [#allocation8], 4
      %s7312 = int_to_ptr.vmem [resolvable:$true] %s7311
      %s7313 = sshll.u32 %s5, 4
      %s7314 = int_to_ptr.hbm [resolvable:$true] %s7313
      %7316 = dma.vmem_to_hbm [thread:$0]  %s7312, 16, %s7314, [#allocation5]
    $region33: #{tpu_custom_call.1} parent=1 // pred_fallthru
      _
    // Predicated region
    $region34: #{tpu_custom_call.1} parent=1 // pred_check
      _
    $region35: #{tpu_custom_call.1} parent=1 // pred_check_branch
      %7318 = sbr.rel (0) target = $region37
    $region36: #{tpu_custom_call.1} parent=1 // pred_region
      %7320 = dma.done [#allocation5], 16
    $region37: #{tpu_custom_call.1} parent=1 // pred_fallthru
      _
    %7321 = vsyncpa [#allocation4], 1
    %7322 = vsyncpa [#allocation7], 1
    %7323 = vsyncpa [#allocation5], 1

</llo_original>
